<compile_context>
chip_gen: v5e
topology: v5e:2x2
jax: 0.10.0
libtpu: 0.0.40
codegen_flags: <defaults>
</compile_context>

<pallas_src>
import math
import numpy as np
import jax
import jax.numpy as jnp
from jax.experimental import pallas as pl
from jax.experimental.pallas import tpu as pltpu

L_IN = 245          # fixed by LayerNorm(245) and the conv arithmetic
N_FV = 15           # fixed by BatchNorm1d(15)
N_OUT = 32          # channels of the final Conv1d(16 -> 32)
LN_EPS = 1e-5
BN_EPS = 1e-5
PW_EPS = 1e-6       # F.pairwise_distance default eps
POOL_K = 3          # every MaxPool1d has kernel_size 3
SPT = 8             # samples per grid step (multiple of 8); tm = 15 * SPT = 120


# ----------------------------------------------------------------------------
# Parameter-build helpers: fold Conv1d (+ MaxPool1d) into dense matmuls.
# Activations are channel-major flattened: flat index = ci * L + pos.
# ----------------------------------------------------------------------------
def _round_up(n, m):
    return ((n + m - 1) // m) * m


def _pad2(a, rows, cols):
    return np.pad(a, ((0, rows - a.shape[0]), (0, cols - a.shape[1])))


def _pooled_conv_blocks(w, b, l_in, conv_stride, pool_k, pool_stride):
    """Per-pool-tap dense matrices for Conv1d followed by MaxPool1d.

    pooled[:, co*l_pool+lo] = max_k (h @ Ws[k])[:, co*l_pool+lo] + b[co]
    Returns Ws[pool_k, cin*l_in, cout*l_pool], the tap-independent conv bias
    row (1, cout*l_pool) and l_pool.
    """
    cout, cin, ksz = w.shape
    l_conv = (l_in - ksz) // conv_stride + 1
    l_pool = (l_conv - pool_k) // pool_stride + 1
    Ws = np.zeros((pool_k, cin * l_in, cout * l_pool), np.float32)
    for kk in range(pool_k):
        for co in range(cout):
            for lo in range(l_pool):
                p = pool_stride * lo + kk          # conv output position
                col = co * l_pool + lo
                for ci in range(cin):
                    for t in range(ksz):
                        Ws[kk, ci * l_in + conv_stride * p + t, col] += w[co, ci, t]
    bias = np.repeat(np.asarray(b, np.float32), l_pool)[None, :]
    return Ws, bias, l_pool


def _conv_dense(w, b, l_in, stride):
    """Plain Conv1d (no pool after) as a dense (cin*l_in, cout*l_out) matrix."""
    cout, cin, ksz = w.shape
    l_out = (l_in - ksz) // stride + 1
    W = np.zeros((cin * l_in, cout * l_out), np.float32)
    for co in range(cout):
        for p in range(l_out):
            for ci in range(cin):
                for t in range(ksz):
                    W[ci * l_in + stride * p + t, co * l_out + p] += w[co, ci, t]
    B = np.repeat(np.asarray(b, np.float32), l_out)[None, :]
    return W, B, l_out


# ----------------------------------------------------------------------------
# Pallas kernel: one grid step = all 3 triplet slices of SPT whole samples.
# ----------------------------------------------------------------------------
def _cnn_triplet_kernel(
    x1_ref, x2_ref, x3_ref,              # (tm, 245) f32 : pen1 / refer / pen2 rows
    bns_ref, bnb_ref,                    # (tm, 1)   f32 : per-fv BatchNorm affine
    wp1_ref, bp1_ref,                    # conv1+pool1: (245, 3*384) bf16 / (1, 3*384) f32
    wp2_ref, bp2_ref,                    # conv2+pool2: (384, 3*256) bf16 / (1, 256) f32
    wp3_ref, bp3_ref,                    # conv3+pool3: (256, 3*128) bf16 / (1, 128) f32
    w4_ref, b4_ref,                      # conv4:       (128, 128) f32 / (1, 128) f32
    a5_ref, s5_ref, b5_ref,              # final conv:  (128, 128) / (1, 128) / (1, 128) f32
    lsel_ref, linb_ref,                  # Linear(15->1): (SPT, tm) select / (1, 1)
    y_ref,                               # output block (SPT, 1) f32
):
    tm = x1_ref.shape[0]

    # Triplet concat (VMEM-internal; tm is a multiple of 8 -> aligned copy).
    x = jnp.concatenate([x1_ref[...], x2_ref[...], x3_ref[...]], axis=0)   # (3tm, 245)

    # One pass: sum(x^2) feeds both the energy term and the LayerNorm variance.
    sumsq = jnp.sum(x * x, axis=-1, keepdims=True)                          # (3tm, 1)
    mu = jnp.sum(x, axis=-1, keepdims=True) * (1.0 / L_IN)
    var = jnp.maximum(sumsq * (1.0 / L_IN) - mu * mu, 0.0)
    xn = (x - mu) * jax.lax.rsqrt(var + LN_EPS)    # LN affine folded into wp1/bp1

    # energy -> BatchNorm1d(15) eval-mode affine (same per-fv pattern each slice).
    bns = bns_ref[...]
    bnb = bnb_ref[...]
    energy = (sumsq * jnp.concatenate([bns, bns, bns], axis=0)
              + jnp.concatenate([bnb, bnb, bnb], axis=0))                   # (3tm, 1)

    def pooled_max(s, pool_k):
        n = s.shape[1] // pool_k                   # multiple of 128 -> aligned slices
        m = s[:, :n]
        for kk in range(1, pool_k):
            m = jnp.maximum(m, s[:, kk * n:(kk + 1) * n])
        return m

    # Stage 1: Conv1d(1->8,k5,s3)+MaxPool(3,2); per-tap bias (LN shift folded)
    # added before the pool max; one fused matmul across all 3 taps.
    s1 = (jnp.dot(xn.astype(jnp.bfloat16), wp1_ref[...],
                  preferred_element_type=jnp.float32) + bp1_ref[...])
    h = pooled_max(s1, POOL_K)                                              # (3tm, 384)

    # Stages 2/3: tap-independent bias, added once after the pool max.
    s2 = jnp.dot(h.astype(jnp.bfloat16), wp2_ref[...],
                 preferred_element_type=jnp.float32)
    h = pooled_max(s2, POOL_K) + bp2_ref[...]                               # (3tm, 256)
    s3 = jnp.dot(h.astype(jnp.bfloat16), wp3_ref[...],
                 preferred_element_type=jnp.float32)
    h = pooled_max(s3, POOL_K) + bp3_ref[...]                               # (3tm, 128)

    # Stage 4: Conv1d(16->16,k3,s1) (tiny -> keep f32 operands).
    h = jnp.dot(h, w4_ref[...], preferred_element_type=jnp.float32) + b4_ref[...]
    # TODO(synk): nn.Dropout(p=0.1) is identity here (inference mode).

    # Final Conv1d(16->32,k4) on cat([conv-out (len 3), energy (len 1)], -1):
    # tap 3 sees the same energy scalar on all 16 input channels -> folded s5.
    out32 = (jnp.dot(h, a5_ref[...], preferred_element_type=jnp.float32)
             + energy * s5_ref[...] + b5_ref[...])                          # (3tm, 128)

    # Triplet head: splits at 8-aligned sublane offsets; pairwise_distance eps
    # is applied only to the 32 real channels so padded lanes contribute 0.
    y0 = out32[0 * tm:1 * tm, :]     # pen1
    y1 = out32[1 * tm:2 * tm, :]     # refer
    y2 = out32[2 * tm:3 * tm, :]     # pen2
    col = jax.lax.broadcasted_iota(jnp.int32, (1, out32.shape[1]), 1)
    eps = jnp.where(col < N_OUT, jnp.float32(PW_EPS), jnp.float32(0.0))
    d12 = jnp.sqrt(jnp.sum(jnp.square(y1 - y2 + eps), axis=-1, keepdims=True))
    d10 = jnp.sqrt(jnp.sum(jnp.square(y1 - y0 + eps), axis=-1, keepdims=True))
    r = 2.2 * (jax.nn.sigmoid(d12 / d10 + 0.2) - 0.55)                      # (tm, 1)

    # Linear(15 -> 1) per sample via a constant (SPT, tm) block-diag select.
    y_ref[...] = (jnp.dot(lsel_ref[...], r, preferred_element_type=jnp.float32)
                  + linb_ref[...])


# ----------------------------------------------------------------------------
# Wrapper
# ----------------------------------------------------------------------------
def cnn_triplet_forward(pen1fea, referfea, pen2fea, params, *, spt=SPT):
    assert spt % 8 == 0, "samples-per-tile must be a multiple of 8"
    bsz = pen1fea.shape[0]
    tm = N_FV * spt                          # rows per triplet slice per grid step
    n_tiles = pl.cdiv(bsz, spt)
    b_pad = n_tiles * spt
    mrow = N_FV * bsz
    mp = N_FV * b_pad

    def prep(t):
        # (B, 15, 245) -> (15*B, 245): contiguous reshape, no relayout.
        t = jnp.reshape(t.astype(jnp.float32), (mrow, L_IN))
        if mp != mrow:                       # pad only when B % spt != 0
            t = jnp.pad(t, ((0, mp - mrow), (0, 0)))
        return t

    x1, x2, x3 = prep(pen1fea), prep(referfea), prep(pen2fea)

    # Per-fv BatchNorm affine column and Linear(15->1) block-diag select are
    # O(spt) (independent of B) and identical for every grid step.
    bns_col = jnp.tile(params["bn_scale"], spt).reshape(tm, 1)
    bnb_col = jnp.tile(params["bn_shift"], spt).reshape(tm, 1)
    lsel = jnp.kron(jnp.eye(spt, dtype=jnp.float32),
                    params["lin_w"].reshape(1, N_FV))               # (spt, tm)

    x_spec = pl.BlockSpec((tm, L_IN), lambda i: (i, 0))
    const_spec = lambda a: pl.BlockSpec(a.shape, lambda i: (0, 0))  # VMEM-resident

    weights = (params["wp1"], params["bp1"], params["wp2"], params["bp2"],
               params["wp3"], params["bp3"], params["w4"], params["b4"],
               params["a5"], params["s5"], params["b5"])

    y = pl.pallas_call(
        _cnn_triplet_kernel,
        out_shape=jax.ShapeDtypeStruct((b_pad, 1), jnp.float32),
        grid=(n_tiles,),
        in_specs=[x_spec, x_spec, x_spec,
                  const_spec(bns_col), const_spec(bnb_col),
                  *[const_spec(w) for w in weights],
                  const_spec(lsel), const_spec(params["lin_b"])],
        out_specs=pl.BlockSpec((spt, 1), lambda i: (i, 0)),
        compiler_params=pltpu.CompilerParams(
            dimension_semantics=("parallel",),       # v7x: 2 TCs split the samples
            vmem_limit_bytes=24 * 1024 * 1024),      # ~1.5 MB weights + ~6 MB working set
    )(x1, x2, x3, bns_col, bnb_col, *weights, lsel, params["lin_b"])
    return y[:bsz, 0]                                               # (B,)


# ----------------------------------------------------------------------------
# Deterministic parameter construction (synthetic init, torch-like scales)
# ----------------------------------------------------------------------------
def init_params(key):
    keys = jax.random.split(key, 13)

    def conv_init(k, cout, cin, ksz):
        bound = 1.0 / math.sqrt(cin * ksz)
        kw, kb = jax.random.split(k)
        w = jax.random.uniform(kw, (cout, cin, ksz), jnp.float32, -bound, bound)
        b = jax.random.uniform(kb, (cout,), jnp.float32, -bound, bound)
        return np.asarray(w), np.asarray(b)

    w1, c1b = conv_init(keys[0], 8, 1, 5)
    w2, c2b = conv_init(keys[1], 16, 8, 3)
    w3, c3b = conv_init(keys[2], 16, 16, 3)
    w4, c4b = conv_init(keys[3], 16, 16, 3)
    w5, c5b = conv_init(keys[4], 32, 16, 4)

    # LayerNorm(245) affine (folded into the stage-1 matrices below)
    ln_w = np.asarray(jax.random.uniform(keys[5], (L_IN,), jnp.float32, 0.8, 1.2))
    ln_b = np.asarray(jax.random.uniform(keys[6], (L_IN,), jnp.float32, -0.1, 0.1))

    # Stage 1: Conv1d(1->8,k5,s3)+MaxPool(3,2); LN affine folded, per-tap bias,
    # N padded 320->384, taps concatenated along N.
    Ws1, bias1, l1 = _pooled_conv_blocks(w1, c1b, L_IN, 3, POOL_K, 2)       # l1 = 40
    n1p = _round_up(Ws1.shape[2], 128)                                      # 384
    WP1 = np.concatenate(
        [_pad2(Ws1[kk] * ln_w[:, None], L_IN, n1p) for kk in range(POOL_K)], axis=1)
    BP1 = np.concatenate(
        [_pad2(bias1 + ln_b[None, :] @ Ws1[kk], 1, n1p) for kk in range(POOL_K)], axis=1)

    # Stage 2: Conv1d(8->16,k3,s2)+MaxPool(3,2); K padded to 384, N 144->256.
    Ws2, bias2, l2 = _pooled_conv_blocks(w2, c2b, l1, 2, POOL_K, 2)         # l2 = 9
    n2p = _round_up(Ws2.shape[2], 128)                                      # 256
    WP2 = np.concatenate([_pad2(Ws2[kk], n1p, n2p) for kk in range(POOL_K)], axis=1)
    BP2 = _pad2(bias2, 1, n2p)

    # Stage 3: Conv1d(16->16,k3,s1)+MaxPool(3,1); K 144->256, N 80->128.
    Ws3, bias3, l3 = _pooled_conv_blocks(w3, c3b, l2, 1, POOL_K, 1)         # l3 = 5
    n3p = _round_up(Ws3.shape[2], 128)                                      # 128
    WP3 = np.concatenate([_pad2(Ws3[kk], n2p, n3p) for kk in range(POOL_K)], axis=1)
    BP3 = _pad2(bias3, 1, n3p)

    # Stage 4: Conv1d(16->16,k3,s1); K 80->128, N 48->128 (f32 operands).
    W4r, B4r, l4 = _conv_dense(w4, c4b, l3, 1)
    assert l4 == 3
    n4p = _round_up(W4r.shape[1], 128)                                      # 128
    W4 = _pad2(W4r, n3p, n4p)
    B4 = _pad2(B4r, 1, n4p)

    # Final Conv1d(16->32,k4): taps 0..2 hit the conv-stack output, tap 3 hits
    # the per-channel-broadcast energy scalar (folded into s5). N 32 -> 128.
    n5p = _round_up(N_OUT, 128)                                             # 128
    a5 = np.zeros((n4p, n5p), np.float32)
    for co in range(N_OUT):
        for ci in range(16):
            a5[ci * 3:(ci + 1) * 3, co] = w5[co, ci, :3]
    s5 = np.zeros((1, n5p), np.float32)
    s5[0, :N_OUT] = w5[:, :, 3].sum(axis=1)
    b5 = np.zeros((1, n5p), np.float32)
    b5[0, :N_OUT] = c5b

    # BatchNorm1d(15), eval mode: fold gamma/beta/running stats into an affine.
    # TODO(synk): training-mode BatchNorm (batch statistics) is not implemented.
    bn_g = jax.random.uniform(keys[7], (N_FV,), jnp.float32, 0.8, 1.2)
    bn_b = jax.random.uniform(keys[8], (N_FV,), jnp.float32, -0.1, 0.1)
    bn_rm = jax.random.uniform(keys[9], (N_FV,), jnp.float32, -0.5, 0.5)
    bn_rv = jax.random.uniform(keys[10], (N_FV,), jnp.float32, 0.5, 1.5)
    bn_scale = bn_g / jnp.sqrt(bn_rv + BN_EPS)
    bn_shift = bn_b - bn_rm * bn_scale

    # Linear(15 -> 1)
    bound = 1.0 / math.sqrt(N_FV)
    lin_w = jax.random.uniform(keys[11], (1, N_FV), jnp.float32, -bound, bound)
    lin_b = jax.random.uniform(keys[12], (1, 1), jnp.float32, -bound, bound)

    f32, bf16 = jnp.float32, jnp.bfloat16
    return {
        "bn_scale": jnp.asarray(bn_scale, f32),
        "bn_shift": jnp.asarray(bn_shift, f32),
        "wp1": jnp.asarray(WP1, bf16), "bp1": jnp.asarray(BP1, f32),
        "wp2": jnp.asarray(WP2, bf16), "bp2": jnp.asarray(BP2, f32),
        "wp3": jnp.asarray(WP3, bf16), "bp3": jnp.asarray(BP3, f32),
        "w4": jnp.asarray(W4, f32), "b4": jnp.asarray(B4, f32),
        "a5": jnp.asarray(a5, f32), "s5": jnp.asarray(s5, f32),
        "b5": jnp.asarray(b5, f32),
        "lin_w": jnp.asarray(lin_w, f32), "lin_b": jnp.asarray(lin_b, f32),
    }


if __name__ == "__main__":
    key = jax.random.PRNGKey(0)
    kp, k1, k2, k3 = jax.random.split(key, 4)
    params = init_params(kp)

    B = 2
    pen1fea = jax.random.normal(k1, (B, N_FV, L_IN), jnp.float32)
    referfea = jax.random.normal(k2, (B, N_FV, L_IN), jnp.float32)
    pen2fea = jax.random.normal(k3, (B, N_FV, L_IN), jnp.float32)

    y = cnn_triplet_forward(pen1fea, referfea, pen2fea, params)
    y = jax.block_until_ready(y)
    assert y.shape == (B,) and bool(jnp.all(jnp.isfinite(y)))
    print("KERNEL_OK")
</pallas_src>

<mosaic_0001>
module attributes {stable_mosaic.version = 11 : i64} {
  func.func @_cnn_triplet_kernel(%arg0: i32, %arg1: memref<120x245xf32, #tpu.memory_space<vmem>>, %arg2: memref<120x245xf32, #tpu.memory_space<vmem>>, %arg3: memref<120x245xf32, #tpu.memory_space<vmem>>, %arg4: memref<120x1xf32, #tpu.memory_space<vmem>>, %arg5: memref<120x1xf32, #tpu.memory_space<vmem>>, %arg6: memref<245x1152xbf16, #tpu.memory_space<vmem>>, %arg7: memref<1x1152xf32, #tpu.memory_space<vmem>>, %arg8: memref<384x768xbf16, #tpu.memory_space<vmem>>, %arg9: memref<1x256xf32, #tpu.memory_space<vmem>>, %arg10: memref<256x384xbf16, #tpu.memory_space<vmem>>, %arg11: memref<1x128xf32, #tpu.memory_space<vmem>>, %arg12: memref<128x128xf32, #tpu.memory_space<vmem>>, %arg13: memref<1x128xf32, #tpu.memory_space<vmem>>, %arg14: memref<128x128xf32, #tpu.memory_space<vmem>>, %arg15: memref<1x128xf32, #tpu.memory_space<vmem>>, %arg16: memref<1x128xf32, #tpu.memory_space<vmem>>, %arg17: memref<8x120xf32, #tpu.memory_space<vmem>>, %arg18: memref<1x1xf32, #tpu.memory_space<vmem>>, %arg19: memref<8x1xf32, #tpu.memory_space<vmem>>) attributes {dimension_semantics = [#tpu.dimension_semantics<parallel>], iteration_bounds = array<i64: 1>, scalar_prefetch = 0 : i64, scratch_operands = 0 : i64, tpu.core_type = #tpu.core_type<tc>, window_params = [{transform_indices = @transform_0, window_bounds = array<i64: 120, 245>}, {transform_indices = @transform_1, window_bounds = array<i64: 120, 245>}, {transform_indices = @transform_2, window_bounds = array<i64: 120, 245>}, {pipeline_mode = #tpu.pipeline_mode<synchronous>, transform_indices = @transform_3, window_bounds = array<i64: 120, 1>}, {pipeline_mode = #tpu.pipeline_mode<synchronous>, transform_indices = @transform_4, window_bounds = array<i64: 120, 1>}, {pipeline_mode = #tpu.pipeline_mode<synchronous>, transform_indices = @transform_5, window_bounds = array<i64: 245, 1152>}, {pipeline_mode = #tpu.pipeline_mode<synchronous>, transform_indices = @transform_6, window_bounds = array<i64: 1, 1152>}, {pipeline_mode = #tpu.pipeline_mode<synchronous>, transform_indices = @transform_7, window_bounds = array<i64: 384, 768>}, {pipeline_mode = #tpu.pipeline_mode<synchronous>, transform_indices = @transform_8, window_bounds = array<i64: 1, 256>}, {pipeline_mode = #tpu.pipeline_mode<synchronous>, transform_indices = @transform_9, window_bounds = array<i64: 256, 384>}, {pipeline_mode = #tpu.pipeline_mode<synchronous>, transform_indices = @transform_10, window_bounds = array<i64: 1, 128>}, {pipeline_mode = #tpu.pipeline_mode<synchronous>, transform_indices = @transform_11, window_bounds = array<i64: 128, 128>}, {pipeline_mode = #tpu.pipeline_mode<synchronous>, transform_indices = @transform_12, window_bounds = array<i64: 1, 128>}, {pipeline_mode = #tpu.pipeline_mode<synchronous>, transform_indices = @transform_13, window_bounds = array<i64: 128, 128>}, {pipeline_mode = #tpu.pipeline_mode<synchronous>, transform_indices = @transform_14, window_bounds = array<i64: 1, 128>}, {pipeline_mode = #tpu.pipeline_mode<synchronous>, transform_indices = @transform_15, window_bounds = array<i64: 1, 128>}, {pipeline_mode = #tpu.pipeline_mode<synchronous>, transform_indices = @transform_16, window_bounds = array<i64: 8, 120>}, {pipeline_mode = #tpu.pipeline_mode<synchronous>, transform_indices = @transform_17, window_bounds = array<i64: 1, 1>}, {transform_indices = @transform_18, window_bounds = array<i64: 8, 1>}]} {
    %c0 = arith.constant 0 : index
    %c0_0 = arith.constant 0 : index
    %0 = vector.load %arg1[%c0, %c0_0] : memref<120x245xf32, #tpu.memory_space<vmem>>, vector<120x245xf32>
    %c0_1 = arith.constant 0 : index
    %c0_2 = arith.constant 0 : index
    %1 = vector.load %arg2[%c0_1, %c0_2] : memref<120x245xf32, #tpu.memory_space<vmem>>, vector<120x245xf32>
    %c0_3 = arith.constant 0 : index
    %c0_4 = arith.constant 0 : index
    %2 = vector.load %arg3[%c0_3, %c0_4] : memref<120x245xf32, #tpu.memory_space<vmem>>, vector<120x245xf32>
    %3 = tpu.concatenate %0, %1, %2 in 0 : vector<120x245xf32>, vector<120x245xf32>, vector<120x245xf32> -> vector<360x245xf32>
    %4 = arith.mulf %3, %3 : vector<360x245xf32>
    %cst = arith.constant dense<0.000000e+00> : vector<360xf32>
    %5 = vector.multi_reduction <add>, %4, %cst [1] : vector<360x245xf32> to vector<360xf32>
    %6 = vector.shape_cast %5 : vector<360xf32> to vector<360x1xf32>
    %cst_5 = arith.constant dense<0.000000e+00> : vector<360xf32>
    %7 = vector.multi_reduction <add>, %3, %cst_5 [1] : vector<360x245xf32> to vector<360xf32>
    %8 = vector.shape_cast %7 : vector<360xf32> to vector<360x1xf32>
    %cst_6 = arith.constant 0.00408163248 : f32
    %9 = vector.broadcast %cst_6 : f32 to vector<360x1xf32>
    %10 = arith.mulf %8, %9 : vector<360x1xf32>
    %cst_7 = arith.constant 0.00408163248 : f32
    %11 = vector.broadcast %cst_7 : f32 to vector<360x1xf32>
    %12 = arith.mulf %6, %11 : vector<360x1xf32>
    %13 = arith.mulf %10, %10 : vector<360x1xf32>
    %14 = arith.subf %12, %13 : vector<360x1xf32>
    %cst_8 = arith.constant 0.000000e+00 : f32
    %15 = vector.broadcast %cst_8 : f32 to vector<360x1xf32>
    %16 = arith.maximumf %14, %15 : vector<360x1xf32>
    %17 = vector.broadcast %10 : vector<360x1xf32> to vector<360x245xf32>
    %18 = arith.subf %3, %17 : vector<360x245xf32>
    %cst_9 = arith.constant 9.99999974E-6 : f32
    %19 = vector.broadcast %cst_9 : f32 to vector<360x1xf32>
    %20 = arith.addf %16, %19 : vector<360x1xf32>
    %21 = math.rsqrt %20 : vector<360x1xf32>
    %22 = vector.broadcast %21 : vector<360x1xf32> to vector<360x245xf32>
    %23 = arith.mulf %18, %22 : vector<360x245xf32>
    %c0_10 = arith.constant 0 : index
    %c0_11 = arith.constant 0 : index
    %24 = vector.load %arg4[%c0_10, %c0_11] : memref<120x1xf32, #tpu.memory_space<vmem>>, vector<120x1xf32>
    %c0_12 = arith.constant 0 : index
    %c0_13 = arith.constant 0 : index
    %25 = vector.load %arg5[%c0_12, %c0_13] : memref<120x1xf32, #tpu.memory_space<vmem>>, vector<120x1xf32>
    %26 = tpu.concatenate %24, %24, %24 in 0 : vector<120x1xf32>, vector<120x1xf32>, vector<120x1xf32> -> vector<360x1xf32>
    %27 = arith.mulf %6, %26 : vector<360x1xf32>
    %28 = tpu.concatenate %25, %25, %25 in 0 : vector<120x1xf32>, vector<120x1xf32>, vector<120x1xf32> -> vector<360x1xf32>
    %29 = arith.addf %27, %28 : vector<360x1xf32>
    %30 = arith.truncf %23 : vector<360x245xf32> to vector<360x245xbf16>
    %c0_14 = arith.constant 0 : index
    %c0_15 = arith.constant 0 : index
    %31 = vector.load %arg6[%c0_14, %c0_15] : memref<245x1152xbf16, #tpu.memory_space<vmem>>, vector<245x1152xbf16>
    %cst_16 = arith.constant dense<0.000000e+00> : vector<360x1152xf32>
    %32 = tpu.matmul %30, %31, %cst_16 {dimension_numbers = #tpu.dot_dimension_numbers<[1], [0], [0], [1], [0, 0, 1, 1], [], []>} : vector<360x245xbf16>, vector<245x1152xbf16>, vector<360x1152xf32> -> vector<360x1152xf32>
    %c0_17 = arith.constant 0 : index
    %c0_18 = arith.constant 0 : index
    %33 = vector.load %arg7[%c0_17, %c0_18] : memref<1x1152xf32, #tpu.memory_space<vmem>>, vector<1x1152xf32>
    %34 = vector.broadcast %33 : vector<1x1152xf32> to vector<360x1152xf32>
    %35 = arith.addf %32, %34 : vector<360x1152xf32>
    %36 = vector.extract_strided_slice %35 {offsets = [0, 0], sizes = [360, 384], strides = [1, 1]} : vector<360x1152xf32> to vector<360x384xf32>
    %37 = vector.extract_strided_slice %35 {offsets = [0, 384], sizes = [360, 384], strides = [1, 1]} : vector<360x1152xf32> to vector<360x384xf32>
    %38 = arith.maximumf %36, %37 : vector<360x384xf32>
    %39 = vector.extract_strided_slice %35 {offsets = [0, 768], sizes = [360, 384], strides = [1, 1]} : vector<360x1152xf32> to vector<360x384xf32>
    %40 = arith.maximumf %38, %39 : vector<360x384xf32>
    %41 = arith.truncf %40 : vector<360x384xf32> to vector<360x384xbf16>
    %c0_19 = arith.constant 0 : index
    %c0_20 = arith.constant 0 : index
    %42 = vector.load %arg8[%c0_19, %c0_20] : memref<384x768xbf16, #tpu.memory_space<vmem>>, vector<384x768xbf16>
    %cst_21 = arith.constant dense<0.000000e+00> : vector<360x768xf32>
    %43 = tpu.matmul %41, %42, %cst_21 {dimension_numbers = #tpu.dot_dimension_numbers<[1], [0], [0], [1], [0, 0, 1, 1], [], []>} : vector<360x384xbf16>, vector<384x768xbf16>, vector<360x768xf32> -> vector<360x768xf32>
    %44 = vector.extract_strided_slice %43 {offsets = [0, 0], sizes = [360, 256], strides = [1, 1]} : vector<360x768xf32> to vector<360x256xf32>
    %45 = vector.extract_strided_slice %43 {offsets = [0, 256], sizes = [360, 256], strides = [1, 1]} : vector<360x768xf32> to vector<360x256xf32>
    %46 = arith.maximumf %44, %45 : vector<360x256xf32>
    %47 = vector.extract_strided_slice %43 {offsets = [0, 512], sizes = [360, 256], strides = [1, 1]} : vector<360x768xf32> to vector<360x256xf32>
    %48 = arith.maximumf %46, %47 : vector<360x256xf32>
    %c0_22 = arith.constant 0 : index
    %c0_23 = arith.constant 0 : index
    %49 = vector.load %arg9[%c0_22, %c0_23] : memref<1x256xf32, #tpu.memory_space<vmem>>, vector<1x256xf32>
    %50 = vector.broadcast %49 : vector<1x256xf32> to vector<360x256xf32>
    %51 = arith.addf %48, %50 : vector<360x256xf32>
    %52 = arith.truncf %51 : vector<360x256xf32> to vector<360x256xbf16>
    %c0_24 = arith.constant 0 : index
    %c0_25 = arith.constant 0 : index
    %53 = vector.load %arg10[%c0_24, %c0_25] : memref<256x384xbf16, #tpu.memory_space<vmem>>, vector<256x384xbf16>
    %cst_26 = arith.constant dense<0.000000e+00> : vector<360x384xf32>
    %54 = tpu.matmul %52, %53, %cst_26 {dimension_numbers = #tpu.dot_dimension_numbers<[1], [0], [0], [1], [0, 0, 1, 1], [], []>} : vector<360x256xbf16>, vector<256x384xbf16>, vector<360x384xf32> -> vector<360x384xf32>
    %55 = vector.extract_strided_slice %54 {offsets = [0, 0], sizes = [360, 128], strides = [1, 1]} : vector<360x384xf32> to vector<360x128xf32>
    %56 = vector.extract_strided_slice %54 {offsets = [0, 128], sizes = [360, 128], strides = [1, 1]} : vector<360x384xf32> to vector<360x128xf32>
    %57 = arith.maximumf %55, %56 : vector<360x128xf32>
    %58 = vector.extract_strided_slice %54 {offsets = [0, 256], sizes = [360, 128], strides = [1, 1]} : vector<360x384xf32> to vector<360x128xf32>
    %59 = arith.maximumf %57, %58 : vector<360x128xf32>
    %c0_27 = arith.constant 0 : index
    %c0_28 = arith.constant 0 : index
    %60 = vector.load %arg11[%c0_27, %c0_28] : memref<1x128xf32, #tpu.memory_space<vmem>>, vector<1x128xf32>
    %61 = vector.broadcast %60 : vector<1x128xf32> to vector<360x128xf32>
    %62 = arith.addf %59, %61 : vector<360x128xf32>
    %c0_29 = arith.constant 0 : index
    %c0_30 = arith.constant 0 : index
    %63 = vector.load %arg12[%c0_29, %c0_30] : memref<128x128xf32, #tpu.memory_space<vmem>>, vector<128x128xf32>
    %cst_31 = arith.constant dense<0.000000e+00> : vector<360x128xf32>
    %64 = tpu.matmul %62, %63, %cst_31 {dimension_numbers = #tpu.dot_dimension_numbers<[1], [0], [0], [1], [0, 0, 1, 1], [], []>} : vector<360x128xf32>, vector<128x128xf32>, vector<360x128xf32> -> vector<360x128xf32>
    %c0_32 = arith.constant 0 : index
    %c0_33 = arith.constant 0 : index
    %65 = vector.load %arg13[%c0_32, %c0_33] : memref<1x128xf32, #tpu.memory_space<vmem>>, vector<1x128xf32>
    %66 = vector.broadcast %65 : vector<1x128xf32> to vector<360x128xf32>
    %67 = arith.addf %64, %66 : vector<360x128xf32>
    %c0_34 = arith.constant 0 : index
    %c0_35 = arith.constant 0 : index
    %68 = vector.load %arg14[%c0_34, %c0_35] : memref<128x128xf32, #tpu.memory_space<vmem>>, vector<128x128xf32>
    %cst_36 = arith.constant dense<0.000000e+00> : vector<360x128xf32>
    %69 = tpu.matmul %67, %68, %cst_36 {dimension_numbers = #tpu.dot_dimension_numbers<[1], [0], [0], [1], [0, 0, 1, 1], [], []>} : vector<360x128xf32>, vector<128x128xf32>, vector<360x128xf32> -> vector<360x128xf32>
    %c0_37 = arith.constant 0 : index
    %c0_38 = arith.constant 0 : index
    %70 = vector.load %arg15[%c0_37, %c0_38] : memref<1x128xf32, #tpu.memory_space<vmem>>, vector<1x128xf32>
    %71 = vector.broadcast %29 : vector<360x1xf32> to vector<360x128xf32>
    %72 = vector.broadcast %70 : vector<1x128xf32> to vector<360x128xf32>
    %73 = arith.mulf %71, %72 : vector<360x128xf32>
    %74 = arith.addf %69, %73 : vector<360x128xf32>
    %c0_39 = arith.constant 0 : index
    %c0_40 = arith.constant 0 : index
    %75 = vector.load %arg16[%c0_39, %c0_40] : memref<1x128xf32, #tpu.memory_space<vmem>>, vector<1x128xf32>
    %76 = vector.broadcast %75 : vector<1x128xf32> to vector<360x128xf32>
    %77 = arith.addf %74, %76 : vector<360x128xf32>
    %78 = vector.extract_strided_slice %77 {offsets = [0, 0], sizes = [120, 128], strides = [1, 1]} : vector<360x128xf32> to vector<120x128xf32>
    %79 = vector.extract_strided_slice %77 {offsets = [120, 0], sizes = [120, 128], strides = [1, 1]} : vector<360x128xf32> to vector<120x128xf32>
    %80 = vector.extract_strided_slice %77 {offsets = [240, 0], sizes = [120, 128], strides = [1, 1]} : vector<360x128xf32> to vector<120x128xf32>
    %81 = tpu.iota {dimensions = array<i32: 1>} : vector<1x128xi32>
    %c32_i32 = arith.constant 32 : i32
    %82 = vector.broadcast %c32_i32 : i32 to vector<1x128xi32>
    %83 = arith.cmpi slt, %81, %82 : vector<1x128xi32>
    %cst_41 = arith.constant 9.99999997E-7 : f32
    %cst_42 = arith.constant 0.000000e+00 : f32
    %84 = vector.broadcast %cst_41 : f32 to vector<1x128xf32>
    %85 = vector.broadcast %cst_42 : f32 to vector<1x128xf32>
    %86 = arith.select %83, %84, %85 : vector<1x128xi1>, vector<1x128xf32>
    %87 = arith.subf %79, %80 : vector<120x128xf32>
    %88 = vector.broadcast %86 : vector<1x128xf32> to vector<120x128xf32>
    %89 = arith.addf %87, %88 : vector<120x128xf32>
    %90 = arith.mulf %89, %89 : vector<120x128xf32>
    %cst_43 = arith.constant dense<0.000000e+00> : vector<120xf32>
    %91 = vector.multi_reduction <add>, %90, %cst_43 [1] : vector<120x128xf32> to vector<120xf32>
    %92 = vector.shape_cast %91 : vector<120xf32> to vector<120x1xf32>
    %93 = math.sqrt %92 : vector<120x1xf32>
    %94 = arith.subf %79, %78 : vector<120x128xf32>
    %95 = vector.broadcast %86 : vector<1x128xf32> to vector<120x128xf32>
    %96 = arith.addf %94, %95 : vector<120x128xf32>
    %97 = arith.mulf %96, %96 : vector<120x128xf32>
    %cst_44 = arith.constant dense<0.000000e+00> : vector<120xf32>
    %98 = vector.multi_reduction <add>, %97, %cst_44 [1] : vector<120x128xf32> to vector<120xf32>
    %99 = vector.shape_cast %98 : vector<120xf32> to vector<120x1xf32>
    %100 = math.sqrt %99 : vector<120x1xf32>
    %101 = arith.divf %93, %100 : vector<120x1xf32>
    %cst_45 = arith.constant 2.000000e-01 : f32
    %102 = vector.broadcast %cst_45 : f32 to vector<120x1xf32>
    %103 = arith.addf %101, %102 : vector<120x1xf32>
    %104 = arith.negf %103 : vector<120x1xf32>
    %105 = math.exp %104 : vector<120x1xf32>
    %cst_46 = arith.constant 1.000000e+00 : f32
    %106 = vector.broadcast %cst_46 : f32 to vector<120x1xf32>
    %107 = arith.addf %106, %105 : vector<120x1xf32>
    %108 = arith.divf %106, %107 : vector<120x1xf32>
    %cst_47 = arith.constant 5.500000e-01 : f32
    %109 = vector.broadcast %cst_47 : f32 to vector<120x1xf32>
    %110 = arith.subf %108, %109 : vector<120x1xf32>
    %cst_48 = arith.constant 2.200000e+00 : f32
    %111 = vector.broadcast %cst_48 : f32 to vector<120x1xf32>
    %112 = arith.mulf %111, %110 : vector<120x1xf32>
    %c0_49 = arith.constant 0 : index
    %c0_50 = arith.constant 0 : index
    %113 = vector.load %arg17[%c0_49, %c0_50] : memref<8x120xf32, #tpu.memory_space<vmem>>, vector<8x120xf32>
    %cst_51 = arith.constant dense<0.000000e+00> : vector<8x1xf32>
    %114 = tpu.matmul %113, %112, %cst_51 {dimension_numbers = #tpu.dot_dimension_numbers<[1], [0], [0], [1], [0, 0, 1, 1], [], []>} : vector<8x120xf32>, vector<120x1xf32>, vector<8x1xf32> -> vector<8x1xf32>
    %c0_52 = arith.constant 0 : index
    %c0_53 = arith.constant 0 : index
    %115 = vector.load %arg18[%c0_52, %c0_53] : memref<1x1xf32, #tpu.memory_space<vmem>>, vector<1x1xf32>
    %116 = vector.broadcast %115 : vector<1x1xf32> to vector<8x1xf32>
    %117 = arith.addf %114, %116 : vector<8x1xf32>
    %c0_54 = arith.constant 0 : index
    %c0_55 = arith.constant 0 : index
    %118 = vector.load %arg19[%c0_54, %c0_55] : memref<8x1xf32, #tpu.memory_space<vmem>>, vector<8x1xf32>
    tpu.vector_store %arg19[%c0_54, %c0_55], %117 {strides = array<i32>} : memref<8x1xf32, #tpu.memory_space<vmem>>, vector<8x1xf32>,
    return
  }
  func.func @transform_0(%arg0: i32) -> (i32, i32) {
    %c0_i32 = arith.constant 0 : i32
    %c0_i32_0 = arith.constant 0 : i32
    return %arg0, %c0_i32 : i32, i32
  }
  func.func @transform_1(%arg0: i32) -> (i32, i32) {
    %c0_i32 = arith.constant 0 : i32
    %c0_i32_0 = arith.constant 0 : i32
    return %arg0, %c0_i32 : i32, i32
  }
  func.func @transform_2(%arg0: i32) -> (i32, i32) {
    %c0_i32 = arith.constant 0 : i32
    %c0_i32_0 = arith.constant 0 : i32
    return %arg0, %c0_i32 : i32, i32
  }
  func.func @transform_3(%arg0: i32) -> (i32, i32) {
    %c0_i32 = arith.constant 0 : i32
    %c0_i32_0 = arith.constant 0 : i32
    %c0_i32_1 = arith.constant 0 : i32
    return %c0_i32, %c0_i32_0 : i32, i32
  }
  func.func @transform_4(%arg0: i32) -> (i32, i32) {
    %c0_i32 = arith.constant 0 : i32
    %c0_i32_0 = arith.constant 0 : i32
    %c0_i32_1 = arith.constant 0 : i32
    return %c0_i32, %c0_i32_0 : i32, i32
  }
  func.func @transform_5(%arg0: i32) -> (i32, i32) {
    %c0_i32 = arith.constant 0 : i32
    %c0_i32_0 = arith.constant 0 : i32
    %c0_i32_1 = arith.constant 0 : i32
    return %c0_i32, %c0_i32_0 : i32, i32
  }
  func.func @transform_6(%arg0: i32) -> (i32, i32) {
    %c0_i32 = arith.constant 0 : i32
    %c0_i32_0 = arith.constant 0 : i32
    %c0_i32_1 = arith.constant 0 : i32
    return %c0_i32, %c0_i32_0 : i32, i32
  }
  func.func @transform_7(%arg0: i32) -> (i32, i32) {
    %c0_i32 = arith.constant 0 : i32
    %c0_i32_0 = arith.constant 0 : i32
    %c0_i32_1 = arith.constant 0 : i32
    return %c0_i32, %c0_i32_0 : i32, i32
  }
  func.func @transform_8(%arg0: i32) -> (i32, i32) {
    %c0_i32 = arith.constant 0 : i32
    %c0_i32_0 = arith.constant 0 : i32
    %c0_i32_1 = arith.constant 0 : i32
    return %c0_i32, %c0_i32_0 : i32, i32
  }
  func.func @transform_9(%arg0: i32) -> (i32, i32) {
    %c0_i32 = arith.constant 0 : i32
    %c0_i32_0 = arith.constant 0 : i32
    %c0_i32_1 = arith.constant 0 : i32
    return %c0_i32, %c0_i32_0 : i32, i32
  }
  func.func @transform_10(%arg0: i32) -> (i32, i32) {
    %c0_i32 = arith.constant 0 : i32
    %c0_i32_0 = arith.constant 0 : i32
    %c0_i32_1 = arith.constant 0 : i32
    return %c0_i32, %c0_i32_0 : i32, i32
  }
  func.func @transform_11(%arg0: i32) -> (i32, i32) {
    %c0_i32 = arith.constant 0 : i32
    %c0_i32_0 = arith.constant 0 : i32
    %c0_i32_1 = arith.constant 0 : i32
    return %c0_i32, %c0_i32_0 : i32, i32
  }
  func.func @transform_12(%arg0: i32) -> (i32, i32) {
    %c0_i32 = arith.constant 0 : i32
    %c0_i32_0 = arith.constant 0 : i32
    %c0_i32_1 = arith.constant 0 : i32
    return %c0_i32, %c0_i32_0 : i32, i32
  }
  func.func @transform_13(%arg0: i32) -> (i32, i32) {
    %c0_i32 = arith.constant 0 : i32
    %c0_i32_0 = arith.constant 0 : i32
    %c0_i32_1 = arith.constant 0 : i32
    return %c0_i32, %c0_i32_0 : i32, i32
  }
  func.func @transform_14(%arg0: i32) -> (i32, i32) {
    %c0_i32 = arith.constant 0 : i32
    %c0_i32_0 = arith.constant 0 : i32
    %c0_i32_1 = arith.constant 0 : i32
    return %c0_i32, %c0_i32_0 : i32, i32
  }
  func.func @transform_15(%arg0: i32) -> (i32, i32) {
    %c0_i32 = arith.constant 0 : i32
    %c0_i32_0 = arith.constant 0 : i32
    %c0_i32_1 = arith.constant 0 : i32
    return %c0_i32, %c0_i32_0 : i32, i32
  }
  func.func @transform_16(%arg0: i32) -> (i32, i32) {
    %c0_i32 = arith.constant 0 : i32
    %c0_i32_0 = arith.constant 0 : i32
    %c0_i32_1 = arith.constant 0 : i32
    return %c0_i32, %c0_i32_0 : i32, i32
  }
  func.func @transform_17(%arg0: i32) -> (i32, i32) {
    %c0_i32 = arith.constant 0 : i32
    %c0_i32_0 = arith.constant 0 : i32
    %c0_i32_1 = arith.constant 0 : i32
    return %c0_i32, %c0_i32_0 : i32, i32
  }
  func.func @transform_18(%arg0: i32) -> (i32, i32) {
    %c0_i32 = arith.constant 0 : i32
    %c0_i32_0 = arith.constant 0 : i32
    return %arg0, %c0_i32 : i32, i32
  }
}

</mosaic_0001>

<llo_original>
// kernel: tpu_custom_call.1
$region0: #{tpu_custom_call.1}
  #allocation0 [shape = 'u32[]', space=smem, size = 0x4, offset = 0x4, fixed_abs, tag = 'smem constant byte address 0x4 - core index']
  #allocation1 [shape = 'u32[72,128]{1,0:T(1,128)}', space=vmem, size = 0x9000, scoped, tag = 'internal scratch']
  #allocation2 [shape = 'f32[1,1]{1,0:T(1,128)S(1)}', space=vmem, size = 0x200, scoped, tag = 'scoped memory for tpu_custom_call.1']
  %s0 = inlined_call_operand.vmem [shape: f32[120,245], index: 0, kind: input, shape index: {}]
  %s1 = inlined_call_operand.hbm [shape: f32[120,245], index: 1, kind: input, shape index: {}]
  %s2 = inlined_call_operand.hbm [shape: f32[120,245], index: 2, kind: input, shape index: {}]
  %s3 = inlined_call_operand.vmem [shape: f32[120,1], index: 3, kind: input, shape index: {}]
  %s4 = inlined_call_operand.vmem [shape: f32[120,1], index: 4, kind: input, shape index: {}]
  %s5 = inlined_call_operand.hbm [shape: bf16[245,1152], index: 5, kind: input, shape index: {}]
  %s6 = inlined_call_operand.hbm [shape: f32[1,1152], index: 6, kind: input, shape index: {}]
  %s7 = inlined_call_operand.hbm [shape: bf16[384,768], index: 7, kind: input, shape index: {}]
  %s8 = inlined_call_operand.vmem [shape: f32[1,256], index: 8, kind: input, shape index: {}]
  %s9 = inlined_call_operand.hbm [shape: bf16[256,384], index: 9, kind: input, shape index: {}]
  %s10 = inlined_call_operand.hbm [shape: f32[1,128], index: 10, kind: input, shape index: {}]
  %s11 = inlined_call_operand.hbm [shape: f32[128,128], index: 11, kind: input, shape index: {}]
  %s12 = inlined_call_operand.hbm [shape: f32[1,128], index: 12, kind: input, shape index: {}]
  %s13 = inlined_call_operand.hbm [shape: f32[128,128], index: 13, kind: input, shape index: {}]
  %s14 = inlined_call_operand.vmem [shape: f32[1,128], index: 14, kind: input, shape index: {}]
  %s15 = inlined_call_operand.vmem [shape: f32[1,128], index: 15, kind: input, shape index: {}]
  %s16 = inlined_call_operand.vmem [shape: f32[8,120], index: 16, kind: input, shape index: {}]
  %s17 = inlined_call_operand.<no memory space> [shape: f32[1,1], index: 17, kind: input, shape index: {}]
  %s18 = inlined_call_operand.vmem [shape: f32[8,1], index: 18, kind: output, shape index: {}]
  %s19 = sld [smem:[#allocation0]]
  $region122: #{tpu_custom_call.1} parent=0
    _
  %s21 = ssub.s32 1, %s19
  %s22 = scalar_select 0, %s21, %s19
  %v23 = vstv %s17
  %24 = vst [vmem:[#allocation2] sm:$0x1] %v23
  $region1: #{tpu_custom_call.1} parent=0
    #allocation3 [shape = 'u8[122880]{0}', space=vmem, size = 0x1e000, scoped, tag = 'input window, operand 1, single buffered']
    #allocation4 [shape = 's32[1]{0}', space=sflag, size = 0x4, scoped, tag = 'scoped memory for tpu_custom_call.1']
    #allocation5 [shape = 'u8[122880]{0}', space=vmem, size = 0x1e000, scoped, tag = 'input window, operand 2, single buffered']
    #allocation6 [shape = 's32[1]{0}', space=sflag, size = 0x4, scoped, tag = 'scoped memory for tpu_custom_call.1']
    #allocation7 [shape = 'u8[571392]{0}', space=vmem, size = 0x8b800, scoped, tag = 'input window, operand 5, single buffered']
    #allocation8 [shape = 'u8[4608]{0}', space=vmem, size = 0x1400, scoped, tag = 'input window, operand 6, single buffered']
    #allocation9 [shape = 's32[1]{0}', space=sflag, size = 0x4, scoped, tag = 'scoped memory for tpu_custom_call.1']
    #allocation10 [shape = 'u8[589824]{0}', space=vmem, size = 0x90000, scoped, tag = 'input window, operand 7, single buffered']
    #allocation11 [shape = 'u8[196608]{0}', space=vmem, size = 0x30000, scoped, tag = 'input window, operand 9, single buffered']
    #allocation12 [shape = 's32[1]{0}', space=sflag, size = 0x4, scoped, tag = 'scoped memory for tpu_custom_call.1']
    #allocation13 [shape = 'u8[512]{0}', space=vmem, size = 0x400, scoped, tag = 'input window, operand 10, single buffered']
    #allocation14 [shape = 'u8[65536]{0}', space=vmem, size = 0x10000, scoped, tag = 'input window, operand 11, single buffered']
    #allocation15 [shape = 's32[1]{0}', space=sflag, size = 0x4, scoped, tag = 'scoped memory for tpu_custom_call.1']
    #allocation16 [shape = 'u8[512]{0}', space=vmem, size = 0x400, scoped, tag = 'input window, operand 12, single buffered']
    #allocation17 [shape = 'u8[65536]{0}', space=vmem, size = 0x10000, scoped, tag = 'input window, operand 13, single buffered']
    #allocation18 [shape = 's32[1]{0}', space=sflag, size = 0x4, scoped, tag = 'scoped memory for tpu_custom_call.1']
    %25 = vsyncpa [#allocation4], 0
    %26 = vsyncpa [#allocation6], 0
    %27 = vsyncpa [#allocation9], 0
    %28 = vsyncpa [#allocation12], 0
    %29 = vsyncpa [#allocation15], 0
    %30 = vsyncpa [#allocation18], 0
    // Predicated region
    $region2: #{tpu_custom_call.1} parent=1 // pred_check
      _
    $region3: #{tpu_custom_call.1} parent=1 // pred_check_branch
      %32 = sbr.rel (0) target = $region5
    $region4: #{tpu_custom_call.1} parent=1 // pred_region
      _
    $region5: #{tpu_custom_call.1} parent=1 // pred_fallthru
      _
    // Predicated region
    $region6: #{tpu_custom_call.1} parent=1 // pred_check
      _
    $region7: #{tpu_custom_call.1} parent=1 // pred_check_branch
      %34 = sbr.rel (0) target = $region9
    $region8: #{tpu_custom_call.1} parent=1 // pred_region
      %36 = vsyncadd [#allocation4], 0
      %s37 = sshll.u32 %s1, 4
      %s38 = int_to_ptr.hbm [resolvable:$true] %s37
      %s39 = sshll.u32 [#allocation3], 4
      %s40 = int_to_ptr.vmem [resolvable:$true] %s39
      %45 = dma.hbm_to_vmem [thread:$0]  %s38, 3840, %s40, [#allocation4], 256, 256, 16
    $region9: #{tpu_custom_call.1} parent=1 // pred_fallthru
      _
    // Predicated region
    $region10: #{tpu_custom_call.1} parent=1 // pred_check
      _
    $region11: #{tpu_custom_call.1} parent=1 // pred_check_branch
      %47 = sbr.rel (0) target = $region13
    $region12: #{tpu_custom_call.1} parent=1 // pred_region
      %49 = vsyncadd [#allocation6], 0
      %s50 = sshll.u32 %s2, 4
      %s51 = int_to_ptr.hbm [resolvable:$true] %s50
      %s52 = sshll.u32 [#allocation5], 4
      %s53 = int_to_ptr.vmem [resolvable:$true] %s52
      %58 = dma.hbm_to_vmem [thread:$0]  %s51, 3840, %s53, [#allocation6], 256, 256, 16
    $region13: #{tpu_custom_call.1} parent=1 // pred_fallthru
      _
    // Predicated region
    $region14: #{tpu_custom_call.1} parent=1 // pred_check
      _
    $region15: #{tpu_custom_call.1} parent=1 // pred_check_branch
      %60 = sbr.rel (0) target = $region17
    $region16: #{tpu_custom_call.1} parent=1 // pred_region
      _
    $region17: #{tpu_custom_call.1} parent=1 // pred_fallthru
      _
    // Predicated region
    $region18: #{tpu_custom_call.1} parent=1 // pred_check
      _
    $region19: #{tpu_custom_call.1} parent=1 // pred_check_branch
      %62 = sbr.rel (0) target = $region21
    $region20: #{tpu_custom_call.1} parent=1 // pred_region
      _
    $region21: #{tpu_custom_call.1} parent=1 // pred_fallthru
      _
    // Predicated region
    $region22: #{tpu_custom_call.1} parent=1 // pred_check
      _
    $region23: #{tpu_custom_call.1} parent=1 // pred_check_branch
      %64 = sbr.rel (0) target = $region25
    $region24: #{tpu_custom_call.1} parent=1 // pred_region
      %66 = vsyncadd [#allocation6], 0
      %s67 = sshll.u32 %s5, 4
      %s68 = int_to_ptr.hbm [resolvable:$true] %s67
      %s69 = sshll.u32 [#allocation7], 4
      %s70 = int_to_ptr.vmem [resolvable:$true] %s69
      %75 = dma.hbm_to_vmem [thread:$0]  %s68, 17856, %s70, [#allocation6], 576, 576, 36
    $region25: #{tpu_custom_call.1} parent=1 // pred_fallthru
      _
    // Predicated region
    $region26: #{tpu_custom_call.1} parent=1 // pred_check
      _
    $region27: #{tpu_custom_call.1} parent=1 // pred_check_branch
      %77 = sbr.rel (0) target = $region29
    $region28: #{tpu_custom_call.1} parent=1 // pred_region
      %79 = vsyncadd [#allocation9], 0
      %s81 = sshll.u32 %s6, 4
      %s82 = int_to_ptr.hbm [resolvable:$true] %s81
      %s83 = sshll.u32 [#allocation8], 4
      %s84 = int_to_ptr.vmem [resolvable:$true] %s83
      %86 = dma.hbm_to_vmem [thread:$0]  %s82, 144, %s84, [#allocation9]
    $region29: #{tpu_custom_call.1} parent=1 // pred_fallthru
      _
    // Predicated region
    $region30: #{tpu_custom_call.1} parent=1 // pred_check
      _
    $region31: #{tpu_custom_call.1} parent=1 // pred_check_branch
      %88 = sbr.rel (0) target = $region33
    $region32: #{tpu_custom_call.1} parent=1 // pred_region
      %90 = vsyncadd [#allocation9], 0
      %s91 = sshll.u32 %s7, 4
      %s92 = int_to_ptr.hbm [resolvable:$true] %s91
      %s93 = sshll.u32 [#allocation10], 4
      %s94 = int_to_ptr.vmem [resolvable:$true] %s93
      %99 = dma.hbm_to_vmem [thread:$0]  %s92, 18432, %s94, [#allocation9], 384, 384, 24
    $region33: #{tpu_custom_call.1} parent=1 // pred_fallthru
      _
    // Predicated region
    $region34: #{tpu_custom_call.1} parent=1 // pred_check
      _
    $region35: #{tpu_custom_call.1} parent=1 // pred_check_branch
      %101 = sbr.rel (0) target = $region37
    $region36: #{tpu_custom_call.1} parent=1 // pred_region
      _
    $region37: #{tpu_custom_call.1} parent=1 // pred_fallthru
      _
    // Predicated region
    $region38: #{tpu_custom_call.1} parent=1 // pred_check
      _
    $region39: #{tpu_custom_call.1} parent=1 // pred_check_branch
      %103 = sbr.rel (0) target = $region41
    $region40: #{tpu_custom_call.1} parent=1 // pred_region
      %105 = vsyncadd [#allocation12], 0
      %s106 = sshll.u32 %s9, 4
      %s107 = int_to_ptr.hbm [resolvable:$true] %s106
      %s108 = sshll.u32 [#allocation11], 4
      %s109 = int_to_ptr.vmem [resolvable:$true] %s108
      %114 = dma.hbm_to_vmem [thread:$0]  %s107, 6144, %s109, [#allocation12], 192, 192, 12
    $region41: #{tpu_custom_call.1} parent=1 // pred_fallthru
      _
    // Predicated region
    $region42: #{tpu_custom_call.1} parent=1 // pred_check
      _
    $region43: #{tpu_custom_call.1} parent=1 // pred_check_branch
      %116 = sbr.rel (0) target = $region45
    $region44: #{tpu_custom_call.1} parent=1 // pred_region
      %118 = vsyncadd [#allocation12], 0
      %s120 = sshll.u32 %s10, 4
      %s121 = int_to_ptr.hbm [resolvable:$true] %s120
      %s122 = sshll.u32 [#allocation13], 4
      %s123 = int_to_ptr.vmem [resolvable:$true] %s122
      %125 = dma.hbm_to_vmem [thread:$0]  %s121, 16, %s123, [#allocation12]
    $region45: #{tpu_custom_call.1} parent=1 // pred_fallthru
      _
    // Predicated region
    $region46: #{tpu_custom_call.1} parent=1 // pred_check
      _
    $region47: #{tpu_custom_call.1} parent=1 // pred_check_branch
      %127 = sbr.rel (0) target = $region49
    $region48: #{tpu_custom_call.1} parent=1 // pred_region
      %129 = vsyncadd [#allocation15], 0
      %s130 = sshll.u32 %s11, 4
      %s131 = int_to_ptr.hbm [resolvable:$true] %s130
      %s132 = sshll.u32 [#allocation14], 4
      %s133 = int_to_ptr.vmem [resolvable:$true] %s132
      %138 = dma.hbm_to_vmem [thread:$0]  %s131, 2048, %s133, [#allocation15], 128, 128, 8
    $region49: #{tpu_custom_call.1} parent=1 // pred_fallthru
      _
    // Predicated region
    $region50: #{tpu_custom_call.1} parent=1 // pred_check
      _
    $region51: #{tpu_custom_call.1} parent=1 // pred_check_branch
      %140 = sbr.rel (0) target = $region53
    $region52: #{tpu_custom_call.1} parent=1 // pred_region
      %142 = vsyncadd [#allocation15], 0
      %s144 = sshll.u32 %s12, 4
      %s145 = int_to_ptr.hbm [resolvable:$true] %s144
      %s146 = sshll.u32 [#allocation16], 4
      %s147 = int_to_ptr.vmem [resolvable:$true] %s146
      %149 = dma.hbm_to_vmem [thread:$0]  %s145, 16, %s147, [#allocation15]
    $region53: #{tpu_custom_call.1} parent=1 // pred_fallthru
      _
    // Predicated region
    $region54: #{tpu_custom_call.1} parent=1 // pred_check
      _
    $region55: #{tpu_custom_call.1} parent=1 // pred_check_branch
      %151 = sbr.rel (0) target = $region57
    $region56: #{tpu_custom_call.1} parent=1 // pred_region
      %153 = vsyncadd [#allocation18], 0
      %s154 = sshll.u32 %s13, 4
      %s155 = int_to_ptr.hbm [resolvable:$true] %s154
      %s156 = sshll.u32 [#allocation17], 4
      %s157 = int_to_ptr.vmem [resolvable:$true] %s156
      %162 = dma.hbm_to_vmem [thread:$0]  %s155, 2048, %s157, [#allocation18], 128, 128, 8
    $region57: #{tpu_custom_call.1} parent=1 // pred_fallthru
      _
    // Predicated region
    $region58: #{tpu_custom_call.1} parent=1 // pred_check
      _
    $region59: #{tpu_custom_call.1} parent=1 // pred_check_branch
      %164 = sbr.rel (0) target = $region61
    $region60: #{tpu_custom_call.1} parent=1 // pred_region
      _
    $region61: #{tpu_custom_call.1} parent=1 // pred_fallthru
      _
    // Predicated region
    $region62: #{tpu_custom_call.1} parent=1 // pred_check
      _
    $region63: #{tpu_custom_call.1} parent=1 // pred_check_branch
      %166 = sbr.rel (0) target = $region65
    $region64: #{tpu_custom_call.1} parent=1 // pred_region
      _
    $region65: #{tpu_custom_call.1} parent=1 // pred_fallthru
      _
    // Predicated region
    $region66: #{tpu_custom_call.1} parent=1 // pred_check
      _
    $region67: #{tpu_custom_call.1} parent=1 // pred_check_branch
      %168 = sbr.rel (0) target = $region69
    $region68: #{tpu_custom_call.1} parent=1 // pred_region
      _
    $region69: #{tpu_custom_call.1} parent=1 // pred_fallthru
      _
    // Predicated region
    $region70: #{tpu_custom_call.1} parent=1 // pred_check
      _
    $region71: #{tpu_custom_call.1} parent=1 // pred_check_branch
      %170 = sbr.rel (0) target = $region73
    $region72: #{tpu_custom_call.1} parent=1 // pred_region
      _
    $region73: #{tpu_custom_call.1} parent=1 // pred_fallthru
      _
    // Predicated region
    $region74: #{tpu_custom_call.1} parent=1 // pred_check
      _
    $region75: #{tpu_custom_call.1} parent=1 // pred_check_branch
      %172 = sbr.rel (0) target = $region77
    $region76: #{tpu_custom_call.1} parent=1 // pred_region
      %174 = dma.done [#allocation4], 3840
    $region77: #{tpu_custom_call.1} parent=1 // pred_fallthru
      _
    // Predicated region
    $region78: #{tpu_custom_call.1} parent=1 // pred_check
      _
    $region79: #{tpu_custom_call.1} parent=1 // pred_check_branch
      %176 = sbr.rel (0) target = $region81
    $region80: #{tpu_custom_call.1} parent=1 // pred_region
      %178 = dma.done [#allocation6], 3840
    $region81: #{tpu_custom_call.1} parent=1 // pred_fallthru
      _
    // Predicated region
    $region82: #{tpu_custom_call.1} parent=1 // pred_check
      _
    $region83: #{tpu_custom_call.1} parent=1 // pred_check_branch
      %180 = sbr.rel (0) target = $region85
    $region84: #{tpu_custom_call.1} parent=1 // pred_region
      %182 = dma.done [#allocation6], 17856
    $region85: #{tpu_custom_call.1} parent=1 // pred_fallthru
      _
    // Predicated region
    $region86: #{tpu_custom_call.1} parent=1 // pred_check
      _
    $region87: #{tpu_custom_call.1} parent=1 // pred_check_branch
      %184 = sbr.rel (0) target = $region89
    $region88: #{tpu_custom_call.1} parent=1 // pred_region
      %186 = dma.done [#allocation9], 144
    $region89: #{tpu_custom_call.1} parent=1 // pred_fallthru
      _
    // Predicated region
    $region90: #{tpu_custom_call.1} parent=1 // pred_check
      _
    $region91: #{tpu_custom_call.1} parent=1 // pred_check_branch
      %188 = sbr.rel (0) target = $region93
    $region92: #{tpu_custom_call.1} parent=1 // pred_region
      %190 = dma.done [#allocation9], 18432
    $region93: #{tpu_custom_call.1} parent=1 // pred_fallthru
      _
    // Predicated region
    $region94: #{tpu_custom_call.1} parent=1 // pred_check
      _
    $region95: #{tpu_custom_call.1} parent=1 // pred_check_branch
      %192 = sbr.rel (0) target = $region97
    $region96: #{tpu_custom_call.1} parent=1 // pred_region
      %194 = dma.done [#allocation12], 6144
    $region97: #{tpu_custom_call.1} parent=1 // pred_fallthru
      _
    // Predicated region
    $region98: #{tpu_custom_call.1} parent=1 // pred_check
      _
    $region99: #{tpu_custom_call.1} parent=1 // pred_check_branch
      %196 = sbr.rel (0) target = $region101
    $region100: #{tpu_custom_call.1} parent=1 // pred_region
      %198 = dma.done [#allocation12], 16
    $region101: #{tpu_custom_call.1} parent=1 // pred_fallthru
      _
    // Predicated region
    $region102: #{tpu_custom_call.1} parent=1 // pred_check
      _
    $region103: #{tpu_custom_call.1} parent=1 // pred_check_branch
      %200 = sbr.rel (0) target = $region105
    $region104: #{tpu_custom_call.1} parent=1 // pred_region
      %202 = dma.done [#allocation15], 2048
    $region105: #{tpu_custom_call.1} parent=1 // pred_fallthru
      _
    // Predicated region
    $region106: #{tpu_custom_call.1} parent=1 // pred_check
      _
    $region107: #{tpu_custom_call.1} parent=1 // pred_check_branch
      %204 = sbr.rel (0) target = $region109
    $region108: #{tpu_custom_call.1} parent=1 // pred_region
      %206 = dma.done [#allocation15], 16
    $region109: #{tpu_custom_call.1} parent=1 // pred_fallthru
      _
    // Predicated region
    $region110: #{tpu_custom_call.1} parent=1 // pred_check
      _
    $region111: #{tpu_custom_call.1} parent=1 // pred_check_branch
      %208 = sbr.rel (0) target = $region113
    $region112: #{tpu_custom_call.1} parent=1 // pred_region
      %210 = dma.done [#allocation18], 2048
    $region113: #{tpu_custom_call.1} parent=1 // pred_fallthru
      _
    %v211 = vld [vmem:[%s0] sm:$0xff]
    %v212 = vld [vmem:[%s0 + $0x8] sm:$0xff]
    %v213 = vld [vmem:[%s0 + $0x10] sm:$0xff]
    %v214 = vld [vmem:[%s0 + $0x18] sm:$0xff]
    %v215 = vld [vmem:[%s0 + $0x20] sm:$0xff]
    %v216 = vld [vmem:[%s0 + $0x28] sm:$0xff]
    %v217 = vld [vmem:[%s0 + $0x30] sm:$0xff]
    %v218 = vld [vmem:[%s0 + $0x38] sm:$0xff]
    %v219 = vld [vmem:[%s0 + $0x40] sm:$0xff]
    %v220 = vld [vmem:[%s0 + $0x48] sm:$0xff]
    %v221 = vld [vmem:[%s0 + $0x50] sm:$0xff]
    %v222 = vld [vmem:[%s0 + $0x58] sm:$0xff]
    %v223 = vld [vmem:[%s0 + $0x60] sm:$0xff]
    %v224 = vld [vmem:[%s0 + $0x68] sm:$0xff]
    %v225 = vld [vmem:[%s0 + $0x70] sm:$0xff]
    %v226 = vld [vmem:[%s0 + $0x78] sm:$0xff]
    %v227 = vld [vmem:[%s0 + $0x80] sm:$0xff]
    %v228 = vld [vmem:[%s0 + $0x88] sm:$0xff]
    %v229 = vld [vmem:[%s0 + $0x90] sm:$0xff]
    %v230 = vld [vmem:[%s0 + $0x98] sm:$0xff]
    %v231 = vld [vmem:[%s0 + $0xa0] sm:$0xff]
    %v232 = vld [vmem:[%s0 + $0xa8] sm:$0xff]
    %v233 = vld [vmem:[%s0 + $0xb0] sm:$0xff]
    %v234 = vld [vmem:[%s0 + $0xb8] sm:$0xff]
    %v235 = vld [vmem:[%s0 + $0xc0] sm:$0xff]
    %v236 = vld [vmem:[%s0 + $0xc8] sm:$0xff]
    %v237 = vld [vmem:[%s0 + $0xd0] sm:$0xff]
    %v238 = vld [vmem:[%s0 + $0xd8] sm:$0xff]
    %v239 = vld [vmem:[%s0 + $0xe0] sm:$0xff]
    %v240 = vld [vmem:[%s0 + $0xe8] sm:$0xff]
    %v241 = vld [vmem:[#allocation3] sm:$0xff]
    %v242 = vld [vmem:[#allocation3 + $0x8] sm:$0xff]
    %v243 = vld [vmem:[#allocation3 + $0x10] sm:$0xff]
    %v244 = vld [vmem:[#allocation3 + $0x18] sm:$0xff]
    %v245 = vld [vmem:[#allocation3 + $0x20] sm:$0xff]
    %v246 = vld [vmem:[#allocation3 + $0x28] sm:$0xff]
    %v247 = vld [vmem:[#allocation3 + $0x30] sm:$0xff]
    %v248 = vld [vmem:[#allocation3 + $0x38] sm:$0xff]
    %v249 = vld [vmem:[#allocation3 + $0x40] sm:$0xff]
    %v250 = vld [vmem:[#allocation3 + $0x48] sm:$0xff]
    %v251 = vld [vmem:[#allocation3 + $0x50] sm:$0xff]
    %v252 = vld [vmem:[#allocation3 + $0x58] sm:$0xff]
    %v253 = vld [vmem:[#allocation3 + $0x60] sm:$0xff]
    %v254 = vld [vmem:[#allocation3 + $0x68] sm:$0xff]
    %v255 = vld [vmem:[#allocation3 + $0x70] sm:$0xff]
    %v256 = vld [vmem:[#allocation3 + $0x78] sm:$0xff]
    %v257 = vld [vmem:[#allocation3 + $0x80] sm:$0xff]
    %v258 = vld [vmem:[#allocation3 + $0x88] sm:$0xff]
    %v259 = vld [vmem:[#allocation3 + $0x90] sm:$0xff]
    %v260 = vld [vmem:[#allocation3 + $0x98] sm:$0xff]
    %v261 = vld [vmem:[#allocation3 + $0xa0] sm:$0xff]
    %v262 = vld [vmem:[#allocation3 + $0xa8] sm:$0xff]
    %v263 = vld [vmem:[#allocation3 + $0xb0] sm:$0xff]
    %v264 = vld [vmem:[#allocation3 + $0xb8] sm:$0xff]
    %v265 = vld [vmem:[#allocation3 + $0xc0] sm:$0xff]
    %v266 = vld [vmem:[#allocation3 + $0xc8] sm:$0xff]
    %v267 = vld [vmem:[#allocation3 + $0xd0] sm:$0xff]
    %v268 = vld [vmem:[#allocation3 + $0xd8] sm:$0xff]
    %v269 = vld [vmem:[#allocation3 + $0xe0] sm:$0xff]
    %v270 = vld [vmem:[#allocation3 + $0xe8] sm:$0xff]
    %v271 = vld [vmem:[#allocation5] sm:$0xff]
    %v272 = vld [vmem:[#allocation5 + $0x8] sm:$0xff]
    %v273 = vld [vmem:[#allocation5 + $0x10] sm:$0xff]
    %v274 = vld [vmem:[#allocation5 + $0x18] sm:$0xff]
    %v275 = vld [vmem:[#allocation5 + $0x20] sm:$0xff]
    %v276 = vld [vmem:[#allocation5 + $0x28] sm:$0xff]
    %v277 = vld [vmem:[#allocation5 + $0x30] sm:$0xff]
    %v278 = vld [vmem:[#allocation5 + $0x38] sm:$0xff]
    %v279 = vld [vmem:[#allocation5 + $0x40] sm:$0xff]
    %v280 = vld [vmem:[#allocation5 + $0x48] sm:$0xff]
    %v281 = vld [vmem:[#allocation5 + $0x50] sm:$0xff]
    %v282 = vld [vmem:[#allocation5 + $0x58] sm:$0xff]
    %v283 = vld [vmem:[#allocation5 + $0x60] sm:$0xff]
    %v284 = vld [vmem:[#allocation5 + $0x68] sm:$0xff]
    %v285 = vld [vmem:[#allocation5 + $0x70] sm:$0xff]
    %v286 = vld [vmem:[#allocation5 + $0x78] sm:$0xff]
    %v287 = vld [vmem:[#allocation5 + $0x80] sm:$0xff]
    %v288 = vld [vmem:[#allocation5 + $0x88] sm:$0xff]
    %v289 = vld [vmem:[#allocation5 + $0x90] sm:$0xff]
    %v290 = vld [vmem:[#allocation5 + $0x98] sm:$0xff]
    %v291 = vld [vmem:[#allocation5 + $0xa0] sm:$0xff]
    %v292 = vld [vmem:[#allocation5 + $0xa8] sm:$0xff]
    %v293 = vld [vmem:[#allocation5 + $0xb0] sm:$0xff]
    %v294 = vld [vmem:[#allocation5 + $0xb8] sm:$0xff]
    %v295 = vld [vmem:[#allocation5 + $0xc0] sm:$0xff]
    %v296 = vld [vmem:[#allocation5 + $0xc8] sm:$0xff]
    %v297 = vld [vmem:[#allocation5 + $0xd0] sm:$0xff]
    %v298 = vld [vmem:[#allocation5 + $0xd8] sm:$0xff]
    %v299 = vld [vmem:[#allocation5 + $0xe0] sm:$0xff]
    %v300 = vld [vmem:[#allocation5 + $0xe8] sm:$0xff]
    %v301 = vmul.f32 %v211, %v211
    %v302 = vmul.f32 %v212, %v212
    %v303 = vmul.f32 %v213, %v213
    %v304 = vmul.f32 %v214, %v214
    %v305 = vmul.f32 %v215, %v215
    %v306 = vmul.f32 %v216, %v216
    %v307 = vmul.f32 %v217, %v217
    %v308 = vmul.f32 %v218, %v218
    %v309 = vmul.f32 %v219, %v219
    %v310 = vmul.f32 %v220, %v220
    %v311 = vmul.f32 %v221, %v221
    %v312 = vmul.f32 %v222, %v222
    %v313 = vmul.f32 %v223, %v223
    %v314 = vmul.f32 %v224, %v224
    %v315 = vmul.f32 %v225, %v225
    %v316 = vmul.f32 %v226, %v226
    %v317 = vmul.f32 %v227, %v227
    %v318 = vmul.f32 %v228, %v228
    %v319 = vmul.f32 %v229, %v229
    %v320 = vmul.f32 %v230, %v230
    %v321 = vmul.f32 %v231, %v231
    %v322 = vmul.f32 %v232, %v232
    %v323 = vmul.f32 %v233, %v233
    %v324 = vmul.f32 %v234, %v234
    %v325 = vmul.f32 %v235, %v235
    %v326 = vmul.f32 %v236, %v236
    %v327 = vmul.f32 %v237, %v237
    %v328 = vmul.f32 %v238, %v238
    %v329 = vmul.f32 %v239, %v239
    %v330 = vmul.f32 %v240, %v240
    %v331 = vmul.f32 %v241, %v241
    %v332 = vmul.f32 %v242, %v242
    %v333 = vmul.f32 %v243, %v243
    %v334 = vmul.f32 %v244, %v244
    %v335 = vmul.f32 %v245, %v245
    %v336 = vmul.f32 %v246, %v246
    %v337 = vmul.f32 %v247, %v247
    %v338 = vmul.f32 %v248, %v248
    %v339 = vmul.f32 %v249, %v249
    %v340 = vmul.f32 %v250, %v250
    %v341 = vmul.f32 %v251, %v251
    %v342 = vmul.f32 %v252, %v252
    %v343 = vmul.f32 %v253, %v253
    %v344 = vmul.f32 %v254, %v254
    %v345 = vmul.f32 %v255, %v255
    %v346 = vmul.f32 %v256, %v256
    %v347 = vmul.f32 %v257, %v257
    %v348 = vmul.f32 %v258, %v258
    %v349 = vmul.f32 %v259, %v259
    %v350 = vmul.f32 %v260, %v260
    %v351 = vmul.f32 %v261, %v261
    %v352 = vmul.f32 %v262, %v262
    %v353 = vmul.f32 %v263, %v263
    %v354 = vmul.f32 %v264, %v264
    %v355 = vmul.f32 %v265, %v265
    %v356 = vmul.f32 %v266, %v266
    %v357 = vmul.f32 %v267, %v267
    %v358 = vmul.f32 %v268, %v268
    %v359 = vmul.f32 %v269, %v269
    %v360 = vmul.f32 %v270, %v270
    %v361 = vmul.f32 %v271, %v271
    %v362 = vmul.f32 %v272, %v272
    %v363 = vmul.f32 %v273, %v273
    %v364 = vmul.f32 %v274, %v274
    %v365 = vmul.f32 %v275, %v275
    %v366 = vmul.f32 %v276, %v276
    %v367 = vmul.f32 %v277, %v277
    %v368 = vmul.f32 %v278, %v278
    %v369 = vmul.f32 %v279, %v279
    %v370 = vmul.f32 %v280, %v280
    %v371 = vmul.f32 %v281, %v281
    %v372 = vmul.f32 %v282, %v282
    %v373 = vmul.f32 %v283, %v283
    %v374 = vmul.f32 %v284, %v284
    %v375 = vmul.f32 %v285, %v285
    %v376 = vmul.f32 %v286, %v286
    %v377 = vmul.f32 %v287, %v287
    %v378 = vmul.f32 %v288, %v288
    %v379 = vmul.f32 %v289, %v289
    %v380 = vmul.f32 %v290, %v290
    %v381 = vmul.f32 %v291, %v291
    %v382 = vmul.f32 %v292, %v292
    %v383 = vmul.f32 %v293, %v293
    %v384 = vmul.f32 %v294, %v294
    %v385 = vmul.f32 %v295, %v295
    %v386 = vmul.f32 %v296, %v296
    %v387 = vmul.f32 %v297, %v297
    %v388 = vmul.f32 %v298, %v298
    %v389 = vmul.f32 %v299, %v299
    %v390 = vmul.f32 %v300, %v300
    %vm391 = vcmask 957440
    %v392 = vsel %vm391, %v302, 0.0
    %v393 = vadd.f32 %v301, %v392
    %394 = vadd.xlane.f32.xlu0 %v393
    %v395 = vpop.xlane.xlu0 %394
    %v396 = vsel %vm391, %v304, 0.0
    %v397 = vadd.f32 %v303, %v396
    %398 = vadd.xlane.f32.xlu0 %v397
    %v399 = vpop.xlane.xlu0 %398
    %v400 = vsel %vm391, %v306, 0.0
    %v401 = vadd.f32 %v305, %v400
    %402 = vadd.xlane.f32.xlu0 %v401
    %v403 = vpop.xlane.xlu0 %402
    %v404 = vsel %vm391, %v308, 0.0
    %v405 = vadd.f32 %v307, %v404
    %406 = vadd.xlane.f32.xlu0 %v405
    %v407 = vpop.xlane.xlu0 %406
    %v408 = vsel %vm391, %v310, 0.0
    %v409 = vadd.f32 %v309, %v408
    %410 = vadd.xlane.f32.xlu0 %v409
    %v411 = vpop.xlane.xlu0 %410
    %v412 = vsel %vm391, %v312, 0.0
    %v413 = vadd.f32 %v311, %v412
    %414 = vadd.xlane.f32.xlu0 %v413
    %v415 = vpop.xlane.xlu0 %414
    %v416 = vsel %vm391, %v314, 0.0
    %v417 = vadd.f32 %v313, %v416
    %418 = vadd.xlane.f32.xlu0 %v417
    %v419 = vpop.xlane.xlu0 %418
    %v420 = vsel %vm391, %v316, 0.0
    %v421 = vadd.f32 %v315, %v420
    %422 = vadd.xlane.f32.xlu0 %v421
    %v423 = vpop.xlane.xlu0 %422
    %v424 = vsel %vm391, %v318, 0.0
    %v425 = vadd.f32 %v317, %v424
    %426 = vadd.xlane.f32.xlu0 %v425
    %v427 = vpop.xlane.xlu0 %426
    %v428 = vsel %vm391, %v320, 0.0
    %v429 = vadd.f32 %v319, %v428
    %430 = vadd.xlane.f32.xlu0 %v429
    %v431 = vpop.xlane.xlu0 %430
    %v432 = vsel %vm391, %v322, 0.0
    %v433 = vadd.f32 %v321, %v432
    %434 = vadd.xlane.f32.xlu0 %v433
    %v435 = vpop.xlane.xlu0 %434
    %v436 = vsel %vm391, %v324, 0.0
    %v437 = vadd.f32 %v323, %v436
    %438 = vadd.xlane.f32.xlu0 %v437
    %v439 = vpop.xlane.xlu0 %438
    %v440 = vsel %vm391, %v326, 0.0
    %v441 = vadd.f32 %v325, %v440
    %442 = vadd.xlane.f32.xlu0 %v441
    %v443 = vpop.xlane.xlu0 %442
    %v444 = vsel %vm391, %v328, 0.0
    %v445 = vadd.f32 %v327, %v444
    %446 = vadd.xlane.f32.xlu0 %v445
    %v447 = vpop.xlane.xlu0 %446
    %v448 = vsel %vm391, %v330, 0.0
    %v449 = vadd.f32 %v329, %v448
    %450 = vadd.xlane.f32.xlu0 %v449
    %v451 = vpop.xlane.xlu0 %450
    %v452 = vsel %vm391, %v332, 0.0
    %v453 = vadd.f32 %v331, %v452
    %454 = vadd.xlane.f32.xlu0 %v453
    %v455 = vpop.xlane.xlu0 %454
    %v456 = vsel %vm391, %v334, 0.0
    %v457 = vadd.f32 %v333, %v456
    %458 = vadd.xlane.f32.xlu0 %v457
    %v459 = vpop.xlane.xlu0 %458
    %v460 = vsel %vm391, %v336, 0.0
    %v461 = vadd.f32 %v335, %v460
    %462 = vadd.xlane.f32.xlu0 %v461
    %v463 = vpop.xlane.xlu0 %462
    %v464 = vsel %vm391, %v338, 0.0
    %v465 = vadd.f32 %v337, %v464
    %466 = vadd.xlane.f32.xlu0 %v465
    %v467 = vpop.xlane.xlu0 %466
    %v468 = vsel %vm391, %v340, 0.0
    %v469 = vadd.f32 %v339, %v468
    %470 = vadd.xlane.f32.xlu0 %v469
    %v471 = vpop.xlane.xlu0 %470
    %v472 = vsel %vm391, %v342, 0.0
    %v473 = vadd.f32 %v341, %v472
    %474 = vadd.xlane.f32.xlu0 %v473
    %v475 = vpop.xlane.xlu0 %474
    %v476 = vsel %vm391, %v344, 0.0
    %v477 = vadd.f32 %v343, %v476
    %478 = vadd.xlane.f32.xlu0 %v477
    %v479 = vpop.xlane.xlu0 %478
    %v480 = vsel %vm391, %v346, 0.0
    %v481 = vadd.f32 %v345, %v480
    %482 = vadd.xlane.f32.xlu0 %v481
    %v483 = vpop.xlane.xlu0 %482
    %v484 = vsel %vm391, %v348, 0.0
    %v485 = vadd.f32 %v347, %v484
    %486 = vadd.xlane.f32.xlu0 %v485
    %v487 = vpop.xlane.xlu0 %486
    %v488 = vsel %vm391, %v350, 0.0
    %v489 = vadd.f32 %v349, %v488
    %490 = vadd.xlane.f32.xlu0 %v489
    %v491 = vpop.xlane.xlu0 %490
    %v492 = vsel %vm391, %v352, 0.0
    %v493 = vadd.f32 %v351, %v492
    %494 = vadd.xlane.f32.xlu0 %v493
    %v495 = vpop.xlane.xlu0 %494
    %v496 = vsel %vm391, %v354, 0.0
    %v497 = vadd.f32 %v353, %v496
    %498 = vadd.xlane.f32.xlu0 %v497
    %v499 = vpop.xlane.xlu0 %498
    %v500 = vsel %vm391, %v356, 0.0
    %v501 = vadd.f32 %v355, %v500
    %502 = vadd.xlane.f32.xlu0 %v501
    %v503 = vpop.xlane.xlu0 %502
    %v504 = vsel %vm391, %v358, 0.0
    %v505 = vadd.f32 %v357, %v504
    %506 = vadd.xlane.f32.xlu0 %v505
    %v507 = vpop.xlane.xlu0 %506
    %v508 = vsel %vm391, %v360, 0.0
    %v509 = vadd.f32 %v359, %v508
    %510 = vadd.xlane.f32.xlu0 %v509
    %v511 = vpop.xlane.xlu0 %510
    %v512 = vsel %vm391, %v362, 0.0
    %v513 = vadd.f32 %v361, %v512
    %514 = vadd.xlane.f32.xlu0 %v513
    %v515 = vpop.xlane.xlu0 %514
    %v516 = vsel %vm391, %v364, 0.0
    %v517 = vadd.f32 %v363, %v516
    %518 = vadd.xlane.f32.xlu0 %v517
    %v519 = vpop.xlane.xlu0 %518
    %v520 = vsel %vm391, %v366, 0.0
    %v521 = vadd.f32 %v365, %v520
    %522 = vadd.xlane.f32.xlu0 %v521
    %v523 = vpop.xlane.xlu0 %522
    %v524 = vsel %vm391, %v368, 0.0
    %v525 = vadd.f32 %v367, %v524
    %526 = vadd.xlane.f32.xlu0 %v525
    %v527 = vpop.xlane.xlu0 %526
    %v528 = vsel %vm391, %v370, 0.0
    %v529 = vadd.f32 %v369, %v528
    %530 = vadd.xlane.f32.xlu0 %v529
    %v531 = vpop.xlane.xlu0 %530
    %v532 = vsel %vm391, %v372, 0.0
    %v533 = vadd.f32 %v371, %v532
    %534 = vadd.xlane.f32.xlu0 %v533
    %v535 = vpop.xlane.xlu0 %534
    %v536 = vsel %vm391, %v374, 0.0
    %v537 = vadd.f32 %v373, %v536
    %538 = vadd.xlane.f32.xlu0 %v537
    %v539 = vpop.xlane.xlu0 %538
    %v540 = vsel %vm391, %v376, 0.0
    %v541 = vadd.f32 %v375, %v540
    %542 = vadd.xlane.f32.xlu0 %v541
    %v543 = vpop.xlane.xlu0 %542
    %v544 = vsel %vm391, %v378, 0.0
    %v545 = vadd.f32 %v377, %v544
    %546 = vadd.xlane.f32.xlu0 %v545
    %v547 = vpop.xlane.xlu0 %546
    %v548 = vsel %vm391, %v380, 0.0
    %v549 = vadd.f32 %v379, %v548
    %550 = vadd.xlane.f32.xlu0 %v549
    %v551 = vpop.xlane.xlu0 %550
    %v552 = vsel %vm391, %v382, 0.0
    %v553 = vadd.f32 %v381, %v552
    %554 = vadd.xlane.f32.xlu0 %v553
    %v555 = vpop.xlane.xlu0 %554
    %v556 = vsel %vm391, %v384, 0.0
    %v557 = vadd.f32 %v383, %v556
    %558 = vadd.xlane.f32.xlu0 %v557
    %v559 = vpop.xlane.xlu0 %558
    %v560 = vsel %vm391, %v386, 0.0
    %v561 = vadd.f32 %v385, %v560
    %562 = vadd.xlane.f32.xlu0 %v561
    %v563 = vpop.xlane.xlu0 %562
    %v564 = vsel %vm391, %v388, 0.0
    %v565 = vadd.f32 %v387, %v564
    %566 = vadd.xlane.f32.xlu0 %v565
    %v567 = vpop.xlane.xlu0 %566
    %v568 = vsel %vm391, %v390, 0.0
    %v569 = vadd.f32 %v389, %v568
    %570 = vadd.xlane.f32.xlu0 %v569
    %v571 = vpop.xlane.xlu0 %570
    %v572 = vsel %vm391, %v212, 0.0
    %v573 = vadd.f32 %v211, %v572
    %574 = vadd.xlane.f32.xlu0 %v573
    %v575 = vpop.xlane.xlu0 %574
    %v576 = vsel %vm391, %v214, 0.0
    %v577 = vadd.f32 %v213, %v576
    %578 = vadd.xlane.f32.xlu0 %v577
    %v579 = vpop.xlane.xlu0 %578
    %v580 = vsel %vm391, %v216, 0.0
    %v581 = vadd.f32 %v215, %v580
    %582 = vadd.xlane.f32.xlu0 %v581
    %v583 = vpop.xlane.xlu0 %582
    %v584 = vsel %vm391, %v218, 0.0
    %v585 = vadd.f32 %v217, %v584
    %586 = vadd.xlane.f32.xlu0 %v585
    %v587 = vpop.xlane.xlu0 %586
    %v588 = vsel %vm391, %v220, 0.0
    %v589 = vadd.f32 %v219, %v588
    %590 = vadd.xlane.f32.xlu0 %v589
    %v591 = vpop.xlane.xlu0 %590
    %v592 = vsel %vm391, %v222, 0.0
    %v593 = vadd.f32 %v221, %v592
    %594 = vadd.xlane.f32.xlu0 %v593
    %v595 = vpop.xlane.xlu0 %594
    %v596 = vsel %vm391, %v224, 0.0
    %v597 = vadd.f32 %v223, %v596
    %598 = vadd.xlane.f32.xlu0 %v597
    %v599 = vpop.xlane.xlu0 %598
    %v600 = vsel %vm391, %v226, 0.0
    %v601 = vadd.f32 %v225, %v600
    %602 = vadd.xlane.f32.xlu0 %v601
    %v603 = vpop.xlane.xlu0 %602
    %v604 = vsel %vm391, %v228, 0.0
    %v605 = vadd.f32 %v227, %v604
    %606 = vadd.xlane.f32.xlu0 %v605
    %v607 = vpop.xlane.xlu0 %606
    %v608 = vsel %vm391, %v230, 0.0
    %v609 = vadd.f32 %v229, %v608
    %610 = vadd.xlane.f32.xlu0 %v609
    %v611 = vpop.xlane.xlu0 %610
    %v612 = vsel %vm391, %v232, 0.0
    %v613 = vadd.f32 %v231, %v612
    %614 = vadd.xlane.f32.xlu0 %v613
    %v615 = vpop.xlane.xlu0 %614
    %v616 = vsel %vm391, %v234, 0.0
    %v617 = vadd.f32 %v233, %v616
    %618 = vadd.xlane.f32.xlu0 %v617
    %v619 = vpop.xlane.xlu0 %618
    %v620 = vsel %vm391, %v236, 0.0
    %v621 = vadd.f32 %v235, %v620
    %622 = vadd.xlane.f32.xlu0 %v621
    %v623 = vpop.xlane.xlu0 %622
    %v624 = vsel %vm391, %v238, 0.0
    %v625 = vadd.f32 %v237, %v624
    %626 = vadd.xlane.f32.xlu0 %v625
    %v627 = vpop.xlane.xlu0 %626
    %v628 = vsel %vm391, %v240, 0.0
    %v629 = vadd.f32 %v239, %v628
    %630 = vadd.xlane.f32.xlu0 %v629
    %v631 = vpop.xlane.xlu0 %630
    %v632 = vsel %vm391, %v242, 0.0
    %v633 = vadd.f32 %v241, %v632
    %634 = vadd.xlane.f32.xlu0 %v633
    %v635 = vpop.xlane.xlu0 %634
    %v636 = vsel %vm391, %v244, 0.0
    %v637 = vadd.f32 %v243, %v636
    %638 = vadd.xlane.f32.xlu0 %v637
    %v639 = vpop.xlane.xlu0 %638
    %v640 = vsel %vm391, %v246, 0.0
    %v641 = vadd.f32 %v245, %v640
    %642 = vadd.xlane.f32.xlu0 %v641
    %v643 = vpop.xlane.xlu0 %642
    %v644 = vsel %vm391, %v248, 0.0
    %v645 = vadd.f32 %v247, %v644
    %646 = vadd.xlane.f32.xlu0 %v645
    %v647 = vpop.xlane.xlu0 %646
    %v648 = vsel %vm391, %v250, 0.0
    %v649 = vadd.f32 %v249, %v648
    %650 = vadd.xlane.f32.xlu0 %v649
    %v651 = vpop.xlane.xlu0 %650
    %v652 = vsel %vm391, %v252, 0.0
    %v653 = vadd.f32 %v251, %v652
    %654 = vadd.xlane.f32.xlu0 %v653
    %v655 = vpop.xlane.xlu0 %654
    %v656 = vsel %vm391, %v254, 0.0
    %v657 = vadd.f32 %v253, %v656
    %658 = vadd.xlane.f32.xlu0 %v657
    %v659 = vpop.xlane.xlu0 %658
    %v660 = vsel %vm391, %v256, 0.0
    %v661 = vadd.f32 %v255, %v660
    %662 = vadd.xlane.f32.xlu0 %v661
    %v663 = vpop.xlane.xlu0 %662
    %v664 = vsel %vm391, %v258, 0.0
    %v665 = vadd.f32 %v257, %v664
    %666 = vadd.xlane.f32.xlu0 %v665
    %v667 = vpop.xlane.xlu0 %666
    %v668 = vsel %vm391, %v260, 0.0
    %v669 = vadd.f32 %v259, %v668
    %670 = vadd.xlane.f32.xlu0 %v669
    %v671 = vpop.xlane.xlu0 %670
    %v672 = vsel %vm391, %v262, 0.0
    %v673 = vadd.f32 %v261, %v672
    %674 = vadd.xlane.f32.xlu0 %v673
    %v675 = vpop.xlane.xlu0 %674
    %v676 = vsel %vm391, %v264, 0.0
    %v677 = vadd.f32 %v263, %v676
    %678 = vadd.xlane.f32.xlu0 %v677
    %v679 = vpop.xlane.xlu0 %678
    %v680 = vsel %vm391, %v266, 0.0
    %v681 = vadd.f32 %v265, %v680
    %682 = vadd.xlane.f32.xlu0 %v681
    %v683 = vpop.xlane.xlu0 %682
    %v684 = vsel %vm391, %v268, 0.0
    %v685 = vadd.f32 %v267, %v684
    %686 = vadd.xlane.f32.xlu0 %v685
    %v687 = vpop.xlane.xlu0 %686
    %v688 = vsel %vm391, %v270, 0.0
    %v689 = vadd.f32 %v269, %v688
    %690 = vadd.xlane.f32.xlu0 %v689
    %v691 = vpop.xlane.xlu0 %690
    %v692 = vsel %vm391, %v272, 0.0
    %v693 = vadd.f32 %v271, %v692
    %694 = vadd.xlane.f32.xlu0 %v693
    %v695 = vpop.xlane.xlu0 %694
    %v696 = vsel %vm391, %v274, 0.0
    %v697 = vadd.f32 %v273, %v696
    %698 = vadd.xlane.f32.xlu0 %v697
    %v699 = vpop.xlane.xlu0 %698
    %v700 = vsel %vm391, %v276, 0.0
    %v701 = vadd.f32 %v275, %v700
    %702 = vadd.xlane.f32.xlu0 %v701
    %v703 = vpop.xlane.xlu0 %702
    %v704 = vsel %vm391, %v278, 0.0
    %v705 = vadd.f32 %v277, %v704
    %706 = vadd.xlane.f32.xlu0 %v705
    %v707 = vpop.xlane.xlu0 %706
    %v708 = vsel %vm391, %v280, 0.0
    %v709 = vadd.f32 %v279, %v708
    %710 = vadd.xlane.f32.xlu0 %v709
    %v711 = vpop.xlane.xlu0 %710
    %v712 = vsel %vm391, %v282, 0.0
    %v713 = vadd.f32 %v281, %v712
    %714 = vadd.xlane.f32.xlu0 %v713
    %v715 = vpop.xlane.xlu0 %714
    %v716 = vsel %vm391, %v284, 0.0
    %v717 = vadd.f32 %v283, %v716
    %718 = vadd.xlane.f32.xlu0 %v717
    %v719 = vpop.xlane.xlu0 %718
    %v720 = vsel %vm391, %v286, 0.0
    %v721 = vadd.f32 %v285, %v720
    %722 = vadd.xlane.f32.xlu0 %v721
    %v723 = vpop.xlane.xlu0 %722
    %v724 = vsel %vm391, %v288, 0.0
    %v725 = vadd.f32 %v287, %v724
    %726 = vadd.xlane.f32.xlu0 %v725
    %v727 = vpop.xlane.xlu0 %726
    %v728 = vsel %vm391, %v290, 0.0
    %v729 = vadd.f32 %v289, %v728
    %730 = vadd.xlane.f32.xlu0 %v729
    %v731 = vpop.xlane.xlu0 %730
    %v732 = vsel %vm391, %v292, 0.0
    %v733 = vadd.f32 %v291, %v732
    %734 = vadd.xlane.f32.xlu0 %v733
    %v735 = vpop.xlane.xlu0 %734
    %v736 = vsel %vm391, %v294, 0.0
    %v737 = vadd.f32 %v293, %v736
    %738 = vadd.xlane.f32.xlu0 %v737
    %v739 = vpop.xlane.xlu0 %738
    %v740 = vsel %vm391, %v296, 0.0
    %v741 = vadd.f32 %v295, %v740
    %742 = vadd.xlane.f32.xlu0 %v741
    %v743 = vpop.xlane.xlu0 %742
    %v744 = vsel %vm391, %v298, 0.0
    %v745 = vadd.f32 %v297, %v744
    %746 = vadd.xlane.f32.xlu0 %v745
    %v747 = vpop.xlane.xlu0 %746
    %v748 = vsel %vm391, %v300, 0.0
    %v749 = vadd.f32 %v299, %v748
    %750 = vadd.xlane.f32.xlu0 %v749
    %v751 = vpop.xlane.xlu0 %750
    %v752 = vmul.f32 %v575, 0.0040816325
    %v753 = vmul.f32 %v579, 0.0040816325
    %v754 = vmul.f32 %v583, 0.0040816325
    %v755 = vmul.f32 %v587, 0.0040816325
    %v756 = vmul.f32 %v591, 0.0040816325
    %v757 = vmul.f32 %v595, 0.0040816325
    %v758 = vmul.f32 %v599, 0.0040816325
    %v759 = vmul.f32 %v603, 0.0040816325
    %v760 = vmul.f32 %v607, 0.0040816325
    %v761 = vmul.f32 %v611, 0.0040816325
    %v762 = vmul.f32 %v615, 0.0040816325
    %v763 = vmul.f32 %v619, 0.0040816325
    %v764 = vmul.f32 %v623, 0.0040816325
    %v765 = vmul.f32 %v627, 0.0040816325
    %v766 = vmul.f32 %v631, 0.0040816325
    %v767 = vmul.f32 %v635, 0.0040816325
    %v768 = vmul.f32 %v639, 0.0040816325
    %v769 = vmul.f32 %v643, 0.0040816325
    %v770 = vmul.f32 %v647, 0.0040816325
    %v771 = vmul.f32 %v651, 0.0040816325
    %v772 = vmul.f32 %v655, 0.0040816325
    %v773 = vmul.f32 %v659, 0.0040816325
    %v774 = vmul.f32 %v663, 0.0040816325
    %v775 = vmul.f32 %v667, 0.0040816325
    %v776 = vmul.f32 %v671, 0.0040816325
    %v777 = vmul.f32 %v675, 0.0040816325
    %v778 = vmul.f32 %v679, 0.0040816325
    %v779 = vmul.f32 %v683, 0.0040816325
    %v780 = vmul.f32 %v687, 0.0040816325
    %v781 = vmul.f32 %v691, 0.0040816325
    %v782 = vmul.f32 %v695, 0.0040816325
    %v783 = vmul.f32 %v699, 0.0040816325
    %v784 = vmul.f32 %v703, 0.0040816325
    %v785 = vmul.f32 %v707, 0.0040816325
    %v786 = vmul.f32 %v711, 0.0040816325
    %v787 = vmul.f32 %v715, 0.0040816325
    %v788 = vmul.f32 %v719, 0.0040816325
    %v789 = vmul.f32 %v723, 0.0040816325
    %v790 = vmul.f32 %v727, 0.0040816325
    %v791 = vmul.f32 %v731, 0.0040816325
    %v792 = vmul.f32 %v735, 0.0040816325
    %v793 = vmul.f32 %v739, 0.0040816325
    %v794 = vmul.f32 %v743, 0.0040816325
    %v795 = vmul.f32 %v747, 0.0040816325
    %v796 = vmul.f32 %v751, 0.0040816325
    %v797 = vmul.f32 %v395, 0.0040816325
    %v798 = vmul.f32 %v399, 0.0040816325
    %v799 = vmul.f32 %v403, 0.0040816325
    %v800 = vmul.f32 %v407, 0.0040816325
    %v801 = vmul.f32 %v411, 0.0040816325
    %v802 = vmul.f32 %v415, 0.0040816325
    %v803 = vmul.f32 %v419, 0.0040816325
    %v804 = vmul.f32 %v423, 0.0040816325
    %v805 = vmul.f32 %v427, 0.0040816325
    %v806 = vmul.f32 %v431, 0.0040816325
    %v807 = vmul.f32 %v435, 0.0040816325
    %v808 = vmul.f32 %v439, 0.0040816325
    %v809 = vmul.f32 %v443, 0.0040816325
    %v810 = vmul.f32 %v447, 0.0040816325
    %v811 = vmul.f32 %v451, 0.0040816325
    %v812 = vmul.f32 %v455, 0.0040816325
    %v813 = vmul.f32 %v459, 0.0040816325
    %v814 = vmul.f32 %v463, 0.0040816325
    %v815 = vmul.f32 %v467, 0.0040816325
    %v816 = vmul.f32 %v471, 0.0040816325
    %v817 = vmul.f32 %v475, 0.0040816325
    %v818 = vmul.f32 %v479, 0.0040816325
    %v819 = vmul.f32 %v483, 0.0040816325
    %v820 = vmul.f32 %v487, 0.0040816325
    %v821 = vmul.f32 %v491, 0.0040816325
    %v822 = vmul.f32 %v495, 0.0040816325
    %v823 = vmul.f32 %v499, 0.0040816325
    %v824 = vmul.f32 %v503, 0.0040816325
    %v825 = vmul.f32 %v507, 0.0040816325
    %v826 = vmul.f32 %v511, 0.0040816325
    %v827 = vmul.f32 %v515, 0.0040816325
    %v828 = vmul.f32 %v519, 0.0040816325
    %v829 = vmul.f32 %v523, 0.0040816325
    %v830 = vmul.f32 %v527, 0.0040816325
    %v831 = vmul.f32 %v531, 0.0040816325
    %v832 = vmul.f32 %v535, 0.0040816325
    %v833 = vmul.f32 %v539, 0.0040816325
    %v834 = vmul.f32 %v543, 0.0040816325
    %v835 = vmul.f32 %v547, 0.0040816325
    %v836 = vmul.f32 %v551, 0.0040816325
    %v837 = vmul.f32 %v555, 0.0040816325
    %v838 = vmul.f32 %v559, 0.0040816325
    %v839 = vmul.f32 %v563, 0.0040816325
    %v840 = vmul.f32 %v567, 0.0040816325
    %v841 = vmul.f32 %v571, 0.0040816325
    %v842 = vmul.f32 %v752, %v752
    %v843 = vmul.f32 %v753, %v753
    %v844 = vmul.f32 %v754, %v754
    %v845 = vmul.f32 %v755, %v755
    %v846 = vmul.f32 %v756, %v756
    %v847 = vmul.f32 %v757, %v757
    %v848 = vmul.f32 %v758, %v758
    %v849 = vmul.f32 %v759, %v759
    %v850 = vmul.f32 %v760, %v760
    %v851 = vmul.f32 %v761, %v761
    %v852 = vmul.f32 %v762, %v762
    %v853 = vmul.f32 %v763, %v763
    %v854 = vmul.f32 %v764, %v764
    %v855 = vmul.f32 %v765, %v765
    %v856 = vmul.f32 %v766, %v766
    %v857 = vmul.f32 %v767, %v767
    %v858 = vmul.f32 %v768, %v768
    %v859 = vmul.f32 %v769, %v769
    %v860 = vmul.f32 %v770, %v770
    %v861 = vmul.f32 %v771, %v771
    %v862 = vmul.f32 %v772, %v772
    %v863 = vmul.f32 %v773, %v773
    %v864 = vmul.f32 %v774, %v774
    %v865 = vmul.f32 %v775, %v775
    %v866 = vmul.f32 %v776, %v776
    %v867 = vmul.f32 %v777, %v777
    %v868 = vmul.f32 %v778, %v778
    %v869 = vmul.f32 %v779, %v779
    %v870 = vmul.f32 %v780, %v780
    %v871 = vmul.f32 %v781, %v781
    %v872 = vmul.f32 %v782, %v782
    %v873 = vmul.f32 %v783, %v783
    %v874 = vmul.f32 %v784, %v784
    %v875 = vmul.f32 %v785, %v785
    %v876 = vmul.f32 %v786, %v786
    %v877 = vmul.f32 %v787, %v787
    %v878 = vmul.f32 %v788, %v788
    %v879 = vmul.f32 %v789, %v789
    %v880 = vmul.f32 %v790, %v790
    %v881 = vmul.f32 %v791, %v791
    %v882 = vmul.f32 %v792, %v792
    %v883 = vmul.f32 %v793, %v793
    %v884 = vmul.f32 %v794, %v794
    %v885 = vmul.f32 %v795, %v795
    %v886 = vmul.f32 %v796, %v796
    %v887 = vsub.f32 %v797, %v842
    %v888 = vsub.f32 %v798, %v843
    %v889 = vsub.f32 %v799, %v844
    %v890 = vsub.f32 %v800, %v845
    %v891 = vsub.f32 %v801, %v846
    %v892 = vsub.f32 %v802, %v847
    %v893 = vsub.f32 %v803, %v848
    %v894 = vsub.f32 %v804, %v849
    %v895 = vsub.f32 %v805, %v850
    %v896 = vsub.f32 %v806, %v851
    %v897 = vsub.f32 %v807, %v852
    %v898 = vsub.f32 %v808, %v853
    %v899 = vsub.f32 %v809, %v854
    %v900 = vsub.f32 %v810, %v855
    %v901 = vsub.f32 %v811, %v856
    %v902 = vsub.f32 %v812, %v857
    %v903 = vsub.f32 %v813, %v858
    %v904 = vsub.f32 %v814, %v859
    %v905 = vsub.f32 %v815, %v860
    %v906 = vsub.f32 %v816, %v861
    %v907 = vsub.f32 %v817, %v862
    %v908 = vsub.f32 %v818, %v863
    %v909 = vsub.f32 %v819, %v864
    %v910 = vsub.f32 %v820, %v865
    %v911 = vsub.f32 %v821, %v866
    %v912 = vsub.f32 %v822, %v867
    %v913 = vsub.f32 %v823, %v868
    %v914 = vsub.f32 %v824, %v869
    %v915 = vsub.f32 %v825, %v870
    %v916 = vsub.f32 %v826, %v871
    %v917 = vsub.f32 %v827, %v872
    %v918 = vsub.f32 %v828, %v873
    %v919 = vsub.f32 %v829, %v874
    %v920 = vsub.f32 %v830, %v875
    %v921 = vsub.f32 %v831, %v876
    %v922 = vsub.f32 %v832, %v877
    %v923 = vsub.f32 %v833, %v878
    %v924 = vsub.f32 %v834, %v879
    %v925 = vsub.f32 %v835, %v880
    %v926 = vsub.f32 %v836, %v881
    %v927 = vsub.f32 %v837, %v882
    %v928 = vsub.f32 %v838, %v883
    %v929 = vsub.f32 %v839, %v884
    %v930 = vsub.f32 %v840, %v885
    %v931 = vsub.f32 %v841, %v886
    %v932 = vmax.f32 %v887, 0.0
    %v933 = vmax.f32 %v888, 0.0
    %v934 = vmax.f32 %v889, 0.0
    %v935 = vmax.f32 %v890, 0.0
    %v936 = vmax.f32 %v891, 0.0
    %v937 = vmax.f32 %v892, 0.0
    %v938 = vmax.f32 %v893, 0.0
    %v939 = vmax.f32 %v894, 0.0
    %v940 = vmax.f32 %v895, 0.0
    %v941 = vmax.f32 %v896, 0.0
    %v942 = vmax.f32 %v897, 0.0
    %v943 = vmax.f32 %v898, 0.0
    %v944 = vmax.f32 %v899, 0.0
    %v945 = vmax.f32 %v900, 0.0
    %v946 = vmax.f32 %v901, 0.0
    %v947 = vmax.f32 %v902, 0.0
    %v948 = vmax.f32 %v903, 0.0
    %v949 = vmax.f32 %v904, 0.0
    %v950 = vmax.f32 %v905, 0.0
    %v951 = vmax.f32 %v906, 0.0
    %v952 = vmax.f32 %v907, 0.0
    %v953 = vmax.f32 %v908, 0.0
    %v954 = vmax.f32 %v909, 0.0
    %v955 = vmax.f32 %v910, 0.0
    %v956 = vmax.f32 %v911, 0.0
    %v957 = vmax.f32 %v912, 0.0
    %v958 = vmax.f32 %v913, 0.0
    %v959 = vmax.f32 %v914, 0.0
    %v960 = vmax.f32 %v915, 0.0
    %v961 = vmax.f32 %v916, 0.0
    %v962 = vmax.f32 %v917, 0.0
    %v963 = vmax.f32 %v918, 0.0
    %v964 = vmax.f32 %v919, 0.0
    %v965 = vmax.f32 %v920, 0.0
    %v966 = vmax.f32 %v921, 0.0
    %v967 = vmax.f32 %v922, 0.0
    %v968 = vmax.f32 %v923, 0.0
    %v969 = vmax.f32 %v924, 0.0
    %v970 = vmax.f32 %v925, 0.0
    %v971 = vmax.f32 %v926, 0.0
    %v972 = vmax.f32 %v927, 0.0
    %v973 = vmax.f32 %v928, 0.0
    %v974 = vmax.f32 %v929, 0.0
    %v975 = vmax.f32 %v930, 0.0
    %v976 = vmax.f32 %v931, 0.0
    %v977 = vsub.f32 %v211, %v752
    %v978 = vsub.f32 %v212, %v752
    %v979 = vsub.f32 %v213, %v753
    %v980 = vsub.f32 %v214, %v753
    %v981 = vsub.f32 %v215, %v754
    %v982 = vsub.f32 %v216, %v754
    %v983 = vsub.f32 %v217, %v755
    %v984 = vsub.f32 %v218, %v755
    %v985 = vsub.f32 %v219, %v756
    %v986 = vsub.f32 %v220, %v756
    %v987 = vsub.f32 %v221, %v757
    %v988 = vsub.f32 %v222, %v757
    %v989 = vsub.f32 %v223, %v758
    %v990 = vsub.f32 %v224, %v758
    %v991 = vsub.f32 %v225, %v759
    %v992 = vsub.f32 %v226, %v759
    %v993 = vsub.f32 %v227, %v760
    %v994 = vsub.f32 %v228, %v760
    %v995 = vsub.f32 %v229, %v761
    %v996 = vsub.f32 %v230, %v761
    %v997 = vsub.f32 %v231, %v762
    %v998 = vsub.f32 %v232, %v762
    %v999 = vsub.f32 %v233, %v763
    %v1000 = vsub.f32 %v234, %v763
    %v1001 = vsub.f32 %v235, %v764
    %v1002 = vsub.f32 %v236, %v764
    %v1003 = vsub.f32 %v237, %v765
    %v1004 = vsub.f32 %v238, %v765
    %v1005 = vsub.f32 %v239, %v766
    %v1006 = vsub.f32 %v240, %v766
    %v1007 = vsub.f32 %v241, %v767
    %v1008 = vsub.f32 %v242, %v767
    %v1009 = vsub.f32 %v243, %v768
    %v1010 = vsub.f32 %v244, %v768
    %v1011 = vsub.f32 %v245, %v769
    %v1012 = vsub.f32 %v246, %v769
    %v1013 = vsub.f32 %v247, %v770
    %v1014 = vsub.f32 %v248, %v770
    %v1015 = vsub.f32 %v249, %v771
    %v1016 = vsub.f32 %v250, %v771
    %v1017 = vsub.f32 %v251, %v772
    %v1018 = vsub.f32 %v252, %v772
    %v1019 = vsub.f32 %v253, %v773
    %v1020 = vsub.f32 %v254, %v773
    %v1021 = vsub.f32 %v255, %v774
    %v1022 = vsub.f32 %v256, %v774
    %v1023 = vsub.f32 %v257, %v775
    %v1024 = vsub.f32 %v258, %v775
    %v1025 = vsub.f32 %v259, %v776
    %v1026 = vsub.f32 %v260, %v776
    %v1027 = vsub.f32 %v261, %v777
    %v1028 = vsub.f32 %v262, %v777
    %v1029 = vsub.f32 %v263, %v778
    %v1030 = vsub.f32 %v264, %v778
    %v1031 = vsub.f32 %v265, %v779
    %v1032 = vsub.f32 %v266, %v779
    %v1033 = vsub.f32 %v267, %v780
    %v1034 = vsub.f32 %v268, %v780
    %v1035 = vsub.f32 %v269, %v781
    %v1036 = vsub.f32 %v270, %v781
    %v1037 = vsub.f32 %v271, %v782
    %v1038 = vsub.f32 %v272, %v782
    %v1039 = vsub.f32 %v273, %v783
    %v1040 = vsub.f32 %v274, %v783
    %v1041 = vsub.f32 %v275, %v784
    %v1042 = vsub.f32 %v276, %v784
    %v1043 = vsub.f32 %v277, %v785
    %v1044 = vsub.f32 %v278, %v785
    %v1045 = vsub.f32 %v279, %v786
    %v1046 = vsub.f32 %v280, %v786
    %v1047 = vsub.f32 %v281, %v787
    %v1048 = vsub.f32 %v282, %v787
    %v1049 = vsub.f32 %v283, %v788
    %v1050 = vsub.f32 %v284, %v788
    %v1051 = vsub.f32 %v285, %v789
    %v1052 = vsub.f32 %v286, %v789
    %v1053 = vsub.f32 %v287, %v790
    %v1054 = vsub.f32 %v288, %v790
    %v1055 = vsub.f32 %v289, %v791
    %v1056 = vsub.f32 %v290, %v791
    %v1057 = vsub.f32 %v291, %v792
    %v1058 = vsub.f32 %v292, %v792
    %v1059 = vsub.f32 %v293, %v793
    %v1060 = vsub.f32 %v294, %v793
    %v1061 = vsub.f32 %v295, %v794
    %v1062 = vsub.f32 %v296, %v794
    %v1063 = vsub.f32 %v297, %v795
    %v1064 = vsub.f32 %v298, %v795
    %v1065 = vsub.f32 %v299, %v796
    %v1066 = vsub.f32 %v300, %v796
    %v1067 = vadd.f32 %v932, 1e-05
    %v1068 = vadd.f32 %v933, 1e-05
    %v1069 = vadd.f32 %v934, 1e-05
    %v1070 = vadd.f32 %v935, 1e-05
    %v1071 = vadd.f32 %v936, 1e-05
    %v1072 = vadd.f32 %v937, 1e-05
    %v1073 = vadd.f32 %v938, 1e-05
    %v1074 = vadd.f32 %v939, 1e-05
    %v1075 = vadd.f32 %v940, 1e-05
    %v1076 = vadd.f32 %v941, 1e-05
    %v1077 = vadd.f32 %v942, 1e-05
    %v1078 = vadd.f32 %v943, 1e-05
    %v1079 = vadd.f32 %v944, 1e-05
    %v1080 = vadd.f32 %v945, 1e-05
    %v1081 = vadd.f32 %v946, 1e-05
    %v1082 = vadd.f32 %v947, 1e-05
    %v1083 = vadd.f32 %v948, 1e-05
    %v1084 = vadd.f32 %v949, 1e-05
    %v1085 = vadd.f32 %v950, 1e-05
    %v1086 = vadd.f32 %v951, 1e-05
    %v1087 = vadd.f32 %v952, 1e-05
    %v1088 = vadd.f32 %v953, 1e-05
    %v1089 = vadd.f32 %v954, 1e-05
    %v1090 = vadd.f32 %v955, 1e-05
    %v1091 = vadd.f32 %v956, 1e-05
    %v1092 = vadd.f32 %v957, 1e-05
    %v1093 = vadd.f32 %v958, 1e-05
    %v1094 = vadd.f32 %v959, 1e-05
    %v1095 = vadd.f32 %v960, 1e-05
    %v1096 = vadd.f32 %v961, 1e-05
    %v1097 = vadd.f32 %v962, 1e-05
    %v1098 = vadd.f32 %v963, 1e-05
    %v1099 = vadd.f32 %v964, 1e-05
    %v1100 = vadd.f32 %v965, 1e-05
    %v1101 = vadd.f32 %v966, 1e-05
    %v1102 = vadd.f32 %v967, 1e-05
    %v1103 = vadd.f32 %v968, 1e-05
    %v1104 = vadd.f32 %v969, 1e-05
    %v1105 = vadd.f32 %v970, 1e-05
    %v1106 = vadd.f32 %v971, 1e-05
    %v1107 = vadd.f32 %v972, 1e-05
    %v1108 = vadd.f32 %v973, 1e-05
    %v1109 = vadd.f32 %v974, 1e-05
    %v1110 = vadd.f32 %v975, 1e-05
    %v1111 = vadd.f32 %v976, 1e-05
    %v1112 = vrsqrt.pop %v1067
    %v1113 = vmul.f32 %v1112, %v1067
    %v1114 = vmul.f32 %v1113, %v1112
    %v1115 = vmul.f32 0.5, %v1114
    %v1116 = vsub.f32 1.5, %v1115
    %v1117 = vmul.f32 %v1112, %v1116
    %vm1118 = vweird.f32 %v1067
    %vm1119 = vweird.f32 %v1112
    %vm1120 = vmor %vm1118, %vm1119
    %v1121 = vsel %vm1120, %v1112, %v1117
    %v1122 = vrsqrt.pop %v1068
    %v1123 = vmul.f32 %v1122, %v1068
    %v1124 = vmul.f32 %v1123, %v1122
    %v1125 = vmul.f32 0.5, %v1124
    %v1126 = vsub.f32 1.5, %v1125
    %v1127 = vmul.f32 %v1122, %v1126
    %vm1128 = vweird.f32 %v1068
    %vm1129 = vweird.f32 %v1122
    %vm1130 = vmor %vm1128, %vm1129
    %v1131 = vsel %vm1130, %v1122, %v1127
    %v1132 = vrsqrt.pop %v1069
    %v1133 = vmul.f32 %v1132, %v1069
    %v1134 = vmul.f32 %v1133, %v1132
    %v1135 = vmul.f32 0.5, %v1134
    %v1136 = vsub.f32 1.5, %v1135
    %v1137 = vmul.f32 %v1132, %v1136
    %vm1138 = vweird.f32 %v1069
    %vm1139 = vweird.f32 %v1132
    %vm1140 = vmor %vm1138, %vm1139
    %v1141 = vsel %vm1140, %v1132, %v1137
    %v1142 = vrsqrt.pop %v1070
    %v1143 = vmul.f32 %v1142, %v1070
    %v1144 = vmul.f32 %v1143, %v1142
    %v1145 = vmul.f32 0.5, %v1144
    %v1146 = vsub.f32 1.5, %v1145
    %v1147 = vmul.f32 %v1142, %v1146
    %vm1148 = vweird.f32 %v1070
    %vm1149 = vweird.f32 %v1142
    %vm1150 = vmor %vm1148, %vm1149
    %v1151 = vsel %vm1150, %v1142, %v1147
    %v1152 = vrsqrt.pop %v1071
    %v1153 = vmul.f32 %v1152, %v1071
    %v1154 = vmul.f32 %v1153, %v1152
    %v1155 = vmul.f32 0.5, %v1154
    %v1156 = vsub.f32 1.5, %v1155
    %v1157 = vmul.f32 %v1152, %v1156
    %vm1158 = vweird.f32 %v1071
    %vm1159 = vweird.f32 %v1152
    %vm1160 = vmor %vm1158, %vm1159
    %v1161 = vsel %vm1160, %v1152, %v1157
    %v1162 = vrsqrt.pop %v1072
    %v1163 = vmul.f32 %v1162, %v1072
    %v1164 = vmul.f32 %v1163, %v1162
    %v1165 = vmul.f32 0.5, %v1164
    %v1166 = vsub.f32 1.5, %v1165
    %v1167 = vmul.f32 %v1162, %v1166
    %vm1168 = vweird.f32 %v1072
    %vm1169 = vweird.f32 %v1162
    %vm1170 = vmor %vm1168, %vm1169
    %v1171 = vsel %vm1170, %v1162, %v1167
    %v1172 = vrsqrt.pop %v1073
    %v1173 = vmul.f32 %v1172, %v1073
    %v1174 = vmul.f32 %v1173, %v1172
    %v1175 = vmul.f32 0.5, %v1174
    %v1176 = vsub.f32 1.5, %v1175
    %v1177 = vmul.f32 %v1172, %v1176
    %vm1178 = vweird.f32 %v1073
    %vm1179 = vweird.f32 %v1172
    %vm1180 = vmor %vm1178, %vm1179
    %v1181 = vsel %vm1180, %v1172, %v1177
    %v1182 = vrsqrt.pop %v1074
    %v1183 = vmul.f32 %v1182, %v1074
    %v1184 = vmul.f32 %v1183, %v1182
    %v1185 = vmul.f32 0.5, %v1184
    %v1186 = vsub.f32 1.5, %v1185
    %v1187 = vmul.f32 %v1182, %v1186
    %vm1188 = vweird.f32 %v1074
    %vm1189 = vweird.f32 %v1182
    %vm1190 = vmor %vm1188, %vm1189
    %v1191 = vsel %vm1190, %v1182, %v1187
    %v1192 = vrsqrt.pop %v1075
    %v1193 = vmul.f32 %v1192, %v1075
    %v1194 = vmul.f32 %v1193, %v1192
    %v1195 = vmul.f32 0.5, %v1194
    %v1196 = vsub.f32 1.5, %v1195
    %v1197 = vmul.f32 %v1192, %v1196
    %vm1198 = vweird.f32 %v1075
    %vm1199 = vweird.f32 %v1192
    %vm1200 = vmor %vm1198, %vm1199
    %v1201 = vsel %vm1200, %v1192, %v1197
    %v1202 = vrsqrt.pop %v1076
    %v1203 = vmul.f32 %v1202, %v1076
    %v1204 = vmul.f32 %v1203, %v1202
    %v1205 = vmul.f32 0.5, %v1204
    %v1206 = vsub.f32 1.5, %v1205
    %v1207 = vmul.f32 %v1202, %v1206
    %vm1208 = vweird.f32 %v1076
    %vm1209 = vweird.f32 %v1202
    %vm1210 = vmor %vm1208, %vm1209
    %v1211 = vsel %vm1210, %v1202, %v1207
    %v1212 = vrsqrt.pop %v1077
    %v1213 = vmul.f32 %v1212, %v1077
    %v1214 = vmul.f32 %v1213, %v1212
    %v1215 = vmul.f32 0.5, %v1214
    %v1216 = vsub.f32 1.5, %v1215
    %v1217 = vmul.f32 %v1212, %v1216
    %vm1218 = vweird.f32 %v1077
    %vm1219 = vweird.f32 %v1212
    %vm1220 = vmor %vm1218, %vm1219
    %v1221 = vsel %vm1220, %v1212, %v1217
    %v1222 = vrsqrt.pop %v1078
    %v1223 = vmul.f32 %v1222, %v1078
    %v1224 = vmul.f32 %v1223, %v1222
    %v1225 = vmul.f32 0.5, %v1224
    %v1226 = vsub.f32 1.5, %v1225
    %v1227 = vmul.f32 %v1222, %v1226
    %vm1228 = vweird.f32 %v1078
    %vm1229 = vweird.f32 %v1222
    %vm1230 = vmor %vm1228, %vm1229
    %v1231 = vsel %vm1230, %v1222, %v1227
    %v1232 = vrsqrt.pop %v1079
    %v1233 = vmul.f32 %v1232, %v1079
    %v1234 = vmul.f32 %v1233, %v1232
    %v1235 = vmul.f32 0.5, %v1234
    %v1236 = vsub.f32 1.5, %v1235
    %v1237 = vmul.f32 %v1232, %v1236
    %vm1238 = vweird.f32 %v1079
    %vm1239 = vweird.f32 %v1232
    %vm1240 = vmor %vm1238, %vm1239
    %v1241 = vsel %vm1240, %v1232, %v1237
    %v1242 = vrsqrt.pop %v1080
    %v1243 = vmul.f32 %v1242, %v1080
    %v1244 = vmul.f32 %v1243, %v1242
    %v1245 = vmul.f32 0.5, %v1244
    %v1246 = vsub.f32 1.5, %v1245
    %v1247 = vmul.f32 %v1242, %v1246
    %vm1248 = vweird.f32 %v1080
    %vm1249 = vweird.f32 %v1242
    %vm1250 = vmor %vm1248, %vm1249
    %v1251 = vsel %vm1250, %v1242, %v1247
    %v1252 = vrsqrt.pop %v1081
    %v1253 = vmul.f32 %v1252, %v1081
    %v1254 = vmul.f32 %v1253, %v1252
    %v1255 = vmul.f32 0.5, %v1254
    %v1256 = vsub.f32 1.5, %v1255
    %v1257 = vmul.f32 %v1252, %v1256
    %vm1258 = vweird.f32 %v1081
    %vm1259 = vweird.f32 %v1252
    %vm1260 = vmor %vm1258, %vm1259
    %v1261 = vsel %vm1260, %v1252, %v1257
    %v1262 = vrsqrt.pop %v1082
    %v1263 = vmul.f32 %v1262, %v1082
    %v1264 = vmul.f32 %v1263, %v1262
    %v1265 = vmul.f32 0.5, %v1264
    %v1266 = vsub.f32 1.5, %v1265
    %v1267 = vmul.f32 %v1262, %v1266
    %vm1268 = vweird.f32 %v1082
    %vm1269 = vweird.f32 %v1262
    %vm1270 = vmor %vm1268, %vm1269
    %v1271 = vsel %vm1270, %v1262, %v1267
    %v1272 = vrsqrt.pop %v1083
    %v1273 = vmul.f32 %v1272, %v1083
    %v1274 = vmul.f32 %v1273, %v1272
    %v1275 = vmul.f32 0.5, %v1274
    %v1276 = vsub.f32 1.5, %v1275
    %v1277 = vmul.f32 %v1272, %v1276
    %vm1278 = vweird.f32 %v1083
    %vm1279 = vweird.f32 %v1272
    %vm1280 = vmor %vm1278, %vm1279
    %v1281 = vsel %vm1280, %v1272, %v1277
    %v1282 = vrsqrt.pop %v1084
    %v1283 = vmul.f32 %v1282, %v1084
    %v1284 = vmul.f32 %v1283, %v1282
    %v1285 = vmul.f32 0.5, %v1284
    %v1286 = vsub.f32 1.5, %v1285
    %v1287 = vmul.f32 %v1282, %v1286
    %vm1288 = vweird.f32 %v1084
    %vm1289 = vweird.f32 %v1282
    %vm1290 = vmor %vm1288, %vm1289
    %v1291 = vsel %vm1290, %v1282, %v1287
    %v1292 = vrsqrt.pop %v1085
    %v1293 = vmul.f32 %v1292, %v1085
    %v1294 = vmul.f32 %v1293, %v1292
    %v1295 = vmul.f32 0.5, %v1294
    %v1296 = vsub.f32 1.5, %v1295
    %v1297 = vmul.f32 %v1292, %v1296
    %vm1298 = vweird.f32 %v1085
    %vm1299 = vweird.f32 %v1292
    %vm1300 = vmor %vm1298, %vm1299
    %v1301 = vsel %vm1300, %v1292, %v1297
    %v1302 = vrsqrt.pop %v1086
    %v1303 = vmul.f32 %v1302, %v1086
    %v1304 = vmul.f32 %v1303, %v1302
    %v1305 = vmul.f32 0.5, %v1304
    %v1306 = vsub.f32 1.5, %v1305
    %v1307 = vmul.f32 %v1302, %v1306
    %vm1308 = vweird.f32 %v1086
    %vm1309 = vweird.f32 %v1302
    %vm1310 = vmor %vm1308, %vm1309
    %v1311 = vsel %vm1310, %v1302, %v1307
    %v1312 = vrsqrt.pop %v1087
    %v1313 = vmul.f32 %v1312, %v1087
    %v1314 = vmul.f32 %v1313, %v1312
    %v1315 = vmul.f32 0.5, %v1314
    %v1316 = vsub.f32 1.5, %v1315
    %v1317 = vmul.f32 %v1312, %v1316
    %vm1318 = vweird.f32 %v1087
    %vm1319 = vweird.f32 %v1312
    %vm1320 = vmor %vm1318, %vm1319
    %v1321 = vsel %vm1320, %v1312, %v1317
    %v1322 = vrsqrt.pop %v1088
    %v1323 = vmul.f32 %v1322, %v1088
    %v1324 = vmul.f32 %v1323, %v1322
    %v1325 = vmul.f32 0.5, %v1324
    %v1326 = vsub.f32 1.5, %v1325
    %v1327 = vmul.f32 %v1322, %v1326
    %vm1328 = vweird.f32 %v1088
    %vm1329 = vweird.f32 %v1322
    %vm1330 = vmor %vm1328, %vm1329
    %v1331 = vsel %vm1330, %v1322, %v1327
    %v1332 = vrsqrt.pop %v1089
    %v1333 = vmul.f32 %v1332, %v1089
    %v1334 = vmul.f32 %v1333, %v1332
    %v1335 = vmul.f32 0.5, %v1334
    %v1336 = vsub.f32 1.5, %v1335
    %v1337 = vmul.f32 %v1332, %v1336
    %vm1338 = vweird.f32 %v1089
    %vm1339 = vweird.f32 %v1332
    %vm1340 = vmor %vm1338, %vm1339
    %v1341 = vsel %vm1340, %v1332, %v1337
    %v1342 = vrsqrt.pop %v1090
    %v1343 = vmul.f32 %v1342, %v1090
    %v1344 = vmul.f32 %v1343, %v1342
    %v1345 = vmul.f32 0.5, %v1344
    %v1346 = vsub.f32 1.5, %v1345
    %v1347 = vmul.f32 %v1342, %v1346
    %vm1348 = vweird.f32 %v1090
    %vm1349 = vweird.f32 %v1342
    %vm1350 = vmor %vm1348, %vm1349
    %v1351 = vsel %vm1350, %v1342, %v1347
    %v1352 = vrsqrt.pop %v1091
    %v1353 = vmul.f32 %v1352, %v1091
    %v1354 = vmul.f32 %v1353, %v1352
    %v1355 = vmul.f32 0.5, %v1354
    %v1356 = vsub.f32 1.5, %v1355
    %v1357 = vmul.f32 %v1352, %v1356
    %vm1358 = vweird.f32 %v1091
    %vm1359 = vweird.f32 %v1352
    %vm1360 = vmor %vm1358, %vm1359
    %v1361 = vsel %vm1360, %v1352, %v1357
    %v1362 = vrsqrt.pop %v1092
    %v1363 = vmul.f32 %v1362, %v1092
    %v1364 = vmul.f32 %v1363, %v1362
    %v1365 = vmul.f32 0.5, %v1364
    %v1366 = vsub.f32 1.5, %v1365
    %v1367 = vmul.f32 %v1362, %v1366
    %vm1368 = vweird.f32 %v1092
    %vm1369 = vweird.f32 %v1362
    %vm1370 = vmor %vm1368, %vm1369
    %v1371 = vsel %vm1370, %v1362, %v1367
    %v1372 = vrsqrt.pop %v1093
    %v1373 = vmul.f32 %v1372, %v1093
    %v1374 = vmul.f32 %v1373, %v1372
    %v1375 = vmul.f32 0.5, %v1374
    %v1376 = vsub.f32 1.5, %v1375
    %v1377 = vmul.f32 %v1372, %v1376
    %vm1378 = vweird.f32 %v1093
    %vm1379 = vweird.f32 %v1372
    %vm1380 = vmor %vm1378, %vm1379
    %v1381 = vsel %vm1380, %v1372, %v1377
    %v1382 = vrsqrt.pop %v1094
    %v1383 = vmul.f32 %v1382, %v1094
    %v1384 = vmul.f32 %v1383, %v1382
    %v1385 = vmul.f32 0.5, %v1384
    %v1386 = vsub.f32 1.5, %v1385
    %v1387 = vmul.f32 %v1382, %v1386
    %vm1388 = vweird.f32 %v1094
    %vm1389 = vweird.f32 %v1382
    %vm1390 = vmor %vm1388, %vm1389
    %v1391 = vsel %vm1390, %v1382, %v1387
    %v1392 = vrsqrt.pop %v1095
    %v1393 = vmul.f32 %v1392, %v1095
    %v1394 = vmul.f32 %v1393, %v1392
    %v1395 = vmul.f32 0.5, %v1394
    %v1396 = vsub.f32 1.5, %v1395
    %v1397 = vmul.f32 %v1392, %v1396
    %vm1398 = vweird.f32 %v1095
    %vm1399 = vweird.f32 %v1392
    %vm1400 = vmor %vm1398, %vm1399
    %v1401 = vsel %vm1400, %v1392, %v1397
    %v1402 = vrsqrt.pop %v1096
    %v1403 = vmul.f32 %v1402, %v1096
    %v1404 = vmul.f32 %v1403, %v1402
    %v1405 = vmul.f32 0.5, %v1404
    %v1406 = vsub.f32 1.5, %v1405
    %v1407 = vmul.f32 %v1402, %v1406
    %vm1408 = vweird.f32 %v1096
    %vm1409 = vweird.f32 %v1402
    %vm1410 = vmor %vm1408, %vm1409
    %v1411 = vsel %vm1410, %v1402, %v1407
    %v1412 = vrsqrt.pop %v1097
    %v1413 = vmul.f32 %v1412, %v1097
    %v1414 = vmul.f32 %v1413, %v1412
    %v1415 = vmul.f32 0.5, %v1414
    %v1416 = vsub.f32 1.5, %v1415
    %v1417 = vmul.f32 %v1412, %v1416
    %vm1418 = vweird.f32 %v1097
    %vm1419 = vweird.f32 %v1412
    %vm1420 = vmor %vm1418, %vm1419
    %v1421 = vsel %vm1420, %v1412, %v1417
    %v1422 = vrsqrt.pop %v1098
    %v1423 = vmul.f32 %v1422, %v1098
    %v1424 = vmul.f32 %v1423, %v1422
    %v1425 = vmul.f32 0.5, %v1424
    %v1426 = vsub.f32 1.5, %v1425
    %v1427 = vmul.f32 %v1422, %v1426
    %vm1428 = vweird.f32 %v1098
    %vm1429 = vweird.f32 %v1422
    %vm1430 = vmor %vm1428, %vm1429
    %v1431 = vsel %vm1430, %v1422, %v1427
    %v1432 = vrsqrt.pop %v1099
    %v1433 = vmul.f32 %v1432, %v1099
    %v1434 = vmul.f32 %v1433, %v1432
    %v1435 = vmul.f32 0.5, %v1434
    %v1436 = vsub.f32 1.5, %v1435
    %v1437 = vmul.f32 %v1432, %v1436
    %vm1438 = vweird.f32 %v1099
    %vm1439 = vweird.f32 %v1432
    %vm1440 = vmor %vm1438, %vm1439
    %v1441 = vsel %vm1440, %v1432, %v1437
    %v1442 = vrsqrt.pop %v1100
    %v1443 = vmul.f32 %v1442, %v1100
    %v1444 = vmul.f32 %v1443, %v1442
    %v1445 = vmul.f32 0.5, %v1444
    %v1446 = vsub.f32 1.5, %v1445
    %v1447 = vmul.f32 %v1442, %v1446
    %vm1448 = vweird.f32 %v1100
    %vm1449 = vweird.f32 %v1442
    %vm1450 = vmor %vm1448, %vm1449
    %v1451 = vsel %vm1450, %v1442, %v1447
    %v1452 = vrsqrt.pop %v1101
    %v1453 = vmul.f32 %v1452, %v1101
    %v1454 = vmul.f32 %v1453, %v1452
    %v1455 = vmul.f32 0.5, %v1454
    %v1456 = vsub.f32 1.5, %v1455
    %v1457 = vmul.f32 %v1452, %v1456
    %vm1458 = vweird.f32 %v1101
    %vm1459 = vweird.f32 %v1452
    %vm1460 = vmor %vm1458, %vm1459
    %v1461 = vsel %vm1460, %v1452, %v1457
    %v1462 = vrsqrt.pop %v1102
    %v1463 = vmul.f32 %v1462, %v1102
    %v1464 = vmul.f32 %v1463, %v1462
    %v1465 = vmul.f32 0.5, %v1464
    %v1466 = vsub.f32 1.5, %v1465
    %v1467 = vmul.f32 %v1462, %v1466
    %vm1468 = vweird.f32 %v1102
    %vm1469 = vweird.f32 %v1462
    %vm1470 = vmor %vm1468, %vm1469
    %v1471 = vsel %vm1470, %v1462, %v1467
    %v1472 = vrsqrt.pop %v1103
    %v1473 = vmul.f32 %v1472, %v1103
    %v1474 = vmul.f32 %v1473, %v1472
    %v1475 = vmul.f32 0.5, %v1474
    %v1476 = vsub.f32 1.5, %v1475
    %v1477 = vmul.f32 %v1472, %v1476
    %vm1478 = vweird.f32 %v1103
    %vm1479 = vweird.f32 %v1472
    %vm1480 = vmor %vm1478, %vm1479
    %v1481 = vsel %vm1480, %v1472, %v1477
    %v1482 = vrsqrt.pop %v1104
    %v1483 = vmul.f32 %v1482, %v1104
    %v1484 = vmul.f32 %v1483, %v1482
    %v1485 = vmul.f32 0.5, %v1484
    %v1486 = vsub.f32 1.5, %v1485
    %v1487 = vmul.f32 %v1482, %v1486
    %vm1488 = vweird.f32 %v1104
    %vm1489 = vweird.f32 %v1482
    %vm1490 = vmor %vm1488, %vm1489
    %v1491 = vsel %vm1490, %v1482, %v1487
    %v1492 = vrsqrt.pop %v1105
    %v1493 = vmul.f32 %v1492, %v1105
    %v1494 = vmul.f32 %v1493, %v1492
    %v1495 = vmul.f32 0.5, %v1494
    %v1496 = vsub.f32 1.5, %v1495
    %v1497 = vmul.f32 %v1492, %v1496
    %vm1498 = vweird.f32 %v1105
    %vm1499 = vweird.f32 %v1492
    %vm1500 = vmor %vm1498, %vm1499
    %v1501 = vsel %vm1500, %v1492, %v1497
    %v1502 = vrsqrt.pop %v1106
    %v1503 = vmul.f32 %v1502, %v1106
    %v1504 = vmul.f32 %v1503, %v1502
    %v1505 = vmul.f32 0.5, %v1504
    %v1506 = vsub.f32 1.5, %v1505
    %v1507 = vmul.f32 %v1502, %v1506
    %vm1508 = vweird.f32 %v1106
    %vm1509 = vweird.f32 %v1502
    %vm1510 = vmor %vm1508, %vm1509
    %v1511 = vsel %vm1510, %v1502, %v1507
    %v1512 = vrsqrt.pop %v1107
    %v1513 = vmul.f32 %v1512, %v1107
    %v1514 = vmul.f32 %v1513, %v1512
    %v1515 = vmul.f32 0.5, %v1514
    %v1516 = vsub.f32 1.5, %v1515
    %v1517 = vmul.f32 %v1512, %v1516
    %vm1518 = vweird.f32 %v1107
    %vm1519 = vweird.f32 %v1512
    %vm1520 = vmor %vm1518, %vm1519
    %v1521 = vsel %vm1520, %v1512, %v1517
    %v1522 = vrsqrt.pop %v1108
    %v1523 = vmul.f32 %v1522, %v1108
    %v1524 = vmul.f32 %v1523, %v1522
    %v1525 = vmul.f32 0.5, %v1524
    %v1526 = vsub.f32 1.5, %v1525
    %v1527 = vmul.f32 %v1522, %v1526
    %vm1528 = vweird.f32 %v1108
    %vm1529 = vweird.f32 %v1522
    %vm1530 = vmor %vm1528, %vm1529
    %v1531 = vsel %vm1530, %v1522, %v1527
    %v1532 = vrsqrt.pop %v1109
    %v1533 = vmul.f32 %v1532, %v1109
    %v1534 = vmul.f32 %v1533, %v1532
    %v1535 = vmul.f32 0.5, %v1534
    %v1536 = vsub.f32 1.5, %v1535
    %v1537 = vmul.f32 %v1532, %v1536
    %vm1538 = vweird.f32 %v1109
    %vm1539 = vweird.f32 %v1532
    %vm1540 = vmor %vm1538, %vm1539
    %v1541 = vsel %vm1540, %v1532, %v1537
    %v1542 = vrsqrt.pop %v1110
    %v1543 = vmul.f32 %v1542, %v1110
    %v1544 = vmul.f32 %v1543, %v1542
    %v1545 = vmul.f32 0.5, %v1544
    %v1546 = vsub.f32 1.5, %v1545
    %v1547 = vmul.f32 %v1542, %v1546
    %vm1548 = vweird.f32 %v1110
    %vm1549 = vweird.f32 %v1542
    %vm1550 = vmor %vm1548, %vm1549
    %v1551 = vsel %vm1550, %v1542, %v1547
    %v1552 = vrsqrt.pop %v1111
    %v1553 = vmul.f32 %v1552, %v1111
    %v1554 = vmul.f32 %v1553, %v1552
    %v1555 = vmul.f32 0.5, %v1554
    %v1556 = vsub.f32 1.5, %v1555
    %v1557 = vmul.f32 %v1552, %v1556
    %vm1558 = vweird.f32 %v1111
    %vm1559 = vweird.f32 %v1552
    %vm1560 = vmor %vm1558, %vm1559
    %v1561 = vsel %vm1560, %v1552, %v1557
    %v1562 = vmul.f32 %v977, %v1121
    %v1563 = vmul.f32 %v978, %v1121
    %v1564 = vmul.f32 %v979, %v1131
    %v1565 = vmul.f32 %v980, %v1131
    %v1566 = vmul.f32 %v981, %v1141
    %v1567 = vmul.f32 %v982, %v1141
    %v1568 = vmul.f32 %v983, %v1151
    %v1569 = vmul.f32 %v984, %v1151
    %v1570 = vmul.f32 %v985, %v1161
    %v1571 = vmul.f32 %v986, %v1161
    %v1572 = vmul.f32 %v987, %v1171
    %v1573 = vmul.f32 %v988, %v1171
    %v1574 = vmul.f32 %v989, %v1181
    %v1575 = vmul.f32 %v990, %v1181
    %v1576 = vmul.f32 %v991, %v1191
    %v1577 = vmul.f32 %v992, %v1191
    %v1578 = vmul.f32 %v993, %v1201
    %v1579 = vmul.f32 %v994, %v1201
    %v1580 = vmul.f32 %v995, %v1211
    %v1581 = vmul.f32 %v996, %v1211
    %v1582 = vmul.f32 %v997, %v1221
    %v1583 = vmul.f32 %v998, %v1221
    %v1584 = vmul.f32 %v999, %v1231
    %v1585 = vmul.f32 %v1000, %v1231
    %v1586 = vmul.f32 %v1001, %v1241
    %v1587 = vmul.f32 %v1002, %v1241
    %v1588 = vmul.f32 %v1003, %v1251
    %v1589 = vmul.f32 %v1004, %v1251
    %v1590 = vmul.f32 %v1005, %v1261
    %v1591 = vmul.f32 %v1006, %v1261
    %v1592 = vmul.f32 %v1007, %v1271
    %v1593 = vmul.f32 %v1008, %v1271
    %v1594 = vmul.f32 %v1009, %v1281
    %v1595 = vmul.f32 %v1010, %v1281
    %v1596 = vmul.f32 %v1011, %v1291
    %v1597 = vmul.f32 %v1012, %v1291
    %v1598 = vmul.f32 %v1013, %v1301
    %v1599 = vmul.f32 %v1014, %v1301
    %v1600 = vmul.f32 %v1015, %v1311
    %v1601 = vmul.f32 %v1016, %v1311
    %v1602 = vmul.f32 %v1017, %v1321
    %v1603 = vmul.f32 %v1018, %v1321
    %v1604 = vmul.f32 %v1019, %v1331
    %v1605 = vmul.f32 %v1020, %v1331
    %v1606 = vmul.f32 %v1021, %v1341
    %v1607 = vmul.f32 %v1022, %v1341
    %v1608 = vmul.f32 %v1023, %v1351
    %v1609 = vmul.f32 %v1024, %v1351
    %v1610 = vmul.f32 %v1025, %v1361
    %v1611 = vmul.f32 %v1026, %v1361
    %v1612 = vmul.f32 %v1027, %v1371
    %v1613 = vmul.f32 %v1028, %v1371
    %v1614 = vmul.f32 %v1029, %v1381
    %v1615 = vmul.f32 %v1030, %v1381
    %v1616 = vmul.f32 %v1031, %v1391
    %v1617 = vmul.f32 %v1032, %v1391
    %v1618 = vmul.f32 %v1033, %v1401
    %v1619 = vmul.f32 %v1034, %v1401
    %v1620 = vmul.f32 %v1035, %v1411
    %v1621 = vmul.f32 %v1036, %v1411
    %v1622 = vmul.f32 %v1037, %v1421
    %v1623 = vmul.f32 %v1038, %v1421
    %v1624 = vmul.f32 %v1039, %v1431
    %v1625 = vmul.f32 %v1040, %v1431
    %v1626 = vmul.f32 %v1041, %v1441
    %v1627 = vmul.f32 %v1042, %v1441
    %v1628 = vmul.f32 %v1043, %v1451
    %v1629 = vmul.f32 %v1044, %v1451
    %v1630 = vmul.f32 %v1045, %v1461
    %v1631 = vmul.f32 %v1046, %v1461
    %v1632 = vmul.f32 %v1047, %v1471
    %v1633 = vmul.f32 %v1048, %v1471
    %v1634 = vmul.f32 %v1049, %v1481
    %v1635 = vmul.f32 %v1050, %v1481
    %v1636 = vmul.f32 %v1051, %v1491
    %v1637 = vmul.f32 %v1052, %v1491
    %v1638 = vmul.f32 %v1053, %v1501
    %v1639 = vmul.f32 %v1054, %v1501
    %v1640 = vmul.f32 %v1055, %v1511
    %v1641 = vmul.f32 %v1056, %v1511
    %v1642 = vmul.f32 %v1057, %v1521
    %v1643 = vmul.f32 %v1058, %v1521
    %v1644 = vmul.f32 %v1059, %v1531
    %v1645 = vmul.f32 %v1060, %v1531
    %v1646 = vmul.f32 %v1061, %v1541
    %v1647 = vmul.f32 %v1062, %v1541
    %v1648 = vmul.f32 %v1063, %v1551
    %v1649 = vmul.f32 %v1064, %v1551
    %v1650 = vmul.f32 %v1065, %v1561
    %v1651 = vmul.f32 %v1066, %v1561
    %v1652 = vld [vmem:[%s3] sm:$0xff]
    %v1653 = vld [vmem:[%s3 + $0x8] sm:$0xff]
    %v1654 = vld [vmem:[%s3 + $0x10] sm:$0xff]
    %v1655 = vld [vmem:[%s3 + $0x18] sm:$0xff]
    %v1656 = vld [vmem:[%s3 + $0x20] sm:$0xff]
    %v1657 = vld [vmem:[%s3 + $0x28] sm:$0xff]
    %v1658 = vld [vmem:[%s3 + $0x30] sm:$0xff]
    %v1659 = vld [vmem:[%s3 + $0x38] sm:$0xff]
    %v1660 = vld [vmem:[%s3 + $0x40] sm:$0xff]
    %v1661 = vld [vmem:[%s3 + $0x48] sm:$0xff]
    %v1662 = vld [vmem:[%s3 + $0x50] sm:$0xff]
    %v1663 = vld [vmem:[%s3 + $0x58] sm:$0xff]
    %v1664 = vld [vmem:[%s3 + $0x60] sm:$0xff]
    %v1665 = vld [vmem:[%s3 + $0x68] sm:$0xff]
    %v1666 = vld [vmem:[%s3 + $0x70] sm:$0xff]
    %v1667 = vld [vmem:[%s4] sm:$0xff]
    %v1668 = vld [vmem:[%s4 + $0x8] sm:$0xff]
    %v1669 = vld [vmem:[%s4 + $0x10] sm:$0xff]
    %v1670 = vld [vmem:[%s4 + $0x18] sm:$0xff]
    %v1671 = vld [vmem:[%s4 + $0x20] sm:$0xff]
    %v1672 = vld [vmem:[%s4 + $0x28] sm:$0xff]
    %v1673 = vld [vmem:[%s4 + $0x30] sm:$0xff]
    %v1674 = vld [vmem:[%s4 + $0x38] sm:$0xff]
    %v1675 = vld [vmem:[%s4 + $0x40] sm:$0xff]
    %v1676 = vld [vmem:[%s4 + $0x48] sm:$0xff]
    %v1677 = vld [vmem:[%s4 + $0x50] sm:$0xff]
    %v1678 = vld [vmem:[%s4 + $0x58] sm:$0xff]
    %v1679 = vld [vmem:[%s4 + $0x60] sm:$0xff]
    %v1680 = vld [vmem:[%s4 + $0x68] sm:$0xff]
    %v1681 = vld [vmem:[%s4 + $0x70] sm:$0xff]
    %v1682 = vmul.f32 %v395, %v1652
    %v1683 = vmul.f32 %v399, %v1653
    %v1684 = vmul.f32 %v403, %v1654
    %v1685 = vmul.f32 %v407, %v1655
    %v1686 = vmul.f32 %v411, %v1656
    %v1687 = vmul.f32 %v415, %v1657
    %v1688 = vmul.f32 %v419, %v1658
    %v1689 = vmul.f32 %v423, %v1659
    %v1690 = vmul.f32 %v427, %v1660
    %v1691 = vmul.f32 %v431, %v1661
    %v1692 = vmul.f32 %v435, %v1662
    %v1693 = vmul.f32 %v439, %v1663
    %v1694 = vmul.f32 %v443, %v1664
    %v1695 = vmul.f32 %v447, %v1665
    %v1696 = vmul.f32 %v451, %v1666
    %v1697 = vmul.f32 %v455, %v1652
    %v1698 = vmul.f32 %v459, %v1653
    %v1699 = vmul.f32 %v463, %v1654
    %v1700 = vmul.f32 %v467, %v1655
    %v1701 = vmul.f32 %v471, %v1656
    %v1702 = vmul.f32 %v475, %v1657
    %v1703 = vmul.f32 %v479, %v1658
    %v1704 = vmul.f32 %v483, %v1659
    %v1705 = vmul.f32 %v487, %v1660
    %v1706 = vmul.f32 %v491, %v1661
    %v1707 = vmul.f32 %v495, %v1662
    %v1708 = vmul.f32 %v499, %v1663
    %v1709 = vmul.f32 %v503, %v1664
    %v1710 = vmul.f32 %v507, %v1665
    %v1711 = vmul.f32 %v511, %v1666
    %v1712 = vmul.f32 %v515, %v1652
    %v1713 = vmul.f32 %v519, %v1653
    %v1714 = vmul.f32 %v523, %v1654
    %v1715 = vmul.f32 %v527, %v1655
    %v1716 = vmul.f32 %v531, %v1656
    %v1717 = vmul.f32 %v535, %v1657
    %v1718 = vmul.f32 %v539, %v1658
    %v1719 = vmul.f32 %v543, %v1659
    %v1720 = vmul.f32 %v547, %v1660
    %v1721 = vmul.f32 %v551, %v1661
    %v1722 = vmul.f32 %v555, %v1662
    %v1723 = vmul.f32 %v559, %v1663
    %v1724 = vmul.f32 %v563, %v1664
    %v1725 = vmul.f32 %v567, %v1665
    %v1726 = vmul.f32 %v571, %v1666
    %v1727 = vadd.f32 %v1682, %v1667
    %v1728 = vadd.f32 %v1683, %v1668
    %v1729 = vadd.f32 %v1684, %v1669
    %v1730 = vadd.f32 %v1685, %v1670
    %v1731 = vadd.f32 %v1686, %v1671
    %v1732 = vadd.f32 %v1687, %v1672
    %v1733 = vadd.f32 %v1688, %v1673
    %v1734 = vadd.f32 %v1689, %v1674
    %v1735 = vadd.f32 %v1690, %v1675
    %v1736 = vadd.f32 %v1691, %v1676
    %v1737 = vadd.f32 %v1692, %v1677
    %v1738 = vadd.f32 %v1693, %v1678
    %v1739 = vadd.f32 %v1694, %v1679
    %v1740 = vadd.f32 %v1695, %v1680
    %v1741 = vadd.f32 %v1696, %v1681
    %v1742 = vadd.f32 %v1697, %v1667
    %v1743 = vadd.f32 %v1698, %v1668
    %v1744 = vadd.f32 %v1699, %v1669
    %v1745 = vadd.f32 %v1700, %v1670
    %v1746 = vadd.f32 %v1701, %v1671
    %v1747 = vadd.f32 %v1702, %v1672
    %v1748 = vadd.f32 %v1703, %v1673
    %v1749 = vadd.f32 %v1704, %v1674
    %v1750 = vadd.f32 %v1705, %v1675
    %v1751 = vadd.f32 %v1706, %v1676
    %v1752 = vadd.f32 %v1707, %v1677
    %v1753 = vadd.f32 %v1708, %v1678
    %v1754 = vadd.f32 %v1709, %v1679
    %v1755 = vadd.f32 %v1710, %v1680
    %v1756 = vadd.f32 %v1711, %v1681
    %v1757 = vadd.f32 %v1712, %v1667
    %v1758 = vadd.f32 %v1713, %v1668
    %v1759 = vadd.f32 %v1714, %v1669
    %v1760 = vadd.f32 %v1715, %v1670
    %v1761 = vadd.f32 %v1716, %v1671
    %v1762 = vadd.f32 %v1717, %v1672
    %v1763 = vadd.f32 %v1718, %v1673
    %v1764 = vadd.f32 %v1719, %v1674
    %v1765 = vadd.f32 %v1720, %v1675
    %v1766 = vadd.f32 %v1721, %v1676
    %v1767 = vadd.f32 %v1722, %v1677
    %v1768 = vadd.f32 %v1723, %v1678
    %v1769 = vadd.f32 %v1724, %v1679
    %v1770 = vadd.f32 %v1725, %v1680
    %v1771 = vadd.f32 %v1726, %v1681
    %v1772 = vpack.c.bf16 %v1564, %v1562
    %v1773 = vpack.c.bf16 %v1565, %v1563
    %v1774 = vpack.c.bf16 %v1568, %v1566
    %v1775 = vpack.c.bf16 %v1569, %v1567
    %v1776 = vpack.c.bf16 %v1572, %v1570
    %v1777 = vpack.c.bf16 %v1573, %v1571
    %v1778 = vpack.c.bf16 %v1576, %v1574
    %v1779 = vpack.c.bf16 %v1577, %v1575
    %v1780 = vpack.c.bf16 %v1580, %v1578
    %v1781 = vpack.c.bf16 %v1581, %v1579
    %v1782 = vpack.c.bf16 %v1584, %v1582
    %v1783 = vpack.c.bf16 %v1585, %v1583
    %v1784 = vpack.c.bf16 %v1588, %v1586
    %v1785 = vpack.c.bf16 %v1589, %v1587
    %v1786 = vpack.c.bf16 %v1592, %v1590
    %v1787 = vpack.c.bf16 %v1593, %v1591
    %v1788 = vpack.c.bf16 %v1596, %v1594
    %v1789 = vpack.c.bf16 %v1597, %v1595
    %v1790 = vpack.c.bf16 %v1600, %v1598
    %v1791 = vpack.c.bf16 %v1601, %v1599
    %v1792 = vpack.c.bf16 %v1604, %v1602
    %v1793 = vpack.c.bf16 %v1605, %v1603
    %v1794 = vpack.c.bf16 %v1608, %v1606
    %v1795 = vpack.c.bf16 %v1609, %v1607
    %v1796 = vpack.c.bf16 %v1612, %v1610
    %v1797 = vpack.c.bf16 %v1613, %v1611
    %v1798 = vpack.c.bf16 %v1616, %v1614
    %v1799 = vpack.c.bf16 %v1617, %v1615
    %v1800 = vpack.c.bf16 %v1620, %v1618
    %v1801 = vpack.c.bf16 %v1621, %v1619
    %v1802 = vpack.c.bf16 %v1624, %v1622
    %v1803 = vpack.c.bf16 %v1625, %v1623
    %v1804 = vpack.c.bf16 %v1628, %v1626
    %v1805 = vpack.c.bf16 %v1629, %v1627
    %v1806 = vpack.c.bf16 %v1632, %v1630
    %v1807 = vpack.c.bf16 %v1633, %v1631
    %v1808 = vpack.c.bf16 %v1636, %v1634
    %v1809 = vpack.c.bf16 %v1637, %v1635
    %v1810 = vpack.c.bf16 %v1640, %v1638
    %v1811 = vpack.c.bf16 %v1641, %v1639
    %v1812 = vpack.c.bf16 %v1644, %v1642
    %v1813 = vpack.c.bf16 %v1645, %v1643
    %v1814 = vpack.c.bf16 %v1648, %v1646
    %v1815 = vpack.c.bf16 %v1649, %v1647
    %v1816 = vpack.c.bf16 %v1650, %v1650
    %v1817 = vpack.c.bf16 %v1651, %v1651
    %v1818 = vld [vmem:[#allocation7] sm:$0xff]
    %v1819 = vld [vmem:[#allocation7 + $0x8] sm:$0xff]
    %v1820 = vld [vmem:[#allocation7 + $0x10] sm:$0xff]
    %v1821 = vld [vmem:[#allocation7 + $0x18] sm:$0xff]
    %v1822 = vld [vmem:[#allocation7 + $0x20] sm:$0xf]
    %v1823 = vld [vmem:[#allocation7 + $0x24] sm:$0xff]
    %v1824 = vld [vmem:[#allocation7 + $0x2c] sm:$0xff]
    %v1825 = vld [vmem:[#allocation7 + $0x34] sm:$0xff]
    %v1826 = vld [vmem:[#allocation7 + $0x3c] sm:$0xff]
    %v1827 = vld [vmem:[#allocation7 + $0x44] sm:$0xf]
    %v1828 = vld [vmem:[#allocation7 + $0x48] sm:$0xff]
    %v1829 = vld [vmem:[#allocation7 + $0x50] sm:$0xff]
    %v1830 = vld [vmem:[#allocation7 + $0x58] sm:$0xff]
    %v1831 = vld [vmem:[#allocation7 + $0x60] sm:$0xff]
    %v1832 = vld [vmem:[#allocation7 + $0x68] sm:$0xf]
    %v1833 = vld [vmem:[#allocation7 + $0x6c] sm:$0xff]
    %v1834 = vld [vmem:[#allocation7 + $0x74] sm:$0xff]
    %v1835 = vld [vmem:[#allocation7 + $0x7c] sm:$0xff]
    %v1836 = vld [vmem:[#allocation7 + $0x84] sm:$0xff]
    %v1837 = vld [vmem:[#allocation7 + $0x8c] sm:$0xf]
    %v1838 = vld [vmem:[#allocation7 + $0x90] sm:$0xff]
    %v1839 = vld [vmem:[#allocation7 + $0x98] sm:$0xff]
    %v1840 = vld [vmem:[#allocation7 + $0xa0] sm:$0xff]
    %v1841 = vld [vmem:[#allocation7 + $0xa8] sm:$0xff]
    %v1842 = vld [vmem:[#allocation7 + $0xb0] sm:$0xf]
    %v1843 = vld [vmem:[#allocation7 + $0xb4] sm:$0xff]
    %v1844 = vld [vmem:[#allocation7 + $0xbc] sm:$0xff]
    %v1845 = vld [vmem:[#allocation7 + $0xc4] sm:$0xff]
    %v1846 = vld [vmem:[#allocation7 + $0xcc] sm:$0xff]
    %v1847 = vld [vmem:[#allocation7 + $0xd4] sm:$0xf]
    %v1848 = vld [vmem:[#allocation7 + $0xd8] sm:$0xff]
    %v1849 = vld [vmem:[#allocation7 + $0xe0] sm:$0xff]
    %v1850 = vld [vmem:[#allocation7 + $0xe8] sm:$0xff]
    %v1851 = vld [vmem:[#allocation7 + $0xf0] sm:$0xff]
    %v1852 = vld [vmem:[#allocation7 + $0xf8] sm:$0xf]
    %v1853 = vld [vmem:[#allocation7 + $0xfc] sm:$0xff]
    %v1854 = vld [vmem:[#allocation7 + $0x104] sm:$0xff]
    %v1855 = vld [vmem:[#allocation7 + $0x10c] sm:$0xff]
    %v1856 = vld [vmem:[#allocation7 + $0x114] sm:$0xff]
    %v1857 = vld [vmem:[#allocation7 + $0x11c] sm:$0xf]
    %v1858 = vld [vmem:[#allocation7 + $0x120] sm:$0xff]
    %v1859 = vld [vmem:[#allocation7 + $0x128] sm:$0xff]
    %v1860 = vld [vmem:[#allocation7 + $0x130] sm:$0xff]
    %v1861 = vld [vmem:[#allocation7 + $0x138] sm:$0xff]
    %v1862 = vld [vmem:[#allocation7 + $0x140] sm:$0xf]
    %v1863 = vld [vmem:[#allocation7 + $0x144] sm:$0xff]
    %v1864 = vld [vmem:[#allocation7 + $0x14c] sm:$0xff]
    %v1865 = vld [vmem:[#allocation7 + $0x154] sm:$0xff]
    %v1866 = vld [vmem:[#allocation7 + $0x15c] sm:$0xff]
    %v1867 = vld [vmem:[#allocation7 + $0x164] sm:$0xf]
    %v1868 = vld [vmem:[#allocation7 + $0x168] sm:$0xff]
    %v1869 = vld [vmem:[#allocation7 + $0x170] sm:$0xff]
    %v1870 = vld [vmem:[#allocation7 + $0x178] sm:$0xff]
    %v1871 = vld [vmem:[#allocation7 + $0x180] sm:$0xff]
    %v1872 = vld [vmem:[#allocation7 + $0x188] sm:$0xf]
    %v1873 = vld [vmem:[#allocation7 + $0x18c] sm:$0xff]
    %v1874 = vld [vmem:[#allocation7 + $0x194] sm:$0xff]
    %v1875 = vld [vmem:[#allocation7 + $0x19c] sm:$0xff]
    %v1876 = vld [vmem:[#allocation7 + $0x1a4] sm:$0xff]
    %v1877 = vld [vmem:[#allocation7 + $0x1ac] sm:$0xf]
    %v1878 = vld [vmem:[#allocation7 + $0x1b0] sm:$0xff]
    %v1879 = vld [vmem:[#allocation7 + $0x1b8] sm:$0xff]
    %v1880 = vld [vmem:[#allocation7 + $0x1c0] sm:$0xff]
    %v1881 = vld [vmem:[#allocation7 + $0x1c8] sm:$0xff]
    %v1882 = vld [vmem:[#allocation7 + $0x1d0] sm:$0xf]
    %v1883 = vld [vmem:[#allocation7 + $0x1d4] sm:$0xff]
    %v1884 = vld [vmem:[#allocation7 + $0x1dc] sm:$0xff]
    %v1885 = vld [vmem:[#allocation7 + $0x1e4] sm:$0xff]
    %v1886 = vld [vmem:[#allocation7 + $0x1ec] sm:$0xff]
    %v1887 = vld [vmem:[#allocation7 + $0x1f4] sm:$0xf]
    %v1888 = vld [vmem:[#allocation7 + $0x1f8] sm:$0xff]
    %v1889 = vld [vmem:[#allocation7 + $0x200] sm:$0xff]
    %v1890 = vld [vmem:[#allocation7 + $0x208] sm:$0xff]
    %v1891 = vld [vmem:[#allocation7 + $0x210] sm:$0xff]
    %v1892 = vld [vmem:[#allocation7 + $0x218] sm:$0xf]
    %v1893 = vld [vmem:[#allocation7 + $0x21c] sm:$0xff]
    %v1894 = vld [vmem:[#allocation7 + $0x224] sm:$0xff]
    %v1895 = vld [vmem:[#allocation7 + $0x22c] sm:$0xff]
    %v1896 = vld [vmem:[#allocation7 + $0x234] sm:$0xff]
    %v1897 = vld [vmem:[#allocation7 + $0x23c] sm:$0xf]
    %v1898 = vld [vmem:[#allocation7 + $0x240] sm:$0xff]
    %v1899 = vld [vmem:[#allocation7 + $0x248] sm:$0xff]
    %v1900 = vld [vmem:[#allocation7 + $0x250] sm:$0xff]
    %v1901 = vld [vmem:[#allocation7 + $0x258] sm:$0xff]
    %v1902 = vld [vmem:[#allocation7 + $0x260] sm:$0xf]
    %v1903 = vld [vmem:[#allocation7 + $0x264] sm:$0xff]
    %v1904 = vld [vmem:[#allocation7 + $0x26c] sm:$0xff]
    %v1905 = vld [vmem:[#allocation7 + $0x274] sm:$0xff]
    %v1906 = vld [vmem:[#allocation7 + $0x27c] sm:$0xff]
    %v1907 = vld [vmem:[#allocation7 + $0x284] sm:$0xf]
    %v1908 = vld [vmem:[#allocation7 + $0x288] sm:$0xff]
    %v1909 = vld [vmem:[#allocation7 + $0x290] sm:$0xff]
    %v1910 = vld [vmem:[#allocation7 + $0x298] sm:$0xff]
    %v1911 = vld [vmem:[#allocation7 + $0x2a0] sm:$0xff]
    %v1912 = vld [vmem:[#allocation7 + $0x2a8] sm:$0xf]
    %v1913 = vld [vmem:[#allocation7 + $0x2ac] sm:$0xff]
    %v1914 = vld [vmem:[#allocation7 + $0x2b4] sm:$0xff]
    %v1915 = vld [vmem:[#allocation7 + $0x2bc] sm:$0xff]
    %v1916 = vld [vmem:[#allocation7 + $0x2c4] sm:$0xff]
    %v1917 = vld [vmem:[#allocation7 + $0x2cc] sm:$0xf]
    %v1918 = vld [vmem:[#allocation7 + $0x2d0] sm:$0xff]
    %v1919 = vld [vmem:[#allocation7 + $0x2d8] sm:$0xff]
    %v1920 = vld [vmem:[#allocation7 + $0x2e0] sm:$0xff]
    %v1921 = vld [vmem:[#allocation7 + $0x2e8] sm:$0xff]
    %v1922 = vld [vmem:[#allocation7 + $0x2f0] sm:$0xf]
    %v1923 = vld [vmem:[#allocation7 + $0x2f4] sm:$0xff]
    %v1924 = vld [vmem:[#allocation7 + $0x2fc] sm:$0xff]
    %v1925 = vld [vmem:[#allocation7 + $0x304] sm:$0xff]
    %v1926 = vld [vmem:[#allocation7 + $0x30c] sm:$0xff]
    %v1927 = vld [vmem:[#allocation7 + $0x314] sm:$0xf]
    %v1928 = vld [vmem:[#allocation7 + $0x318] sm:$0xff]
    %v1929 = vld [vmem:[#allocation7 + $0x320] sm:$0xff]
    %v1930 = vld [vmem:[#allocation7 + $0x328] sm:$0xff]
    %v1931 = vld [vmem:[#allocation7 + $0x330] sm:$0xff]
    %v1932 = vld [vmem:[#allocation7 + $0x338] sm:$0xf]
    %v1933 = vld [vmem:[#allocation7 + $0x33c] sm:$0xff]
    %v1934 = vld [vmem:[#allocation7 + $0x344] sm:$0xff]
    %v1935 = vld [vmem:[#allocation7 + $0x34c] sm:$0xff]
    %v1936 = vld [vmem:[#allocation7 + $0x354] sm:$0xff]
    %v1937 = vld [vmem:[#allocation7 + $0x35c] sm:$0xf]
    %v1938 = vld [vmem:[#allocation7 + $0x360] sm:$0xff]
    %v1939 = vld [vmem:[#allocation7 + $0x368] sm:$0xff]
    %v1940 = vld [vmem:[#allocation7 + $0x370] sm:$0xff]
    %v1941 = vld [vmem:[#allocation7 + $0x378] sm:$0xff]
    %v1942 = vld [vmem:[#allocation7 + $0x380] sm:$0xf]
    %v1943 = vld [vmem:[#allocation7 + $0x384] sm:$0xff]
    %v1944 = vld [vmem:[#allocation7 + $0x38c] sm:$0xff]
    %v1945 = vld [vmem:[#allocation7 + $0x394] sm:$0xff]
    %v1946 = vld [vmem:[#allocation7 + $0x39c] sm:$0xff]
    %v1947 = vld [vmem:[#allocation7 + $0x3a4] sm:$0xf]
    %v1948 = vld [vmem:[#allocation7 + $0x3a8] sm:$0xff]
    %v1949 = vld [vmem:[#allocation7 + $0x3b0] sm:$0xff]
    %v1950 = vld [vmem:[#allocation7 + $0x3b8] sm:$0xff]
    %v1951 = vld [vmem:[#allocation7 + $0x3c0] sm:$0xff]
    %v1952 = vld [vmem:[#allocation7 + $0x3c8] sm:$0xf]
    %v1953 = vld [vmem:[#allocation7 + $0x3cc] sm:$0xff]
    %v1954 = vld [vmem:[#allocation7 + $0x3d4] sm:$0xff]
    %v1955 = vld [vmem:[#allocation7 + $0x3dc] sm:$0xff]
    %v1956 = vld [vmem:[#allocation7 + $0x3e4] sm:$0xff]
    %v1957 = vld [vmem:[#allocation7 + $0x3ec] sm:$0xf]
    %v1958 = vld [vmem:[#allocation7 + $0x3f0] sm:$0xff]
    %v1959 = vld [vmem:[#allocation7 + $0x3f8] sm:$0xff]
    %v1960 = vld [vmem:[#allocation7 + $0x400] sm:$0xff]
    %v1961 = vld [vmem:[#allocation7 + $0x408] sm:$0xff]
    %v1962 = vld [vmem:[#allocation7 + $0x410] sm:$0xf]
    %v1963 = vld [vmem:[#allocation7 + $0x414] sm:$0xff]
    %v1964 = vld [vmem:[#allocation7 + $0x41c] sm:$0xff]
    %v1965 = vld [vmem:[#allocation7 + $0x424] sm:$0xff]
    %v1966 = vld [vmem:[#allocation7 + $0x42c] sm:$0xff]
    %v1967 = vld [vmem:[#allocation7 + $0x434] sm:$0xf]
    %v1968 = vld [vmem:[#allocation7 + $0x438] sm:$0x77]
    %v1969 = vld [vmem:[#allocation7 + $0x440] sm:$0x77]
    %v1970 = vld [vmem:[#allocation7 + $0x448] sm:$0x77]
    %v1971 = vld [vmem:[#allocation7 + $0x450] sm:$0x77]
    %v1972 = vld [vmem:[#allocation7 + $0x458] sm:$0x7]
    %v1973 = vld [vmem:[#allocation8] sm:$0xff]
    %v1974 = vld [vmem:[#allocation8 + $0x8] sm:$0x1]
    %v1977 = vperm.slane %v1973, 0
    %v1978 = vperm.slane %v1973, 1
    %v1979 = vperm.slane %v1973, 2
    %v1980 = vperm.slane %v1973, 3
    %v1981 = vperm.slane %v1973, 4
    %v1982 = vperm.slane %v1973, 5
    %v1983 = vperm.slane %v1973, 6
    %v1984 = vperm.slane %v1973, 7
    %v1985 = vperm.slane %v1974, 0
    %v2150 = vunpack.c.l.b16 %v1818
    %v2151 = vunpack.c.h.b16 %v1818
    %v2152 = vunpack.c.l.b16 %v1819
    %v2153 = vunpack.c.h.b16 %v1819
    %v2154 = vunpack.c.l.b16 %v1820
    %v2155 = vunpack.c.h.b16 %v1820
    %v2156 = vunpack.c.l.b16 %v1821
    %v2157 = vunpack.c.h.b16 %v1821
    %v2158 = vunpack.c.l.b16 %v1822
    %v2159 = vunpack.c.l.b16 %v1823
    %v2160 = vunpack.c.h.b16 %v1823
    %v2161 = vunpack.c.l.b16 %v1824
    %v2162 = vunpack.c.h.b16 %v1824
    %v2163 = vunpack.c.l.b16 %v1825
    %v2164 = vunpack.c.h.b16 %v1825
    %v2165 = vunpack.c.l.b16 %v1826
    %v2166 = vunpack.c.h.b16 %v1826
    %v2167 = vunpack.c.l.b16 %v1827
    %v2168 = vunpack.c.l.b16 %v1828
    %v2169 = vunpack.c.h.b16 %v1828
    %v2170 = vunpack.c.l.b16 %v1829
    %v2171 = vunpack.c.h.b16 %v1829
    %v2172 = vunpack.c.l.b16 %v1830
    %v2173 = vunpack.c.h.b16 %v1830
    %v2174 = vunpack.c.l.b16 %v1831
    %v2175 = vunpack.c.h.b16 %v1831
    %v2176 = vunpack.c.l.b16 %v1832
    %v2177 = vunpack.c.l.b16 %v1833
    %v2178 = vunpack.c.h.b16 %v1833
    %v2179 = vunpack.c.l.b16 %v1834
    %v2180 = vunpack.c.h.b16 %v1834
    %v2181 = vunpack.c.l.b16 %v1835
    %v2182 = vunpack.c.h.b16 %v1835
    %v2183 = vunpack.c.l.b16 %v1836
    %v2184 = vunpack.c.h.b16 %v1836
    %v2185 = vunpack.c.l.b16 %v1837
    %v2186 = vunpack.c.l.b16 %v1838
    %v2187 = vunpack.c.h.b16 %v1838
    %v2188 = vunpack.c.l.b16 %v1839
    %v2189 = vunpack.c.h.b16 %v1839
    %v2190 = vunpack.c.l.b16 %v1840
    %v2191 = vunpack.c.h.b16 %v1840
    %v2192 = vunpack.c.l.b16 %v1841
    %v2193 = vunpack.c.h.b16 %v1841
    %v2194 = vunpack.c.l.b16 %v1842
    %v2195 = vunpack.c.l.b16 %v1843
    %v2196 = vunpack.c.h.b16 %v1843
    %v2197 = vunpack.c.l.b16 %v1844
    %v2198 = vunpack.c.h.b16 %v1844
    %v2199 = vunpack.c.l.b16 %v1845
    %v2200 = vunpack.c.h.b16 %v1845
    %v2201 = vunpack.c.l.b16 %v1846
    %v2202 = vunpack.c.h.b16 %v1846
    %v2203 = vunpack.c.l.b16 %v1847
    %v2204 = vunpack.c.l.b16 %v1848
    %v2205 = vunpack.c.h.b16 %v1848
    %v2206 = vunpack.c.l.b16 %v1849
    %v2207 = vunpack.c.h.b16 %v1849
    %v2208 = vunpack.c.l.b16 %v1850
    %v2209 = vunpack.c.h.b16 %v1850
    %v2210 = vunpack.c.l.b16 %v1851
    %v2211 = vunpack.c.h.b16 %v1851
    %v2212 = vunpack.c.l.b16 %v1852
    %v2213 = vunpack.c.l.b16 %v1853
    %v2214 = vunpack.c.h.b16 %v1853
    %v2215 = vunpack.c.l.b16 %v1854
    %v2216 = vunpack.c.h.b16 %v1854
    %v2217 = vunpack.c.l.b16 %v1855
    %v2218 = vunpack.c.h.b16 %v1855
    %v2219 = vunpack.c.l.b16 %v1856
    %v2220 = vunpack.c.h.b16 %v1856
    %v2221 = vunpack.c.l.b16 %v1857
    %v2222 = vunpack.c.l.b16 %v1858
    %v2223 = vunpack.c.h.b16 %v1858
    %v2224 = vunpack.c.l.b16 %v1859
    %v2225 = vunpack.c.h.b16 %v1859
    %v2226 = vunpack.c.l.b16 %v1860
    %v2227 = vunpack.c.h.b16 %v1860
    %v2228 = vunpack.c.l.b16 %v1861
    %v2229 = vunpack.c.h.b16 %v1861
    %v2230 = vunpack.c.l.b16 %v1862
    %v2231 = vunpack.c.l.b16 %v1863
    %v2232 = vunpack.c.h.b16 %v1863
    %v2233 = vunpack.c.l.b16 %v1864
    %v2234 = vunpack.c.h.b16 %v1864
    %v2235 = vunpack.c.l.b16 %v1865
    %v2236 = vunpack.c.h.b16 %v1865
    %v2237 = vunpack.c.l.b16 %v1866
    %v2238 = vunpack.c.h.b16 %v1866
    %v2239 = vunpack.c.l.b16 %v1867
    %v2240 = vunpack.c.l.b16 %v1868
    %v2241 = vunpack.c.h.b16 %v1868
    %v2242 = vunpack.c.l.b16 %v1869
    %v2243 = vunpack.c.h.b16 %v1869
    %v2244 = vunpack.c.l.b16 %v1870
    %v2245 = vunpack.c.h.b16 %v1870
    %v2246 = vunpack.c.l.b16 %v1871
    %v2247 = vunpack.c.h.b16 %v1871
    %v2248 = vunpack.c.l.b16 %v1872
    %v2249 = vunpack.c.l.b16 %v1873
    %v2250 = vunpack.c.h.b16 %v1873
    %v2251 = vunpack.c.l.b16 %v1874
    %v2252 = vunpack.c.h.b16 %v1874
    %v2253 = vunpack.c.l.b16 %v1875
    %v2254 = vunpack.c.h.b16 %v1875
    %v2255 = vunpack.c.l.b16 %v1876
    %v2256 = vunpack.c.h.b16 %v1876
    %v2257 = vunpack.c.l.b16 %v1877
    %v2258 = vunpack.c.l.b16 %v1878
    %v2259 = vunpack.c.h.b16 %v1878
    %v2260 = vunpack.c.l.b16 %v1879
    %v2261 = vunpack.c.h.b16 %v1879
    %v2262 = vunpack.c.l.b16 %v1880
    %v2263 = vunpack.c.h.b16 %v1880
    %v2264 = vunpack.c.l.b16 %v1881
    %v2265 = vunpack.c.h.b16 %v1881
    %v2266 = vunpack.c.l.b16 %v1882
    %v2267 = vunpack.c.l.b16 %v1883
    %v2268 = vunpack.c.h.b16 %v1883
    %v2269 = vunpack.c.l.b16 %v1884
    %v2270 = vunpack.c.h.b16 %v1884
    %v2271 = vunpack.c.l.b16 %v1885
    %v2272 = vunpack.c.h.b16 %v1885
    %v2273 = vunpack.c.l.b16 %v1886
    %v2274 = vunpack.c.h.b16 %v1886
    %v2275 = vunpack.c.l.b16 %v1887
    %v2276 = vunpack.c.l.b16 %v1888
    %v2277 = vunpack.c.h.b16 %v1888
    %v2278 = vunpack.c.l.b16 %v1889
    %v2279 = vunpack.c.h.b16 %v1889
    %v2280 = vunpack.c.l.b16 %v1890
    %v2281 = vunpack.c.h.b16 %v1890
    %v2282 = vunpack.c.l.b16 %v1891
    %v2283 = vunpack.c.h.b16 %v1891
    %v2284 = vunpack.c.l.b16 %v1892
    %v2285 = vunpack.c.l.b16 %v1893
    %v2286 = vunpack.c.h.b16 %v1893
    %v2287 = vunpack.c.l.b16 %v1894
    %v2288 = vunpack.c.h.b16 %v1894
    %v2289 = vunpack.c.l.b16 %v1895
    %v2290 = vunpack.c.h.b16 %v1895
    %v2291 = vunpack.c.l.b16 %v1896
    %v2292 = vunpack.c.h.b16 %v1896
    %v2293 = vunpack.c.l.b16 %v1897
    %v2294 = vunpack.c.l.b16 %v1898
    %v2295 = vunpack.c.h.b16 %v1898
    %v2296 = vunpack.c.l.b16 %v1899
    %v2297 = vunpack.c.h.b16 %v1899
    %v2298 = vunpack.c.l.b16 %v1900
    %v2299 = vunpack.c.h.b16 %v1900
    %v2300 = vunpack.c.l.b16 %v1901
    %v2301 = vunpack.c.h.b16 %v1901
    %v2302 = vunpack.c.l.b16 %v1902
    %v2303 = vunpack.c.l.b16 %v1903
    %v2304 = vunpack.c.h.b16 %v1903
    %v2305 = vunpack.c.l.b16 %v1904
    %v2306 = vunpack.c.h.b16 %v1904
    %v2307 = vunpack.c.l.b16 %v1905
    %v2308 = vunpack.c.h.b16 %v1905
    %v2309 = vunpack.c.l.b16 %v1906
    %v2310 = vunpack.c.h.b16 %v1906
    %v2311 = vunpack.c.l.b16 %v1907
    %v2312 = vunpack.c.l.b16 %v1908
    %v2313 = vunpack.c.h.b16 %v1908
    %v2314 = vunpack.c.l.b16 %v1909
    %v2315 = vunpack.c.h.b16 %v1909
    %v2316 = vunpack.c.l.b16 %v1910
    %v2317 = vunpack.c.h.b16 %v1910
    %v2318 = vunpack.c.l.b16 %v1911
    %v2319 = vunpack.c.h.b16 %v1911
    %v2320 = vunpack.c.l.b16 %v1912
    %v2321 = vunpack.c.l.b16 %v1913
    %v2322 = vunpack.c.h.b16 %v1913
    %v2323 = vunpack.c.l.b16 %v1914
    %v2324 = vunpack.c.h.b16 %v1914
    %v2325 = vunpack.c.l.b16 %v1915
    %v2326 = vunpack.c.h.b16 %v1915
    %v2327 = vunpack.c.l.b16 %v1916
    %v2328 = vunpack.c.h.b16 %v1916
    %v2329 = vunpack.c.l.b16 %v1917
    %v2330 = vunpack.c.l.b16 %v1918
    %v2331 = vunpack.c.h.b16 %v1918
    %v2332 = vunpack.c.l.b16 %v1919
    %v2333 = vunpack.c.h.b16 %v1919
    %v2334 = vunpack.c.l.b16 %v1920
    %v2335 = vunpack.c.h.b16 %v1920
    %v2336 = vunpack.c.l.b16 %v1921
    %v2337 = vunpack.c.h.b16 %v1921
    %v2338 = vunpack.c.l.b16 %v1922
    %v2339 = vunpack.c.l.b16 %v1923
    %v2340 = vunpack.c.h.b16 %v1923
    %v2341 = vunpack.c.l.b16 %v1924
    %v2342 = vunpack.c.h.b16 %v1924
    %v2343 = vunpack.c.l.b16 %v1925
    %v2344 = vunpack.c.h.b16 %v1925
    %v2345 = vunpack.c.l.b16 %v1926
    %v2346 = vunpack.c.h.b16 %v1926
    %v2347 = vunpack.c.l.b16 %v1927
    %v2348 = vunpack.c.l.b16 %v1928
    %v2349 = vunpack.c.h.b16 %v1928
    %v2350 = vunpack.c.l.b16 %v1929
    %v2351 = vunpack.c.h.b16 %v1929
    %v2352 = vunpack.c.l.b16 %v1930
    %v2353 = vunpack.c.h.b16 %v1930
    %v2354 = vunpack.c.l.b16 %v1931
    %v2355 = vunpack.c.h.b16 %v1931
    %v2356 = vunpack.c.l.b16 %v1932
    %v2357 = vunpack.c.l.b16 %v1933
    %v2358 = vunpack.c.h.b16 %v1933
    %v2359 = vunpack.c.l.b16 %v1934
    %v2360 = vunpack.c.h.b16 %v1934
    %v2361 = vunpack.c.l.b16 %v1935
    %v2362 = vunpack.c.h.b16 %v1935
    %v2363 = vunpack.c.l.b16 %v1936
    %v2364 = vunpack.c.h.b16 %v1936
    %v2365 = vunpack.c.l.b16 %v1937
    %v2366 = vunpack.c.l.b16 %v1938
    %v2367 = vunpack.c.h.b16 %v1938
    %v2368 = vunpack.c.l.b16 %v1939
    %v2369 = vunpack.c.h.b16 %v1939
    %v2370 = vunpack.c.l.b16 %v1940
    %v2371 = vunpack.c.h.b16 %v1940
    %v2372 = vunpack.c.l.b16 %v1941
    %v2373 = vunpack.c.h.b16 %v1941
    %v2374 = vunpack.c.l.b16 %v1942
    %v2375 = vunpack.c.l.b16 %v1943
    %v2376 = vunpack.c.h.b16 %v1943
    %v2377 = vunpack.c.l.b16 %v1944
    %v2378 = vunpack.c.h.b16 %v1944
    %v2379 = vunpack.c.l.b16 %v1945
    %v2380 = vunpack.c.h.b16 %v1945
    %v2381 = vunpack.c.l.b16 %v1946
    %v2382 = vunpack.c.h.b16 %v1946
    %v2383 = vunpack.c.l.b16 %v1947
    %v2384 = vunpack.c.l.b16 %v1948
    %v2385 = vunpack.c.h.b16 %v1948
    %v2386 = vunpack.c.l.b16 %v1949
    %v2387 = vunpack.c.h.b16 %v1949
    %v2388 = vunpack.c.l.b16 %v1950
    %v2389 = vunpack.c.h.b16 %v1950
    %v2390 = vunpack.c.l.b16 %v1951
    %v2391 = vunpack.c.h.b16 %v1951
    %v2392 = vunpack.c.l.b16 %v1952
    %v2393 = vunpack.c.l.b16 %v1953
    %v2394 = vunpack.c.h.b16 %v1953
    %v2395 = vunpack.c.l.b16 %v1954
    %v2396 = vunpack.c.h.b16 %v1954
    %v2397 = vunpack.c.l.b16 %v1955
    %v2398 = vunpack.c.h.b16 %v1955
    %v2399 = vunpack.c.l.b16 %v1956
    %v2400 = vunpack.c.h.b16 %v1956
    %v2401 = vunpack.c.l.b16 %v1957
    %v2402 = vunpack.c.l.b16 %v1958
    %v2403 = vunpack.c.h.b16 %v1958
    %v2404 = vunpack.c.l.b16 %v1959
    %v2405 = vunpack.c.h.b16 %v1959
    %v2406 = vunpack.c.l.b16 %v1960
    %v2407 = vunpack.c.h.b16 %v1960
    %v2408 = vunpack.c.l.b16 %v1961
    %v2409 = vunpack.c.h.b16 %v1961
    %v2410 = vunpack.c.l.b16 %v1962
    %v2411 = vunpack.c.l.b16 %v1963
    %v2412 = vunpack.c.h.b16 %v1963
    %v2413 = vunpack.c.l.b16 %v1964
    %v2414 = vunpack.c.h.b16 %v1964
    %v2415 = vunpack.c.l.b16 %v1965
    %v2416 = vunpack.c.h.b16 %v1965
    %v2417 = vunpack.c.l.b16 %v1966
    %v2418 = vunpack.c.h.b16 %v1966
    %v2419 = vunpack.c.l.b16 %v1967
    %v2420 = vunpack.c.l.b16 %v1968
    %v2421 = vunpack.c.h.b16 %v1968
    %v2422 = vunpack.c.l.b16 %v1969
    %v2423 = vunpack.c.h.b16 %v1969
    %v2424 = vunpack.c.l.b16 %v1970
    %v2425 = vunpack.c.h.b16 %v1970
    %v2426 = vunpack.c.l.b16 %v1971
    %v2427 = vunpack.c.h.b16 %v1971
    %v2428 = vunpack.c.l.b16 %v1972
    %v2429 = vpack.c.b16 %v2159, %v2150
    %v2430 = vpack.c.b16 %v2160, %v2151
    %v2431 = vpack.c.b16 %v2161, %v2152
    %v2432 = vpack.c.b16 %v2162, %v2153
    %v2433 = vpack.c.b16 %v2163, %v2154
    %v2434 = vpack.c.b16 %v2164, %v2155
    %v2435 = vpack.c.b16 %v2165, %v2156
    %v2436 = vpack.c.b16 %v2166, %v2157
    %v2437 = vpack.c.b16 %v2167, %v2158
    %v2438 = vpack.c.b16 %v2177, %v2168
    %v2439 = vpack.c.b16 %v2178, %v2169
    %v2440 = vpack.c.b16 %v2179, %v2170
    %v2441 = vpack.c.b16 %v2180, %v2171
    %v2442 = vpack.c.b16 %v2181, %v2172
    %v2443 = vpack.c.b16 %v2182, %v2173
    %v2444 = vpack.c.b16 %v2183, %v2174
    %v2445 = vpack.c.b16 %v2184, %v2175
    %v2446 = vpack.c.b16 %v2185, %v2176
    %v2447 = vpack.c.b16 %v2195, %v2186
    %v2448 = vpack.c.b16 %v2196, %v2187
    %v2449 = vpack.c.b16 %v2197, %v2188
    %v2450 = vpack.c.b16 %v2198, %v2189
    %v2451 = vpack.c.b16 %v2199, %v2190
    %v2452 = vpack.c.b16 %v2200, %v2191
    %v2453 = vpack.c.b16 %v2201, %v2192
    %v2454 = vpack.c.b16 %v2202, %v2193
    %v2455 = vpack.c.b16 %v2203, %v2194
    %v2456 = vpack.c.b16 %v2213, %v2204
    %v2457 = vpack.c.b16 %v2214, %v2205
    %v2458 = vpack.c.b16 %v2215, %v2206
    %v2459 = vpack.c.b16 %v2216, %v2207
    %v2460 = vpack.c.b16 %v2217, %v2208
    %v2461 = vpack.c.b16 %v2218, %v2209
    %v2462 = vpack.c.b16 %v2219, %v2210
    %v2463 = vpack.c.b16 %v2220, %v2211
    %v2464 = vpack.c.b16 %v2221, %v2212
    %v2465 = vpack.c.b16 %v2231, %v2222
    %v2466 = vpack.c.b16 %v2232, %v2223
    %v2467 = vpack.c.b16 %v2233, %v2224
    %v2468 = vpack.c.b16 %v2234, %v2225
    %v2469 = vpack.c.b16 %v2235, %v2226
    %v2470 = vpack.c.b16 %v2236, %v2227
    %v2471 = vpack.c.b16 %v2237, %v2228
    %v2472 = vpack.c.b16 %v2238, %v2229
    %v2473 = vpack.c.b16 %v2239, %v2230
    %v2474 = vpack.c.b16 %v2249, %v2240
    %v2475 = vpack.c.b16 %v2250, %v2241
    %v2476 = vpack.c.b16 %v2251, %v2242
    %v2477 = vpack.c.b16 %v2252, %v2243
    %v2478 = vpack.c.b16 %v2253, %v2244
    %v2479 = vpack.c.b16 %v2254, %v2245
    %v2480 = vpack.c.b16 %v2255, %v2246
    %v2481 = vpack.c.b16 %v2256, %v2247
    %v2482 = vpack.c.b16 %v2257, %v2248
    %v2483 = vpack.c.b16 %v2267, %v2258
    %v2484 = vpack.c.b16 %v2268, %v2259
    %v2485 = vpack.c.b16 %v2269, %v2260
    %v2486 = vpack.c.b16 %v2270, %v2261
    %v2487 = vpack.c.b16 %v2271, %v2262
    %v2488 = vpack.c.b16 %v2272, %v2263
    %v2489 = vpack.c.b16 %v2273, %v2264
    %v2490 = vpack.c.b16 %v2274, %v2265
    %v2491 = vpack.c.b16 %v2275, %v2266
    %v2492 = vpack.c.b16 %v2285, %v2276
    %v2493 = vpack.c.b16 %v2286, %v2277
    %v2494 = vpack.c.b16 %v2287, %v2278
    %v2495 = vpack.c.b16 %v2288, %v2279
    %v2496 = vpack.c.b16 %v2289, %v2280
    %v2497 = vpack.c.b16 %v2290, %v2281
    %v2498 = vpack.c.b16 %v2291, %v2282
    %v2499 = vpack.c.b16 %v2292, %v2283
    %v2500 = vpack.c.b16 %v2293, %v2284
    %v2501 = vpack.c.b16 %v2303, %v2294
    %v2502 = vpack.c.b16 %v2304, %v2295
    %v2503 = vpack.c.b16 %v2305, %v2296
    %v2504 = vpack.c.b16 %v2306, %v2297
    %v2505 = vpack.c.b16 %v2307, %v2298
    %v2506 = vpack.c.b16 %v2308, %v2299
    %v2507 = vpack.c.b16 %v2309, %v2300
    %v2508 = vpack.c.b16 %v2310, %v2301
    %v2509 = vpack.c.b16 %v2311, %v2302
    %v2510 = vpack.c.b16 %v2321, %v2312
    %v2511 = vpack.c.b16 %v2322, %v2313
    %v2512 = vpack.c.b16 %v2323, %v2314
    %v2513 = vpack.c.b16 %v2324, %v2315
    %v2514 = vpack.c.b16 %v2325, %v2316
    %v2515 = vpack.c.b16 %v2326, %v2317
    %v2516 = vpack.c.b16 %v2327, %v2318
    %v2517 = vpack.c.b16 %v2328, %v2319
    %v2518 = vpack.c.b16 %v2329, %v2320
    %v2519 = vpack.c.b16 %v2339, %v2330
    %v2520 = vpack.c.b16 %v2340, %v2331
    %v2521 = vpack.c.b16 %v2341, %v2332
    %v2522 = vpack.c.b16 %v2342, %v2333
    %v2523 = vpack.c.b16 %v2343, %v2334
    %v2524 = vpack.c.b16 %v2344, %v2335
    %v2525 = vpack.c.b16 %v2345, %v2336
    %v2526 = vpack.c.b16 %v2346, %v2337
    %v2527 = vpack.c.b16 %v2347, %v2338
    %v2528 = vpack.c.b16 %v2357, %v2348
    %v2529 = vpack.c.b16 %v2358, %v2349
    %v2530 = vpack.c.b16 %v2359, %v2350
    %v2531 = vpack.c.b16 %v2360, %v2351
    %v2532 = vpack.c.b16 %v2361, %v2352
    %v2533 = vpack.c.b16 %v2362, %v2353
    %v2534 = vpack.c.b16 %v2363, %v2354
    %v2535 = vpack.c.b16 %v2364, %v2355
    %v2536 = vpack.c.b16 %v2365, %v2356
    %v2537 = vpack.c.b16 %v2375, %v2366
    %v2538 = vpack.c.b16 %v2376, %v2367
    %v2539 = vpack.c.b16 %v2377, %v2368
    %v2540 = vpack.c.b16 %v2378, %v2369
    %v2541 = vpack.c.b16 %v2379, %v2370
    %v2542 = vpack.c.b16 %v2380, %v2371
    %v2543 = vpack.c.b16 %v2381, %v2372
    %v2544 = vpack.c.b16 %v2382, %v2373
    %v2545 = vpack.c.b16 %v2383, %v2374
    %v2546 = vpack.c.b16 %v2393, %v2384
    %v2547 = vpack.c.b16 %v2394, %v2385
    %v2548 = vpack.c.b16 %v2395, %v2386
    %v2549 = vpack.c.b16 %v2396, %v2387
    %v2550 = vpack.c.b16 %v2397, %v2388
    %v2551 = vpack.c.b16 %v2398, %v2389
    %v2552 = vpack.c.b16 %v2399, %v2390
    %v2553 = vpack.c.b16 %v2400, %v2391
    %v2554 = vpack.c.b16 %v2401, %v2392
    %v2555 = vpack.c.b16 %v2411, %v2402
    %v2556 = vpack.c.b16 %v2412, %v2403
    %v2557 = vpack.c.b16 %v2413, %v2404
    %v2558 = vpack.c.b16 %v2414, %v2405
    %v2559 = vpack.c.b16 %v2415, %v2406
    %v2560 = vpack.c.b16 %v2416, %v2407
    %v2561 = vpack.c.b16 %v2417, %v2408
    %v2562 = vpack.c.b16 %v2418, %v2409
    %v2563 = vpack.c.b16 %v2419, %v2410
    %v2564 = vpack.c.b16 %v2420, %v2420
    %v2565 = vpack.c.b16 %v2421, %v2421
    %v2566 = vpack.c.b16 %v2422, %v2422
    %v2567 = vpack.c.b16 %v2423, %v2423
    %v2568 = vpack.c.b16 %v2424, %v2424
    %v2569 = vpack.c.b16 %v2425, %v2425
    %v2570 = vpack.c.b16 %v2426, %v2426
    %v2571 = vpack.c.b16 %v2427, %v2427
    %v2572 = vpack.c.b16 %v2428, %v2428
    %v2709 = vsel %vm391, %v1773, 0
    %v2712 = vsel %vm391, %v1775, 0
    %v2715 = vsel %vm391, %v1777, 0
    %v2718 = vsel %vm391, %v1779, 0
    %v2721 = vsel %vm391, %v1781, 0
    %v2724 = vsel %vm391, %v1783, 0
    %v2727 = vsel %vm391, %v1785, 0
    %v2730 = vsel %vm391, %v1787, 0
    %v2733 = vsel %vm391, %v1789, 0
    %v2736 = vsel %vm391, %v1791, 0
    %v2739 = vsel %vm391, %v1793, 0
    %v2742 = vsel %vm391, %v1795, 0
    %v2745 = vsel %vm391, %v1797, 0
    %v2748 = vsel %vm391, %v1799, 0
    %v2751 = vsel %vm391, %v1801, 0
    %v2754 = vsel %vm391, %v1803, 0
    %v2757 = vsel %vm391, %v1805, 0
    %v2760 = vsel %vm391, %v1807, 0
    %v2763 = vsel %vm391, %v1809, 0
    %v2766 = vsel %vm391, %v1811, 0
    %v2769 = vsel %vm391, %v1813, 0
    %v2772 = vsel %vm391, %v1815, 0
    %v2775 = vsel %vm391, %v1817, 0
    %vm2777 = vcmask 1041408
    %vm2778 = vcmask 1042432
    %v2779 = vsel %vm2777, 4294967295, 65535
    %v2780 = vsel %vm2778, %v2779, 0
    %v2782 = vand.u32 %v2564, %v2780
    %v2785 = vand.u32 %v2565, %v2780
    %v2788 = vand.u32 %v2566, %v2780
    %v2791 = vand.u32 %v2567, %v2780
    %v2794 = vand.u32 %v2568, %v2780
    %v2797 = vand.u32 %v2569, %v2780
    %v2800 = vand.u32 %v2570, %v2780
    %v2803 = vand.u32 %v2571, %v2780
    %v2806 = vand.u32 %v2572, %v2780
    %2808 = vmatpush.bf16.msra.mxu0 %v2492
    %2809 = vmatpush.bf16.msra.mxu0 %v2483
    %2810 = vmatpush.bf16.msra.mxu0 %v2474
    %2811 = vmatpush.bf16.msra.mxu0 %v2465
    %2812 = vmatpush.bf16.msra.mxu0 %v2456
    %2813 = vmatpush.bf16.msra.mxu0 %v2447
    %2814 = vmatpush.bf16.msra.mxu0 %v2438
    %2815 = vmatpush.bf16.msra.mxu0 %v2429
    %2816 = vmatmul.bf16.gmra.mxu0 %v1772
    %v2817 = vpop.f32.mrf.mxu0
    %v2818 = vadd.f32 %v1977, %v2817
    %v2819 = vpop.f32.mrf.mxu0
    %v2820 = vadd.f32 %v1977, %v2819
    %2821 = vmatmul.bf16.gmra.mxu0 %v1774
    %v2822 = vpop.f32.mrf.mxu0
    %v2823 = vadd.f32 %v1977, %v2822
    %v2824 = vpop.f32.mrf.mxu0
    %v2825 = vadd.f32 %v1977, %v2824
    %2826 = vmatmul.bf16.gmra.mxu0 %v1776
    %v2827 = vpop.f32.mrf.mxu0
    %v2828 = vadd.f32 %v1977, %v2827
    %v2829 = vpop.f32.mrf.mxu0
    %v2830 = vadd.f32 %v1977, %v2829
    %2831 = vmatmul.bf16.gmra.mxu0 %v1778
    %v2832 = vpop.f32.mrf.mxu0
    %v2833 = vadd.f32 %v1977, %v2832
    %v2834 = vpop.f32.mrf.mxu0
    %v2835 = vadd.f32 %v1977, %v2834
    %2836 = vmatmul.bf16.gmra.mxu0 %v1780
    %v2837 = vpop.f32.mrf.mxu0
    %v2838 = vadd.f32 %v1977, %v2837
    %v2839 = vpop.f32.mrf.mxu0
    %v2840 = vadd.f32 %v1977, %v2839
    %2841 = vmatmul.bf16.gmra.mxu0 %v1782
    %v2842 = vpop.f32.mrf.mxu0
    %v2843 = vadd.f32 %v1977, %v2842
    %v2844 = vpop.f32.mrf.mxu0
    %v2845 = vadd.f32 %v1977, %v2844
    %2846 = vmatmul.bf16.gmra.mxu0 %v1784
    %v2847 = vpop.f32.mrf.mxu0
    %v2848 = vadd.f32 %v1977, %v2847
    %v2849 = vpop.f32.mrf.mxu0
    %v2850 = vadd.f32 %v1977, %v2849
    %2851 = vmatmul.bf16.gmra.mxu0 %v1786
    %v2852 = vpop.f32.mrf.mxu0
    %v2853 = vadd.f32 %v1977, %v2852
    %v2854 = vpop.f32.mrf.mxu0
    %v2855 = vadd.f32 %v1977, %v2854
    %2856 = vmatmul.bf16.gmra.mxu0 %v1788
    %v2857 = vpop.f32.mrf.mxu0
    %v2858 = vadd.f32 %v1977, %v2857
    %v2859 = vpop.f32.mrf.mxu0
    %v2860 = vadd.f32 %v1977, %v2859
    %2861 = vmatmul.bf16.gmra.mxu0 %v1790
    %v2862 = vpop.f32.mrf.mxu0
    %v2863 = vadd.f32 %v1977, %v2862
    %v2864 = vpop.f32.mrf.mxu0
    %v2865 = vadd.f32 %v1977, %v2864
    %2866 = vmatmul.bf16.gmra.mxu0 %v1792
    %v2867 = vpop.f32.mrf.mxu0
    %v2868 = vadd.f32 %v1977, %v2867
    %v2869 = vpop.f32.mrf.mxu0
    %v2870 = vadd.f32 %v1977, %v2869
    %2871 = vmatmul.bf16.gmra.mxu0 %v1794
    %v2872 = vpop.f32.mrf.mxu0
    %v2873 = vadd.f32 %v1977, %v2872
    %v2874 = vpop.f32.mrf.mxu0
    %v2875 = vadd.f32 %v1977, %v2874
    %2876 = vmatmul.bf16.gmra.mxu0 %v1796
    %v2877 = vpop.f32.mrf.mxu0
    %v2878 = vadd.f32 %v1977, %v2877
    %v2879 = vpop.f32.mrf.mxu0
    %v2880 = vadd.f32 %v1977, %v2879
    %2881 = vmatmul.bf16.gmra.mxu0 %v1798
    %v2882 = vpop.f32.mrf.mxu0
    %v2883 = vadd.f32 %v1977, %v2882
    %v2884 = vpop.f32.mrf.mxu0
    %v2885 = vadd.f32 %v1977, %v2884
    %2886 = vmatmul.bf16.gmra.mxu0 %v1800
    %v2887 = vpop.f32.mrf.mxu0
    %v2888 = vadd.f32 %v1977, %v2887
    %v2889 = vpop.f32.mrf.mxu0
    %v2890 = vadd.f32 %v1977, %v2889
    %2891 = vmatmul.bf16.gmra.mxu0 %v1802
    %v2892 = vpop.f32.mrf.mxu0
    %v2893 = vadd.f32 %v1977, %v2892
    %v2894 = vpop.f32.mrf.mxu0
    %v2895 = vadd.f32 %v1977, %v2894
    %2896 = vmatmul.bf16.gmra.mxu0 %v1804
    %v2897 = vpop.f32.mrf.mxu0
    %v2898 = vadd.f32 %v1977, %v2897
    %v2899 = vpop.f32.mrf.mxu0
    %v2900 = vadd.f32 %v1977, %v2899
    %2901 = vmatmul.bf16.gmra.mxu0 %v1806
    %v2902 = vpop.f32.mrf.mxu0
    %v2903 = vadd.f32 %v1977, %v2902
    %v2904 = vpop.f32.mrf.mxu0
    %v2905 = vadd.f32 %v1977, %v2904
    %2906 = vmatmul.bf16.gmra.mxu0 %v1808
    %v2907 = vpop.f32.mrf.mxu0
    %v2908 = vadd.f32 %v1977, %v2907
    %v2909 = vpop.f32.mrf.mxu0
    %v2910 = vadd.f32 %v1977, %v2909
    %2911 = vmatmul.bf16.gmra.mxu0 %v1810
    %v2912 = vpop.f32.mrf.mxu0
    %v2913 = vadd.f32 %v1977, %v2912
    %v2914 = vpop.f32.mrf.mxu0
    %v2915 = vadd.f32 %v1977, %v2914
    %2916 = vmatmul.bf16.gmra.mxu0 %v1812
    %v2917 = vpop.f32.mrf.mxu0
    %v2918 = vadd.f32 %v1977, %v2917
    %v2919 = vpop.f32.mrf.mxu0
    %v2920 = vadd.f32 %v1977, %v2919
    %2921 = vmatmul.bf16.gmra.mxu0 %v1814
    %v2922 = vpop.f32.mrf.mxu0
    %v2923 = vadd.f32 %v1977, %v2922
    %v2924 = vpop.f32.mrf.mxu0
    %v2925 = vadd.f32 %v1977, %v2924
    %2926 = vmatmul.bf16.gmra.mxu0 %v1816
    %v2927 = vpop.f32.mrf.mxu0
    %v2928 = vadd.f32 %v1977, %v2927
    %v2929 = vpop.f32.mrf.mxu0
    %2930 = vdwg.mxu0
    %2931 = vmatpush.bf16.msra.mxu0 %v2782
    %2932 = vmatpush.bf16.msra.mxu0 %v2555
    %2933 = vmatpush.bf16.msra.mxu0 %v2546
    %2934 = vmatpush.bf16.msra.mxu0 %v2537
    %2935 = vmatpush.bf16.msra.mxu0 %v2528
    %2936 = vmatpush.bf16.msra.mxu0 %v2519
    %2937 = vmatpush.bf16.msra.mxu0 %v2510
    %2938 = vmatpush.bf16.msra.mxu0 %v2501
    %2939 = vmatmul.bf16.gmra.mxu0 %v2709
    %v2940 = vpop.f32.mrf.mxu0
    %v2941 = vadd.f32 %v2818, %v2940
    %v2942 = vpop.f32.mrf.mxu0
    %v2943 = vadd.f32 %v2820, %v2942
    %2944 = vmatmul.bf16.gmra.mxu0 %v2712
    %v2945 = vpop.f32.mrf.mxu0
    %v2946 = vadd.f32 %v2823, %v2945
    %v2947 = vpop.f32.mrf.mxu0
    %v2948 = vadd.f32 %v2825, %v2947
    %2949 = vmatmul.bf16.gmra.mxu0 %v2715
    %v2950 = vpop.f32.mrf.mxu0
    %v2951 = vadd.f32 %v2828, %v2950
    %v2952 = vpop.f32.mrf.mxu0
    %v2953 = vadd.f32 %v2830, %v2952
    %2954 = vmatmul.bf16.gmra.mxu0 %v2718
    %v2955 = vpop.f32.mrf.mxu0
    %v2956 = vadd.f32 %v2833, %v2955
    %v2957 = vpop.f32.mrf.mxu0
    %v2958 = vadd.f32 %v2835, %v2957
    %2959 = vmatmul.bf16.gmra.mxu0 %v2721
    %v2960 = vpop.f32.mrf.mxu0
    %v2961 = vadd.f32 %v2838, %v2960
    %v2962 = vpop.f32.mrf.mxu0
    %v2963 = vadd.f32 %v2840, %v2962
    %2964 = vmatmul.bf16.gmra.mxu0 %v2724
    %v2965 = vpop.f32.mrf.mxu0
    %v2966 = vadd.f32 %v2843, %v2965
    %v2967 = vpop.f32.mrf.mxu0
    %v2968 = vadd.f32 %v2845, %v2967
    %2969 = vmatmul.bf16.gmra.mxu0 %v2727
    %v2970 = vpop.f32.mrf.mxu0
    %v2971 = vadd.f32 %v2848, %v2970
    %v2972 = vpop.f32.mrf.mxu0
    %v2973 = vadd.f32 %v2850, %v2972
    %2974 = vmatmul.bf16.gmra.mxu0 %v2730
    %v2975 = vpop.f32.mrf.mxu0
    %v2976 = vadd.f32 %v2853, %v2975
    %v2977 = vpop.f32.mrf.mxu0
    %v2978 = vadd.f32 %v2855, %v2977
    %2979 = vmatmul.bf16.gmra.mxu0 %v2733
    %v2980 = vpop.f32.mrf.mxu0
    %v2981 = vadd.f32 %v2858, %v2980
    %v2982 = vpop.f32.mrf.mxu0
    %v2983 = vadd.f32 %v2860, %v2982
    %2984 = vmatmul.bf16.gmra.mxu0 %v2736
    %v2985 = vpop.f32.mrf.mxu0
    %v2986 = vadd.f32 %v2863, %v2985
    %v2987 = vpop.f32.mrf.mxu0
    %v2988 = vadd.f32 %v2865, %v2987
    %2989 = vmatmul.bf16.gmra.mxu0 %v2739
    %v2990 = vpop.f32.mrf.mxu0
    %v2991 = vadd.f32 %v2868, %v2990
    %v2992 = vpop.f32.mrf.mxu0
    %v2993 = vadd.f32 %v2870, %v2992
    %2994 = vmatmul.bf16.gmra.mxu0 %v2742
    %v2995 = vpop.f32.mrf.mxu0
    %v2996 = vadd.f32 %v2873, %v2995
    %v2997 = vpop.f32.mrf.mxu0
    %v2998 = vadd.f32 %v2875, %v2997
    %2999 = vmatmul.bf16.gmra.mxu0 %v2745
    %v3000 = vpop.f32.mrf.mxu0
    %v3001 = vadd.f32 %v2878, %v3000
    %v3002 = vpop.f32.mrf.mxu0
    %v3003 = vadd.f32 %v2880, %v3002
    %3004 = vmatmul.bf16.gmra.mxu0 %v2748
    %v3005 = vpop.f32.mrf.mxu0
    %v3006 = vadd.f32 %v2883, %v3005
    %v3007 = vpop.f32.mrf.mxu0
    %v3008 = vadd.f32 %v2885, %v3007
    %3009 = vmatmul.bf16.gmra.mxu0 %v2751
    %v3010 = vpop.f32.mrf.mxu0
    %v3011 = vadd.f32 %v2888, %v3010
    %v3012 = vpop.f32.mrf.mxu0
    %v3013 = vadd.f32 %v2890, %v3012
    %3014 = vmatmul.bf16.gmra.mxu0 %v2754
    %v3015 = vpop.f32.mrf.mxu0
    %v3016 = vadd.f32 %v2893, %v3015
    %v3017 = vpop.f32.mrf.mxu0
    %v3018 = vadd.f32 %v2895, %v3017
    %3019 = vmatmul.bf16.gmra.mxu0 %v2757
    %v3020 = vpop.f32.mrf.mxu0
    %v3021 = vadd.f32 %v2898, %v3020
    %v3022 = vpop.f32.mrf.mxu0
    %v3023 = vadd.f32 %v2900, %v3022
    %3024 = vmatmul.bf16.gmra.mxu0 %v2760
    %v3025 = vpop.f32.mrf.mxu0
    %v3026 = vadd.f32 %v2903, %v3025
    %v3027 = vpop.f32.mrf.mxu0
    %v3028 = vadd.f32 %v2905, %v3027
    %3029 = vmatmul.bf16.gmra.mxu0 %v2763
    %v3030 = vpop.f32.mrf.mxu0
    %v3031 = vadd.f32 %v2908, %v3030
    %v3032 = vpop.f32.mrf.mxu0
    %v3033 = vadd.f32 %v2910, %v3032
    %3034 = vmatmul.bf16.gmra.mxu0 %v2766
    %v3035 = vpop.f32.mrf.mxu0
    %v3036 = vadd.f32 %v2913, %v3035
    %v3037 = vpop.f32.mrf.mxu0
    %v3038 = vadd.f32 %v2915, %v3037
    %3039 = vmatmul.bf16.gmra.mxu0 %v2769
    %v3040 = vpop.f32.mrf.mxu0
    %v3041 = vadd.f32 %v2918, %v3040
    %v3042 = vpop.f32.mrf.mxu0
    %v3043 = vadd.f32 %v2920, %v3042
    %3044 = vmatmul.bf16.gmra.mxu0 %v2772
    %v3045 = vpop.f32.mrf.mxu0
    %v3046 = vadd.f32 %v2923, %v3045
    %v3047 = vpop.f32.mrf.mxu0
    %v3048 = vadd.f32 %v2925, %v3047
    %3049 = vmatmul.bf16.gmra.mxu0 %v2775
    %v3050 = vpop.f32.mrf.mxu0
    %v3051 = vadd.f32 %v2928, %v3050
    %v3052 = vpop.f32.mrf.mxu0
    %3053 = vdwg.mxu0
    %3054 = vmatpush.bf16.msra.mxu0 %v2493
    %3055 = vmatpush.bf16.msra.mxu0 %v2484
    %3056 = vmatpush.bf16.msra.mxu0 %v2475
    %3057 = vmatpush.bf16.msra.mxu0 %v2466
    %3058 = vmatpush.bf16.msra.mxu0 %v2457
    %3059 = vmatpush.bf16.msra.mxu0 %v2448
    %3060 = vmatpush.bf16.msra.mxu0 %v2439
    %3061 = vmatpush.bf16.msra.mxu0 %v2430
    %3062 = vmatmul.bf16.gmra.mxu0 %v1772
    %v3063 = vpop.f32.mrf.mxu0
    %v3064 = vadd.f32 %v1978, %v3063
    %v3065 = vpop.f32.mrf.mxu0
    %v3066 = vadd.f32 %v1978, %v3065
    %3067 = vmatmul.bf16.gmra.mxu0 %v1774
    %v3068 = vpop.f32.mrf.mxu0
    %v3069 = vadd.f32 %v1978, %v3068
    %v3070 = vpop.f32.mrf.mxu0
    %v3071 = vadd.f32 %v1978, %v3070
    %3072 = vmatmul.bf16.gmra.mxu0 %v1776
    %v3073 = vpop.f32.mrf.mxu0
    %v3074 = vadd.f32 %v1978, %v3073
    %v3075 = vpop.f32.mrf.mxu0
    %v3076 = vadd.f32 %v1978, %v3075
    %3077 = vmatmul.bf16.gmra.mxu0 %v1778
    %v3078 = vpop.f32.mrf.mxu0
    %v3079 = vadd.f32 %v1978, %v3078
    %v3080 = vpop.f32.mrf.mxu0
    %v3081 = vadd.f32 %v1978, %v3080
    %3082 = vmatmul.bf16.gmra.mxu0 %v1780
    %v3083 = vpop.f32.mrf.mxu0
    %v3084 = vadd.f32 %v1978, %v3083
    %v3085 = vpop.f32.mrf.mxu0
    %v3086 = vadd.f32 %v1978, %v3085
    %3087 = vmatmul.bf16.gmra.mxu0 %v1782
    %v3088 = vpop.f32.mrf.mxu0
    %v3089 = vadd.f32 %v1978, %v3088
    %v3090 = vpop.f32.mrf.mxu0
    %v3091 = vadd.f32 %v1978, %v3090
    %3092 = vmatmul.bf16.gmra.mxu0 %v1784
    %v3093 = vpop.f32.mrf.mxu0
    %v3094 = vadd.f32 %v1978, %v3093
    %v3095 = vpop.f32.mrf.mxu0
    %v3096 = vadd.f32 %v1978, %v3095
    %3097 = vmatmul.bf16.gmra.mxu0 %v1786
    %v3098 = vpop.f32.mrf.mxu0
    %v3099 = vadd.f32 %v1978, %v3098
    %v3100 = vpop.f32.mrf.mxu0
    %v3101 = vadd.f32 %v1978, %v3100
    %3102 = vmatmul.bf16.gmra.mxu0 %v1788
    %v3103 = vpop.f32.mrf.mxu0
    %v3104 = vadd.f32 %v1978, %v3103
    %v3105 = vpop.f32.mrf.mxu0
    %v3106 = vadd.f32 %v1978, %v3105
    %3107 = vmatmul.bf16.gmra.mxu0 %v1790
    %v3108 = vpop.f32.mrf.mxu0
    %v3109 = vadd.f32 %v1978, %v3108
    %v3110 = vpop.f32.mrf.mxu0
    %v3111 = vadd.f32 %v1978, %v3110
    %3112 = vmatmul.bf16.gmra.mxu0 %v1792
    %v3113 = vpop.f32.mrf.mxu0
    %v3114 = vadd.f32 %v1978, %v3113
    %v3115 = vpop.f32.mrf.mxu0
    %v3116 = vadd.f32 %v1978, %v3115
    %3117 = vmatmul.bf16.gmra.mxu0 %v1794
    %v3118 = vpop.f32.mrf.mxu0
    %v3119 = vadd.f32 %v1978, %v3118
    %v3120 = vpop.f32.mrf.mxu0
    %v3121 = vadd.f32 %v1978, %v3120
    %3122 = vmatmul.bf16.gmra.mxu0 %v1796
    %v3123 = vpop.f32.mrf.mxu0
    %v3124 = vadd.f32 %v1978, %v3123
    %v3125 = vpop.f32.mrf.mxu0
    %v3126 = vadd.f32 %v1978, %v3125
    %3127 = vmatmul.bf16.gmra.mxu0 %v1798
    %v3128 = vpop.f32.mrf.mxu0
    %v3129 = vadd.f32 %v1978, %v3128
    %v3130 = vpop.f32.mrf.mxu0
    %v3131 = vadd.f32 %v1978, %v3130
    %3132 = vmatmul.bf16.gmra.mxu0 %v1800
    %v3133 = vpop.f32.mrf.mxu0
    %v3134 = vadd.f32 %v1978, %v3133
    %v3135 = vpop.f32.mrf.mxu0
    %v3136 = vadd.f32 %v1978, %v3135
    %3137 = vmatmul.bf16.gmra.mxu0 %v1802
    %v3138 = vpop.f32.mrf.mxu0
    %v3139 = vadd.f32 %v1978, %v3138
    %v3140 = vpop.f32.mrf.mxu0
    %v3141 = vadd.f32 %v1978, %v3140
    %3142 = vmatmul.bf16.gmra.mxu0 %v1804
    %v3143 = vpop.f32.mrf.mxu0
    %v3144 = vadd.f32 %v1978, %v3143
    %v3145 = vpop.f32.mrf.mxu0
    %v3146 = vadd.f32 %v1978, %v3145
    %3147 = vmatmul.bf16.gmra.mxu0 %v1806
    %v3148 = vpop.f32.mrf.mxu0
    %v3149 = vadd.f32 %v1978, %v3148
    %v3150 = vpop.f32.mrf.mxu0
    %v3151 = vadd.f32 %v1978, %v3150
    %3152 = vmatmul.bf16.gmra.mxu0 %v1808
    %v3153 = vpop.f32.mrf.mxu0
    %v3154 = vadd.f32 %v1978, %v3153
    %v3155 = vpop.f32.mrf.mxu0
    %v3156 = vadd.f32 %v1978, %v3155
    %3157 = vmatmul.bf16.gmra.mxu0 %v1810
    %v3158 = vpop.f32.mrf.mxu0
    %v3159 = vadd.f32 %v1978, %v3158
    %v3160 = vpop.f32.mrf.mxu0
    %v3161 = vadd.f32 %v1978, %v3160
    %3162 = vmatmul.bf16.gmra.mxu0 %v1812
    %v3163 = vpop.f32.mrf.mxu0
    %v3164 = vadd.f32 %v1978, %v3163
    %v3165 = vpop.f32.mrf.mxu0
    %v3166 = vadd.f32 %v1978, %v3165
    %3167 = vmatmul.bf16.gmra.mxu0 %v1814
    %v3168 = vpop.f32.mrf.mxu0
    %v3169 = vadd.f32 %v1978, %v3168
    %v3170 = vpop.f32.mrf.mxu0
    %v3171 = vadd.f32 %v1978, %v3170
    %3172 = vmatmul.bf16.gmra.mxu0 %v1816
    %v3173 = vpop.f32.mrf.mxu0
    %v3174 = vadd.f32 %v1978, %v3173
    %v3175 = vpop.f32.mrf.mxu0
    %3176 = vdwg.mxu0
    %3177 = vmatpush.bf16.msra.mxu0 %v2785
    %3178 = vmatpush.bf16.msra.mxu0 %v2556
    %3179 = vmatpush.bf16.msra.mxu0 %v2547
    %3180 = vmatpush.bf16.msra.mxu0 %v2538
    %3181 = vmatpush.bf16.msra.mxu0 %v2529
    %3182 = vmatpush.bf16.msra.mxu0 %v2520
    %3183 = vmatpush.bf16.msra.mxu0 %v2511
    %3184 = vmatpush.bf16.msra.mxu0 %v2502
    %3185 = vmatmul.bf16.gmra.mxu0 %v2709
    %v3186 = vpop.f32.mrf.mxu0
    %v3187 = vadd.f32 %v3064, %v3186
    %v3188 = vpop.f32.mrf.mxu0
    %v3189 = vadd.f32 %v3066, %v3188
    %3190 = vmatmul.bf16.gmra.mxu0 %v2712
    %v3191 = vpop.f32.mrf.mxu0
    %v3192 = vadd.f32 %v3069, %v3191
    %v3193 = vpop.f32.mrf.mxu0
    %v3194 = vadd.f32 %v3071, %v3193
    %3195 = vmatmul.bf16.gmra.mxu0 %v2715
    %v3196 = vpop.f32.mrf.mxu0
    %v3197 = vadd.f32 %v3074, %v3196
    %v3198 = vpop.f32.mrf.mxu0
    %v3199 = vadd.f32 %v3076, %v3198
    %3200 = vmatmul.bf16.gmra.mxu0 %v2718
    %v3201 = vpop.f32.mrf.mxu0
    %v3202 = vadd.f32 %v3079, %v3201
    %v3203 = vpop.f32.mrf.mxu0
    %v3204 = vadd.f32 %v3081, %v3203
    %3205 = vmatmul.bf16.gmra.mxu0 %v2721
    %v3206 = vpop.f32.mrf.mxu0
    %v3207 = vadd.f32 %v3084, %v3206
    %v3208 = vpop.f32.mrf.mxu0
    %v3209 = vadd.f32 %v3086, %v3208
    %3210 = vmatmul.bf16.gmra.mxu0 %v2724
    %v3211 = vpop.f32.mrf.mxu0
    %v3212 = vadd.f32 %v3089, %v3211
    %v3213 = vpop.f32.mrf.mxu0
    %v3214 = vadd.f32 %v3091, %v3213
    %3215 = vmatmul.bf16.gmra.mxu0 %v2727
    %v3216 = vpop.f32.mrf.mxu0
    %v3217 = vadd.f32 %v3094, %v3216
    %v3218 = vpop.f32.mrf.mxu0
    %v3219 = vadd.f32 %v3096, %v3218
    %3220 = vmatmul.bf16.gmra.mxu0 %v2730
    %v3221 = vpop.f32.mrf.mxu0
    %v3222 = vadd.f32 %v3099, %v3221
    %v3223 = vpop.f32.mrf.mxu0
    %v3224 = vadd.f32 %v3101, %v3223
    %3225 = vmatmul.bf16.gmra.mxu0 %v2733
    %v3226 = vpop.f32.mrf.mxu0
    %v3227 = vadd.f32 %v3104, %v3226
    %v3228 = vpop.f32.mrf.mxu0
    %v3229 = vadd.f32 %v3106, %v3228
    %3230 = vmatmul.bf16.gmra.mxu0 %v2736
    %v3231 = vpop.f32.mrf.mxu0
    %v3232 = vadd.f32 %v3109, %v3231
    %v3233 = vpop.f32.mrf.mxu0
    %v3234 = vadd.f32 %v3111, %v3233
    %3235 = vmatmul.bf16.gmra.mxu0 %v2739
    %v3236 = vpop.f32.mrf.mxu0
    %v3237 = vadd.f32 %v3114, %v3236
    %v3238 = vpop.f32.mrf.mxu0
    %v3239 = vadd.f32 %v3116, %v3238
    %3240 = vmatmul.bf16.gmra.mxu0 %v2742
    %v3241 = vpop.f32.mrf.mxu0
    %v3242 = vadd.f32 %v3119, %v3241
    %v3243 = vpop.f32.mrf.mxu0
    %v3244 = vadd.f32 %v3121, %v3243
    %3245 = vmatmul.bf16.gmra.mxu0 %v2745
    %v3246 = vpop.f32.mrf.mxu0
    %v3247 = vadd.f32 %v3124, %v3246
    %v3248 = vpop.f32.mrf.mxu0
    %v3249 = vadd.f32 %v3126, %v3248
    %3250 = vmatmul.bf16.gmra.mxu0 %v2748
    %v3251 = vpop.f32.mrf.mxu0
    %v3252 = vadd.f32 %v3129, %v3251
    %v3253 = vpop.f32.mrf.mxu0
    %v3254 = vadd.f32 %v3131, %v3253
    %3255 = vmatmul.bf16.gmra.mxu0 %v2751
    %v3256 = vpop.f32.mrf.mxu0
    %v3257 = vadd.f32 %v3134, %v3256
    %v3258 = vpop.f32.mrf.mxu0
    %v3259 = vadd.f32 %v3136, %v3258
    %3260 = vmatmul.bf16.gmra.mxu0 %v2754
    %v3261 = vpop.f32.mrf.mxu0
    %v3262 = vadd.f32 %v3139, %v3261
    %v3263 = vpop.f32.mrf.mxu0
    %v3264 = vadd.f32 %v3141, %v3263
    %3265 = vmatmul.bf16.gmra.mxu0 %v2757
    %v3266 = vpop.f32.mrf.mxu0
    %v3267 = vadd.f32 %v3144, %v3266
    %v3268 = vpop.f32.mrf.mxu0
    %v3269 = vadd.f32 %v3146, %v3268
    %3270 = vmatmul.bf16.gmra.mxu0 %v2760
    %v3271 = vpop.f32.mrf.mxu0
    %v3272 = vadd.f32 %v3149, %v3271
    %v3273 = vpop.f32.mrf.mxu0
    %v3274 = vadd.f32 %v3151, %v3273
    %3275 = vmatmul.bf16.gmra.mxu0 %v2763
    %v3276 = vpop.f32.mrf.mxu0
    %v3277 = vadd.f32 %v3154, %v3276
    %v3278 = vpop.f32.mrf.mxu0
    %v3279 = vadd.f32 %v3156, %v3278
    %3280 = vmatmul.bf16.gmra.mxu0 %v2766
    %v3281 = vpop.f32.mrf.mxu0
    %v3282 = vadd.f32 %v3159, %v3281
    %v3283 = vpop.f32.mrf.mxu0
    %v3284 = vadd.f32 %v3161, %v3283
    %3285 = vmatmul.bf16.gmra.mxu0 %v2769
    %v3286 = vpop.f32.mrf.mxu0
    %v3287 = vadd.f32 %v3164, %v3286
    %v3288 = vpop.f32.mrf.mxu0
    %v3289 = vadd.f32 %v3166, %v3288
    %3290 = vmatmul.bf16.gmra.mxu0 %v2772
    %v3291 = vpop.f32.mrf.mxu0
    %v3292 = vadd.f32 %v3169, %v3291
    %v3293 = vpop.f32.mrf.mxu0
    %v3294 = vadd.f32 %v3171, %v3293
    %3295 = vmatmul.bf16.gmra.mxu0 %v2775
    %v3296 = vpop.f32.mrf.mxu0
    %v3297 = vadd.f32 %v3174, %v3296
    %v3298 = vpop.f32.mrf.mxu0
    %3299 = vdwg.mxu0
    %3300 = vmatpush.bf16.msra.mxu0 %v2494
    %3301 = vmatpush.bf16.msra.mxu0 %v2485
    %3302 = vmatpush.bf16.msra.mxu0 %v2476
    %3303 = vmatpush.bf16.msra.mxu0 %v2467
    %3304 = vmatpush.bf16.msra.mxu0 %v2458
    %3305 = vmatpush.bf16.msra.mxu0 %v2449
    %3306 = vmatpush.bf16.msra.mxu0 %v2440
    %3307 = vmatpush.bf16.msra.mxu0 %v2431
    %3308 = vmatmul.bf16.gmra.mxu0 %v1772
    %v3309 = vpop.f32.mrf.mxu0
    %v3310 = vadd.f32 %v1979, %v3309
    %v3311 = vpop.f32.mrf.mxu0
    %v3312 = vadd.f32 %v1979, %v3311
    %3313 = vmatmul.bf16.gmra.mxu0 %v1774
    %v3314 = vpop.f32.mrf.mxu0
    %v3315 = vadd.f32 %v1979, %v3314
    %v3316 = vpop.f32.mrf.mxu0
    %v3317 = vadd.f32 %v1979, %v3316
    %3318 = vmatmul.bf16.gmra.mxu0 %v1776
    %v3319 = vpop.f32.mrf.mxu0
    %v3320 = vadd.f32 %v1979, %v3319
    %v3321 = vpop.f32.mrf.mxu0
    %v3322 = vadd.f32 %v1979, %v3321
    %3323 = vmatmul.bf16.gmra.mxu0 %v1778
    %v3324 = vpop.f32.mrf.mxu0
    %v3325 = vadd.f32 %v1979, %v3324
    %v3326 = vpop.f32.mrf.mxu0
    %v3327 = vadd.f32 %v1979, %v3326
    %3328 = vmatmul.bf16.gmra.mxu0 %v1780
    %v3329 = vpop.f32.mrf.mxu0
    %v3330 = vadd.f32 %v1979, %v3329
    %v3331 = vpop.f32.mrf.mxu0
    %v3332 = vadd.f32 %v1979, %v3331
    %3333 = vmatmul.bf16.gmra.mxu0 %v1782
    %v3334 = vpop.f32.mrf.mxu0
    %v3335 = vadd.f32 %v1979, %v3334
    %v3336 = vpop.f32.mrf.mxu0
    %v3337 = vadd.f32 %v1979, %v3336
    %3338 = vmatmul.bf16.gmra.mxu0 %v1784
    %v3339 = vpop.f32.mrf.mxu0
    %v3340 = vadd.f32 %v1979, %v3339
    %v3341 = vpop.f32.mrf.mxu0
    %v3342 = vadd.f32 %v1979, %v3341
    %3343 = vmatmul.bf16.gmra.mxu0 %v1786
    %v3344 = vpop.f32.mrf.mxu0
    %v3345 = vadd.f32 %v1979, %v3344
    %v3346 = vpop.f32.mrf.mxu0
    %v3347 = vadd.f32 %v1979, %v3346
    %3348 = vmatmul.bf16.gmra.mxu0 %v1788
    %v3349 = vpop.f32.mrf.mxu0
    %v3350 = vadd.f32 %v1979, %v3349
    %v3351 = vpop.f32.mrf.mxu0
    %v3352 = vadd.f32 %v1979, %v3351
    %3353 = vmatmul.bf16.gmra.mxu0 %v1790
    %v3354 = vpop.f32.mrf.mxu0
    %v3355 = vadd.f32 %v1979, %v3354
    %v3356 = vpop.f32.mrf.mxu0
    %v3357 = vadd.f32 %v1979, %v3356
    %3358 = vmatmul.bf16.gmra.mxu0 %v1792
    %v3359 = vpop.f32.mrf.mxu0
    %v3360 = vadd.f32 %v1979, %v3359
    %v3361 = vpop.f32.mrf.mxu0
    %v3362 = vadd.f32 %v1979, %v3361
    %3363 = vmatmul.bf16.gmra.mxu0 %v1794
    %v3364 = vpop.f32.mrf.mxu0
    %v3365 = vadd.f32 %v1979, %v3364
    %v3366 = vpop.f32.mrf.mxu0
    %v3367 = vadd.f32 %v1979, %v3366
    %3368 = vmatmul.bf16.gmra.mxu0 %v1796
    %v3369 = vpop.f32.mrf.mxu0
    %v3370 = vadd.f32 %v1979, %v3369
    %v3371 = vpop.f32.mrf.mxu0
    %v3372 = vadd.f32 %v1979, %v3371
    %3373 = vmatmul.bf16.gmra.mxu0 %v1798
    %v3374 = vpop.f32.mrf.mxu0
    %v3375 = vadd.f32 %v1979, %v3374
    %v3376 = vpop.f32.mrf.mxu0
    %v3377 = vadd.f32 %v1979, %v3376
    %3378 = vmatmul.bf16.gmra.mxu0 %v1800
    %v3379 = vpop.f32.mrf.mxu0
    %v3380 = vadd.f32 %v1979, %v3379
    %v3381 = vpop.f32.mrf.mxu0
    %v3382 = vadd.f32 %v1979, %v3381
    %3383 = vmatmul.bf16.gmra.mxu0 %v1802
    %v3384 = vpop.f32.mrf.mxu0
    %v3385 = vadd.f32 %v1979, %v3384
    %v3386 = vpop.f32.mrf.mxu0
    %v3387 = vadd.f32 %v1979, %v3386
    %3388 = vmatmul.bf16.gmra.mxu0 %v1804
    %v3389 = vpop.f32.mrf.mxu0
    %v3390 = vadd.f32 %v1979, %v3389
    %v3391 = vpop.f32.mrf.mxu0
    %v3392 = vadd.f32 %v1979, %v3391
    %3393 = vmatmul.bf16.gmra.mxu0 %v1806
    %v3394 = vpop.f32.mrf.mxu0
    %v3395 = vadd.f32 %v1979, %v3394
    %v3396 = vpop.f32.mrf.mxu0
    %v3397 = vadd.f32 %v1979, %v3396
    %3398 = vmatmul.bf16.gmra.mxu0 %v1808
    %v3399 = vpop.f32.mrf.mxu0
    %v3400 = vadd.f32 %v1979, %v3399
    %v3401 = vpop.f32.mrf.mxu0
    %v3402 = vadd.f32 %v1979, %v3401
    %3403 = vmatmul.bf16.gmra.mxu0 %v1810
    %v3404 = vpop.f32.mrf.mxu0
    %v3405 = vadd.f32 %v1979, %v3404
    %v3406 = vpop.f32.mrf.mxu0
    %v3407 = vadd.f32 %v1979, %v3406
    %3408 = vmatmul.bf16.gmra.mxu0 %v1812
    %v3409 = vpop.f32.mrf.mxu0
    %v3410 = vadd.f32 %v1979, %v3409
    %v3411 = vpop.f32.mrf.mxu0
    %v3412 = vadd.f32 %v1979, %v3411
    %3413 = vmatmul.bf16.gmra.mxu0 %v1814
    %v3414 = vpop.f32.mrf.mxu0
    %v3415 = vadd.f32 %v1979, %v3414
    %v3416 = vpop.f32.mrf.mxu0
    %v3417 = vadd.f32 %v1979, %v3416
    %3418 = vmatmul.bf16.gmra.mxu0 %v1816
    %v3419 = vpop.f32.mrf.mxu0
    %v3420 = vadd.f32 %v1979, %v3419
    %v3421 = vpop.f32.mrf.mxu0
    %3422 = vdwg.mxu0
    %3423 = vmatpush.bf16.msra.mxu0 %v2788
    %3424 = vmatpush.bf16.msra.mxu0 %v2557
    %3425 = vmatpush.bf16.msra.mxu0 %v2548
    %3426 = vmatpush.bf16.msra.mxu0 %v2539
    %3427 = vmatpush.bf16.msra.mxu0 %v2530
    %3428 = vmatpush.bf16.msra.mxu0 %v2521
    %3429 = vmatpush.bf16.msra.mxu0 %v2512
    %3430 = vmatpush.bf16.msra.mxu0 %v2503
    %3431 = vmatmul.bf16.gmra.mxu0 %v2709
    %v3432 = vpop.f32.mrf.mxu0
    %v3433 = vadd.f32 %v3310, %v3432
    %v3434 = vpop.f32.mrf.mxu0
    %v3435 = vadd.f32 %v3312, %v3434
    %3436 = vmatmul.bf16.gmra.mxu0 %v2712
    %v3437 = vpop.f32.mrf.mxu0
    %v3438 = vadd.f32 %v3315, %v3437
    %v3439 = vpop.f32.mrf.mxu0
    %v3440 = vadd.f32 %v3317, %v3439
    %3441 = vmatmul.bf16.gmra.mxu0 %v2715
    %v3442 = vpop.f32.mrf.mxu0
    %v3443 = vadd.f32 %v3320, %v3442
    %v3444 = vpop.f32.mrf.mxu0
    %v3445 = vadd.f32 %v3322, %v3444
    %3446 = vmatmul.bf16.gmra.mxu0 %v2718
    %v3447 = vpop.f32.mrf.mxu0
    %v3448 = vadd.f32 %v3325, %v3447
    %v3449 = vpop.f32.mrf.mxu0
    %v3450 = vadd.f32 %v3327, %v3449
    %3451 = vmatmul.bf16.gmra.mxu0 %v2721
    %v3452 = vpop.f32.mrf.mxu0
    %v3453 = vadd.f32 %v3330, %v3452
    %v3454 = vpop.f32.mrf.mxu0
    %v3455 = vadd.f32 %v3332, %v3454
    %3456 = vmatmul.bf16.gmra.mxu0 %v2724
    %v3457 = vpop.f32.mrf.mxu0
    %v3458 = vadd.f32 %v3335, %v3457
    %v3459 = vpop.f32.mrf.mxu0
    %v3460 = vadd.f32 %v3337, %v3459
    %3461 = vmatmul.bf16.gmra.mxu0 %v2727
    %v3462 = vpop.f32.mrf.mxu0
    %v3463 = vadd.f32 %v3340, %v3462
    %v3464 = vpop.f32.mrf.mxu0
    %v3465 = vadd.f32 %v3342, %v3464
    %3466 = vmatmul.bf16.gmra.mxu0 %v2730
    %v3467 = vpop.f32.mrf.mxu0
    %v3468 = vadd.f32 %v3345, %v3467
    %v3469 = vpop.f32.mrf.mxu0
    %v3470 = vadd.f32 %v3347, %v3469
    %3471 = vmatmul.bf16.gmra.mxu0 %v2733
    %v3472 = vpop.f32.mrf.mxu0
    %v3473 = vadd.f32 %v3350, %v3472
    %v3474 = vpop.f32.mrf.mxu0
    %v3475 = vadd.f32 %v3352, %v3474
    %3476 = vmatmul.bf16.gmra.mxu0 %v2736
    %v3477 = vpop.f32.mrf.mxu0
    %v3478 = vadd.f32 %v3355, %v3477
    %v3479 = vpop.f32.mrf.mxu0
    %v3480 = vadd.f32 %v3357, %v3479
    %3481 = vmatmul.bf16.gmra.mxu0 %v2739
    %v3482 = vpop.f32.mrf.mxu0
    %v3483 = vadd.f32 %v3360, %v3482
    %v3484 = vpop.f32.mrf.mxu0
    %v3485 = vadd.f32 %v3362, %v3484
    %3486 = vmatmul.bf16.gmra.mxu0 %v2742
    %v3487 = vpop.f32.mrf.mxu0
    %v3488 = vadd.f32 %v3365, %v3487
    %v3489 = vpop.f32.mrf.mxu0
    %v3490 = vadd.f32 %v3367, %v3489
    %3491 = vmatmul.bf16.gmra.mxu0 %v2745
    %v3492 = vpop.f32.mrf.mxu0
    %v3493 = vadd.f32 %v3370, %v3492
    %v3494 = vpop.f32.mrf.mxu0
    %v3495 = vadd.f32 %v3372, %v3494
    %3496 = vmatmul.bf16.gmra.mxu0 %v2748
    %v3497 = vpop.f32.mrf.mxu0
    %v3498 = vadd.f32 %v3375, %v3497
    %v3499 = vpop.f32.mrf.mxu0
    %v3500 = vadd.f32 %v3377, %v3499
    %3501 = vmatmul.bf16.gmra.mxu0 %v2751
    %v3502 = vpop.f32.mrf.mxu0
    %v3503 = vadd.f32 %v3380, %v3502
    %v3504 = vpop.f32.mrf.mxu0
    %v3505 = vadd.f32 %v3382, %v3504
    %3506 = vmatmul.bf16.gmra.mxu0 %v2754
    %v3507 = vpop.f32.mrf.mxu0
    %v3508 = vadd.f32 %v3385, %v3507
    %v3509 = vpop.f32.mrf.mxu0
    %v3510 = vadd.f32 %v3387, %v3509
    %3511 = vmatmul.bf16.gmra.mxu0 %v2757
    %v3512 = vpop.f32.mrf.mxu0
    %v3513 = vadd.f32 %v3390, %v3512
    %v3514 = vpop.f32.mrf.mxu0
    %v3515 = vadd.f32 %v3392, %v3514
    %3516 = vmatmul.bf16.gmra.mxu0 %v2760
    %v3517 = vpop.f32.mrf.mxu0
    %v3518 = vadd.f32 %v3395, %v3517
    %v3519 = vpop.f32.mrf.mxu0
    %v3520 = vadd.f32 %v3397, %v3519
    %3521 = vmatmul.bf16.gmra.mxu0 %v2763
    %v3522 = vpop.f32.mrf.mxu0
    %v3523 = vadd.f32 %v3400, %v3522
    %v3524 = vpop.f32.mrf.mxu0
    %v3525 = vadd.f32 %v3402, %v3524
    %3526 = vmatmul.bf16.gmra.mxu0 %v2766
    %v3527 = vpop.f32.mrf.mxu0
    %v3528 = vadd.f32 %v3405, %v3527
    %v3529 = vpop.f32.mrf.mxu0
    %v3530 = vadd.f32 %v3407, %v3529
    %3531 = vmatmul.bf16.gmra.mxu0 %v2769
    %v3532 = vpop.f32.mrf.mxu0
    %v3533 = vadd.f32 %v3410, %v3532
    %v3534 = vpop.f32.mrf.mxu0
    %v3535 = vadd.f32 %v3412, %v3534
    %3536 = vmatmul.bf16.gmra.mxu0 %v2772
    %v3537 = vpop.f32.mrf.mxu0
    %v3538 = vadd.f32 %v3415, %v3537
    %v3539 = vpop.f32.mrf.mxu0
    %v3540 = vadd.f32 %v3417, %v3539
    %3541 = vmatmul.bf16.gmra.mxu0 %v2775
    %v3542 = vpop.f32.mrf.mxu0
    %v3543 = vadd.f32 %v3420, %v3542
    %v3544 = vpop.f32.mrf.mxu0
    %3545 = vdwg.mxu0
    %3546 = vmatpush.bf16.msra.mxu0 %v2495
    %3547 = vmatpush.bf16.msra.mxu0 %v2486
    %3548 = vmatpush.bf16.msra.mxu0 %v2477
    %3549 = vmatpush.bf16.msra.mxu0 %v2468
    %3550 = vmatpush.bf16.msra.mxu0 %v2459
    %3551 = vmatpush.bf16.msra.mxu0 %v2450
    %3552 = vmatpush.bf16.msra.mxu0 %v2441
    %3553 = vmatpush.bf16.msra.mxu0 %v2432
    %3554 = vmatmul.bf16.gmra.mxu0 %v1772
    %v3555 = vpop.f32.mrf.mxu0
    %v3556 = vadd.f32 %v1980, %v3555
    %v3557 = vpop.f32.mrf.mxu0
    %v3558 = vadd.f32 %v1980, %v3557
    %3559 = vmatmul.bf16.gmra.mxu0 %v1774
    %v3560 = vpop.f32.mrf.mxu0
    %v3561 = vadd.f32 %v1980, %v3560
    %v3562 = vpop.f32.mrf.mxu0
    %v3563 = vadd.f32 %v1980, %v3562
    %3564 = vmatmul.bf16.gmra.mxu0 %v1776
    %v3565 = vpop.f32.mrf.mxu0
    %v3566 = vadd.f32 %v1980, %v3565
    %v3567 = vpop.f32.mrf.mxu0
    %v3568 = vadd.f32 %v1980, %v3567
    %3569 = vmatmul.bf16.gmra.mxu0 %v1778
    %v3570 = vpop.f32.mrf.mxu0
    %v3571 = vadd.f32 %v1980, %v3570
    %v3572 = vpop.f32.mrf.mxu0
    %v3573 = vadd.f32 %v1980, %v3572
    %3574 = vmatmul.bf16.gmra.mxu0 %v1780
    %v3575 = vpop.f32.mrf.mxu0
    %v3576 = vadd.f32 %v1980, %v3575
    %v3577 = vpop.f32.mrf.mxu0
    %v3578 = vadd.f32 %v1980, %v3577
    %3579 = vmatmul.bf16.gmra.mxu0 %v1782
    %v3580 = vpop.f32.mrf.mxu0
    %v3581 = vadd.f32 %v1980, %v3580
    %v3582 = vpop.f32.mrf.mxu0
    %v3583 = vadd.f32 %v1980, %v3582
    %3584 = vmatmul.bf16.gmra.mxu0 %v1784
    %v3585 = vpop.f32.mrf.mxu0
    %v3586 = vadd.f32 %v1980, %v3585
    %v3587 = vpop.f32.mrf.mxu0
    %v3588 = vadd.f32 %v1980, %v3587
    %3589 = vmatmul.bf16.gmra.mxu0 %v1786
    %v3590 = vpop.f32.mrf.mxu0
    %v3591 = vadd.f32 %v1980, %v3590
    %v3592 = vpop.f32.mrf.mxu0
    %v3593 = vadd.f32 %v1980, %v3592
    %3594 = vmatmul.bf16.gmra.mxu0 %v1788
    %v3595 = vpop.f32.mrf.mxu0
    %v3596 = vadd.f32 %v1980, %v3595
    %v3597 = vpop.f32.mrf.mxu0
    %v3598 = vadd.f32 %v1980, %v3597
    %3599 = vmatmul.bf16.gmra.mxu0 %v1790
    %v3600 = vpop.f32.mrf.mxu0
    %v3601 = vadd.f32 %v1980, %v3600
    %v3602 = vpop.f32.mrf.mxu0
    %v3603 = vadd.f32 %v1980, %v3602
    %3604 = vmatmul.bf16.gmra.mxu0 %v1792
    %v3605 = vpop.f32.mrf.mxu0
    %v3606 = vadd.f32 %v1980, %v3605
    %v3607 = vpop.f32.mrf.mxu0
    %v3608 = vadd.f32 %v1980, %v3607
    %3609 = vmatmul.bf16.gmra.mxu0 %v1794
    %v3610 = vpop.f32.mrf.mxu0
    %v3611 = vadd.f32 %v1980, %v3610
    %v3612 = vpop.f32.mrf.mxu0
    %v3613 = vadd.f32 %v1980, %v3612
    %3614 = vmatmul.bf16.gmra.mxu0 %v1796
    %v3615 = vpop.f32.mrf.mxu0
    %v3616 = vadd.f32 %v1980, %v3615
    %v3617 = vpop.f32.mrf.mxu0
    %v3618 = vadd.f32 %v1980, %v3617
    %3619 = vmatmul.bf16.gmra.mxu0 %v1798
    %v3620 = vpop.f32.mrf.mxu0
    %v3621 = vadd.f32 %v1980, %v3620
    %v3622 = vpop.f32.mrf.mxu0
    %v3623 = vadd.f32 %v1980, %v3622
    %3624 = vmatmul.bf16.gmra.mxu0 %v1800
    %v3625 = vpop.f32.mrf.mxu0
    %v3626 = vadd.f32 %v1980, %v3625
    %v3627 = vpop.f32.mrf.mxu0
    %v3628 = vadd.f32 %v1980, %v3627
    %3629 = vmatmul.bf16.gmra.mxu0 %v1802
    %v3630 = vpop.f32.mrf.mxu0
    %v3631 = vadd.f32 %v1980, %v3630
    %v3632 = vpop.f32.mrf.mxu0
    %v3633 = vadd.f32 %v1980, %v3632
    %3634 = vmatmul.bf16.gmra.mxu0 %v1804
    %v3635 = vpop.f32.mrf.mxu0
    %v3636 = vadd.f32 %v1980, %v3635
    %v3637 = vpop.f32.mrf.mxu0
    %v3638 = vadd.f32 %v1980, %v3637
    %3639 = vmatmul.bf16.gmra.mxu0 %v1806
    %v3640 = vpop.f32.mrf.mxu0
    %v3641 = vadd.f32 %v1980, %v3640
    %v3642 = vpop.f32.mrf.mxu0
    %v3643 = vadd.f32 %v1980, %v3642
    %3644 = vmatmul.bf16.gmra.mxu0 %v1808
    %v3645 = vpop.f32.mrf.mxu0
    %v3646 = vadd.f32 %v1980, %v3645
    %v3647 = vpop.f32.mrf.mxu0
    %v3648 = vadd.f32 %v1980, %v3647
    %3649 = vmatmul.bf16.gmra.mxu0 %v1810
    %v3650 = vpop.f32.mrf.mxu0
    %v3651 = vadd.f32 %v1980, %v3650
    %v3652 = vpop.f32.mrf.mxu0
    %v3653 = vadd.f32 %v1980, %v3652
    %3654 = vmatmul.bf16.gmra.mxu0 %v1812
    %v3655 = vpop.f32.mrf.mxu0
    %v3656 = vadd.f32 %v1980, %v3655
    %v3657 = vpop.f32.mrf.mxu0
    %v3658 = vadd.f32 %v1980, %v3657
    %3659 = vmatmul.bf16.gmra.mxu0 %v1814
    %v3660 = vpop.f32.mrf.mxu0
    %v3661 = vadd.f32 %v1980, %v3660
    %v3662 = vpop.f32.mrf.mxu0
    %v3663 = vadd.f32 %v1980, %v3662
    %3664 = vmatmul.bf16.gmra.mxu0 %v1816
    %v3665 = vpop.f32.mrf.mxu0
    %v3666 = vadd.f32 %v1980, %v3665
    %v3667 = vpop.f32.mrf.mxu0
    %3668 = vdwg.mxu0
    %3669 = vmatpush.bf16.msra.mxu0 %v2791
    %3670 = vmatpush.bf16.msra.mxu0 %v2558
    %3671 = vmatpush.bf16.msra.mxu0 %v2549
    %3672 = vmatpush.bf16.msra.mxu0 %v2540
    %3673 = vmatpush.bf16.msra.mxu0 %v2531
    %3674 = vmatpush.bf16.msra.mxu0 %v2522
    %3675 = vmatpush.bf16.msra.mxu0 %v2513
    %3676 = vmatpush.bf16.msra.mxu0 %v2504
    %3677 = vmatmul.bf16.gmra.mxu0 %v2709
    %v3678 = vpop.f32.mrf.mxu0
    %v3679 = vadd.f32 %v3556, %v3678
    %v3680 = vpop.f32.mrf.mxu0
    %v3681 = vadd.f32 %v3558, %v3680
    %3682 = vmatmul.bf16.gmra.mxu0 %v2712
    %v3683 = vpop.f32.mrf.mxu0
    %v3684 = vadd.f32 %v3561, %v3683
    %v3685 = vpop.f32.mrf.mxu0
    %v3686 = vadd.f32 %v3563, %v3685
    %3687 = vmatmul.bf16.gmra.mxu0 %v2715
    %v3688 = vpop.f32.mrf.mxu0
    %v3689 = vadd.f32 %v3566, %v3688
    %v3690 = vpop.f32.mrf.mxu0
    %v3691 = vadd.f32 %v3568, %v3690
    %3692 = vmatmul.bf16.gmra.mxu0 %v2718
    %v3693 = vpop.f32.mrf.mxu0
    %v3694 = vadd.f32 %v3571, %v3693
    %v3695 = vpop.f32.mrf.mxu0
    %v3696 = vadd.f32 %v3573, %v3695
    %3697 = vmatmul.bf16.gmra.mxu0 %v2721
    %v3698 = vpop.f32.mrf.mxu0
    %v3699 = vadd.f32 %v3576, %v3698
    %v3700 = vpop.f32.mrf.mxu0
    %v3701 = vadd.f32 %v3578, %v3700
    %3702 = vmatmul.bf16.gmra.mxu0 %v2724
    %v3703 = vpop.f32.mrf.mxu0
    %v3704 = vadd.f32 %v3581, %v3703
    %v3705 = vpop.f32.mrf.mxu0
    %v3706 = vadd.f32 %v3583, %v3705
    %3707 = vmatmul.bf16.gmra.mxu0 %v2727
    %v3708 = vpop.f32.mrf.mxu0
    %v3709 = vadd.f32 %v3586, %v3708
    %v3710 = vpop.f32.mrf.mxu0
    %v3711 = vadd.f32 %v3588, %v3710
    %3712 = vmatmul.bf16.gmra.mxu0 %v2730
    %v3713 = vpop.f32.mrf.mxu0
    %v3714 = vadd.f32 %v3591, %v3713
    %v3715 = vpop.f32.mrf.mxu0
    %v3716 = vadd.f32 %v3593, %v3715
    %3717 = vmatmul.bf16.gmra.mxu0 %v2733
    %v3718 = vpop.f32.mrf.mxu0
    %v3719 = vadd.f32 %v3596, %v3718
    %v3720 = vpop.f32.mrf.mxu0
    %v3721 = vadd.f32 %v3598, %v3720
    %3722 = vmatmul.bf16.gmra.mxu0 %v2736
    %v3723 = vpop.f32.mrf.mxu0
    %v3724 = vadd.f32 %v3601, %v3723
    %v3725 = vpop.f32.mrf.mxu0
    %v3726 = vadd.f32 %v3603, %v3725
    %3727 = vmatmul.bf16.gmra.mxu0 %v2739
    %v3728 = vpop.f32.mrf.mxu0
    %v3729 = vadd.f32 %v3606, %v3728
    %v3730 = vpop.f32.mrf.mxu0
    %v3731 = vadd.f32 %v3608, %v3730
    %3732 = vmatmul.bf16.gmra.mxu0 %v2742
    %v3733 = vpop.f32.mrf.mxu0
    %v3734 = vadd.f32 %v3611, %v3733
    %v3735 = vpop.f32.mrf.mxu0
    %v3736 = vadd.f32 %v3613, %v3735
    %3737 = vmatmul.bf16.gmra.mxu0 %v2745
    %v3738 = vpop.f32.mrf.mxu0
    %v3739 = vadd.f32 %v3616, %v3738
    %v3740 = vpop.f32.mrf.mxu0
    %v3741 = vadd.f32 %v3618, %v3740
    %3742 = vmatmul.bf16.gmra.mxu0 %v2748
    %v3743 = vpop.f32.mrf.mxu0
    %v3744 = vadd.f32 %v3621, %v3743
    %v3745 = vpop.f32.mrf.mxu0
    %v3746 = vadd.f32 %v3623, %v3745
    %3747 = vmatmul.bf16.gmra.mxu0 %v2751
    %v3748 = vpop.f32.mrf.mxu0
    %v3749 = vadd.f32 %v3626, %v3748
    %v3750 = vpop.f32.mrf.mxu0
    %v3751 = vadd.f32 %v3628, %v3750
    %3752 = vmatmul.bf16.gmra.mxu0 %v2754
    %v3753 = vpop.f32.mrf.mxu0
    %v3754 = vadd.f32 %v3631, %v3753
    %v3755 = vpop.f32.mrf.mxu0
    %v3756 = vadd.f32 %v3633, %v3755
    %3757 = vmatmul.bf16.gmra.mxu0 %v2757
    %v3758 = vpop.f32.mrf.mxu0
    %v3759 = vadd.f32 %v3636, %v3758
    %v3760 = vpop.f32.mrf.mxu0
    %v3761 = vadd.f32 %v3638, %v3760
    %3762 = vmatmul.bf16.gmra.mxu0 %v2760
    %v3763 = vpop.f32.mrf.mxu0
    %v3764 = vadd.f32 %v3641, %v3763
    %v3765 = vpop.f32.mrf.mxu0
    %v3766 = vadd.f32 %v3643, %v3765
    %3767 = vmatmul.bf16.gmra.mxu0 %v2763
    %v3768 = vpop.f32.mrf.mxu0
    %v3769 = vadd.f32 %v3646, %v3768
    %v3770 = vpop.f32.mrf.mxu0
    %v3771 = vadd.f32 %v3648, %v3770
    %3772 = vmatmul.bf16.gmra.mxu0 %v2766
    %v3773 = vpop.f32.mrf.mxu0
    %v3774 = vadd.f32 %v3651, %v3773
    %v3775 = vpop.f32.mrf.mxu0
    %v3776 = vadd.f32 %v3653, %v3775
    %3777 = vmatmul.bf16.gmra.mxu0 %v2769
    %v3778 = vpop.f32.mrf.mxu0
    %v3779 = vadd.f32 %v3656, %v3778
    %v3780 = vpop.f32.mrf.mxu0
    %v3781 = vadd.f32 %v3658, %v3780
    %3782 = vmatmul.bf16.gmra.mxu0 %v2772
    %v3783 = vpop.f32.mrf.mxu0
    %v3784 = vadd.f32 %v3661, %v3783
    %v3785 = vpop.f32.mrf.mxu0
    %v3786 = vadd.f32 %v3663, %v3785
    %3787 = vmatmul.bf16.gmra.mxu0 %v2775
    %v3788 = vpop.f32.mrf.mxu0
    %v3789 = vadd.f32 %v3666, %v3788
    %v3790 = vpop.f32.mrf.mxu0
    %3791 = vdwg.mxu0
    %3792 = vmatpush.bf16.msra.mxu0 %v2496
    %3793 = vmatpush.bf16.msra.mxu0 %v2487
    %3794 = vmatpush.bf16.msra.mxu0 %v2478
    %3795 = vmatpush.bf16.msra.mxu0 %v2469
    %3796 = vmatpush.bf16.msra.mxu0 %v2460
    %3797 = vmatpush.bf16.msra.mxu0 %v2451
    %3798 = vmatpush.bf16.msra.mxu0 %v2442
    %3799 = vmatpush.bf16.msra.mxu0 %v2433
    %3800 = vmatmul.bf16.gmra.mxu0 %v1772
    %v3801 = vpop.f32.mrf.mxu0
    %v3802 = vadd.f32 %v1981, %v3801
    %v3803 = vpop.f32.mrf.mxu0
    %v3804 = vadd.f32 %v1981, %v3803
    %3805 = vmatmul.bf16.gmra.mxu0 %v1774
    %v3806 = vpop.f32.mrf.mxu0
    %v3807 = vadd.f32 %v1981, %v3806
    %v3808 = vpop.f32.mrf.mxu0
    %v3809 = vadd.f32 %v1981, %v3808
    %3810 = vmatmul.bf16.gmra.mxu0 %v1776
    %v3811 = vpop.f32.mrf.mxu0
    %v3812 = vadd.f32 %v1981, %v3811
    %v3813 = vpop.f32.mrf.mxu0
    %v3814 = vadd.f32 %v1981, %v3813
    %3815 = vmatmul.bf16.gmra.mxu0 %v1778
    %v3816 = vpop.f32.mrf.mxu0
    %v3817 = vadd.f32 %v1981, %v3816
    %v3818 = vpop.f32.mrf.mxu0
    %v3819 = vadd.f32 %v1981, %v3818
    %3820 = vmatmul.bf16.gmra.mxu0 %v1780
    %v3821 = vpop.f32.mrf.mxu0
    %v3822 = vadd.f32 %v1981, %v3821
    %v3823 = vpop.f32.mrf.mxu0
    %v3824 = vadd.f32 %v1981, %v3823
    %3825 = vmatmul.bf16.gmra.mxu0 %v1782
    %v3826 = vpop.f32.mrf.mxu0
    %v3827 = vadd.f32 %v1981, %v3826
    %v3828 = vpop.f32.mrf.mxu0
    %v3829 = vadd.f32 %v1981, %v3828
    %3830 = vmatmul.bf16.gmra.mxu0 %v1784
    %v3831 = vpop.f32.mrf.mxu0
    %v3832 = vadd.f32 %v1981, %v3831
    %v3833 = vpop.f32.mrf.mxu0
    %v3834 = vadd.f32 %v1981, %v3833
    %3835 = vmatmul.bf16.gmra.mxu0 %v1786
    %v3836 = vpop.f32.mrf.mxu0
    %v3837 = vadd.f32 %v1981, %v3836
    %v3838 = vpop.f32.mrf.mxu0
    %v3839 = vadd.f32 %v1981, %v3838
    %3840 = vmatmul.bf16.gmra.mxu0 %v1788
    %v3841 = vpop.f32.mrf.mxu0
    %v3842 = vadd.f32 %v1981, %v3841
    %v3843 = vpop.f32.mrf.mxu0
    %v3844 = vadd.f32 %v1981, %v3843
    %3845 = vmatmul.bf16.gmra.mxu0 %v1790
    %v3846 = vpop.f32.mrf.mxu0
    %v3847 = vadd.f32 %v1981, %v3846
    %v3848 = vpop.f32.mrf.mxu0
    %v3849 = vadd.f32 %v1981, %v3848
    %3850 = vmatmul.bf16.gmra.mxu0 %v1792
    %v3851 = vpop.f32.mrf.mxu0
    %v3852 = vadd.f32 %v1981, %v3851
    %v3853 = vpop.f32.mrf.mxu0
    %v3854 = vadd.f32 %v1981, %v3853
    %3855 = vmatmul.bf16.gmra.mxu0 %v1794
    %v3856 = vpop.f32.mrf.mxu0
    %v3857 = vadd.f32 %v1981, %v3856
    %v3858 = vpop.f32.mrf.mxu0
    %v3859 = vadd.f32 %v1981, %v3858
    %3860 = vmatmul.bf16.gmra.mxu0 %v1796
    %v3861 = vpop.f32.mrf.mxu0
    %v3862 = vadd.f32 %v1981, %v3861
    %v3863 = vpop.f32.mrf.mxu0
    %v3864 = vadd.f32 %v1981, %v3863
    %3865 = vmatmul.bf16.gmra.mxu0 %v1798
    %v3866 = vpop.f32.mrf.mxu0
    %v3867 = vadd.f32 %v1981, %v3866
    %v3868 = vpop.f32.mrf.mxu0
    %v3869 = vadd.f32 %v1981, %v3868
    %3870 = vmatmul.bf16.gmra.mxu0 %v1800
    %v3871 = vpop.f32.mrf.mxu0
    %v3872 = vadd.f32 %v1981, %v3871
    %v3873 = vpop.f32.mrf.mxu0
    %v3874 = vadd.f32 %v1981, %v3873
    %3875 = vmatmul.bf16.gmra.mxu0 %v1802
    %v3876 = vpop.f32.mrf.mxu0
    %v3877 = vadd.f32 %v1981, %v3876
    %v3878 = vpop.f32.mrf.mxu0
    %v3879 = vadd.f32 %v1981, %v3878
    %3880 = vmatmul.bf16.gmra.mxu0 %v1804
    %v3881 = vpop.f32.mrf.mxu0
    %v3882 = vadd.f32 %v1981, %v3881
    %v3883 = vpop.f32.mrf.mxu0
    %v3884 = vadd.f32 %v1981, %v3883
    %3885 = vmatmul.bf16.gmra.mxu0 %v1806
    %v3886 = vpop.f32.mrf.mxu0
    %v3887 = vadd.f32 %v1981, %v3886
    %v3888 = vpop.f32.mrf.mxu0
    %v3889 = vadd.f32 %v1981, %v3888
    %3890 = vmatmul.bf16.gmra.mxu0 %v1808
    %v3891 = vpop.f32.mrf.mxu0
    %v3892 = vadd.f32 %v1981, %v3891
    %v3893 = vpop.f32.mrf.mxu0
    %v3894 = vadd.f32 %v1981, %v3893
    %3895 = vmatmul.bf16.gmra.mxu0 %v1810
    %v3896 = vpop.f32.mrf.mxu0
    %v3897 = vadd.f32 %v1981, %v3896
    %v3898 = vpop.f32.mrf.mxu0
    %v3899 = vadd.f32 %v1981, %v3898
    %3900 = vmatmul.bf16.gmra.mxu0 %v1812
    %v3901 = vpop.f32.mrf.mxu0
    %v3902 = vadd.f32 %v1981, %v3901
    %v3903 = vpop.f32.mrf.mxu0
    %v3904 = vadd.f32 %v1981, %v3903
    %3905 = vmatmul.bf16.gmra.mxu0 %v1814
    %v3906 = vpop.f32.mrf.mxu0
    %v3907 = vadd.f32 %v1981, %v3906
    %v3908 = vpop.f32.mrf.mxu0
    %v3909 = vadd.f32 %v1981, %v3908
    %3910 = vmatmul.bf16.gmra.mxu0 %v1816
    %v3911 = vpop.f32.mrf.mxu0
    %v3912 = vadd.f32 %v1981, %v3911
    %v3913 = vpop.f32.mrf.mxu0
    %3914 = vdwg.mxu0
    %3915 = vmatpush.bf16.msra.mxu0 %v2794
    %3916 = vmatpush.bf16.msra.mxu0 %v2559
    %3917 = vmatpush.bf16.msra.mxu0 %v2550
    %3918 = vmatpush.bf16.msra.mxu0 %v2541
    %3919 = vmatpush.bf16.msra.mxu0 %v2532
    %3920 = vmatpush.bf16.msra.mxu0 %v2523
    %3921 = vmatpush.bf16.msra.mxu0 %v2514
    %3922 = vmatpush.bf16.msra.mxu0 %v2505
    %3923 = vmatmul.bf16.gmra.mxu0 %v2709
    %v3924 = vpop.f32.mrf.mxu0
    %v3925 = vadd.f32 %v3802, %v3924
    %v3926 = vpop.f32.mrf.mxu0
    %v3927 = vadd.f32 %v3804, %v3926
    %3928 = vmatmul.bf16.gmra.mxu0 %v2712
    %v3929 = vpop.f32.mrf.mxu0
    %v3930 = vadd.f32 %v3807, %v3929
    %v3931 = vpop.f32.mrf.mxu0
    %v3932 = vadd.f32 %v3809, %v3931
    %3933 = vmatmul.bf16.gmra.mxu0 %v2715
    %v3934 = vpop.f32.mrf.mxu0
    %v3935 = vadd.f32 %v3812, %v3934
    %v3936 = vpop.f32.mrf.mxu0
    %v3937 = vadd.f32 %v3814, %v3936
    %3938 = vmatmul.bf16.gmra.mxu0 %v2718
    %v3939 = vpop.f32.mrf.mxu0
    %v3940 = vadd.f32 %v3817, %v3939
    %v3941 = vpop.f32.mrf.mxu0
    %v3942 = vadd.f32 %v3819, %v3941
    %3943 = vmatmul.bf16.gmra.mxu0 %v2721
    %v3944 = vpop.f32.mrf.mxu0
    %v3945 = vadd.f32 %v3822, %v3944
    %v3946 = vpop.f32.mrf.mxu0
    %v3947 = vadd.f32 %v3824, %v3946
    %3948 = vmatmul.bf16.gmra.mxu0 %v2724
    %v3949 = vpop.f32.mrf.mxu0
    %v3950 = vadd.f32 %v3827, %v3949
    %v3951 = vpop.f32.mrf.mxu0
    %v3952 = vadd.f32 %v3829, %v3951
    %3953 = vmatmul.bf16.gmra.mxu0 %v2727
    %v3954 = vpop.f32.mrf.mxu0
    %v3955 = vadd.f32 %v3832, %v3954
    %v3956 = vpop.f32.mrf.mxu0
    %v3957 = vadd.f32 %v3834, %v3956
    %3958 = vmatmul.bf16.gmra.mxu0 %v2730
    %v3959 = vpop.f32.mrf.mxu0
    %v3960 = vadd.f32 %v3837, %v3959
    %v3961 = vpop.f32.mrf.mxu0
    %v3962 = vadd.f32 %v3839, %v3961
    %3963 = vmatmul.bf16.gmra.mxu0 %v2733
    %v3964 = vpop.f32.mrf.mxu0
    %v3965 = vadd.f32 %v3842, %v3964
    %v3966 = vpop.f32.mrf.mxu0
    %v3967 = vadd.f32 %v3844, %v3966
    %3968 = vmatmul.bf16.gmra.mxu0 %v2736
    %v3969 = vpop.f32.mrf.mxu0
    %v3970 = vadd.f32 %v3847, %v3969
    %v3971 = vpop.f32.mrf.mxu0
    %v3972 = vadd.f32 %v3849, %v3971
    %3973 = vmatmul.bf16.gmra.mxu0 %v2739
    %v3974 = vpop.f32.mrf.mxu0
    %v3975 = vadd.f32 %v3852, %v3974
    %v3976 = vpop.f32.mrf.mxu0
    %v3977 = vadd.f32 %v3854, %v3976
    %3978 = vmatmul.bf16.gmra.mxu0 %v2742
    %v3979 = vpop.f32.mrf.mxu0
    %v3980 = vadd.f32 %v3857, %v3979
    %v3981 = vpop.f32.mrf.mxu0
    %v3982 = vadd.f32 %v3859, %v3981
    %3983 = vmatmul.bf16.gmra.mxu0 %v2745
    %v3984 = vpop.f32.mrf.mxu0
    %v3985 = vadd.f32 %v3862, %v3984
    %v3986 = vpop.f32.mrf.mxu0
    %v3987 = vadd.f32 %v3864, %v3986
    %3988 = vmatmul.bf16.gmra.mxu0 %v2748
    %v3989 = vpop.f32.mrf.mxu0
    %v3990 = vadd.f32 %v3867, %v3989
    %v3991 = vpop.f32.mrf.mxu0
    %v3992 = vadd.f32 %v3869, %v3991
    %3993 = vmatmul.bf16.gmra.mxu0 %v2751
    %v3994 = vpop.f32.mrf.mxu0
    %v3995 = vadd.f32 %v3872, %v3994
    %v3996 = vpop.f32.mrf.mxu0
    %v3997 = vadd.f32 %v3874, %v3996
    %3998 = vmatmul.bf16.gmra.mxu0 %v2754
    %v3999 = vpop.f32.mrf.mxu0
    %v4000 = vadd.f32 %v3877, %v3999
    %v4001 = vpop.f32.mrf.mxu0
    %v4002 = vadd.f32 %v3879, %v4001
    %4003 = vmatmul.bf16.gmra.mxu0 %v2757
    %v4004 = vpop.f32.mrf.mxu0
    %v4005 = vadd.f32 %v3882, %v4004
    %v4006 = vpop.f32.mrf.mxu0
    %v4007 = vadd.f32 %v3884, %v4006
    %4008 = vmatmul.bf16.gmra.mxu0 %v2760
    %v4009 = vpop.f32.mrf.mxu0
    %v4010 = vadd.f32 %v3887, %v4009
    %v4011 = vpop.f32.mrf.mxu0
    %v4012 = vadd.f32 %v3889, %v4011
    %4013 = vmatmul.bf16.gmra.mxu0 %v2763
    %v4014 = vpop.f32.mrf.mxu0
    %v4015 = vadd.f32 %v3892, %v4014
    %v4016 = vpop.f32.mrf.mxu0
    %v4017 = vadd.f32 %v3894, %v4016
    %4018 = vmatmul.bf16.gmra.mxu0 %v2766
    %v4019 = vpop.f32.mrf.mxu0
    %v4020 = vadd.f32 %v3897, %v4019
    %v4021 = vpop.f32.mrf.mxu0
    %v4022 = vadd.f32 %v3899, %v4021
    %4023 = vmatmul.bf16.gmra.mxu0 %v2769
    %v4024 = vpop.f32.mrf.mxu0
    %v4025 = vadd.f32 %v3902, %v4024
    %v4026 = vpop.f32.mrf.mxu0
    %v4027 = vadd.f32 %v3904, %v4026
    %4028 = vmatmul.bf16.gmra.mxu0 %v2772
    %v4029 = vpop.f32.mrf.mxu0
    %v4030 = vadd.f32 %v3907, %v4029
    %v4031 = vpop.f32.mrf.mxu0
    %v4032 = vadd.f32 %v3909, %v4031
    %4033 = vmatmul.bf16.gmra.mxu0 %v2775
    %v4034 = vpop.f32.mrf.mxu0
    %v4035 = vadd.f32 %v3912, %v4034
    %v4036 = vpop.f32.mrf.mxu0
    %4037 = vdwg.mxu0
    %4038 = vmatpush.bf16.msra.mxu0 %v2497
    %4039 = vmatpush.bf16.msra.mxu0 %v2488
    %4040 = vmatpush.bf16.msra.mxu0 %v2479
    %4041 = vmatpush.bf16.msra.mxu0 %v2470
    %4042 = vmatpush.bf16.msra.mxu0 %v2461
    %4043 = vmatpush.bf16.msra.mxu0 %v2452
    %4044 = vmatpush.bf16.msra.mxu0 %v2443
    %4045 = vmatpush.bf16.msra.mxu0 %v2434
    %4046 = vmatmul.bf16.gmra.mxu0 %v1772
    %v4047 = vpop.f32.mrf.mxu0
    %v4048 = vadd.f32 %v1982, %v4047
    %v4049 = vpop.f32.mrf.mxu0
    %v4050 = vadd.f32 %v1982, %v4049
    %4051 = vmatmul.bf16.gmra.mxu0 %v1774
    %v4052 = vpop.f32.mrf.mxu0
    %v4053 = vadd.f32 %v1982, %v4052
    %v4054 = vpop.f32.mrf.mxu0
    %v4055 = vadd.f32 %v1982, %v4054
    %4056 = vmatmul.bf16.gmra.mxu0 %v1776
    %v4057 = vpop.f32.mrf.mxu0
    %v4058 = vadd.f32 %v1982, %v4057
    %v4059 = vpop.f32.mrf.mxu0
    %v4060 = vadd.f32 %v1982, %v4059
    %4061 = vmatmul.bf16.gmra.mxu0 %v1778
    %v4062 = vpop.f32.mrf.mxu0
    %v4063 = vadd.f32 %v1982, %v4062
    %v4064 = vpop.f32.mrf.mxu0
    %v4065 = vadd.f32 %v1982, %v4064
    %4066 = vmatmul.bf16.gmra.mxu0 %v1780
    %v4067 = vpop.f32.mrf.mxu0
    %v4068 = vadd.f32 %v1982, %v4067
    %v4069 = vpop.f32.mrf.mxu0
    %v4070 = vadd.f32 %v1982, %v4069
    %4071 = vmatmul.bf16.gmra.mxu0 %v1782
    %v4072 = vpop.f32.mrf.mxu0
    %v4073 = vadd.f32 %v1982, %v4072
    %v4074 = vpop.f32.mrf.mxu0
    %v4075 = vadd.f32 %v1982, %v4074
    %4076 = vmatmul.bf16.gmra.mxu0 %v1784
    %v4077 = vpop.f32.mrf.mxu0
    %v4078 = vadd.f32 %v1982, %v4077
    %v4079 = vpop.f32.mrf.mxu0
    %v4080 = vadd.f32 %v1982, %v4079
    %4081 = vmatmul.bf16.gmra.mxu0 %v1786
    %v4082 = vpop.f32.mrf.mxu0
    %v4083 = vadd.f32 %v1982, %v4082
    %v4084 = vpop.f32.mrf.mxu0
    %v4085 = vadd.f32 %v1982, %v4084
    %4086 = vmatmul.bf16.gmra.mxu0 %v1788
    %v4087 = vpop.f32.mrf.mxu0
    %v4088 = vadd.f32 %v1982, %v4087
    %v4089 = vpop.f32.mrf.mxu0
    %v4090 = vadd.f32 %v1982, %v4089
    %4091 = vmatmul.bf16.gmra.mxu0 %v1790
    %v4092 = vpop.f32.mrf.mxu0
    %v4093 = vadd.f32 %v1982, %v4092
    %v4094 = vpop.f32.mrf.mxu0
    %v4095 = vadd.f32 %v1982, %v4094
    %4096 = vmatmul.bf16.gmra.mxu0 %v1792
    %v4097 = vpop.f32.mrf.mxu0
    %v4098 = vadd.f32 %v1982, %v4097
    %v4099 = vpop.f32.mrf.mxu0
    %v4100 = vadd.f32 %v1982, %v4099
    %4101 = vmatmul.bf16.gmra.mxu0 %v1794
    %v4102 = vpop.f32.mrf.mxu0
    %v4103 = vadd.f32 %v1982, %v4102
    %v4104 = vpop.f32.mrf.mxu0
    %v4105 = vadd.f32 %v1982, %v4104
    %4106 = vmatmul.bf16.gmra.mxu0 %v1796
    %v4107 = vpop.f32.mrf.mxu0
    %v4108 = vadd.f32 %v1982, %v4107
    %v4109 = vpop.f32.mrf.mxu0
    %v4110 = vadd.f32 %v1982, %v4109
    %4111 = vmatmul.bf16.gmra.mxu0 %v1798
    %v4112 = vpop.f32.mrf.mxu0
    %v4113 = vadd.f32 %v1982, %v4112
    %v4114 = vpop.f32.mrf.mxu0
    %v4115 = vadd.f32 %v1982, %v4114
    %4116 = vmatmul.bf16.gmra.mxu0 %v1800
    %v4117 = vpop.f32.mrf.mxu0
    %v4118 = vadd.f32 %v1982, %v4117
    %v4119 = vpop.f32.mrf.mxu0
    %v4120 = vadd.f32 %v1982, %v4119
    %4121 = vmatmul.bf16.gmra.mxu0 %v1802
    %v4122 = vpop.f32.mrf.mxu0
    %v4123 = vadd.f32 %v1982, %v4122
    %v4124 = vpop.f32.mrf.mxu0
    %v4125 = vadd.f32 %v1982, %v4124
    %4126 = vmatmul.bf16.gmra.mxu0 %v1804
    %v4127 = vpop.f32.mrf.mxu0
    %v4128 = vadd.f32 %v1982, %v4127
    %v4129 = vpop.f32.mrf.mxu0
    %v4130 = vadd.f32 %v1982, %v4129
    %4131 = vmatmul.bf16.gmra.mxu0 %v1806
    %v4132 = vpop.f32.mrf.mxu0
    %v4133 = vadd.f32 %v1982, %v4132
    %v4134 = vpop.f32.mrf.mxu0
    %v4135 = vadd.f32 %v1982, %v4134
    %4136 = vmatmul.bf16.gmra.mxu0 %v1808
    %v4137 = vpop.f32.mrf.mxu0
    %v4138 = vadd.f32 %v1982, %v4137
    %v4139 = vpop.f32.mrf.mxu0
    %v4140 = vadd.f32 %v1982, %v4139
    %4141 = vmatmul.bf16.gmra.mxu0 %v1810
    %v4142 = vpop.f32.mrf.mxu0
    %v4143 = vadd.f32 %v1982, %v4142
    %v4144 = vpop.f32.mrf.mxu0
    %v4145 = vadd.f32 %v1982, %v4144
    %4146 = vmatmul.bf16.gmra.mxu0 %v1812
    %v4147 = vpop.f32.mrf.mxu0
    %v4148 = vadd.f32 %v1982, %v4147
    %v4149 = vpop.f32.mrf.mxu0
    %v4150 = vadd.f32 %v1982, %v4149
    %4151 = vmatmul.bf16.gmra.mxu0 %v1814
    %v4152 = vpop.f32.mrf.mxu0
    %v4153 = vadd.f32 %v1982, %v4152
    %v4154 = vpop.f32.mrf.mxu0
    %v4155 = vadd.f32 %v1982, %v4154
    %4156 = vmatmul.bf16.gmra.mxu0 %v1816
    %v4157 = vpop.f32.mrf.mxu0
    %v4158 = vadd.f32 %v1982, %v4157
    %v4159 = vpop.f32.mrf.mxu0
    %4160 = vdwg.mxu0
    %4161 = vmatpush.bf16.msra.mxu0 %v2797
    %4162 = vmatpush.bf16.msra.mxu0 %v2560
    %4163 = vmatpush.bf16.msra.mxu0 %v2551
    %4164 = vmatpush.bf16.msra.mxu0 %v2542
    %4165 = vmatpush.bf16.msra.mxu0 %v2533
    %4166 = vmatpush.bf16.msra.mxu0 %v2524
    %4167 = vmatpush.bf16.msra.mxu0 %v2515
    %4168 = vmatpush.bf16.msra.mxu0 %v2506
    %4169 = vmatmul.bf16.gmra.mxu0 %v2709
    %v4170 = vpop.f32.mrf.mxu0
    %v4171 = vadd.f32 %v4048, %v4170
    %v4172 = vpop.f32.mrf.mxu0
    %v4173 = vadd.f32 %v4050, %v4172
    %4174 = vmatmul.bf16.gmra.mxu0 %v2712
    %v4175 = vpop.f32.mrf.mxu0
    %v4176 = vadd.f32 %v4053, %v4175
    %v4177 = vpop.f32.mrf.mxu0
    %v4178 = vadd.f32 %v4055, %v4177
    %4179 = vmatmul.bf16.gmra.mxu0 %v2715
    %v4180 = vpop.f32.mrf.mxu0
    %v4181 = vadd.f32 %v4058, %v4180
    %v4182 = vpop.f32.mrf.mxu0
    %v4183 = vadd.f32 %v4060, %v4182
    %4184 = vmatmul.bf16.gmra.mxu0 %v2718
    %v4185 = vpop.f32.mrf.mxu0
    %v4186 = vadd.f32 %v4063, %v4185
    %v4187 = vpop.f32.mrf.mxu0
    %v4188 = vadd.f32 %v4065, %v4187
    %4189 = vmatmul.bf16.gmra.mxu0 %v2721
    %v4190 = vpop.f32.mrf.mxu0
    %v4191 = vadd.f32 %v4068, %v4190
    %v4192 = vpop.f32.mrf.mxu0
    %v4193 = vadd.f32 %v4070, %v4192
    %4194 = vmatmul.bf16.gmra.mxu0 %v2724
    %v4195 = vpop.f32.mrf.mxu0
    %v4196 = vadd.f32 %v4073, %v4195
    %v4197 = vpop.f32.mrf.mxu0
    %v4198 = vadd.f32 %v4075, %v4197
    %4199 = vmatmul.bf16.gmra.mxu0 %v2727
    %v4200 = vpop.f32.mrf.mxu0
    %v4201 = vadd.f32 %v4078, %v4200
    %v4202 = vpop.f32.mrf.mxu0
    %v4203 = vadd.f32 %v4080, %v4202
    %4204 = vmatmul.bf16.gmra.mxu0 %v2730
    %v4205 = vpop.f32.mrf.mxu0
    %v4206 = vadd.f32 %v4083, %v4205
    %v4207 = vpop.f32.mrf.mxu0
    %v4208 = vadd.f32 %v4085, %v4207
    %4209 = vmatmul.bf16.gmra.mxu0 %v2733
    %v4210 = vpop.f32.mrf.mxu0
    %v4211 = vadd.f32 %v4088, %v4210
    %v4212 = vpop.f32.mrf.mxu0
    %v4213 = vadd.f32 %v4090, %v4212
    %4214 = vmatmul.bf16.gmra.mxu0 %v2736
    %v4215 = vpop.f32.mrf.mxu0
    %v4216 = vadd.f32 %v4093, %v4215
    %v4217 = vpop.f32.mrf.mxu0
    %v4218 = vadd.f32 %v4095, %v4217
    %4219 = vmatmul.bf16.gmra.mxu0 %v2739
    %v4220 = vpop.f32.mrf.mxu0
    %v4221 = vadd.f32 %v4098, %v4220
    %v4222 = vpop.f32.mrf.mxu0
    %v4223 = vadd.f32 %v4100, %v4222
    %4224 = vmatmul.bf16.gmra.mxu0 %v2742
    %v4225 = vpop.f32.mrf.mxu0
    %v4226 = vadd.f32 %v4103, %v4225
    %v4227 = vpop.f32.mrf.mxu0
    %v4228 = vadd.f32 %v4105, %v4227
    %4229 = vmatmul.bf16.gmra.mxu0 %v2745
    %v4230 = vpop.f32.mrf.mxu0
    %v4231 = vadd.f32 %v4108, %v4230
    %v4232 = vpop.f32.mrf.mxu0
    %v4233 = vadd.f32 %v4110, %v4232
    %4234 = vmatmul.bf16.gmra.mxu0 %v2748
    %v4235 = vpop.f32.mrf.mxu0
    %v4236 = vadd.f32 %v4113, %v4235
    %v4237 = vpop.f32.mrf.mxu0
    %v4238 = vadd.f32 %v4115, %v4237
    %4239 = vmatmul.bf16.gmra.mxu0 %v2751
    %v4240 = vpop.f32.mrf.mxu0
    %v4241 = vadd.f32 %v4118, %v4240
    %v4242 = vpop.f32.mrf.mxu0
    %v4243 = vadd.f32 %v4120, %v4242
    %4244 = vmatmul.bf16.gmra.mxu0 %v2754
    %v4245 = vpop.f32.mrf.mxu0
    %v4246 = vadd.f32 %v4123, %v4245
    %v4247 = vpop.f32.mrf.mxu0
    %v4248 = vadd.f32 %v4125, %v4247
    %4249 = vmatmul.bf16.gmra.mxu0 %v2757
    %v4250 = vpop.f32.mrf.mxu0
    %v4251 = vadd.f32 %v4128, %v4250
    %v4252 = vpop.f32.mrf.mxu0
    %v4253 = vadd.f32 %v4130, %v4252
    %4254 = vmatmul.bf16.gmra.mxu0 %v2760
    %v4255 = vpop.f32.mrf.mxu0
    %v4256 = vadd.f32 %v4133, %v4255
    %v4257 = vpop.f32.mrf.mxu0
    %v4258 = vadd.f32 %v4135, %v4257
    %4259 = vmatmul.bf16.gmra.mxu0 %v2763
    %v4260 = vpop.f32.mrf.mxu0
    %v4261 = vadd.f32 %v4138, %v4260
    %v4262 = vpop.f32.mrf.mxu0
    %v4263 = vadd.f32 %v4140, %v4262
    %4264 = vmatmul.bf16.gmra.mxu0 %v2766
    %v4265 = vpop.f32.mrf.mxu0
    %v4266 = vadd.f32 %v4143, %v4265
    %v4267 = vpop.f32.mrf.mxu0
    %v4268 = vadd.f32 %v4145, %v4267
    %4269 = vmatmul.bf16.gmra.mxu0 %v2769
    %v4270 = vpop.f32.mrf.mxu0
    %v4271 = vadd.f32 %v4148, %v4270
    %v4272 = vpop.f32.mrf.mxu0
    %v4273 = vadd.f32 %v4150, %v4272
    %4274 = vmatmul.bf16.gmra.mxu0 %v2772
    %v4275 = vpop.f32.mrf.mxu0
    %v4276 = vadd.f32 %v4153, %v4275
    %v4277 = vpop.f32.mrf.mxu0
    %v4278 = vadd.f32 %v4155, %v4277
    %4279 = vmatmul.bf16.gmra.mxu0 %v2775
    %v4280 = vpop.f32.mrf.mxu0
    %v4281 = vadd.f32 %v4158, %v4280
    %v4282 = vpop.f32.mrf.mxu0
    %4283 = vdwg.mxu0
    %4284 = vmatpush.bf16.msra.mxu0 %v2498
    %4285 = vmatpush.bf16.msra.mxu0 %v2489
    %4286 = vmatpush.bf16.msra.mxu0 %v2480
    %4287 = vmatpush.bf16.msra.mxu0 %v2471
    %4288 = vmatpush.bf16.msra.mxu0 %v2462
    %4289 = vmatpush.bf16.msra.mxu0 %v2453
    %4290 = vmatpush.bf16.msra.mxu0 %v2444
    %4291 = vmatpush.bf16.msra.mxu0 %v2435
    %4292 = vmatmul.bf16.gmra.mxu0 %v1772
    %v4293 = vpop.f32.mrf.mxu0
    %v4294 = vadd.f32 %v1983, %v4293
    %v4295 = vpop.f32.mrf.mxu0
    %v4296 = vadd.f32 %v1983, %v4295
    %4297 = vmatmul.bf16.gmra.mxu0 %v1774
    %v4298 = vpop.f32.mrf.mxu0
    %v4299 = vadd.f32 %v1983, %v4298
    %v4300 = vpop.f32.mrf.mxu0
    %v4301 = vadd.f32 %v1983, %v4300
    %4302 = vmatmul.bf16.gmra.mxu0 %v1776
    %v4303 = vpop.f32.mrf.mxu0
    %v4304 = vadd.f32 %v1983, %v4303
    %v4305 = vpop.f32.mrf.mxu0
    %v4306 = vadd.f32 %v1983, %v4305
    %4307 = vmatmul.bf16.gmra.mxu0 %v1778
    %v4308 = vpop.f32.mrf.mxu0
    %v4309 = vadd.f32 %v1983, %v4308
    %v4310 = vpop.f32.mrf.mxu0
    %v4311 = vadd.f32 %v1983, %v4310
    %4312 = vmatmul.bf16.gmra.mxu0 %v1780
    %v4313 = vpop.f32.mrf.mxu0
    %v4314 = vadd.f32 %v1983, %v4313
    %v4315 = vpop.f32.mrf.mxu0
    %v4316 = vadd.f32 %v1983, %v4315
    %4317 = vmatmul.bf16.gmra.mxu0 %v1782
    %v4318 = vpop.f32.mrf.mxu0
    %v4319 = vadd.f32 %v1983, %v4318
    %v4320 = vpop.f32.mrf.mxu0
    %v4321 = vadd.f32 %v1983, %v4320
    %4322 = vmatmul.bf16.gmra.mxu0 %v1784
    %v4323 = vpop.f32.mrf.mxu0
    %v4324 = vadd.f32 %v1983, %v4323
    %v4325 = vpop.f32.mrf.mxu0
    %v4326 = vadd.f32 %v1983, %v4325
    %4327 = vmatmul.bf16.gmra.mxu0 %v1786
    %v4328 = vpop.f32.mrf.mxu0
    %v4329 = vadd.f32 %v1983, %v4328
    %v4330 = vpop.f32.mrf.mxu0
    %v4331 = vadd.f32 %v1983, %v4330
    %4332 = vmatmul.bf16.gmra.mxu0 %v1788
    %v4333 = vpop.f32.mrf.mxu0
    %v4334 = vadd.f32 %v1983, %v4333
    %v4335 = vpop.f32.mrf.mxu0
    %v4336 = vadd.f32 %v1983, %v4335
    %4337 = vmatmul.bf16.gmra.mxu0 %v1790
    %v4338 = vpop.f32.mrf.mxu0
    %v4339 = vadd.f32 %v1983, %v4338
    %v4340 = vpop.f32.mrf.mxu0
    %v4341 = vadd.f32 %v1983, %v4340
    %4342 = vmatmul.bf16.gmra.mxu0 %v1792
    %v4343 = vpop.f32.mrf.mxu0
    %v4344 = vadd.f32 %v1983, %v4343
    %v4345 = vpop.f32.mrf.mxu0
    %v4346 = vadd.f32 %v1983, %v4345
    %4347 = vmatmul.bf16.gmra.mxu0 %v1794
    %v4348 = vpop.f32.mrf.mxu0
    %v4349 = vadd.f32 %v1983, %v4348
    %v4350 = vpop.f32.mrf.mxu0
    %v4351 = vadd.f32 %v1983, %v4350
    %4352 = vmatmul.bf16.gmra.mxu0 %v1796
    %v4353 = vpop.f32.mrf.mxu0
    %v4354 = vadd.f32 %v1983, %v4353
    %v4355 = vpop.f32.mrf.mxu0
    %v4356 = vadd.f32 %v1983, %v4355
    %4357 = vmatmul.bf16.gmra.mxu0 %v1798
    %v4358 = vpop.f32.mrf.mxu0
    %v4359 = vadd.f32 %v1983, %v4358
    %v4360 = vpop.f32.mrf.mxu0
    %v4361 = vadd.f32 %v1983, %v4360
    %4362 = vmatmul.bf16.gmra.mxu0 %v1800
    %v4363 = vpop.f32.mrf.mxu0
    %v4364 = vadd.f32 %v1983, %v4363
    %v4365 = vpop.f32.mrf.mxu0
    %v4366 = vadd.f32 %v1983, %v4365
    %4367 = vmatmul.bf16.gmra.mxu0 %v1802
    %v4368 = vpop.f32.mrf.mxu0
    %v4369 = vadd.f32 %v1983, %v4368
    %v4370 = vpop.f32.mrf.mxu0
    %v4371 = vadd.f32 %v1983, %v4370
    %4372 = vmatmul.bf16.gmra.mxu0 %v1804
    %v4373 = vpop.f32.mrf.mxu0
    %v4374 = vadd.f32 %v1983, %v4373
    %v4375 = vpop.f32.mrf.mxu0
    %v4376 = vadd.f32 %v1983, %v4375
    %4377 = vmatmul.bf16.gmra.mxu0 %v1806
    %v4378 = vpop.f32.mrf.mxu0
    %v4379 = vadd.f32 %v1983, %v4378
    %v4380 = vpop.f32.mrf.mxu0
    %v4381 = vadd.f32 %v1983, %v4380
    %4382 = vmatmul.bf16.gmra.mxu0 %v1808
    %v4383 = vpop.f32.mrf.mxu0
    %v4384 = vadd.f32 %v1983, %v4383
    %v4385 = vpop.f32.mrf.mxu0
    %v4386 = vadd.f32 %v1983, %v4385
    %4387 = vmatmul.bf16.gmra.mxu0 %v1810
    %v4388 = vpop.f32.mrf.mxu0
    %v4389 = vadd.f32 %v1983, %v4388
    %v4390 = vpop.f32.mrf.mxu0
    %v4391 = vadd.f32 %v1983, %v4390
    %4392 = vmatmul.bf16.gmra.mxu0 %v1812
    %v4393 = vpop.f32.mrf.mxu0
    %v4394 = vadd.f32 %v1983, %v4393
    %v4395 = vpop.f32.mrf.mxu0
    %v4396 = vadd.f32 %v1983, %v4395
    %4397 = vmatmul.bf16.gmra.mxu0 %v1814
    %v4398 = vpop.f32.mrf.mxu0
    %v4399 = vadd.f32 %v1983, %v4398
    %v4400 = vpop.f32.mrf.mxu0
    %v4401 = vadd.f32 %v1983, %v4400
    %4402 = vmatmul.bf16.gmra.mxu0 %v1816
    %v4403 = vpop.f32.mrf.mxu0
    %v4404 = vadd.f32 %v1983, %v4403
    %v4405 = vpop.f32.mrf.mxu0
    %4406 = vdwg.mxu0
    %4407 = vmatpush.bf16.msra.mxu0 %v2800
    %4408 = vmatpush.bf16.msra.mxu0 %v2561
    %4409 = vmatpush.bf16.msra.mxu0 %v2552
    %4410 = vmatpush.bf16.msra.mxu0 %v2543
    %4411 = vmatpush.bf16.msra.mxu0 %v2534
    %4412 = vmatpush.bf16.msra.mxu0 %v2525
    %4413 = vmatpush.bf16.msra.mxu0 %v2516
    %4414 = vmatpush.bf16.msra.mxu0 %v2507
    %4415 = vmatmul.bf16.gmra.mxu0 %v2709
    %v4416 = vpop.f32.mrf.mxu0
    %v4417 = vadd.f32 %v4294, %v4416
    %v4418 = vpop.f32.mrf.mxu0
    %v4419 = vadd.f32 %v4296, %v4418
    %4420 = vmatmul.bf16.gmra.mxu0 %v2712
    %v4421 = vpop.f32.mrf.mxu0
    %v4422 = vadd.f32 %v4299, %v4421
    %v4423 = vpop.f32.mrf.mxu0
    %v4424 = vadd.f32 %v4301, %v4423
    %4425 = vmatmul.bf16.gmra.mxu0 %v2715
    %v4426 = vpop.f32.mrf.mxu0
    %v4427 = vadd.f32 %v4304, %v4426
    %v4428 = vpop.f32.mrf.mxu0
    %v4429 = vadd.f32 %v4306, %v4428
    %4430 = vmatmul.bf16.gmra.mxu0 %v2718
    %v4431 = vpop.f32.mrf.mxu0
    %v4432 = vadd.f32 %v4309, %v4431
    %v4433 = vpop.f32.mrf.mxu0
    %v4434 = vadd.f32 %v4311, %v4433
    %4435 = vmatmul.bf16.gmra.mxu0 %v2721
    %v4436 = vpop.f32.mrf.mxu0
    %v4437 = vadd.f32 %v4314, %v4436
    %v4438 = vpop.f32.mrf.mxu0
    %v4439 = vadd.f32 %v4316, %v4438
    %4440 = vmatmul.bf16.gmra.mxu0 %v2724
    %v4441 = vpop.f32.mrf.mxu0
    %v4442 = vadd.f32 %v4319, %v4441
    %v4443 = vpop.f32.mrf.mxu0
    %v4444 = vadd.f32 %v4321, %v4443
    %4445 = vmatmul.bf16.gmra.mxu0 %v2727
    %v4446 = vpop.f32.mrf.mxu0
    %v4447 = vadd.f32 %v4324, %v4446
    %v4448 = vpop.f32.mrf.mxu0
    %v4449 = vadd.f32 %v4326, %v4448
    %4450 = vmatmul.bf16.gmra.mxu0 %v2730
    %v4451 = vpop.f32.mrf.mxu0
    %v4452 = vadd.f32 %v4329, %v4451
    %v4453 = vpop.f32.mrf.mxu0
    %v4454 = vadd.f32 %v4331, %v4453
    %4455 = vmatmul.bf16.gmra.mxu0 %v2733
    %v4456 = vpop.f32.mrf.mxu0
    %v4457 = vadd.f32 %v4334, %v4456
    %v4458 = vpop.f32.mrf.mxu0
    %v4459 = vadd.f32 %v4336, %v4458
    %4460 = vmatmul.bf16.gmra.mxu0 %v2736
    %v4461 = vpop.f32.mrf.mxu0
    %v4462 = vadd.f32 %v4339, %v4461
    %v4463 = vpop.f32.mrf.mxu0
    %v4464 = vadd.f32 %v4341, %v4463
    %4465 = vmatmul.bf16.gmra.mxu0 %v2739
    %v4466 = vpop.f32.mrf.mxu0
    %v4467 = vadd.f32 %v4344, %v4466
    %v4468 = vpop.f32.mrf.mxu0
    %v4469 = vadd.f32 %v4346, %v4468
    %4470 = vmatmul.bf16.gmra.mxu0 %v2742
    %v4471 = vpop.f32.mrf.mxu0
    %v4472 = vadd.f32 %v4349, %v4471
    %v4473 = vpop.f32.mrf.mxu0
    %v4474 = vadd.f32 %v4351, %v4473
    %4475 = vmatmul.bf16.gmra.mxu0 %v2745
    %v4476 = vpop.f32.mrf.mxu0
    %v4477 = vadd.f32 %v4354, %v4476
    %v4478 = vpop.f32.mrf.mxu0
    %v4479 = vadd.f32 %v4356, %v4478
    %4480 = vmatmul.bf16.gmra.mxu0 %v2748
    %v4481 = vpop.f32.mrf.mxu0
    %v4482 = vadd.f32 %v4359, %v4481
    %v4483 = vpop.f32.mrf.mxu0
    %v4484 = vadd.f32 %v4361, %v4483
    %4485 = vmatmul.bf16.gmra.mxu0 %v2751
    %v4486 = vpop.f32.mrf.mxu0
    %v4487 = vadd.f32 %v4364, %v4486
    %v4488 = vpop.f32.mrf.mxu0
    %v4489 = vadd.f32 %v4366, %v4488
    %4490 = vmatmul.bf16.gmra.mxu0 %v2754
    %v4491 = vpop.f32.mrf.mxu0
    %v4492 = vadd.f32 %v4369, %v4491
    %v4493 = vpop.f32.mrf.mxu0
    %v4494 = vadd.f32 %v4371, %v4493
    %4495 = vmatmul.bf16.gmra.mxu0 %v2757
    %v4496 = vpop.f32.mrf.mxu0
    %v4497 = vadd.f32 %v4374, %v4496
    %v4498 = vpop.f32.mrf.mxu0
    %v4499 = vadd.f32 %v4376, %v4498
    %4500 = vmatmul.bf16.gmra.mxu0 %v2760
    %v4501 = vpop.f32.mrf.mxu0
    %v4502 = vadd.f32 %v4379, %v4501
    %v4503 = vpop.f32.mrf.mxu0
    %v4504 = vadd.f32 %v4381, %v4503
    %4505 = vmatmul.bf16.gmra.mxu0 %v2763
    %v4506 = vpop.f32.mrf.mxu0
    %v4507 = vadd.f32 %v4384, %v4506
    %v4508 = vpop.f32.mrf.mxu0
    %v4509 = vadd.f32 %v4386, %v4508
    %4510 = vmatmul.bf16.gmra.mxu0 %v2766
    %v4511 = vpop.f32.mrf.mxu0
    %v4512 = vadd.f32 %v4389, %v4511
    %v4513 = vpop.f32.mrf.mxu0
    %v4514 = vadd.f32 %v4391, %v4513
    %4515 = vmatmul.bf16.gmra.mxu0 %v2769
    %v4516 = vpop.f32.mrf.mxu0
    %v4517 = vadd.f32 %v4394, %v4516
    %v4518 = vpop.f32.mrf.mxu0
    %v4519 = vadd.f32 %v4396, %v4518
    %4520 = vmatmul.bf16.gmra.mxu0 %v2772
    %v4521 = vpop.f32.mrf.mxu0
    %v4522 = vadd.f32 %v4399, %v4521
    %v4523 = vpop.f32.mrf.mxu0
    %v4524 = vadd.f32 %v4401, %v4523
    %4525 = vmatmul.bf16.gmra.mxu0 %v2775
    %v4526 = vpop.f32.mrf.mxu0
    %v4527 = vadd.f32 %v4404, %v4526
    %v4528 = vpop.f32.mrf.mxu0
    %4529 = vdwg.mxu0
    %4530 = vmatpush.bf16.msra.mxu0 %v2499
    %4531 = vmatpush.bf16.msra.mxu0 %v2490
    %4532 = vmatpush.bf16.msra.mxu0 %v2481
    %4533 = vmatpush.bf16.msra.mxu0 %v2472
    %4534 = vmatpush.bf16.msra.mxu0 %v2463
    %4535 = vmatpush.bf16.msra.mxu0 %v2454
    %4536 = vmatpush.bf16.msra.mxu0 %v2445
    %4537 = vmatpush.bf16.msra.mxu0 %v2436
    %4538 = vmatmul.bf16.gmra.mxu0 %v1772
    %v4539 = vpop.f32.mrf.mxu0
    %v4540 = vadd.f32 %v1984, %v4539
    %v4541 = vpop.f32.mrf.mxu0
    %v4542 = vadd.f32 %v1984, %v4541
    %4543 = vmatmul.bf16.gmra.mxu0 %v1774
    %v4544 = vpop.f32.mrf.mxu0
    %v4545 = vadd.f32 %v1984, %v4544
    %v4546 = vpop.f32.mrf.mxu0
    %v4547 = vadd.f32 %v1984, %v4546
    %4548 = vmatmul.bf16.gmra.mxu0 %v1776
    %v4549 = vpop.f32.mrf.mxu0
    %v4550 = vadd.f32 %v1984, %v4549
    %v4551 = vpop.f32.mrf.mxu0
    %v4552 = vadd.f32 %v1984, %v4551
    %4553 = vmatmul.bf16.gmra.mxu0 %v1778
    %v4554 = vpop.f32.mrf.mxu0
    %v4555 = vadd.f32 %v1984, %v4554
    %v4556 = vpop.f32.mrf.mxu0
    %v4557 = vadd.f32 %v1984, %v4556
    %4558 = vmatmul.bf16.gmra.mxu0 %v1780
    %v4559 = vpop.f32.mrf.mxu0
    %v4560 = vadd.f32 %v1984, %v4559
    %v4561 = vpop.f32.mrf.mxu0
    %v4562 = vadd.f32 %v1984, %v4561
    %4563 = vmatmul.bf16.gmra.mxu0 %v1782
    %v4564 = vpop.f32.mrf.mxu0
    %v4565 = vadd.f32 %v1984, %v4564
    %v4566 = vpop.f32.mrf.mxu0
    %v4567 = vadd.f32 %v1984, %v4566
    %4568 = vmatmul.bf16.gmra.mxu0 %v1784
    %v4569 = vpop.f32.mrf.mxu0
    %v4570 = vadd.f32 %v1984, %v4569
    %v4571 = vpop.f32.mrf.mxu0
    %v4572 = vadd.f32 %v1984, %v4571
    %4573 = vmatmul.bf16.gmra.mxu0 %v1786
    %v4574 = vpop.f32.mrf.mxu0
    %v4575 = vadd.f32 %v1984, %v4574
    %v4576 = vpop.f32.mrf.mxu0
    %v4577 = vadd.f32 %v1984, %v4576
    %4578 = vmatmul.bf16.gmra.mxu0 %v1788
    %v4579 = vpop.f32.mrf.mxu0
    %v4580 = vadd.f32 %v1984, %v4579
    %v4581 = vpop.f32.mrf.mxu0
    %v4582 = vadd.f32 %v1984, %v4581
    %4583 = vmatmul.bf16.gmra.mxu0 %v1790
    %v4584 = vpop.f32.mrf.mxu0
    %v4585 = vadd.f32 %v1984, %v4584
    %v4586 = vpop.f32.mrf.mxu0
    %v4587 = vadd.f32 %v1984, %v4586
    %4588 = vmatmul.bf16.gmra.mxu0 %v1792
    %v4589 = vpop.f32.mrf.mxu0
    %v4590 = vadd.f32 %v1984, %v4589
    %v4591 = vpop.f32.mrf.mxu0
    %v4592 = vadd.f32 %v1984, %v4591
    %4593 = vmatmul.bf16.gmra.mxu0 %v1794
    %v4594 = vpop.f32.mrf.mxu0
    %v4595 = vadd.f32 %v1984, %v4594
    %v4596 = vpop.f32.mrf.mxu0
    %v4597 = vadd.f32 %v1984, %v4596
    %4598 = vmatmul.bf16.gmra.mxu0 %v1796
    %v4599 = vpop.f32.mrf.mxu0
    %v4600 = vadd.f32 %v1984, %v4599
    %v4601 = vpop.f32.mrf.mxu0
    %v4602 = vadd.f32 %v1984, %v4601
    %4603 = vmatmul.bf16.gmra.mxu0 %v1798
    %v4604 = vpop.f32.mrf.mxu0
    %v4605 = vadd.f32 %v1984, %v4604
    %v4606 = vpop.f32.mrf.mxu0
    %v4607 = vadd.f32 %v1984, %v4606
    %4608 = vmatmul.bf16.gmra.mxu0 %v1800
    %v4609 = vpop.f32.mrf.mxu0
    %v4610 = vadd.f32 %v1984, %v4609
    %v4611 = vpop.f32.mrf.mxu0
    %v4612 = vadd.f32 %v1984, %v4611
    %4613 = vmatmul.bf16.gmra.mxu0 %v1802
    %v4614 = vpop.f32.mrf.mxu0
    %v4615 = vadd.f32 %v1984, %v4614
    %v4616 = vpop.f32.mrf.mxu0
    %v4617 = vadd.f32 %v1984, %v4616
    %4618 = vmatmul.bf16.gmra.mxu0 %v1804
    %v4619 = vpop.f32.mrf.mxu0
    %v4620 = vadd.f32 %v1984, %v4619
    %v4621 = vpop.f32.mrf.mxu0
    %v4622 = vadd.f32 %v1984, %v4621
    %4623 = vmatmul.bf16.gmra.mxu0 %v1806
    %v4624 = vpop.f32.mrf.mxu0
    %v4625 = vadd.f32 %v1984, %v4624
    %v4626 = vpop.f32.mrf.mxu0
    %v4627 = vadd.f32 %v1984, %v4626
    %4628 = vmatmul.bf16.gmra.mxu0 %v1808
    %v4629 = vpop.f32.mrf.mxu0
    %v4630 = vadd.f32 %v1984, %v4629
    %v4631 = vpop.f32.mrf.mxu0
    %v4632 = vadd.f32 %v1984, %v4631
    %4633 = vmatmul.bf16.gmra.mxu0 %v1810
    %v4634 = vpop.f32.mrf.mxu0
    %v4635 = vadd.f32 %v1984, %v4634
    %v4636 = vpop.f32.mrf.mxu0
    %v4637 = vadd.f32 %v1984, %v4636
    %4638 = vmatmul.bf16.gmra.mxu0 %v1812
    %v4639 = vpop.f32.mrf.mxu0
    %v4640 = vadd.f32 %v1984, %v4639
    %v4641 = vpop.f32.mrf.mxu0
    %v4642 = vadd.f32 %v1984, %v4641
    %4643 = vmatmul.bf16.gmra.mxu0 %v1814
    %v4644 = vpop.f32.mrf.mxu0
    %v4645 = vadd.f32 %v1984, %v4644
    %v4646 = vpop.f32.mrf.mxu0
    %v4647 = vadd.f32 %v1984, %v4646
    %4648 = vmatmul.bf16.gmra.mxu0 %v1816
    %v4649 = vpop.f32.mrf.mxu0
    %v4650 = vadd.f32 %v1984, %v4649
    %v4651 = vpop.f32.mrf.mxu0
    %4652 = vdwg.mxu0
    %4653 = vmatpush.bf16.msra.mxu0 %v2803
    %4654 = vmatpush.bf16.msra.mxu0 %v2562
    %4655 = vmatpush.bf16.msra.mxu0 %v2553
    %4656 = vmatpush.bf16.msra.mxu0 %v2544
    %4657 = vmatpush.bf16.msra.mxu0 %v2535
    %4658 = vmatpush.bf16.msra.mxu0 %v2526
    %4659 = vmatpush.bf16.msra.mxu0 %v2517
    %4660 = vmatpush.bf16.msra.mxu0 %v2508
    %4661 = vmatmul.bf16.gmra.mxu0 %v2709
    %v4662 = vpop.f32.mrf.mxu0
    %v4663 = vadd.f32 %v4540, %v4662
    %v4664 = vpop.f32.mrf.mxu0
    %v4665 = vadd.f32 %v4542, %v4664
    %4666 = vmatmul.bf16.gmra.mxu0 %v2712
    %v4667 = vpop.f32.mrf.mxu0
    %v4668 = vadd.f32 %v4545, %v4667
    %v4669 = vpop.f32.mrf.mxu0
    %v4670 = vadd.f32 %v4547, %v4669
    %4671 = vmatmul.bf16.gmra.mxu0 %v2715
    %v4672 = vpop.f32.mrf.mxu0
    %v4673 = vadd.f32 %v4550, %v4672
    %v4674 = vpop.f32.mrf.mxu0
    %v4675 = vadd.f32 %v4552, %v4674
    %4676 = vmatmul.bf16.gmra.mxu0 %v2718
    %v4677 = vpop.f32.mrf.mxu0
    %v4678 = vadd.f32 %v4555, %v4677
    %v4679 = vpop.f32.mrf.mxu0
    %v4680 = vadd.f32 %v4557, %v4679
    %4681 = vmatmul.bf16.gmra.mxu0 %v2721
    %v4682 = vpop.f32.mrf.mxu0
    %v4683 = vadd.f32 %v4560, %v4682
    %v4684 = vpop.f32.mrf.mxu0
    %v4685 = vadd.f32 %v4562, %v4684
    %4686 = vmatmul.bf16.gmra.mxu0 %v2724
    %v4687 = vpop.f32.mrf.mxu0
    %v4688 = vadd.f32 %v4565, %v4687
    %v4689 = vpop.f32.mrf.mxu0
    %v4690 = vadd.f32 %v4567, %v4689
    %4691 = vmatmul.bf16.gmra.mxu0 %v2727
    %v4692 = vpop.f32.mrf.mxu0
    %v4693 = vadd.f32 %v4570, %v4692
    %v4694 = vpop.f32.mrf.mxu0
    %v4695 = vadd.f32 %v4572, %v4694
    %4696 = vmatmul.bf16.gmra.mxu0 %v2730
    %v4697 = vpop.f32.mrf.mxu0
    %v4698 = vadd.f32 %v4575, %v4697
    %v4699 = vpop.f32.mrf.mxu0
    %v4700 = vadd.f32 %v4577, %v4699
    %4701 = vmatmul.bf16.gmra.mxu0 %v2733
    %v4702 = vpop.f32.mrf.mxu0
    %v4703 = vadd.f32 %v4580, %v4702
    %v4704 = vpop.f32.mrf.mxu0
    %v4705 = vadd.f32 %v4582, %v4704
    %4706 = vmatmul.bf16.gmra.mxu0 %v2736
    %v4707 = vpop.f32.mrf.mxu0
    %v4708 = vadd.f32 %v4585, %v4707
    %v4709 = vpop.f32.mrf.mxu0
    %v4710 = vadd.f32 %v4587, %v4709
    %4711 = vmatmul.bf16.gmra.mxu0 %v2739
    %v4712 = vpop.f32.mrf.mxu0
    %v4713 = vadd.f32 %v4590, %v4712
    %v4714 = vpop.f32.mrf.mxu0
    %v4715 = vadd.f32 %v4592, %v4714
    %4716 = vmatmul.bf16.gmra.mxu0 %v2742
    %v4717 = vpop.f32.mrf.mxu0
    %v4718 = vadd.f32 %v4595, %v4717
    %v4719 = vpop.f32.mrf.mxu0
    %v4720 = vadd.f32 %v4597, %v4719
    %4721 = vmatmul.bf16.gmra.mxu0 %v2745
    %v4722 = vpop.f32.mrf.mxu0
    %v4723 = vadd.f32 %v4600, %v4722
    %v4724 = vpop.f32.mrf.mxu0
    %v4725 = vadd.f32 %v4602, %v4724
    %4726 = vmatmul.bf16.gmra.mxu0 %v2748
    %v4727 = vpop.f32.mrf.mxu0
    %v4728 = vadd.f32 %v4605, %v4727
    %v4729 = vpop.f32.mrf.mxu0
    %v4730 = vadd.f32 %v4607, %v4729
    %4731 = vmatmul.bf16.gmra.mxu0 %v2751
    %v4732 = vpop.f32.mrf.mxu0
    %v4733 = vadd.f32 %v4610, %v4732
    %v4734 = vpop.f32.mrf.mxu0
    %v4735 = vadd.f32 %v4612, %v4734
    %4736 = vmatmul.bf16.gmra.mxu0 %v2754
    %v4737 = vpop.f32.mrf.mxu0
    %v4738 = vadd.f32 %v4615, %v4737
    %v4739 = vpop.f32.mrf.mxu0
    %v4740 = vadd.f32 %v4617, %v4739
    %4741 = vmatmul.bf16.gmra.mxu0 %v2757
    %v4742 = vpop.f32.mrf.mxu0
    %v4743 = vadd.f32 %v4620, %v4742
    %v4744 = vpop.f32.mrf.mxu0
    %v4745 = vadd.f32 %v4622, %v4744
    %4746 = vmatmul.bf16.gmra.mxu0 %v2760
    %v4747 = vpop.f32.mrf.mxu0
    %v4748 = vadd.f32 %v4625, %v4747
    %v4749 = vpop.f32.mrf.mxu0
    %v4750 = vadd.f32 %v4627, %v4749
    %4751 = vmatmul.bf16.gmra.mxu0 %v2763
    %v4752 = vpop.f32.mrf.mxu0
    %v4753 = vadd.f32 %v4630, %v4752
    %v4754 = vpop.f32.mrf.mxu0
    %v4755 = vadd.f32 %v4632, %v4754
    %4756 = vmatmul.bf16.gmra.mxu0 %v2766
    %v4757 = vpop.f32.mrf.mxu0
    %v4758 = vadd.f32 %v4635, %v4757
    %v4759 = vpop.f32.mrf.mxu0
    %v4760 = vadd.f32 %v4637, %v4759
    %4761 = vmatmul.bf16.gmra.mxu0 %v2769
    %v4762 = vpop.f32.mrf.mxu0
    %v4763 = vadd.f32 %v4640, %v4762
    %v4764 = vpop.f32.mrf.mxu0
    %v4765 = vadd.f32 %v4642, %v4764
    %4766 = vmatmul.bf16.gmra.mxu0 %v2772
    %v4767 = vpop.f32.mrf.mxu0
    %v4768 = vadd.f32 %v4645, %v4767
    %v4769 = vpop.f32.mrf.mxu0
    %v4770 = vadd.f32 %v4647, %v4769
    %4771 = vmatmul.bf16.gmra.mxu0 %v2775
    %v4772 = vpop.f32.mrf.mxu0
    %v4773 = vadd.f32 %v4650, %v4772
    %v4774 = vpop.f32.mrf.mxu0
    %4775 = vdwg.mxu0
    %4776 = vmatpush.bf16.msra.mxu0 %v2500
    %4777 = vmatpush.bf16.msra.mxu0 %v2491
    %4778 = vmatpush.bf16.msra.mxu0 %v2482
    %4779 = vmatpush.bf16.msra.mxu0 %v2473
    %4780 = vmatpush.bf16.msra.mxu0 %v2464
    %4781 = vmatpush.bf16.msra.mxu0 %v2455
    %4782 = vmatpush.bf16.msra.mxu0 %v2446
    %4783 = vmatpush.bf16.msra.mxu0 %v2437
    %4784 = vmatmul.bf16.gmra.mxu0 %v1772
    %v4785 = vpop.f32.mrf.mxu0
    %v4786 = vadd.f32 %v1985, %v4785
    %v4787 = vpop.f32.mrf.mxu0
    %v4788 = vadd.f32 %v1985, %v4787
    %4789 = vmatmul.bf16.gmra.mxu0 %v1774
    %v4790 = vpop.f32.mrf.mxu0
    %v4791 = vadd.f32 %v1985, %v4790
    %v4792 = vpop.f32.mrf.mxu0
    %v4793 = vadd.f32 %v1985, %v4792
    %4794 = vmatmul.bf16.gmra.mxu0 %v1776
    %v4795 = vpop.f32.mrf.mxu0
    %v4796 = vadd.f32 %v1985, %v4795
    %v4797 = vpop.f32.mrf.mxu0
    %v4798 = vadd.f32 %v1985, %v4797
    %4799 = vmatmul.bf16.gmra.mxu0 %v1778
    %v4800 = vpop.f32.mrf.mxu0
    %v4801 = vadd.f32 %v1985, %v4800
    %v4802 = vpop.f32.mrf.mxu0
    %v4803 = vadd.f32 %v1985, %v4802
    %4804 = vmatmul.bf16.gmra.mxu0 %v1780
    %v4805 = vpop.f32.mrf.mxu0
    %v4806 = vadd.f32 %v1985, %v4805
    %v4807 = vpop.f32.mrf.mxu0
    %v4808 = vadd.f32 %v1985, %v4807
    %4809 = vmatmul.bf16.gmra.mxu0 %v1782
    %v4810 = vpop.f32.mrf.mxu0
    %v4811 = vadd.f32 %v1985, %v4810
    %v4812 = vpop.f32.mrf.mxu0
    %v4813 = vadd.f32 %v1985, %v4812
    %4814 = vmatmul.bf16.gmra.mxu0 %v1784
    %v4815 = vpop.f32.mrf.mxu0
    %v4816 = vadd.f32 %v1985, %v4815
    %v4817 = vpop.f32.mrf.mxu0
    %v4818 = vadd.f32 %v1985, %v4817
    %4819 = vmatmul.bf16.gmra.mxu0 %v1786
    %v4820 = vpop.f32.mrf.mxu0
    %v4821 = vadd.f32 %v1985, %v4820
    %v4822 = vpop.f32.mrf.mxu0
    %v4823 = vadd.f32 %v1985, %v4822
    %4824 = vmatmul.bf16.gmra.mxu0 %v1788
    %v4825 = vpop.f32.mrf.mxu0
    %v4826 = vadd.f32 %v1985, %v4825
    %v4827 = vpop.f32.mrf.mxu0
    %v4828 = vadd.f32 %v1985, %v4827
    %4829 = vmatmul.bf16.gmra.mxu0 %v1790
    %v4830 = vpop.f32.mrf.mxu0
    %v4831 = vadd.f32 %v1985, %v4830
    %v4832 = vpop.f32.mrf.mxu0
    %v4833 = vadd.f32 %v1985, %v4832
    %4834 = vmatmul.bf16.gmra.mxu0 %v1792
    %v4835 = vpop.f32.mrf.mxu0
    %v4836 = vadd.f32 %v1985, %v4835
    %v4837 = vpop.f32.mrf.mxu0
    %v4838 = vadd.f32 %v1985, %v4837
    %4839 = vmatmul.bf16.gmra.mxu0 %v1794
    %v4840 = vpop.f32.mrf.mxu0
    %v4841 = vadd.f32 %v1985, %v4840
    %v4842 = vpop.f32.mrf.mxu0
    %v4843 = vadd.f32 %v1985, %v4842
    %4844 = vmatmul.bf16.gmra.mxu0 %v1796
    %v4845 = vpop.f32.mrf.mxu0
    %v4846 = vadd.f32 %v1985, %v4845
    %v4847 = vpop.f32.mrf.mxu0
    %v4848 = vadd.f32 %v1985, %v4847
    %4849 = vmatmul.bf16.gmra.mxu0 %v1798
    %v4850 = vpop.f32.mrf.mxu0
    %v4851 = vadd.f32 %v1985, %v4850
    %v4852 = vpop.f32.mrf.mxu0
    %v4853 = vadd.f32 %v1985, %v4852
    %4854 = vmatmul.bf16.gmra.mxu0 %v1800
    %v4855 = vpop.f32.mrf.mxu0
    %v4856 = vadd.f32 %v1985, %v4855
    %v4857 = vpop.f32.mrf.mxu0
    %v4858 = vadd.f32 %v1985, %v4857
    %4859 = vmatmul.bf16.gmra.mxu0 %v1802
    %v4860 = vpop.f32.mrf.mxu0
    %v4861 = vadd.f32 %v1985, %v4860
    %v4862 = vpop.f32.mrf.mxu0
    %v4863 = vadd.f32 %v1985, %v4862
    %4864 = vmatmul.bf16.gmra.mxu0 %v1804
    %v4865 = vpop.f32.mrf.mxu0
    %v4866 = vadd.f32 %v1985, %v4865
    %v4867 = vpop.f32.mrf.mxu0
    %v4868 = vadd.f32 %v1985, %v4867
    %4869 = vmatmul.bf16.gmra.mxu0 %v1806
    %v4870 = vpop.f32.mrf.mxu0
    %v4871 = vadd.f32 %v1985, %v4870
    %v4872 = vpop.f32.mrf.mxu0
    %v4873 = vadd.f32 %v1985, %v4872
    %4874 = vmatmul.bf16.gmra.mxu0 %v1808
    %v4875 = vpop.f32.mrf.mxu0
    %v4876 = vadd.f32 %v1985, %v4875
    %v4877 = vpop.f32.mrf.mxu0
    %v4878 = vadd.f32 %v1985, %v4877
    %4879 = vmatmul.bf16.gmra.mxu0 %v1810
    %v4880 = vpop.f32.mrf.mxu0
    %v4881 = vadd.f32 %v1985, %v4880
    %v4882 = vpop.f32.mrf.mxu0
    %v4883 = vadd.f32 %v1985, %v4882
    %4884 = vmatmul.bf16.gmra.mxu0 %v1812
    %v4885 = vpop.f32.mrf.mxu0
    %v4886 = vadd.f32 %v1985, %v4885
    %v4887 = vpop.f32.mrf.mxu0
    %v4888 = vadd.f32 %v1985, %v4887
    %4889 = vmatmul.bf16.gmra.mxu0 %v1814
    %v4890 = vpop.f32.mrf.mxu0
    %v4891 = vadd.f32 %v1985, %v4890
    %v4892 = vpop.f32.mrf.mxu0
    %v4893 = vadd.f32 %v1985, %v4892
    %4894 = vmatmul.bf16.gmra.mxu0 %v1816
    %v4895 = vpop.f32.mrf.mxu0
    %v4896 = vadd.f32 %v1985, %v4895
    %v4897 = vpop.f32.mrf.mxu0
    %4898 = vdwg.mxu0
    %4899 = vmatpush.bf16.msra.mxu0 %v2806
    %4900 = vmatpush.bf16.msra.mxu0 %v2563
    %4901 = vmatpush.bf16.msra.mxu0 %v2554
    %4902 = vmatpush.bf16.msra.mxu0 %v2545
    %4903 = vmatpush.bf16.msra.mxu0 %v2536
    %4904 = vmatpush.bf16.msra.mxu0 %v2527
    %4905 = vmatpush.bf16.msra.mxu0 %v2518
    %4906 = vmatpush.bf16.msra.mxu0 %v2509
    %4907 = vmatmul.bf16.gmra.mxu0 %v2709
    %v4908 = vpop.f32.mrf.mxu0
    %v4909 = vadd.f32 %v4786, %v4908
    %v4910 = vpop.f32.mrf.mxu0
    %v4911 = vadd.f32 %v4788, %v4910
    %4912 = vmatmul.bf16.gmra.mxu0 %v2712
    %v4913 = vpop.f32.mrf.mxu0
    %v4914 = vadd.f32 %v4791, %v4913
    %v4915 = vpop.f32.mrf.mxu0
    %v4916 = vadd.f32 %v4793, %v4915
    %4917 = vmatmul.bf16.gmra.mxu0 %v2715
    %v4918 = vpop.f32.mrf.mxu0
    %v4919 = vadd.f32 %v4796, %v4918
    %v4920 = vpop.f32.mrf.mxu0
    %v4921 = vadd.f32 %v4798, %v4920
    %4922 = vmatmul.bf16.gmra.mxu0 %v2718
    %v4923 = vpop.f32.mrf.mxu0
    %v4924 = vadd.f32 %v4801, %v4923
    %v4925 = vpop.f32.mrf.mxu0
    %v4926 = vadd.f32 %v4803, %v4925
    %4927 = vmatmul.bf16.gmra.mxu0 %v2721
    %v4928 = vpop.f32.mrf.mxu0
    %v4929 = vadd.f32 %v4806, %v4928
    %v4930 = vpop.f32.mrf.mxu0
    %v4931 = vadd.f32 %v4808, %v4930
    %4932 = vmatmul.bf16.gmra.mxu0 %v2724
    %v4933 = vpop.f32.mrf.mxu0
    %v4934 = vadd.f32 %v4811, %v4933
    %v4935 = vpop.f32.mrf.mxu0
    %v4936 = vadd.f32 %v4813, %v4935
    %4937 = vmatmul.bf16.gmra.mxu0 %v2727
    %v4938 = vpop.f32.mrf.mxu0
    %v4939 = vadd.f32 %v4816, %v4938
    %v4940 = vpop.f32.mrf.mxu0
    %v4941 = vadd.f32 %v4818, %v4940
    %4942 = vmatmul.bf16.gmra.mxu0 %v2730
    %v4943 = vpop.f32.mrf.mxu0
    %v4944 = vadd.f32 %v4821, %v4943
    %v4945 = vpop.f32.mrf.mxu0
    %v4946 = vadd.f32 %v4823, %v4945
    %4947 = vmatmul.bf16.gmra.mxu0 %v2733
    %v4948 = vpop.f32.mrf.mxu0
    %v4949 = vadd.f32 %v4826, %v4948
    %v4950 = vpop.f32.mrf.mxu0
    %v4951 = vadd.f32 %v4828, %v4950
    %4952 = vmatmul.bf16.gmra.mxu0 %v2736
    %v4953 = vpop.f32.mrf.mxu0
    %v4954 = vadd.f32 %v4831, %v4953
    %v4955 = vpop.f32.mrf.mxu0
    %v4956 = vadd.f32 %v4833, %v4955
    %4957 = vmatmul.bf16.gmra.mxu0 %v2739
    %v4958 = vpop.f32.mrf.mxu0
    %v4959 = vadd.f32 %v4836, %v4958
    %v4960 = vpop.f32.mrf.mxu0
    %v4961 = vadd.f32 %v4838, %v4960
    %4962 = vmatmul.bf16.gmra.mxu0 %v2742
    %v4963 = vpop.f32.mrf.mxu0
    %v4964 = vadd.f32 %v4841, %v4963
    %v4965 = vpop.f32.mrf.mxu0
    %v4966 = vadd.f32 %v4843, %v4965
    %4967 = vmatmul.bf16.gmra.mxu0 %v2745
    %v4968 = vpop.f32.mrf.mxu0
    %v4969 = vadd.f32 %v4846, %v4968
    %v4970 = vpop.f32.mrf.mxu0
    %v4971 = vadd.f32 %v4848, %v4970
    %4972 = vmatmul.bf16.gmra.mxu0 %v2748
    %v4973 = vpop.f32.mrf.mxu0
    %v4974 = vadd.f32 %v4851, %v4973
    %v4975 = vpop.f32.mrf.mxu0
    %v4976 = vadd.f32 %v4853, %v4975
    %4977 = vmatmul.bf16.gmra.mxu0 %v2751
    %v4978 = vpop.f32.mrf.mxu0
    %v4979 = vadd.f32 %v4856, %v4978
    %v4980 = vpop.f32.mrf.mxu0
    %v4981 = vadd.f32 %v4858, %v4980
    %4982 = vmatmul.bf16.gmra.mxu0 %v2754
    %v4983 = vpop.f32.mrf.mxu0
    %v4984 = vadd.f32 %v4861, %v4983
    %v4985 = vpop.f32.mrf.mxu0
    %v4986 = vadd.f32 %v4863, %v4985
    %4987 = vmatmul.bf16.gmra.mxu0 %v2757
    %v4988 = vpop.f32.mrf.mxu0
    %v4989 = vadd.f32 %v4866, %v4988
    %v4990 = vpop.f32.mrf.mxu0
    %v4991 = vadd.f32 %v4868, %v4990
    %4992 = vmatmul.bf16.gmra.mxu0 %v2760
    %v4993 = vpop.f32.mrf.mxu0
    %v4994 = vadd.f32 %v4871, %v4993
    %v4995 = vpop.f32.mrf.mxu0
    %v4996 = vadd.f32 %v4873, %v4995
    %4997 = vmatmul.bf16.gmra.mxu0 %v2763
    %v4998 = vpop.f32.mrf.mxu0
    %v4999 = vadd.f32 %v4876, %v4998
    %v5000 = vpop.f32.mrf.mxu0
    %v5001 = vadd.f32 %v4878, %v5000
    %5002 = vmatmul.bf16.gmra.mxu0 %v2766
    %v5003 = vpop.f32.mrf.mxu0
    %v5004 = vadd.f32 %v4881, %v5003
    %v5005 = vpop.f32.mrf.mxu0
    %v5006 = vadd.f32 %v4883, %v5005
    %5007 = vmatmul.bf16.gmra.mxu0 %v2769
    %v5008 = vpop.f32.mrf.mxu0
    %v5009 = vadd.f32 %v4886, %v5008
    %v5010 = vpop.f32.mrf.mxu0
    %v5011 = vadd.f32 %v4888, %v5010
    %5012 = vmatmul.bf16.gmra.mxu0 %v2772
    %v5013 = vpop.f32.mrf.mxu0
    %v5014 = vadd.f32 %v4891, %v5013
    %v5015 = vpop.f32.mrf.mxu0
    %v5016 = vadd.f32 %v4893, %v5015
    %5017 = vmatmul.bf16.gmra.mxu0 %v2775
    %v5018 = vpop.f32.mrf.mxu0
    %v5019 = vadd.f32 %v4896, %v5018
    %v5020 = vpop.f32.mrf.mxu0
    %5021 = vdwg.mxu0
    %v5022 = vmax.f32 %v2941, %v3679
    %v5023 = vmax.f32 %v3187, %v3925
    %v5024 = vmax.f32 %v3433, %v4171
    %v5025 = vmax.f32 %v2943, %v3681
    %v5026 = vmax.f32 %v3189, %v3927
    %v5027 = vmax.f32 %v3435, %v4173
    %v5028 = vmax.f32 %v2946, %v3684
    %v5029 = vmax.f32 %v3192, %v3930
    %v5030 = vmax.f32 %v3438, %v4176
    %v5031 = vmax.f32 %v2948, %v3686
    %v5032 = vmax.f32 %v3194, %v3932
    %v5033 = vmax.f32 %v3440, %v4178
    %v5034 = vmax.f32 %v2951, %v3689
    %v5035 = vmax.f32 %v3197, %v3935
    %v5036 = vmax.f32 %v3443, %v4181
    %v5037 = vmax.f32 %v2953, %v3691
    %v5038 = vmax.f32 %v3199, %v3937
    %v5039 = vmax.f32 %v3445, %v4183
    %v5040 = vmax.f32 %v2956, %v3694
    %v5041 = vmax.f32 %v3202, %v3940
    %v5042 = vmax.f32 %v3448, %v4186
    %v5043 = vmax.f32 %v2958, %v3696
    %v5044 = vmax.f32 %v3204, %v3942
    %v5045 = vmax.f32 %v3450, %v4188
    %v5046 = vmax.f32 %v2961, %v3699
    %v5047 = vmax.f32 %v3207, %v3945
    %v5048 = vmax.f32 %v3453, %v4191
    %v5049 = vmax.f32 %v2963, %v3701
    %v5050 = vmax.f32 %v3209, %v3947
    %v5051 = vmax.f32 %v3455, %v4193
    %v5052 = vmax.f32 %v2966, %v3704
    %v5053 = vmax.f32 %v3212, %v3950
    %v5054 = vmax.f32 %v3458, %v4196
    %v5055 = vmax.f32 %v2968, %v3706
    %v5056 = vmax.f32 %v3214, %v3952
    %v5057 = vmax.f32 %v3460, %v4198
    %v5058 = vmax.f32 %v2971, %v3709
    %v5059 = vmax.f32 %v3217, %v3955
    %v5060 = vmax.f32 %v3463, %v4201
    %v5061 = vmax.f32 %v2973, %v3711
    %v5062 = vmax.f32 %v3219, %v3957
    %v5063 = vmax.f32 %v3465, %v4203
    %v5064 = vmax.f32 %v2976, %v3714
    %v5065 = vmax.f32 %v3222, %v3960
    %v5066 = vmax.f32 %v3468, %v4206
    %v5067 = vmax.f32 %v2978, %v3716
    %v5068 = vmax.f32 %v3224, %v3962
    %v5069 = vmax.f32 %v3470, %v4208
    %v5070 = vmax.f32 %v2981, %v3719
    %v5071 = vmax.f32 %v3227, %v3965
    %v5072 = vmax.f32 %v3473, %v4211
    %v5073 = vmax.f32 %v2983, %v3721
    %v5074 = vmax.f32 %v3229, %v3967
    %v5075 = vmax.f32 %v3475, %v4213
    %v5076 = vmax.f32 %v2986, %v3724
    %v5077 = vmax.f32 %v3232, %v3970
    %v5078 = vmax.f32 %v3478, %v4216
    %v5079 = vmax.f32 %v2988, %v3726
    %v5080 = vmax.f32 %v3234, %v3972
    %v5081 = vmax.f32 %v3480, %v4218
    %v5082 = vmax.f32 %v2991, %v3729
    %v5083 = vmax.f32 %v3237, %v3975
    %v5084 = vmax.f32 %v3483, %v4221
    %v5085 = vmax.f32 %v2993, %v3731
    %v5086 = vmax.f32 %v3239, %v3977
    %v5087 = vmax.f32 %v3485, %v4223
    %v5088 = vmax.f32 %v2996, %v3734
    %v5089 = vmax.f32 %v3242, %v3980
    %v5090 = vmax.f32 %v3488, %v4226
    %v5091 = vmax.f32 %v2998, %v3736
    %v5092 = vmax.f32 %v3244, %v3982
    %v5093 = vmax.f32 %v3490, %v4228
    %v5094 = vmax.f32 %v3001, %v3739
    %v5095 = vmax.f32 %v3247, %v3985
    %v5096 = vmax.f32 %v3493, %v4231
    %v5097 = vmax.f32 %v3003, %v3741
    %v5098 = vmax.f32 %v3249, %v3987
    %v5099 = vmax.f32 %v3495, %v4233
    %v5100 = vmax.f32 %v3006, %v3744
    %v5101 = vmax.f32 %v3252, %v3990
    %v5102 = vmax.f32 %v3498, %v4236
    %v5103 = vmax.f32 %v3008, %v3746
    %v5104 = vmax.f32 %v3254, %v3992
    %v5105 = vmax.f32 %v3500, %v4238
    %v5106 = vmax.f32 %v3011, %v3749
    %v5107 = vmax.f32 %v3257, %v3995
    %v5108 = vmax.f32 %v3503, %v4241
    %v5109 = vmax.f32 %v3013, %v3751
    %v5110 = vmax.f32 %v3259, %v3997
    %v5111 = vmax.f32 %v3505, %v4243
    %v5112 = vmax.f32 %v3016, %v3754
    %v5113 = vmax.f32 %v3262, %v4000
    %v5114 = vmax.f32 %v3508, %v4246
    %v5115 = vmax.f32 %v3018, %v3756
    %v5116 = vmax.f32 %v3264, %v4002
    %v5117 = vmax.f32 %v3510, %v4248
    %v5118 = vmax.f32 %v3021, %v3759
    %v5119 = vmax.f32 %v3267, %v4005
    %v5120 = vmax.f32 %v3513, %v4251
    %v5121 = vmax.f32 %v3023, %v3761
    %v5122 = vmax.f32 %v3269, %v4007
    %v5123 = vmax.f32 %v3515, %v4253
    %v5124 = vmax.f32 %v3026, %v3764
    %v5125 = vmax.f32 %v3272, %v4010
    %v5126 = vmax.f32 %v3518, %v4256
    %v5127 = vmax.f32 %v3028, %v3766
    %v5128 = vmax.f32 %v3274, %v4012
    %v5129 = vmax.f32 %v3520, %v4258
    %v5130 = vmax.f32 %v3031, %v3769
    %v5131 = vmax.f32 %v3277, %v4015
    %v5132 = vmax.f32 %v3523, %v4261
    %v5133 = vmax.f32 %v3033, %v3771
    %v5134 = vmax.f32 %v3279, %v4017
    %v5135 = vmax.f32 %v3525, %v4263
    %v5136 = vmax.f32 %v3036, %v3774
    %v5137 = vmax.f32 %v3282, %v4020
    %v5138 = vmax.f32 %v3528, %v4266
    %v5139 = vmax.f32 %v3038, %v3776
    %v5140 = vmax.f32 %v3284, %v4022
    %v5141 = vmax.f32 %v3530, %v4268
    %v5142 = vmax.f32 %v3041, %v3779
    %v5143 = vmax.f32 %v3287, %v4025
    %v5144 = vmax.f32 %v3533, %v4271
    %v5145 = vmax.f32 %v3043, %v3781
    %v5146 = vmax.f32 %v3289, %v4027
    %v5147 = vmax.f32 %v3535, %v4273
    %v5148 = vmax.f32 %v3046, %v3784
    %v5149 = vmax.f32 %v3292, %v4030
    %v5150 = vmax.f32 %v3538, %v4276
    %v5151 = vmax.f32 %v3048, %v3786
    %v5152 = vmax.f32 %v3294, %v4032
    %v5153 = vmax.f32 %v3540, %v4278
    %v5154 = vmax.f32 %v3051, %v3789
    %v5155 = vmax.f32 %v3297, %v4035
    %v5156 = vmax.f32 %v3543, %v4281
    %v5157 = vmax.f32 %v5022, %v4417
    %v5158 = vmax.f32 %v5023, %v4663
    %v5159 = vmax.f32 %v5024, %v4909
    %v5160 = vmax.f32 %v5025, %v4419
    %v5161 = vmax.f32 %v5026, %v4665
    %v5162 = vmax.f32 %v5027, %v4911
    %v5163 = vmax.f32 %v5028, %v4422
    %v5164 = vmax.f32 %v5029, %v4668
    %v5165 = vmax.f32 %v5030, %v4914
    %v5166 = vmax.f32 %v5031, %v4424
    %v5167 = vmax.f32 %v5032, %v4670
    %v5168 = vmax.f32 %v5033, %v4916
    %v5169 = vmax.f32 %v5034, %v4427
    %v5170 = vmax.f32 %v5035, %v4673
    %v5171 = vmax.f32 %v5036, %v4919
    %v5172 = vmax.f32 %v5037, %v4429
    %v5173 = vmax.f32 %v5038, %v4675
    %v5174 = vmax.f32 %v5039, %v4921
    %v5175 = vmax.f32 %v5040, %v4432
    %v5176 = vmax.f32 %v5041, %v4678
    %v5177 = vmax.f32 %v5042, %v4924
    %v5178 = vmax.f32 %v5043, %v4434
    %v5179 = vmax.f32 %v5044, %v4680
    %v5180 = vmax.f32 %v5045, %v4926
    %v5181 = vmax.f32 %v5046, %v4437
    %v5182 = vmax.f32 %v5047, %v4683
    %v5183 = vmax.f32 %v5048, %v4929
    %v5184 = vmax.f32 %v5049, %v4439
    %v5185 = vmax.f32 %v5050, %v4685
    %v5186 = vmax.f32 %v5051, %v4931
    %v5187 = vmax.f32 %v5052, %v4442
    %v5188 = vmax.f32 %v5053, %v4688
    %v5189 = vmax.f32 %v5054, %v4934
    %v5190 = vmax.f32 %v5055, %v4444
    %v5191 = vmax.f32 %v5056, %v4690
    %v5192 = vmax.f32 %v5057, %v4936
    %v5193 = vmax.f32 %v5058, %v4447
    %v5194 = vmax.f32 %v5059, %v4693
    %v5195 = vmax.f32 %v5060, %v4939
    %v5196 = vmax.f32 %v5061, %v4449
    %v5197 = vmax.f32 %v5062, %v4695
    %v5198 = vmax.f32 %v5063, %v4941
    %v5199 = vmax.f32 %v5064, %v4452
    %v5200 = vmax.f32 %v5065, %v4698
    %v5201 = vmax.f32 %v5066, %v4944
    %v5202 = vmax.f32 %v5067, %v4454
    %v5203 = vmax.f32 %v5068, %v4700
    %v5204 = vmax.f32 %v5069, %v4946
    %v5205 = vmax.f32 %v5070, %v4457
    %v5206 = vmax.f32 %v5071, %v4703
    %v5207 = vmax.f32 %v5072, %v4949
    %v5208 = vmax.f32 %v5073, %v4459
    %v5209 = vmax.f32 %v5074, %v4705
    %v5210 = vmax.f32 %v5075, %v4951
    %v5211 = vmax.f32 %v5076, %v4462
    %v5212 = vmax.f32 %v5077, %v4708
    %v5213 = vmax.f32 %v5078, %v4954
    %v5214 = vmax.f32 %v5079, %v4464
    %v5215 = vmax.f32 %v5080, %v4710
    %v5216 = vmax.f32 %v5081, %v4956
    %v5217 = vmax.f32 %v5082, %v4467
    %v5218 = vmax.f32 %v5083, %v4713
    %v5219 = vmax.f32 %v5084, %v4959
    %v5220 = vmax.f32 %v5085, %v4469
    %v5221 = vmax.f32 %v5086, %v4715
    %v5222 = vmax.f32 %v5087, %v4961
    %v5223 = vmax.f32 %v5088, %v4472
    %v5224 = vmax.f32 %v5089, %v4718
    %v5225 = vmax.f32 %v5090, %v4964
    %v5226 = vmax.f32 %v5091, %v4474
    %v5227 = vmax.f32 %v5092, %v4720
    %v5228 = vmax.f32 %v5093, %v4966
    %v5229 = vmax.f32 %v5094, %v4477
    %v5230 = vmax.f32 %v5095, %v4723
    %v5231 = vmax.f32 %v5096, %v4969
    %v5232 = vmax.f32 %v5097, %v4479
    %v5233 = vmax.f32 %v5098, %v4725
    %v5234 = vmax.f32 %v5099, %v4971
    %v5235 = vmax.f32 %v5100, %v4482
    %v5236 = vmax.f32 %v5101, %v4728
    %v5237 = vmax.f32 %v5102, %v4974
    %v5238 = vmax.f32 %v5103, %v4484
    %v5239 = vmax.f32 %v5104, %v4730
    %v5240 = vmax.f32 %v5105, %v4976
    %v5241 = vmax.f32 %v5106, %v4487
    %v5242 = vmax.f32 %v5107, %v4733
    %v5243 = vmax.f32 %v5108, %v4979
    %v5244 = vmax.f32 %v5109, %v4489
    %v5245 = vmax.f32 %v5110, %v4735
    %v5246 = vmax.f32 %v5111, %v4981
    %v5247 = vmax.f32 %v5112, %v4492
    %v5248 = vmax.f32 %v5113, %v4738
    %v5249 = vmax.f32 %v5114, %v4984
    %v5250 = vmax.f32 %v5115, %v4494
    %v5251 = vmax.f32 %v5116, %v4740
    %v5252 = vmax.f32 %v5117, %v4986
    %v5253 = vmax.f32 %v5118, %v4497
    %v5254 = vmax.f32 %v5119, %v4743
    %v5255 = vmax.f32 %v5120, %v4989
    %v5256 = vmax.f32 %v5121, %v4499
    %v5257 = vmax.f32 %v5122, %v4745
    %v5258 = vmax.f32 %v5123, %v4991
    %v5259 = vmax.f32 %v5124, %v4502
    %v5260 = vmax.f32 %v5125, %v4748
    %v5261 = vmax.f32 %v5126, %v4994
    %v5262 = vmax.f32 %v5127, %v4504
    %v5263 = vmax.f32 %v5128, %v4750
    %v5264 = vmax.f32 %v5129, %v4996
    %v5265 = vmax.f32 %v5130, %v4507
    %v5266 = vmax.f32 %v5131, %v4753
    %v5267 = vmax.f32 %v5132, %v4999
    %v5268 = vmax.f32 %v5133, %v4509
    %v5269 = vmax.f32 %v5134, %v4755
    %v5270 = vmax.f32 %v5135, %v5001
    %v5271 = vmax.f32 %v5136, %v4512
    %v5272 = vmax.f32 %v5137, %v4758
    %v5273 = vmax.f32 %v5138, %v5004
    %v5274 = vmax.f32 %v5139, %v4514
    %v5275 = vmax.f32 %v5140, %v4760
    %v5276 = vmax.f32 %v5141, %v5006
    %v5277 = vmax.f32 %v5142, %v4517
    %v5278 = vmax.f32 %v5143, %v4763
    %v5279 = vmax.f32 %v5144, %v5009
    %v5280 = vmax.f32 %v5145, %v4519
    %v5281 = vmax.f32 %v5146, %v4765
    %v5282 = vmax.f32 %v5147, %v5011
    %v5283 = vmax.f32 %v5148, %v4522
    %v5284 = vmax.f32 %v5149, %v4768
    %v5285 = vmax.f32 %v5150, %v5014
    %v5286 = vmax.f32 %v5151, %v4524
    %v5287 = vmax.f32 %v5152, %v4770
    %v5288 = vmax.f32 %v5153, %v5016
    %v5289 = vmax.f32 %v5154, %v4527
    %v5290 = vmax.f32 %v5155, %v4773
    %v5291 = vmax.f32 %v5156, %v5019
    %v5292 = vpack.c.bf16 %v5160, %v5157
    %v5293 = vpack.c.bf16 %v5161, %v5158
    %v5294 = vpack.c.bf16 %v5162, %v5159
    %v5295 = vpack.c.bf16 %v5166, %v5163
    %v5296 = vpack.c.bf16 %v5167, %v5164
    %v5297 = vpack.c.bf16 %v5168, %v5165
    %v5298 = vpack.c.bf16 %v5172, %v5169
    %v5299 = vpack.c.bf16 %v5173, %v5170
    %v5300 = vpack.c.bf16 %v5174, %v5171
    %v5301 = vpack.c.bf16 %v5178, %v5175
    %v5302 = vpack.c.bf16 %v5179, %v5176
    %v5303 = vpack.c.bf16 %v5180, %v5177
    %v5304 = vpack.c.bf16 %v5184, %v5181
    %v5305 = vpack.c.bf16 %v5185, %v5182
    %v5306 = vpack.c.bf16 %v5186, %v5183
    %v5307 = vpack.c.bf16 %v5190, %v5187
    %v5308 = vpack.c.bf16 %v5191, %v5188
    %v5309 = vpack.c.bf16 %v5192, %v5189
    %v5310 = vpack.c.bf16 %v5196, %v5193
    %v5311 = vpack.c.bf16 %v5197, %v5194
    %v5312 = vpack.c.bf16 %v5198, %v5195
    %v5313 = vpack.c.bf16 %v5202, %v5199
    %v5314 = vpack.c.bf16 %v5203, %v5200
    %v5315 = vpack.c.bf16 %v5204, %v5201
    %v5316 = vpack.c.bf16 %v5208, %v5205
    %v5317 = vpack.c.bf16 %v5209, %v5206
    %v5318 = vpack.c.bf16 %v5210, %v5207
    %v5319 = vpack.c.bf16 %v5214, %v5211
    %v5320 = vpack.c.bf16 %v5215, %v5212
    %v5321 = vpack.c.bf16 %v5216, %v5213
    %v5322 = vpack.c.bf16 %v5220, %v5217
    %v5323 = vpack.c.bf16 %v5221, %v5218
    %v5324 = vpack.c.bf16 %v5222, %v5219
    %v5325 = vpack.c.bf16 %v5226, %v5223
    %v5326 = vpack.c.bf16 %v5227, %v5224
    %v5327 = vpack.c.bf16 %v5228, %v5225
    %v5328 = vpack.c.bf16 %v5232, %v5229
    %v5329 = vpack.c.bf16 %v5233, %v5230
    %v5330 = vpack.c.bf16 %v5234, %v5231
    %v5331 = vpack.c.bf16 %v5238, %v5235
    %v5332 = vpack.c.bf16 %v5239, %v5236
    %v5333 = vpack.c.bf16 %v5240, %v5237
    %v5334 = vpack.c.bf16 %v5244, %v5241
    %v5335 = vpack.c.bf16 %v5245, %v5242
    %v5336 = vpack.c.bf16 %v5246, %v5243
    %v5337 = vpack.c.bf16 %v5250, %v5247
    %v5338 = vpack.c.bf16 %v5251, %v5248
    %v5339 = vpack.c.bf16 %v5252, %v5249
    %v5340 = vpack.c.bf16 %v5256, %v5253
    %v5341 = vpack.c.bf16 %v5257, %v5254
    %v5342 = vpack.c.bf16 %v5258, %v5255
    %v5343 = vpack.c.bf16 %v5262, %v5259
    %v5344 = vpack.c.bf16 %v5263, %v5260
    %v5345 = vpack.c.bf16 %v5264, %v5261
    %v5346 = vpack.c.bf16 %v5268, %v5265
    %v5347 = vpack.c.bf16 %v5269, %v5266
    %v5348 = vpack.c.bf16 %v5270, %v5267
    %v5349 = vpack.c.bf16 %v5274, %v5271
    %v5350 = vpack.c.bf16 %v5275, %v5272
    %v5351 = vpack.c.bf16 %v5276, %v5273
    %v5352 = vpack.c.bf16 %v5280, %v5277
    %v5353 = vpack.c.bf16 %v5281, %v5278
    %v5354 = vpack.c.bf16 %v5282, %v5279
    %v5355 = vpack.c.bf16 %v5286, %v5283
    %v5356 = vpack.c.bf16 %v5287, %v5284
    %v5357 = vpack.c.bf16 %v5288, %v5285
    %v5358 = vpack.c.bf16 %v5289, %v5289
    %v5359 = vpack.c.bf16 %v5290, %v5290
    %v5360 = vpack.c.bf16 %v5291, %v5291
    %v5361 = vld [vmem:[#allocation10] sm:$0xff]
    %v5362 = vld [vmem:[#allocation10 + $0x8] sm:$0xff]
    %v5363 = vld [vmem:[#allocation10 + $0x10] sm:$0xff]
    %v5364 = vld [vmem:[#allocation10 + $0x18] sm:$0xff]
    %v5365 = vld [vmem:[#allocation10 + $0x20] sm:$0xff]
    %v5366 = vld [vmem:[#allocation10 + $0x28] sm:$0xff]
    %v5367 = vld [vmem:[#allocation10 + $0x30] sm:$0xff]
    %v5368 = vld [vmem:[#allocation10 + $0x38] sm:$0xff]
    %v5369 = vld [vmem:[#allocation10 + $0x40] sm:$0xff]
    %v5370 = vld [vmem:[#allocation10 + $0x48] sm:$0xff]
    %v5371 = vld [vmem:[#allocation10 + $0x50] sm:$0xff]
    %v5372 = vld [vmem:[#allocation10 + $0x58] sm:$0xff]
    %v5373 = vld [vmem:[#allocation10 + $0x60] sm:$0xff]
    %v5374 = vld [vmem:[#allocation10 + $0x68] sm:$0xff]
    %v5375 = vld [vmem:[#allocation10 + $0x70] sm:$0xff]
    %v5376 = vld [vmem:[#allocation10 + $0x78] sm:$0xff]
    %v5377 = vld [vmem:[#allocation10 + $0x80] sm:$0xff]
    %v5378 = vld [vmem:[#allocation10 + $0x88] sm:$0xff]
    %v5379 = vld [vmem:[#allocation10 + $0x90] sm:$0xff]
    %v5380 = vld [vmem:[#allocation10 + $0x98] sm:$0xff]
    %v5381 = vld [vmem:[#allocation10 + $0xa0] sm:$0xff]
    %v5382 = vld [vmem:[#allocation10 + $0xa8] sm:$0xff]
    %v5383 = vld [vmem:[#allocation10 + $0xb0] sm:$0xff]
    %v5384 = vld [vmem:[#allocation10 + $0xb8] sm:$0xff]
    %v5385 = vld [vmem:[#allocation10 + $0xc0] sm:$0xff]
    %v5386 = vld [vmem:[#allocation10 + $0xc8] sm:$0xff]
    %v5387 = vld [vmem:[#allocation10 + $0xd0] sm:$0xff]
    %v5388 = vld [vmem:[#allocation10 + $0xd8] sm:$0xff]
    %v5389 = vld [vmem:[#allocation10 + $0xe0] sm:$0xff]
    %v5390 = vld [vmem:[#allocation10 + $0xe8] sm:$0xff]
    %v5391 = vld [vmem:[#allocation10 + $0xf0] sm:$0xff]
    %v5392 = vld [vmem:[#allocation10 + $0xf8] sm:$0xff]
    %v5393 = vld [vmem:[#allocation10 + $0x100] sm:$0xff]
    %v5394 = vld [vmem:[#allocation10 + $0x108] sm:$0xff]
    %v5395 = vld [vmem:[#allocation10 + $0x110] sm:$0xff]
    %v5396 = vld [vmem:[#allocation10 + $0x118] sm:$0xff]
    %v5397 = vld [vmem:[#allocation10 + $0x120] sm:$0xff]
    %v5398 = vld [vmem:[#allocation10 + $0x128] sm:$0xff]
    %v5399 = vld [vmem:[#allocation10 + $0x130] sm:$0xff]
    %v5400 = vld [vmem:[#allocation10 + $0x138] sm:$0xff]
    %v5401 = vld [vmem:[#allocation10 + $0x140] sm:$0xff]
    %v5402 = vld [vmem:[#allocation10 + $0x148] sm:$0xff]
    %v5403 = vld [vmem:[#allocation10 + $0x150] sm:$0xff]
    %v5404 = vld [vmem:[#allocation10 + $0x158] sm:$0xff]
    %v5405 = vld [vmem:[#allocation10 + $0x160] sm:$0xff]
    %v5406 = vld [vmem:[#allocation10 + $0x168] sm:$0xff]
    %v5407 = vld [vmem:[#allocation10 + $0x170] sm:$0xff]
    %v5408 = vld [vmem:[#allocation10 + $0x178] sm:$0xff]
    %v5409 = vld [vmem:[#allocation10 + $0x180] sm:$0xff]
    %v5410 = vld [vmem:[#allocation10 + $0x188] sm:$0xff]
    %v5411 = vld [vmem:[#allocation10 + $0x190] sm:$0xff]
    %v5412 = vld [vmem:[#allocation10 + $0x198] sm:$0xff]
    %v5413 = vld [vmem:[#allocation10 + $0x1a0] sm:$0xff]
    %v5414 = vld [vmem:[#allocation10 + $0x1a8] sm:$0xff]
    %v5415 = vld [vmem:[#allocation10 + $0x1b0] sm:$0xff]
    %v5416 = vld [vmem:[#allocation10 + $0x1b8] sm:$0xff]
    %v5417 = vld [vmem:[#allocation10 + $0x1c0] sm:$0xff]
    %v5418 = vld [vmem:[#allocation10 + $0x1c8] sm:$0xff]
    %v5419 = vld [vmem:[#allocation10 + $0x1d0] sm:$0xff]
    %v5420 = vld [vmem:[#allocation10 + $0x1d8] sm:$0xff]
    %v5421 = vld [vmem:[#allocation10 + $0x1e0] sm:$0xff]
    %v5422 = vld [vmem:[#allocation10 + $0x1e8] sm:$0xff]
    %v5423 = vld [vmem:[#allocation10 + $0x1f0] sm:$0xff]
    %v5424 = vld [vmem:[#allocation10 + $0x1f8] sm:$0xff]
    %v5425 = vld [vmem:[#allocation10 + $0x200] sm:$0xff]
    %v5426 = vld [vmem:[#allocation10 + $0x208] sm:$0xff]
    %v5427 = vld [vmem:[#allocation10 + $0x210] sm:$0xff]
    %v5428 = vld [vmem:[#allocation10 + $0x218] sm:$0xff]
    %v5429 = vld [vmem:[#allocation10 + $0x220] sm:$0xff]
    %v5430 = vld [vmem:[#allocation10 + $0x228] sm:$0xff]
    %v5431 = vld [vmem:[#allocation10 + $0x230] sm:$0xff]
    %v5432 = vld [vmem:[#allocation10 + $0x238] sm:$0xff]
    %v5433 = vld [vmem:[#allocation10 + $0x240] sm:$0xff]
    %v5434 = vld [vmem:[#allocation10 + $0x248] sm:$0xff]
    %v5435 = vld [vmem:[#allocation10 + $0x250] sm:$0xff]
    %v5436 = vld [vmem:[#allocation10 + $0x258] sm:$0xff]
    %v5437 = vld [vmem:[#allocation10 + $0x260] sm:$0xff]
    %v5438 = vld [vmem:[#allocation10 + $0x268] sm:$0xff]
    %v5439 = vld [vmem:[#allocation10 + $0x270] sm:$0xff]
    %v5440 = vld [vmem:[#allocation10 + $0x278] sm:$0xff]
    %v5441 = vld [vmem:[#allocation10 + $0x280] sm:$0xff]
    %v5442 = vld [vmem:[#allocation10 + $0x288] sm:$0xff]
    %v5443 = vld [vmem:[#allocation10 + $0x290] sm:$0xff]
    %v5444 = vld [vmem:[#allocation10 + $0x298] sm:$0xff]
    %v5445 = vld [vmem:[#allocation10 + $0x2a0] sm:$0xff]
    %v5446 = vld [vmem:[#allocation10 + $0x2a8] sm:$0xff]
    %v5447 = vld [vmem:[#allocation10 + $0x2b0] sm:$0xff]
    %v5448 = vld [vmem:[#allocation10 + $0x2b8] sm:$0xff]
    %v5449 = vld [vmem:[#allocation10 + $0x2c0] sm:$0xff]
    %v5450 = vld [vmem:[#allocation10 + $0x2c8] sm:$0xff]
    %v5451 = vld [vmem:[#allocation10 + $0x2d0] sm:$0xff]
    %v5452 = vld [vmem:[#allocation10 + $0x2d8] sm:$0xff]
    %v5453 = vld [vmem:[#allocation10 + $0x2e0] sm:$0xff]
    %v5454 = vld [vmem:[#allocation10 + $0x2e8] sm:$0xff]
    %v5455 = vld [vmem:[#allocation10 + $0x2f0] sm:$0xff]
    %v5456 = vld [vmem:[#allocation10 + $0x2f8] sm:$0xff]
    %v5457 = vld [vmem:[#allocation10 + $0x300] sm:$0xff]
    %v5458 = vld [vmem:[#allocation10 + $0x308] sm:$0xff]
    %v5459 = vld [vmem:[#allocation10 + $0x310] sm:$0xff]
    %v5460 = vld [vmem:[#allocation10 + $0x318] sm:$0xff]
    %v5461 = vld [vmem:[#allocation10 + $0x320] sm:$0xff]
    %v5462 = vld [vmem:[#allocation10 + $0x328] sm:$0xff]
    %v5463 = vld [vmem:[#allocation10 + $0x330] sm:$0xff]
    %v5464 = vld [vmem:[#allocation10 + $0x338] sm:$0xff]
    %v5465 = vld [vmem:[#allocation10 + $0x340] sm:$0xff]
    %v5466 = vld [vmem:[#allocation10 + $0x348] sm:$0xff]
    %v5467 = vld [vmem:[#allocation10 + $0x350] sm:$0xff]
    %v5468 = vld [vmem:[#allocation10 + $0x358] sm:$0xff]
    %v5469 = vld [vmem:[#allocation10 + $0x360] sm:$0xff]
    %v5470 = vld [vmem:[#allocation10 + $0x368] sm:$0xff]
    %v5471 = vld [vmem:[#allocation10 + $0x370] sm:$0xff]
    %v5472 = vld [vmem:[#allocation10 + $0x378] sm:$0xff]
    %v5473 = vld [vmem:[#allocation10 + $0x380] sm:$0xff]
    %v5474 = vld [vmem:[#allocation10 + $0x388] sm:$0xff]
    %v5475 = vld [vmem:[#allocation10 + $0x390] sm:$0xff]
    %v5476 = vld [vmem:[#allocation10 + $0x398] sm:$0xff]
    %v5477 = vld [vmem:[#allocation10 + $0x3a0] sm:$0xff]
    %v5478 = vld [vmem:[#allocation10 + $0x3a8] sm:$0xff]
    %v5479 = vld [vmem:[#allocation10 + $0x3b0] sm:$0xff]
    %v5480 = vld [vmem:[#allocation10 + $0x3b8] sm:$0xff]
    %v5481 = vld [vmem:[#allocation10 + $0x3c0] sm:$0xff]
    %v5482 = vld [vmem:[#allocation10 + $0x3c8] sm:$0xff]
    %v5483 = vld [vmem:[#allocation10 + $0x3d0] sm:$0xff]
    %v5484 = vld [vmem:[#allocation10 + $0x3d8] sm:$0xff]
    %v5485 = vld [vmem:[#allocation10 + $0x3e0] sm:$0xff]
    %v5486 = vld [vmem:[#allocation10 + $0x3e8] sm:$0xff]
    %v5487 = vld [vmem:[#allocation10 + $0x3f0] sm:$0xff]
    %v5488 = vld [vmem:[#allocation10 + $0x3f8] sm:$0xff]
    %v5489 = vld [vmem:[#allocation10 + $0x400] sm:$0xff]
    %v5490 = vld [vmem:[#allocation10 + $0x408] sm:$0xff]
    %v5491 = vld [vmem:[#allocation10 + $0x410] sm:$0xff]
    %v5492 = vld [vmem:[#allocation10 + $0x418] sm:$0xff]
    %v5493 = vld [vmem:[#allocation10 + $0x420] sm:$0xff]
    %v5494 = vld [vmem:[#allocation10 + $0x428] sm:$0xff]
    %v5495 = vld [vmem:[#allocation10 + $0x430] sm:$0xff]
    %v5496 = vld [vmem:[#allocation10 + $0x438] sm:$0xff]
    %v5497 = vld [vmem:[#allocation10 + $0x440] sm:$0xff]
    %v5498 = vld [vmem:[#allocation10 + $0x448] sm:$0xff]
    %v5499 = vld [vmem:[#allocation10 + $0x450] sm:$0xff]
    %v5500 = vld [vmem:[#allocation10 + $0x458] sm:$0xff]
    %v5501 = vld [vmem:[#allocation10 + $0x460] sm:$0xff]
    %v5502 = vld [vmem:[#allocation10 + $0x468] sm:$0xff]
    %v5503 = vld [vmem:[#allocation10 + $0x470] sm:$0xff]
    %v5504 = vld [vmem:[#allocation10 + $0x478] sm:$0xff]
    %v5649 = vunpack.c.l.b16 %v5361
    %v5650 = vunpack.c.h.b16 %v5361
    %v5651 = vunpack.c.l.b16 %v5362
    %v5652 = vunpack.c.h.b16 %v5362
    %v5653 = vunpack.c.l.b16 %v5363
    %v5654 = vunpack.c.h.b16 %v5363
    %v5655 = vunpack.c.l.b16 %v5364
    %v5656 = vunpack.c.h.b16 %v5364
    %v5657 = vunpack.c.l.b16 %v5365
    %v5658 = vunpack.c.h.b16 %v5365
    %v5659 = vunpack.c.l.b16 %v5366
    %v5660 = vunpack.c.h.b16 %v5366
    %v5661 = vunpack.c.l.b16 %v5367
    %v5662 = vunpack.c.h.b16 %v5367
    %v5663 = vunpack.c.l.b16 %v5368
    %v5664 = vunpack.c.h.b16 %v5368
    %v5665 = vunpack.c.l.b16 %v5369
    %v5666 = vunpack.c.h.b16 %v5369
    %v5667 = vunpack.c.l.b16 %v5370
    %v5668 = vunpack.c.h.b16 %v5370
    %v5669 = vunpack.c.l.b16 %v5371
    %v5670 = vunpack.c.h.b16 %v5371
    %v5671 = vunpack.c.l.b16 %v5372
    %v5672 = vunpack.c.h.b16 %v5372
    %v5673 = vunpack.c.l.b16 %v5373
    %v5674 = vunpack.c.h.b16 %v5373
    %v5675 = vunpack.c.l.b16 %v5374
    %v5676 = vunpack.c.h.b16 %v5374
    %v5677 = vunpack.c.l.b16 %v5375
    %v5678 = vunpack.c.h.b16 %v5375
    %v5679 = vunpack.c.l.b16 %v5376
    %v5680 = vunpack.c.h.b16 %v5376
    %v5681 = vunpack.c.l.b16 %v5377
    %v5682 = vunpack.c.h.b16 %v5377
    %v5683 = vunpack.c.l.b16 %v5378
    %v5684 = vunpack.c.h.b16 %v5378
    %v5685 = vunpack.c.l.b16 %v5379
    %v5686 = vunpack.c.h.b16 %v5379
    %v5687 = vunpack.c.l.b16 %v5380
    %v5688 = vunpack.c.h.b16 %v5380
    %v5689 = vunpack.c.l.b16 %v5381
    %v5690 = vunpack.c.h.b16 %v5381
    %v5691 = vunpack.c.l.b16 %v5382
    %v5692 = vunpack.c.h.b16 %v5382
    %v5693 = vunpack.c.l.b16 %v5383
    %v5694 = vunpack.c.h.b16 %v5383
    %v5695 = vunpack.c.l.b16 %v5384
    %v5696 = vunpack.c.h.b16 %v5384
    %v5697 = vunpack.c.l.b16 %v5385
    %v5698 = vunpack.c.h.b16 %v5385
    %v5699 = vunpack.c.l.b16 %v5386
    %v5700 = vunpack.c.h.b16 %v5386
    %v5701 = vunpack.c.l.b16 %v5387
    %v5702 = vunpack.c.h.b16 %v5387
    %v5703 = vunpack.c.l.b16 %v5388
    %v5704 = vunpack.c.h.b16 %v5388
    %v5705 = vunpack.c.l.b16 %v5389
    %v5706 = vunpack.c.h.b16 %v5389
    %v5707 = vunpack.c.l.b16 %v5390
    %v5708 = vunpack.c.h.b16 %v5390
    %v5709 = vunpack.c.l.b16 %v5391
    %v5710 = vunpack.c.h.b16 %v5391
    %v5711 = vunpack.c.l.b16 %v5392
    %v5712 = vunpack.c.h.b16 %v5392
    %v5713 = vunpack.c.l.b16 %v5393
    %v5714 = vunpack.c.h.b16 %v5393
    %v5715 = vunpack.c.l.b16 %v5394
    %v5716 = vunpack.c.h.b16 %v5394
    %v5717 = vunpack.c.l.b16 %v5395
    %v5718 = vunpack.c.h.b16 %v5395
    %v5719 = vunpack.c.l.b16 %v5396
    %v5720 = vunpack.c.h.b16 %v5396
    %v5721 = vunpack.c.l.b16 %v5397
    %v5722 = vunpack.c.h.b16 %v5397
    %v5723 = vunpack.c.l.b16 %v5398
    %v5724 = vunpack.c.h.b16 %v5398
    %v5725 = vunpack.c.l.b16 %v5399
    %v5726 = vunpack.c.h.b16 %v5399
    %v5727 = vunpack.c.l.b16 %v5400
    %v5728 = vunpack.c.h.b16 %v5400
    %v5729 = vunpack.c.l.b16 %v5401
    %v5730 = vunpack.c.h.b16 %v5401
    %v5731 = vunpack.c.l.b16 %v5402
    %v5732 = vunpack.c.h.b16 %v5402
    %v5733 = vunpack.c.l.b16 %v5403
    %v5734 = vunpack.c.h.b16 %v5403
    %v5735 = vunpack.c.l.b16 %v5404
    %v5736 = vunpack.c.h.b16 %v5404
    %v5737 = vunpack.c.l.b16 %v5405
    %v5738 = vunpack.c.h.b16 %v5405
    %v5739 = vunpack.c.l.b16 %v5406
    %v5740 = vunpack.c.h.b16 %v5406
    %v5741 = vunpack.c.l.b16 %v5407
    %v5742 = vunpack.c.h.b16 %v5407
    %v5743 = vunpack.c.l.b16 %v5408
    %v5744 = vunpack.c.h.b16 %v5408
    %v5745 = vunpack.c.l.b16 %v5409
    %v5746 = vunpack.c.h.b16 %v5409
    %v5747 = vunpack.c.l.b16 %v5410
    %v5748 = vunpack.c.h.b16 %v5410
    %v5749 = vunpack.c.l.b16 %v5411
    %v5750 = vunpack.c.h.b16 %v5411
    %v5751 = vunpack.c.l.b16 %v5412
    %v5752 = vunpack.c.h.b16 %v5412
    %v5753 = vunpack.c.l.b16 %v5413
    %v5754 = vunpack.c.h.b16 %v5413
    %v5755 = vunpack.c.l.b16 %v5414
    %v5756 = vunpack.c.h.b16 %v5414
    %v5757 = vunpack.c.l.b16 %v5415
    %v5758 = vunpack.c.h.b16 %v5415
    %v5759 = vunpack.c.l.b16 %v5416
    %v5760 = vunpack.c.h.b16 %v5416
    %v5761 = vunpack.c.l.b16 %v5417
    %v5762 = vunpack.c.h.b16 %v5417
    %v5763 = vunpack.c.l.b16 %v5418
    %v5764 = vunpack.c.h.b16 %v5418
    %v5765 = vunpack.c.l.b16 %v5419
    %v5766 = vunpack.c.h.b16 %v5419
    %v5767 = vunpack.c.l.b16 %v5420
    %v5768 = vunpack.c.h.b16 %v5420
    %v5769 = vunpack.c.l.b16 %v5421
    %v5770 = vunpack.c.h.b16 %v5421
    %v5771 = vunpack.c.l.b16 %v5422
    %v5772 = vunpack.c.h.b16 %v5422
    %v5773 = vunpack.c.l.b16 %v5423
    %v5774 = vunpack.c.h.b16 %v5423
    %v5775 = vunpack.c.l.b16 %v5424
    %v5776 = vunpack.c.h.b16 %v5424
    %v5777 = vunpack.c.l.b16 %v5425
    %v5778 = vunpack.c.h.b16 %v5425
    %v5779 = vunpack.c.l.b16 %v5426
    %v5780 = vunpack.c.h.b16 %v5426
    %v5781 = vunpack.c.l.b16 %v5427
    %v5782 = vunpack.c.h.b16 %v5427
    %v5783 = vunpack.c.l.b16 %v5428
    %v5784 = vunpack.c.h.b16 %v5428
    %v5785 = vunpack.c.l.b16 %v5429
    %v5786 = vunpack.c.h.b16 %v5429
    %v5787 = vunpack.c.l.b16 %v5430
    %v5788 = vunpack.c.h.b16 %v5430
    %v5789 = vunpack.c.l.b16 %v5431
    %v5790 = vunpack.c.h.b16 %v5431
    %v5791 = vunpack.c.l.b16 %v5432
    %v5792 = vunpack.c.h.b16 %v5432
    %v5793 = vunpack.c.l.b16 %v5433
    %v5794 = vunpack.c.h.b16 %v5433
    %v5795 = vunpack.c.l.b16 %v5434
    %v5796 = vunpack.c.h.b16 %v5434
    %v5797 = vunpack.c.l.b16 %v5435
    %v5798 = vunpack.c.h.b16 %v5435
    %v5799 = vunpack.c.l.b16 %v5436
    %v5800 = vunpack.c.h.b16 %v5436
    %v5801 = vunpack.c.l.b16 %v5437
    %v5802 = vunpack.c.h.b16 %v5437
    %v5803 = vunpack.c.l.b16 %v5438
    %v5804 = vunpack.c.h.b16 %v5438
    %v5805 = vunpack.c.l.b16 %v5439
    %v5806 = vunpack.c.h.b16 %v5439
    %v5807 = vunpack.c.l.b16 %v5440
    %v5808 = vunpack.c.h.b16 %v5440
    %v5809 = vunpack.c.l.b16 %v5441
    %v5810 = vunpack.c.h.b16 %v5441
    %v5811 = vunpack.c.l.b16 %v5442
    %v5812 = vunpack.c.h.b16 %v5442
    %v5813 = vunpack.c.l.b16 %v5443
    %v5814 = vunpack.c.h.b16 %v5443
    %v5815 = vunpack.c.l.b16 %v5444
    %v5816 = vunpack.c.h.b16 %v5444
    %v5817 = vunpack.c.l.b16 %v5445
    %v5818 = vunpack.c.h.b16 %v5445
    %v5819 = vunpack.c.l.b16 %v5446
    %v5820 = vunpack.c.h.b16 %v5446
    %v5821 = vunpack.c.l.b16 %v5447
    %v5822 = vunpack.c.h.b16 %v5447
    %v5823 = vunpack.c.l.b16 %v5448
    %v5824 = vunpack.c.h.b16 %v5448
    %v5825 = vunpack.c.l.b16 %v5449
    %v5826 = vunpack.c.h.b16 %v5449
    %v5827 = vunpack.c.l.b16 %v5450
    %v5828 = vunpack.c.h.b16 %v5450
    %v5829 = vunpack.c.l.b16 %v5451
    %v5830 = vunpack.c.h.b16 %v5451
    %v5831 = vunpack.c.l.b16 %v5452
    %v5832 = vunpack.c.h.b16 %v5452
    %v5833 = vunpack.c.l.b16 %v5453
    %v5834 = vunpack.c.h.b16 %v5453
    %v5835 = vunpack.c.l.b16 %v5454
    %v5836 = vunpack.c.h.b16 %v5454
    %v5837 = vunpack.c.l.b16 %v5455
    %v5838 = vunpack.c.h.b16 %v5455
    %v5839 = vunpack.c.l.b16 %v5456
    %v5840 = vunpack.c.h.b16 %v5456
    %v5841 = vunpack.c.l.b16 %v5457
    %v5842 = vunpack.c.h.b16 %v5457
    %v5843 = vunpack.c.l.b16 %v5458
    %v5844 = vunpack.c.h.b16 %v5458
    %v5845 = vunpack.c.l.b16 %v5459
    %v5846 = vunpack.c.h.b16 %v5459
    %v5847 = vunpack.c.l.b16 %v5460
    %v5848 = vunpack.c.h.b16 %v5460
    %v5849 = vunpack.c.l.b16 %v5461
    %v5850 = vunpack.c.h.b16 %v5461
    %v5851 = vunpack.c.l.b16 %v5462
    %v5852 = vunpack.c.h.b16 %v5462
    %v5853 = vunpack.c.l.b16 %v5463
    %v5854 = vunpack.c.h.b16 %v5463
    %v5855 = vunpack.c.l.b16 %v5464
    %v5856 = vunpack.c.h.b16 %v5464
    %v5857 = vunpack.c.l.b16 %v5465
    %v5858 = vunpack.c.h.b16 %v5465
    %v5859 = vunpack.c.l.b16 %v5466
    %v5860 = vunpack.c.h.b16 %v5466
    %v5861 = vunpack.c.l.b16 %v5467
    %v5862 = vunpack.c.h.b16 %v5467
    %v5863 = vunpack.c.l.b16 %v5468
    %v5864 = vunpack.c.h.b16 %v5468
    %v5865 = vunpack.c.l.b16 %v5469
    %v5866 = vunpack.c.h.b16 %v5469
    %v5867 = vunpack.c.l.b16 %v5470
    %v5868 = vunpack.c.h.b16 %v5470
    %v5869 = vunpack.c.l.b16 %v5471
    %v5870 = vunpack.c.h.b16 %v5471
    %v5871 = vunpack.c.l.b16 %v5472
    %v5872 = vunpack.c.h.b16 %v5472
    %v5873 = vunpack.c.l.b16 %v5473
    %v5874 = vunpack.c.h.b16 %v5473
    %v5875 = vunpack.c.l.b16 %v5474
    %v5876 = vunpack.c.h.b16 %v5474
    %v5877 = vunpack.c.l.b16 %v5475
    %v5878 = vunpack.c.h.b16 %v5475
    %v5879 = vunpack.c.l.b16 %v5476
    %v5880 = vunpack.c.h.b16 %v5476
    %v5881 = vunpack.c.l.b16 %v5477
    %v5882 = vunpack.c.h.b16 %v5477
    %v5883 = vunpack.c.l.b16 %v5478
    %v5884 = vunpack.c.h.b16 %v5478
    %v5885 = vunpack.c.l.b16 %v5479
    %v5886 = vunpack.c.h.b16 %v5479
    %v5887 = vunpack.c.l.b16 %v5480
    %v5888 = vunpack.c.h.b16 %v5480
    %v5889 = vunpack.c.l.b16 %v5481
    %v5890 = vunpack.c.h.b16 %v5481
    %v5891 = vunpack.c.l.b16 %v5482
    %v5892 = vunpack.c.h.b16 %v5482
    %v5893 = vunpack.c.l.b16 %v5483
    %v5894 = vunpack.c.h.b16 %v5483
    %v5895 = vunpack.c.l.b16 %v5484
    %v5896 = vunpack.c.h.b16 %v5484
    %v5897 = vunpack.c.l.b16 %v5485
    %v5898 = vunpack.c.h.b16 %v5485
    %v5899 = vunpack.c.l.b16 %v5486
    %v5900 = vunpack.c.h.b16 %v5486
    %v5901 = vunpack.c.l.b16 %v5487
    %v5902 = vunpack.c.h.b16 %v5487
    %v5903 = vunpack.c.l.b16 %v5488
    %v5904 = vunpack.c.h.b16 %v5488
    %v5905 = vunpack.c.l.b16 %v5489
    %v5906 = vunpack.c.h.b16 %v5489
    %v5907 = vunpack.c.l.b16 %v5490
    %v5908 = vunpack.c.h.b16 %v5490
    %v5909 = vunpack.c.l.b16 %v5491
    %v5910 = vunpack.c.h.b16 %v5491
    %v5911 = vunpack.c.l.b16 %v5492
    %v5912 = vunpack.c.h.b16 %v5492
    %v5913 = vunpack.c.l.b16 %v5493
    %v5914 = vunpack.c.h.b16 %v5493
    %v5915 = vunpack.c.l.b16 %v5494
    %v5916 = vunpack.c.h.b16 %v5494
    %v5917 = vunpack.c.l.b16 %v5495
    %v5918 = vunpack.c.h.b16 %v5495
    %v5919 = vunpack.c.l.b16 %v5496
    %v5920 = vunpack.c.h.b16 %v5496
    %v5921 = vunpack.c.l.b16 %v5497
    %v5922 = vunpack.c.h.b16 %v5497
    %v5923 = vunpack.c.l.b16 %v5498
    %v5924 = vunpack.c.h.b16 %v5498
    %v5925 = vunpack.c.l.b16 %v5499
    %v5926 = vunpack.c.h.b16 %v5499
    %v5927 = vunpack.c.l.b16 %v5500
    %v5928 = vunpack.c.h.b16 %v5500
    %v5929 = vunpack.c.l.b16 %v5501
    %v5930 = vunpack.c.h.b16 %v5501
    %v5931 = vunpack.c.l.b16 %v5502
    %v5932 = vunpack.c.h.b16 %v5502
    %v5933 = vunpack.c.l.b16 %v5503
    %v5934 = vunpack.c.h.b16 %v5503
    %v5935 = vunpack.c.l.b16 %v5504
    %v5936 = vunpack.c.h.b16 %v5504
    %v5937 = vpack.c.b16 %v5655, %v5649
    %v5938 = vpack.c.b16 %v5656, %v5650
    %v5939 = vpack.c.b16 %v5657, %v5651
    %v5940 = vpack.c.b16 %v5658, %v5652
    %v5941 = vpack.c.b16 %v5659, %v5653
    %v5942 = vpack.c.b16 %v5660, %v5654
    %v5943 = vpack.c.b16 %v5667, %v5661
    %v5944 = vpack.c.b16 %v5668, %v5662
    %v5945 = vpack.c.b16 %v5669, %v5663
    %v5946 = vpack.c.b16 %v5670, %v5664
    %v5947 = vpack.c.b16 %v5671, %v5665
    %v5948 = vpack.c.b16 %v5672, %v5666
    %v5949 = vpack.c.b16 %v5679, %v5673
    %v5950 = vpack.c.b16 %v5680, %v5674
    %v5951 = vpack.c.b16 %v5681, %v5675
    %v5952 = vpack.c.b16 %v5682, %v5676
    %v5953 = vpack.c.b16 %v5683, %v5677
    %v5954 = vpack.c.b16 %v5684, %v5678
    %v5955 = vpack.c.b16 %v5691, %v5685
    %v5956 = vpack.c.b16 %v5692, %v5686
    %v5957 = vpack.c.b16 %v5693, %v5687
    %v5958 = vpack.c.b16 %v5694, %v5688
    %v5959 = vpack.c.b16 %v5695, %v5689
    %v5960 = vpack.c.b16 %v5696, %v5690
    %v5961 = vpack.c.b16 %v5703, %v5697
    %v5962 = vpack.c.b16 %v5704, %v5698
    %v5963 = vpack.c.b16 %v5705, %v5699
    %v5964 = vpack.c.b16 %v5706, %v5700
    %v5965 = vpack.c.b16 %v5707, %v5701
    %v5966 = vpack.c.b16 %v5708, %v5702
    %v5967 = vpack.c.b16 %v5715, %v5709
    %v5968 = vpack.c.b16 %v5716, %v5710
    %v5969 = vpack.c.b16 %v5717, %v5711
    %v5970 = vpack.c.b16 %v5718, %v5712
    %v5971 = vpack.c.b16 %v5719, %v5713
    %v5972 = vpack.c.b16 %v5720, %v5714
    %v5973 = vpack.c.b16 %v5727, %v5721
    %v5974 = vpack.c.b16 %v5728, %v5722
    %v5975 = vpack.c.b16 %v5729, %v5723
    %v5976 = vpack.c.b16 %v5730, %v5724
    %v5977 = vpack.c.b16 %v5731, %v5725
    %v5978 = vpack.c.b16 %v5732, %v5726
    %v5979 = vpack.c.b16 %v5739, %v5733
    %v5980 = vpack.c.b16 %v5740, %v5734
    %v5981 = vpack.c.b16 %v5741, %v5735
    %v5982 = vpack.c.b16 %v5742, %v5736
    %v5983 = vpack.c.b16 %v5743, %v5737
    %v5984 = vpack.c.b16 %v5744, %v5738
    %v5985 = vpack.c.b16 %v5751, %v5745
    %v5986 = vpack.c.b16 %v5752, %v5746
    %v5987 = vpack.c.b16 %v5753, %v5747
    %v5988 = vpack.c.b16 %v5754, %v5748
    %v5989 = vpack.c.b16 %v5755, %v5749
    %v5990 = vpack.c.b16 %v5756, %v5750
    %v5991 = vpack.c.b16 %v5763, %v5757
    %v5992 = vpack.c.b16 %v5764, %v5758
    %v5993 = vpack.c.b16 %v5765, %v5759
    %v5994 = vpack.c.b16 %v5766, %v5760
    %v5995 = vpack.c.b16 %v5767, %v5761
    %v5996 = vpack.c.b16 %v5768, %v5762
    %v5997 = vpack.c.b16 %v5775, %v5769
    %v5998 = vpack.c.b16 %v5776, %v5770
    %v5999 = vpack.c.b16 %v5777, %v5771
    %v6000 = vpack.c.b16 %v5778, %v5772
    %v6001 = vpack.c.b16 %v5779, %v5773
    %v6002 = vpack.c.b16 %v5780, %v5774
    %v6003 = vpack.c.b16 %v5787, %v5781
    %v6004 = vpack.c.b16 %v5788, %v5782
    %v6005 = vpack.c.b16 %v5789, %v5783
    %v6006 = vpack.c.b16 %v5790, %v5784
    %v6007 = vpack.c.b16 %v5791, %v5785
    %v6008 = vpack.c.b16 %v5792, %v5786
    %v6009 = vpack.c.b16 %v5799, %v5793
    %v6010 = vpack.c.b16 %v5800, %v5794
    %v6011 = vpack.c.b16 %v5801, %v5795
    %v6012 = vpack.c.b16 %v5802, %v5796
    %v6013 = vpack.c.b16 %v5803, %v5797
    %v6014 = vpack.c.b16 %v5804, %v5798
    %v6015 = vpack.c.b16 %v5811, %v5805
    %v6016 = vpack.c.b16 %v5812, %v5806
    %v6017 = vpack.c.b16 %v5813, %v5807
    %v6018 = vpack.c.b16 %v5814, %v5808
    %v6019 = vpack.c.b16 %v5815, %v5809
    %v6020 = vpack.c.b16 %v5816, %v5810
    %v6021 = vpack.c.b16 %v5823, %v5817
    %v6022 = vpack.c.b16 %v5824, %v5818
    %v6023 = vpack.c.b16 %v5825, %v5819
    %v6024 = vpack.c.b16 %v5826, %v5820
    %v6025 = vpack.c.b16 %v5827, %v5821
    %v6026 = vpack.c.b16 %v5828, %v5822
    %v6027 = vpack.c.b16 %v5835, %v5829
    %v6028 = vpack.c.b16 %v5836, %v5830
    %v6029 = vpack.c.b16 %v5837, %v5831
    %v6030 = vpack.c.b16 %v5838, %v5832
    %v6031 = vpack.c.b16 %v5839, %v5833
    %v6032 = vpack.c.b16 %v5840, %v5834
    %v6033 = vpack.c.b16 %v5847, %v5841
    %v6034 = vpack.c.b16 %v5848, %v5842
    %v6035 = vpack.c.b16 %v5849, %v5843
    %v6036 = vpack.c.b16 %v5850, %v5844
    %v6037 = vpack.c.b16 %v5851, %v5845
    %v6038 = vpack.c.b16 %v5852, %v5846
    %v6039 = vpack.c.b16 %v5859, %v5853
    %v6040 = vpack.c.b16 %v5860, %v5854
    %v6041 = vpack.c.b16 %v5861, %v5855
    %v6042 = vpack.c.b16 %v5862, %v5856
    %v6043 = vpack.c.b16 %v5863, %v5857
    %v6044 = vpack.c.b16 %v5864, %v5858
    %v6045 = vpack.c.b16 %v5871, %v5865
    %v6046 = vpack.c.b16 %v5872, %v5866
    %v6047 = vpack.c.b16 %v5873, %v5867
    %v6048 = vpack.c.b16 %v5874, %v5868
    %v6049 = vpack.c.b16 %v5875, %v5869
    %v6050 = vpack.c.b16 %v5876, %v5870
    %v6051 = vpack.c.b16 %v5883, %v5877
    %v6052 = vpack.c.b16 %v5884, %v5878
    %v6053 = vpack.c.b16 %v5885, %v5879
    %v6054 = vpack.c.b16 %v5886, %v5880
    %v6055 = vpack.c.b16 %v5887, %v5881
    %v6056 = vpack.c.b16 %v5888, %v5882
    %v6057 = vpack.c.b16 %v5895, %v5889
    %v6058 = vpack.c.b16 %v5896, %v5890
    %v6059 = vpack.c.b16 %v5897, %v5891
    %v6060 = vpack.c.b16 %v5898, %v5892
    %v6061 = vpack.c.b16 %v5899, %v5893
    %v6062 = vpack.c.b16 %v5900, %v5894
    %v6063 = vpack.c.b16 %v5907, %v5901
    %v6064 = vpack.c.b16 %v5908, %v5902
    %v6065 = vpack.c.b16 %v5909, %v5903
    %v6066 = vpack.c.b16 %v5910, %v5904
    %v6067 = vpack.c.b16 %v5911, %v5905
    %v6068 = vpack.c.b16 %v5912, %v5906
    %v6069 = vpack.c.b16 %v5919, %v5913
    %v6070 = vpack.c.b16 %v5920, %v5914
    %v6071 = vpack.c.b16 %v5921, %v5915
    %v6072 = vpack.c.b16 %v5922, %v5916
    %v6073 = vpack.c.b16 %v5923, %v5917
    %v6074 = vpack.c.b16 %v5924, %v5918
    %v6075 = vpack.c.b16 %v5931, %v5925
    %v6076 = vpack.c.b16 %v5932, %v5926
    %v6077 = vpack.c.b16 %v5933, %v5927
    %v6078 = vpack.c.b16 %v5934, %v5928
    %v6079 = vpack.c.b16 %v5935, %v5929
    %v6080 = vpack.c.b16 %v5936, %v5930
    %6225 = vmatpush.bf16.msra.mxu0 %v5979
    %6226 = vmatpush.bf16.msra.mxu0 %v5973
    %6227 = vmatpush.bf16.msra.mxu0 %v5967
    %6228 = vmatpush.bf16.msra.mxu0 %v5961
    %6229 = vmatpush.bf16.msra.mxu0 %v5955
    %6230 = vmatpush.bf16.msra.mxu0 %v5949
    %6231 = vmatpush.bf16.msra.mxu0 %v5943
    %6232 = vmatpush.bf16.msra.mxu0 %v5937
    %6233 = vmatmul.bf16.gmra.mxu0 %v5292
    %v6234 = vpop.f32.mrf.mxu0
    %v6235 = vadd.f32 0.0, %v6234
    %v6236 = vpop.f32.mrf.mxu0
    %v6237 = vadd.f32 0.0, %v6236
    %6238 = vmatmul.bf16.gmra.mxu0 %v5295
    %v6239 = vpop.f32.mrf.mxu0
    %v6240 = vadd.f32 0.0, %v6239
    %v6241 = vpop.f32.mrf.mxu0
    %v6242 = vadd.f32 0.0, %v6241
    %6243 = vmatmul.bf16.gmra.mxu0 %v5298
    %v6244 = vpop.f32.mrf.mxu0
    %v6245 = vadd.f32 0.0, %v6244
    %v6246 = vpop.f32.mrf.mxu0
    %v6247 = vadd.f32 0.0, %v6246
    %6248 = vmatmul.bf16.gmra.mxu0 %v5301
    %v6249 = vpop.f32.mrf.mxu0
    %v6250 = vadd.f32 0.0, %v6249
    %v6251 = vpop.f32.mrf.mxu0
    %v6252 = vadd.f32 0.0, %v6251
    %6253 = vmatmul.bf16.gmra.mxu0 %v5304
    %v6254 = vpop.f32.mrf.mxu0
    %v6255 = vadd.f32 0.0, %v6254
    %v6256 = vpop.f32.mrf.mxu0
    %v6257 = vadd.f32 0.0, %v6256
    %6258 = vmatmul.bf16.gmra.mxu0 %v5307
    %v6259 = vpop.f32.mrf.mxu0
    %v6260 = vadd.f32 0.0, %v6259
    %v6261 = vpop.f32.mrf.mxu0
    %v6262 = vadd.f32 0.0, %v6261
    %6263 = vmatmul.bf16.gmra.mxu0 %v5310
    %v6264 = vpop.f32.mrf.mxu0
    %v6265 = vadd.f32 0.0, %v6264
    %v6266 = vpop.f32.mrf.mxu0
    %v6267 = vadd.f32 0.0, %v6266
    %6268 = vmatmul.bf16.gmra.mxu0 %v5313
    %v6269 = vpop.f32.mrf.mxu0
    %v6270 = vadd.f32 0.0, %v6269
    %v6271 = vpop.f32.mrf.mxu0
    %v6272 = vadd.f32 0.0, %v6271
    %6273 = vmatmul.bf16.gmra.mxu0 %v5316
    %v6274 = vpop.f32.mrf.mxu0
    %v6275 = vadd.f32 0.0, %v6274
    %v6276 = vpop.f32.mrf.mxu0
    %v6277 = vadd.f32 0.0, %v6276
    %6278 = vmatmul.bf16.gmra.mxu0 %v5319
    %v6279 = vpop.f32.mrf.mxu0
    %v6280 = vadd.f32 0.0, %v6279
    %v6281 = vpop.f32.mrf.mxu0
    %v6282 = vadd.f32 0.0, %v6281
    %6283 = vmatmul.bf16.gmra.mxu0 %v5322
    %v6284 = vpop.f32.mrf.mxu0
    %v6285 = vadd.f32 0.0, %v6284
    %v6286 = vpop.f32.mrf.mxu0
    %v6287 = vadd.f32 0.0, %v6286
    %6288 = vmatmul.bf16.gmra.mxu0 %v5325
    %v6289 = vpop.f32.mrf.mxu0
    %v6290 = vadd.f32 0.0, %v6289
    %v6291 = vpop.f32.mrf.mxu0
    %v6292 = vadd.f32 0.0, %v6291
    %6293 = vmatmul.bf16.gmra.mxu0 %v5328
    %v6294 = vpop.f32.mrf.mxu0
    %v6295 = vadd.f32 0.0, %v6294
    %v6296 = vpop.f32.mrf.mxu0
    %v6297 = vadd.f32 0.0, %v6296
    %6298 = vmatmul.bf16.gmra.mxu0 %v5331
    %v6299 = vpop.f32.mrf.mxu0
    %v6300 = vadd.f32 0.0, %v6299
    %v6301 = vpop.f32.mrf.mxu0
    %v6302 = vadd.f32 0.0, %v6301
    %6303 = vmatmul.bf16.gmra.mxu0 %v5334
    %v6304 = vpop.f32.mrf.mxu0
    %v6305 = vadd.f32 0.0, %v6304
    %v6306 = vpop.f32.mrf.mxu0
    %v6307 = vadd.f32 0.0, %v6306
    %6308 = vmatmul.bf16.gmra.mxu0 %v5337
    %v6309 = vpop.f32.mrf.mxu0
    %v6310 = vadd.f32 0.0, %v6309
    %v6311 = vpop.f32.mrf.mxu0
    %v6312 = vadd.f32 0.0, %v6311
    %6313 = vmatmul.bf16.gmra.mxu0 %v5340
    %v6314 = vpop.f32.mrf.mxu0
    %v6315 = vadd.f32 0.0, %v6314
    %v6316 = vpop.f32.mrf.mxu0
    %v6317 = vadd.f32 0.0, %v6316
    %6318 = vmatmul.bf16.gmra.mxu0 %v5343
    %v6319 = vpop.f32.mrf.mxu0
    %v6320 = vadd.f32 0.0, %v6319
    %v6321 = vpop.f32.mrf.mxu0
    %v6322 = vadd.f32 0.0, %v6321
    %6323 = vmatmul.bf16.gmra.mxu0 %v5346
    %v6324 = vpop.f32.mrf.mxu0
    %v6325 = vadd.f32 0.0, %v6324
    %v6326 = vpop.f32.mrf.mxu0
    %v6327 = vadd.f32 0.0, %v6326
    %6328 = vmatmul.bf16.gmra.mxu0 %v5349
    %v6329 = vpop.f32.mrf.mxu0
    %v6330 = vadd.f32 0.0, %v6329
    %v6331 = vpop.f32.mrf.mxu0
    %v6332 = vadd.f32 0.0, %v6331
    %6333 = vmatmul.bf16.gmra.mxu0 %v5352
    %v6334 = vpop.f32.mrf.mxu0
    %v6335 = vadd.f32 0.0, %v6334
    %v6336 = vpop.f32.mrf.mxu0
    %v6337 = vadd.f32 0.0, %v6336
    %6338 = vmatmul.bf16.gmra.mxu0 %v5355
    %v6339 = vpop.f32.mrf.mxu0
    %v6340 = vadd.f32 0.0, %v6339
    %v6341 = vpop.f32.mrf.mxu0
    %v6342 = vadd.f32 0.0, %v6341
    %6343 = vmatmul.bf16.gmra.mxu0 %v5358
    %v6344 = vpop.f32.mrf.mxu0
    %v6345 = vadd.f32 0.0, %v6344
    %v6346 = vpop.f32.mrf.mxu0
    %6347 = vdwg.mxu0
    %6348 = vmatpush.bf16.msra.mxu0 %v6027
    %6349 = vmatpush.bf16.msra.mxu0 %v6021
    %6350 = vmatpush.bf16.msra.mxu0 %v6015
    %6351 = vmatpush.bf16.msra.mxu0 %v6009
    %6352 = vmatpush.bf16.msra.mxu0 %v6003
    %6353 = vmatpush.bf16.msra.mxu0 %v5997
    %6354 = vmatpush.bf16.msra.mxu0 %v5991
    %6355 = vmatpush.bf16.msra.mxu0 %v5985
    %6356 = vmatmul.bf16.gmra.mxu0 %v5293
    %v6357 = vpop.f32.mrf.mxu0
    %v6358 = vadd.f32 %v6235, %v6357
    %v6359 = vpop.f32.mrf.mxu0
    %v6360 = vadd.f32 %v6237, %v6359
    %6361 = vmatmul.bf16.gmra.mxu0 %v5296
    %v6362 = vpop.f32.mrf.mxu0
    %v6363 = vadd.f32 %v6240, %v6362
    %v6364 = vpop.f32.mrf.mxu0
    %v6365 = vadd.f32 %v6242, %v6364
    %6366 = vmatmul.bf16.gmra.mxu0 %v5299
    %v6367 = vpop.f32.mrf.mxu0
    %v6368 = vadd.f32 %v6245, %v6367
    %v6369 = vpop.f32.mrf.mxu0
    %v6370 = vadd.f32 %v6247, %v6369
    %6371 = vmatmul.bf16.gmra.mxu0 %v5302
    %v6372 = vpop.f32.mrf.mxu0
    %v6373 = vadd.f32 %v6250, %v6372
    %v6374 = vpop.f32.mrf.mxu0
    %v6375 = vadd.f32 %v6252, %v6374
    %6376 = vmatmul.bf16.gmra.mxu0 %v5305
    %v6377 = vpop.f32.mrf.mxu0
    %v6378 = vadd.f32 %v6255, %v6377
    %v6379 = vpop.f32.mrf.mxu0
    %v6380 = vadd.f32 %v6257, %v6379
    %6381 = vmatmul.bf16.gmra.mxu0 %v5308
    %v6382 = vpop.f32.mrf.mxu0
    %v6383 = vadd.f32 %v6260, %v6382
    %v6384 = vpop.f32.mrf.mxu0
    %v6385 = vadd.f32 %v6262, %v6384
    %6386 = vmatmul.bf16.gmra.mxu0 %v5311
    %v6387 = vpop.f32.mrf.mxu0
    %v6388 = vadd.f32 %v6265, %v6387
    %v6389 = vpop.f32.mrf.mxu0
    %v6390 = vadd.f32 %v6267, %v6389
    %6391 = vmatmul.bf16.gmra.mxu0 %v5314
    %v6392 = vpop.f32.mrf.mxu0
    %v6393 = vadd.f32 %v6270, %v6392
    %v6394 = vpop.f32.mrf.mxu0
    %v6395 = vadd.f32 %v6272, %v6394
    %6396 = vmatmul.bf16.gmra.mxu0 %v5317
    %v6397 = vpop.f32.mrf.mxu0
    %v6398 = vadd.f32 %v6275, %v6397
    %v6399 = vpop.f32.mrf.mxu0
    %v6400 = vadd.f32 %v6277, %v6399
    %6401 = vmatmul.bf16.gmra.mxu0 %v5320
    %v6402 = vpop.f32.mrf.mxu0
    %v6403 = vadd.f32 %v6280, %v6402
    %v6404 = vpop.f32.mrf.mxu0
    %v6405 = vadd.f32 %v6282, %v6404
    %6406 = vmatmul.bf16.gmra.mxu0 %v5323
    %v6407 = vpop.f32.mrf.mxu0
    %v6408 = vadd.f32 %v6285, %v6407
    %v6409 = vpop.f32.mrf.mxu0
    %v6410 = vadd.f32 %v6287, %v6409
    %6411 = vmatmul.bf16.gmra.mxu0 %v5326
    %v6412 = vpop.f32.mrf.mxu0
    %v6413 = vadd.f32 %v6290, %v6412
    %v6414 = vpop.f32.mrf.mxu0
    %v6415 = vadd.f32 %v6292, %v6414
    %6416 = vmatmul.bf16.gmra.mxu0 %v5329
    %v6417 = vpop.f32.mrf.mxu0
    %v6418 = vadd.f32 %v6295, %v6417
    %v6419 = vpop.f32.mrf.mxu0
    %v6420 = vadd.f32 %v6297, %v6419
    %6421 = vmatmul.bf16.gmra.mxu0 %v5332
    %v6422 = vpop.f32.mrf.mxu0
    %v6423 = vadd.f32 %v6300, %v6422
    %v6424 = vpop.f32.mrf.mxu0
    %v6425 = vadd.f32 %v6302, %v6424
    %6426 = vmatmul.bf16.gmra.mxu0 %v5335
    %v6427 = vpop.f32.mrf.mxu0
    %v6428 = vadd.f32 %v6305, %v6427
    %v6429 = vpop.f32.mrf.mxu0
    %v6430 = vadd.f32 %v6307, %v6429
    %6431 = vmatmul.bf16.gmra.mxu0 %v5338
    %v6432 = vpop.f32.mrf.mxu0
    %v6433 = vadd.f32 %v6310, %v6432
    %v6434 = vpop.f32.mrf.mxu0
    %v6435 = vadd.f32 %v6312, %v6434
    %6436 = vmatmul.bf16.gmra.mxu0 %v5341
    %v6437 = vpop.f32.mrf.mxu0
    %v6438 = vadd.f32 %v6315, %v6437
    %v6439 = vpop.f32.mrf.mxu0
    %v6440 = vadd.f32 %v6317, %v6439
    %6441 = vmatmul.bf16.gmra.mxu0 %v5344
    %v6442 = vpop.f32.mrf.mxu0
    %v6443 = vadd.f32 %v6320, %v6442
    %v6444 = vpop.f32.mrf.mxu0
    %v6445 = vadd.f32 %v6322, %v6444
    %6446 = vmatmul.bf16.gmra.mxu0 %v5347
    %v6447 = vpop.f32.mrf.mxu0
    %v6448 = vadd.f32 %v6325, %v6447
    %v6449 = vpop.f32.mrf.mxu0
    %v6450 = vadd.f32 %v6327, %v6449
    %6451 = vmatmul.bf16.gmra.mxu0 %v5350
    %v6452 = vpop.f32.mrf.mxu0
    %v6453 = vadd.f32 %v6330, %v6452
    %v6454 = vpop.f32.mrf.mxu0
    %v6455 = vadd.f32 %v6332, %v6454
    %6456 = vmatmul.bf16.gmra.mxu0 %v5353
    %v6457 = vpop.f32.mrf.mxu0
    %v6458 = vadd.f32 %v6335, %v6457
    %v6459 = vpop.f32.mrf.mxu0
    %v6460 = vadd.f32 %v6337, %v6459
    %6461 = vmatmul.bf16.gmra.mxu0 %v5356
    %v6462 = vpop.f32.mrf.mxu0
    %v6463 = vadd.f32 %v6340, %v6462
    %v6464 = vpop.f32.mrf.mxu0
    %v6465 = vadd.f32 %v6342, %v6464
    %6466 = vmatmul.bf16.gmra.mxu0 %v5359
    %v6467 = vpop.f32.mrf.mxu0
    %v6468 = vadd.f32 %v6345, %v6467
    %v6469 = vpop.f32.mrf.mxu0
    %6470 = vdwg.mxu0
    %6471 = vmatpush.bf16.msra.mxu0 %v6075
    %6472 = vmatpush.bf16.msra.mxu0 %v6069
    %6473 = vmatpush.bf16.msra.mxu0 %v6063
    %6474 = vmatpush.bf16.msra.mxu0 %v6057
    %6475 = vmatpush.bf16.msra.mxu0 %v6051
    %6476 = vmatpush.bf16.msra.mxu0 %v6045
    %6477 = vmatpush.bf16.msra.mxu0 %v6039
    %6478 = vmatpush.bf16.msra.mxu0 %v6033
    %6479 = vmatmul.bf16.gmra.mxu0 %v5294
    %v6480 = vpop.f32.mrf.mxu0
    %v6481 = vadd.f32 %v6358, %v6480
    %v6482 = vpop.f32.mrf.mxu0
    %v6483 = vadd.f32 %v6360, %v6482
    %6484 = vmatmul.bf16.gmra.mxu0 %v5297
    %v6485 = vpop.f32.mrf.mxu0
    %v6486 = vadd.f32 %v6363, %v6485
    %v6487 = vpop.f32.mrf.mxu0
    %v6488 = vadd.f32 %v6365, %v6487
    %6489 = vmatmul.bf16.gmra.mxu0 %v5300
    %v6490 = vpop.f32.mrf.mxu0
    %v6491 = vadd.f32 %v6368, %v6490
    %v6492 = vpop.f32.mrf.mxu0
    %v6493 = vadd.f32 %v6370, %v6492
    %6494 = vmatmul.bf16.gmra.mxu0 %v5303
    %v6495 = vpop.f32.mrf.mxu0
    %v6496 = vadd.f32 %v6373, %v6495
    %v6497 = vpop.f32.mrf.mxu0
    %v6498 = vadd.f32 %v6375, %v6497
    %6499 = vmatmul.bf16.gmra.mxu0 %v5306
    %v6500 = vpop.f32.mrf.mxu0
    %v6501 = vadd.f32 %v6378, %v6500
    %v6502 = vpop.f32.mrf.mxu0
    %v6503 = vadd.f32 %v6380, %v6502
    %6504 = vmatmul.bf16.gmra.mxu0 %v5309
    %v6505 = vpop.f32.mrf.mxu0
    %v6506 = vadd.f32 %v6383, %v6505
    %v6507 = vpop.f32.mrf.mxu0
    %v6508 = vadd.f32 %v6385, %v6507
    %6509 = vmatmul.bf16.gmra.mxu0 %v5312
    %v6510 = vpop.f32.mrf.mxu0
    %v6511 = vadd.f32 %v6388, %v6510
    %v6512 = vpop.f32.mrf.mxu0
    %v6513 = vadd.f32 %v6390, %v6512
    %6514 = vmatmul.bf16.gmra.mxu0 %v5315
    %v6515 = vpop.f32.mrf.mxu0
    %v6516 = vadd.f32 %v6393, %v6515
    %v6517 = vpop.f32.mrf.mxu0
    %v6518 = vadd.f32 %v6395, %v6517
    %6519 = vmatmul.bf16.gmra.mxu0 %v5318
    %v6520 = vpop.f32.mrf.mxu0
    %v6521 = vadd.f32 %v6398, %v6520
    %v6522 = vpop.f32.mrf.mxu0
    %v6523 = vadd.f32 %v6400, %v6522
    %6524 = vmatmul.bf16.gmra.mxu0 %v5321
    %v6525 = vpop.f32.mrf.mxu0
    %v6526 = vadd.f32 %v6403, %v6525
    %v6527 = vpop.f32.mrf.mxu0
    %v6528 = vadd.f32 %v6405, %v6527
    %6529 = vmatmul.bf16.gmra.mxu0 %v5324
    %v6530 = vpop.f32.mrf.mxu0
    %v6531 = vadd.f32 %v6408, %v6530
    %v6532 = vpop.f32.mrf.mxu0
    %v6533 = vadd.f32 %v6410, %v6532
    %6534 = vmatmul.bf16.gmra.mxu0 %v5327
    %v6535 = vpop.f32.mrf.mxu0
    %v6536 = vadd.f32 %v6413, %v6535
    %v6537 = vpop.f32.mrf.mxu0
    %v6538 = vadd.f32 %v6415, %v6537
    %6539 = vmatmul.bf16.gmra.mxu0 %v5330
    %v6540 = vpop.f32.mrf.mxu0
    %v6541 = vadd.f32 %v6418, %v6540
    %v6542 = vpop.f32.mrf.mxu0
    %v6543 = vadd.f32 %v6420, %v6542
    %6544 = vmatmul.bf16.gmra.mxu0 %v5333
    %v6545 = vpop.f32.mrf.mxu0
    %v6546 = vadd.f32 %v6423, %v6545
    %v6547 = vpop.f32.mrf.mxu0
    %v6548 = vadd.f32 %v6425, %v6547
    %6549 = vmatmul.bf16.gmra.mxu0 %v5336
    %v6550 = vpop.f32.mrf.mxu0
    %v6551 = vadd.f32 %v6428, %v6550
    %v6552 = vpop.f32.mrf.mxu0
    %v6553 = vadd.f32 %v6430, %v6552
    %6554 = vmatmul.bf16.gmra.mxu0 %v5339
    %v6555 = vpop.f32.mrf.mxu0
    %v6556 = vadd.f32 %v6433, %v6555
    %v6557 = vpop.f32.mrf.mxu0
    %v6558 = vadd.f32 %v6435, %v6557
    %6559 = vmatmul.bf16.gmra.mxu0 %v5342
    %v6560 = vpop.f32.mrf.mxu0
    %v6561 = vadd.f32 %v6438, %v6560
    %v6562 = vpop.f32.mrf.mxu0
    %v6563 = vadd.f32 %v6440, %v6562
    %6564 = vmatmul.bf16.gmra.mxu0 %v5345
    %v6565 = vpop.f32.mrf.mxu0
    %v6566 = vadd.f32 %v6443, %v6565
    %v6567 = vpop.f32.mrf.mxu0
    %v6568 = vadd.f32 %v6445, %v6567
    %6569 = vmatmul.bf16.gmra.mxu0 %v5348
    %v6570 = vpop.f32.mrf.mxu0
    %v6571 = vadd.f32 %v6448, %v6570
    %v6572 = vpop.f32.mrf.mxu0
    %v6573 = vadd.f32 %v6450, %v6572
    %6574 = vmatmul.bf16.gmra.mxu0 %v5351
    %v6575 = vpop.f32.mrf.mxu0
    %v6576 = vadd.f32 %v6453, %v6575
    %v6577 = vpop.f32.mrf.mxu0
    %v6578 = vadd.f32 %v6455, %v6577
    %6579 = vmatmul.bf16.gmra.mxu0 %v5354
    %v6580 = vpop.f32.mrf.mxu0
    %v6581 = vadd.f32 %v6458, %v6580
    %v6582 = vpop.f32.mrf.mxu0
    %v6583 = vadd.f32 %v6460, %v6582
    %6584 = vmatmul.bf16.gmra.mxu0 %v5357
    %v6585 = vpop.f32.mrf.mxu0
    %v6586 = vadd.f32 %v6463, %v6585
    %v6587 = vpop.f32.mrf.mxu0
    %v6588 = vadd.f32 %v6465, %v6587
    %6589 = vmatmul.bf16.gmra.mxu0 %v5360
    %v6590 = vpop.f32.mrf.mxu0
    %v6591 = vadd.f32 %v6468, %v6590
    %v6592 = vpop.f32.mrf.mxu0
    %6593 = vdwg.mxu0
    %6594 = vmatpush.bf16.msra.mxu0 %v5980
    %6595 = vmatpush.bf16.msra.mxu0 %v5974
    %6596 = vmatpush.bf16.msra.mxu0 %v5968
    %6597 = vmatpush.bf16.msra.mxu0 %v5962
    %6598 = vmatpush.bf16.msra.mxu0 %v5956
    %6599 = vmatpush.bf16.msra.mxu0 %v5950
    %6600 = vmatpush.bf16.msra.mxu0 %v5944
    %6601 = vmatpush.bf16.msra.mxu0 %v5938
    %6602 = vmatmul.bf16.gmra.mxu0 %v5292
    %v6603 = vpop.f32.mrf.mxu0
    %v6604 = vadd.f32 0.0, %v6603
    %v6605 = vpop.f32.mrf.mxu0
    %v6606 = vadd.f32 0.0, %v6605
    %6607 = vmatmul.bf16.gmra.mxu0 %v5295
    %v6608 = vpop.f32.mrf.mxu0
    %v6609 = vadd.f32 0.0, %v6608
    %v6610 = vpop.f32.mrf.mxu0
    %v6611 = vadd.f32 0.0, %v6610
    %6612 = vmatmul.bf16.gmra.mxu0 %v5298
    %v6613 = vpop.f32.mrf.mxu0
    %v6614 = vadd.f32 0.0, %v6613
    %v6615 = vpop.f32.mrf.mxu0
    %v6616 = vadd.f32 0.0, %v6615
    %6617 = vmatmul.bf16.gmra.mxu0 %v5301
    %v6618 = vpop.f32.mrf.mxu0
    %v6619 = vadd.f32 0.0, %v6618
    %v6620 = vpop.f32.mrf.mxu0
    %v6621 = vadd.f32 0.0, %v6620
    %6622 = vmatmul.bf16.gmra.mxu0 %v5304
    %v6623 = vpop.f32.mrf.mxu0
    %v6624 = vadd.f32 0.0, %v6623
    %v6625 = vpop.f32.mrf.mxu0
    %v6626 = vadd.f32 0.0, %v6625
    %6627 = vmatmul.bf16.gmra.mxu0 %v5307
    %v6628 = vpop.f32.mrf.mxu0
    %v6629 = vadd.f32 0.0, %v6628
    %v6630 = vpop.f32.mrf.mxu0
    %v6631 = vadd.f32 0.0, %v6630
    %6632 = vmatmul.bf16.gmra.mxu0 %v5310
    %v6633 = vpop.f32.mrf.mxu0
    %v6634 = vadd.f32 0.0, %v6633
    %v6635 = vpop.f32.mrf.mxu0
    %v6636 = vadd.f32 0.0, %v6635
    %6637 = vmatmul.bf16.gmra.mxu0 %v5313
    %v6638 = vpop.f32.mrf.mxu0
    %v6639 = vadd.f32 0.0, %v6638
    %v6640 = vpop.f32.mrf.mxu0
    %v6641 = vadd.f32 0.0, %v6640
    %6642 = vmatmul.bf16.gmra.mxu0 %v5316
    %v6643 = vpop.f32.mrf.mxu0
    %v6644 = vadd.f32 0.0, %v6643
    %v6645 = vpop.f32.mrf.mxu0
    %v6646 = vadd.f32 0.0, %v6645
    %6647 = vmatmul.bf16.gmra.mxu0 %v5319
    %v6648 = vpop.f32.mrf.mxu0
    %v6649 = vadd.f32 0.0, %v6648
    %v6650 = vpop.f32.mrf.mxu0
    %v6651 = vadd.f32 0.0, %v6650
    %6652 = vmatmul.bf16.gmra.mxu0 %v5322
    %v6653 = vpop.f32.mrf.mxu0
    %v6654 = vadd.f32 0.0, %v6653
    %v6655 = vpop.f32.mrf.mxu0
    %v6656 = vadd.f32 0.0, %v6655
    %6657 = vmatmul.bf16.gmra.mxu0 %v5325
    %v6658 = vpop.f32.mrf.mxu0
    %v6659 = vadd.f32 0.0, %v6658
    %v6660 = vpop.f32.mrf.mxu0
    %v6661 = vadd.f32 0.0, %v6660
    %6662 = vmatmul.bf16.gmra.mxu0 %v5328
    %v6663 = vpop.f32.mrf.mxu0
    %v6664 = vadd.f32 0.0, %v6663
    %v6665 = vpop.f32.mrf.mxu0
    %v6666 = vadd.f32 0.0, %v6665
    %6667 = vmatmul.bf16.gmra.mxu0 %v5331
    %v6668 = vpop.f32.mrf.mxu0
    %v6669 = vadd.f32 0.0, %v6668
    %v6670 = vpop.f32.mrf.mxu0
    %v6671 = vadd.f32 0.0, %v6670
    %6672 = vmatmul.bf16.gmra.mxu0 %v5334
    %v6673 = vpop.f32.mrf.mxu0
    %v6674 = vadd.f32 0.0, %v6673
    %v6675 = vpop.f32.mrf.mxu0
    %v6676 = vadd.f32 0.0, %v6675
    %6677 = vmatmul.bf16.gmra.mxu0 %v5337
    %v6678 = vpop.f32.mrf.mxu0
    %v6679 = vadd.f32 0.0, %v6678
    %v6680 = vpop.f32.mrf.mxu0
    %v6681 = vadd.f32 0.0, %v6680
    %6682 = vmatmul.bf16.gmra.mxu0 %v5340
    %v6683 = vpop.f32.mrf.mxu0
    %v6684 = vadd.f32 0.0, %v6683
    %v6685 = vpop.f32.mrf.mxu0
    %v6686 = vadd.f32 0.0, %v6685
    %6687 = vmatmul.bf16.gmra.mxu0 %v5343
    %v6688 = vpop.f32.mrf.mxu0
    %v6689 = vadd.f32 0.0, %v6688
    %v6690 = vpop.f32.mrf.mxu0
    %v6691 = vadd.f32 0.0, %v6690
    %6692 = vmatmul.bf16.gmra.mxu0 %v5346
    %v6693 = vpop.f32.mrf.mxu0
    %v6694 = vadd.f32 0.0, %v6693
    %v6695 = vpop.f32.mrf.mxu0
    %v6696 = vadd.f32 0.0, %v6695
    %6697 = vmatmul.bf16.gmra.mxu0 %v5349
    %v6698 = vpop.f32.mrf.mxu0
    %v6699 = vadd.f32 0.0, %v6698
    %v6700 = vpop.f32.mrf.mxu0
    %v6701 = vadd.f32 0.0, %v6700
    %6702 = vmatmul.bf16.gmra.mxu0 %v5352
    %v6703 = vpop.f32.mrf.mxu0
    %v6704 = vadd.f32 0.0, %v6703
    %v6705 = vpop.f32.mrf.mxu0
    %v6706 = vadd.f32 0.0, %v6705
    %6707 = vmatmul.bf16.gmra.mxu0 %v5355
    %v6708 = vpop.f32.mrf.mxu0
    %v6709 = vadd.f32 0.0, %v6708
    %v6710 = vpop.f32.mrf.mxu0
    %v6711 = vadd.f32 0.0, %v6710
    %6712 = vmatmul.bf16.gmra.mxu0 %v5358
    %v6713 = vpop.f32.mrf.mxu0
    %v6714 = vadd.f32 0.0, %v6713
    %v6715 = vpop.f32.mrf.mxu0
    %6716 = vdwg.mxu0
    %6717 = vmatpush.bf16.msra.mxu0 %v6028
    %6718 = vmatpush.bf16.msra.mxu0 %v6022
    %6719 = vmatpush.bf16.msra.mxu0 %v6016
    %6720 = vmatpush.bf16.msra.mxu0 %v6010
    %6721 = vmatpush.bf16.msra.mxu0 %v6004
    %6722 = vmatpush.bf16.msra.mxu0 %v5998
    %6723 = vmatpush.bf16.msra.mxu0 %v5992
    %6724 = vmatpush.bf16.msra.mxu0 %v5986
    %6725 = vmatmul.bf16.gmra.mxu0 %v5293
    %v6726 = vpop.f32.mrf.mxu0
    %v6727 = vadd.f32 %v6604, %v6726
    %v6728 = vpop.f32.mrf.mxu0
    %v6729 = vadd.f32 %v6606, %v6728
    %6730 = vmatmul.bf16.gmra.mxu0 %v5296
    %v6731 = vpop.f32.mrf.mxu0
    %v6732 = vadd.f32 %v6609, %v6731
    %v6733 = vpop.f32.mrf.mxu0
    %v6734 = vadd.f32 %v6611, %v6733
    %6735 = vmatmul.bf16.gmra.mxu0 %v5299
    %v6736 = vpop.f32.mrf.mxu0
    %v6737 = vadd.f32 %v6614, %v6736
    %v6738 = vpop.f32.mrf.mxu0
    %v6739 = vadd.f32 %v6616, %v6738
    %6740 = vmatmul.bf16.gmra.mxu0 %v5302
    %v6741 = vpop.f32.mrf.mxu0
    %v6742 = vadd.f32 %v6619, %v6741
    %v6743 = vpop.f32.mrf.mxu0
    %v6744 = vadd.f32 %v6621, %v6743
    %6745 = vmatmul.bf16.gmra.mxu0 %v5305
    %v6746 = vpop.f32.mrf.mxu0
    %v6747 = vadd.f32 %v6624, %v6746
    %v6748 = vpop.f32.mrf.mxu0
    %v6749 = vadd.f32 %v6626, %v6748
    %6750 = vmatmul.bf16.gmra.mxu0 %v5308
    %v6751 = vpop.f32.mrf.mxu0
    %v6752 = vadd.f32 %v6629, %v6751
    %v6753 = vpop.f32.mrf.mxu0
    %v6754 = vadd.f32 %v6631, %v6753
    %6755 = vmatmul.bf16.gmra.mxu0 %v5311
    %v6756 = vpop.f32.mrf.mxu0
    %v6757 = vadd.f32 %v6634, %v6756
    %v6758 = vpop.f32.mrf.mxu0
    %v6759 = vadd.f32 %v6636, %v6758
    %6760 = vmatmul.bf16.gmra.mxu0 %v5314
    %v6761 = vpop.f32.mrf.mxu0
    %v6762 = vadd.f32 %v6639, %v6761
    %v6763 = vpop.f32.mrf.mxu0
    %v6764 = vadd.f32 %v6641, %v6763
    %6765 = vmatmul.bf16.gmra.mxu0 %v5317
    %v6766 = vpop.f32.mrf.mxu0
    %v6767 = vadd.f32 %v6644, %v6766
    %v6768 = vpop.f32.mrf.mxu0
    %v6769 = vadd.f32 %v6646, %v6768
    %6770 = vmatmul.bf16.gmra.mxu0 %v5320
    %v6771 = vpop.f32.mrf.mxu0
    %v6772 = vadd.f32 %v6649, %v6771
    %v6773 = vpop.f32.mrf.mxu0
    %v6774 = vadd.f32 %v6651, %v6773
    %6775 = vmatmul.bf16.gmra.mxu0 %v5323
    %v6776 = vpop.f32.mrf.mxu0
    %v6777 = vadd.f32 %v6654, %v6776
    %v6778 = vpop.f32.mrf.mxu0
    %v6779 = vadd.f32 %v6656, %v6778
    %6780 = vmatmul.bf16.gmra.mxu0 %v5326
    %v6781 = vpop.f32.mrf.mxu0
    %v6782 = vadd.f32 %v6659, %v6781
    %v6783 = vpop.f32.mrf.mxu0
    %v6784 = vadd.f32 %v6661, %v6783
    %6785 = vmatmul.bf16.gmra.mxu0 %v5329
    %v6786 = vpop.f32.mrf.mxu0
    %v6787 = vadd.f32 %v6664, %v6786
    %v6788 = vpop.f32.mrf.mxu0
    %v6789 = vadd.f32 %v6666, %v6788
    %6790 = vmatmul.bf16.gmra.mxu0 %v5332
    %v6791 = vpop.f32.mrf.mxu0
    %v6792 = vadd.f32 %v6669, %v6791
    %v6793 = vpop.f32.mrf.mxu0
    %v6794 = vadd.f32 %v6671, %v6793
    %6795 = vmatmul.bf16.gmra.mxu0 %v5335
    %v6796 = vpop.f32.mrf.mxu0
    %v6797 = vadd.f32 %v6674, %v6796
    %v6798 = vpop.f32.mrf.mxu0
    %v6799 = vadd.f32 %v6676, %v6798
    %6800 = vmatmul.bf16.gmra.mxu0 %v5338
    %v6801 = vpop.f32.mrf.mxu0
    %v6802 = vadd.f32 %v6679, %v6801
    %v6803 = vpop.f32.mrf.mxu0
    %v6804 = vadd.f32 %v6681, %v6803
    %6805 = vmatmul.bf16.gmra.mxu0 %v5341
    %v6806 = vpop.f32.mrf.mxu0
    %v6807 = vadd.f32 %v6684, %v6806
    %v6808 = vpop.f32.mrf.mxu0
    %v6809 = vadd.f32 %v6686, %v6808
    %6810 = vmatmul.bf16.gmra.mxu0 %v5344
    %v6811 = vpop.f32.mrf.mxu0
    %v6812 = vadd.f32 %v6689, %v6811
    %v6813 = vpop.f32.mrf.mxu0
    %v6814 = vadd.f32 %v6691, %v6813
    %6815 = vmatmul.bf16.gmra.mxu0 %v5347
    %v6816 = vpop.f32.mrf.mxu0
    %v6817 = vadd.f32 %v6694, %v6816
    %v6818 = vpop.f32.mrf.mxu0
    %v6819 = vadd.f32 %v6696, %v6818
    %6820 = vmatmul.bf16.gmra.mxu0 %v5350
    %v6821 = vpop.f32.mrf.mxu0
    %v6822 = vadd.f32 %v6699, %v6821
    %v6823 = vpop.f32.mrf.mxu0
    %v6824 = vadd.f32 %v6701, %v6823
    %6825 = vmatmul.bf16.gmra.mxu0 %v5353
    %v6826 = vpop.f32.mrf.mxu0
    %v6827 = vadd.f32 %v6704, %v6826
    %v6828 = vpop.f32.mrf.mxu0
    %v6829 = vadd.f32 %v6706, %v6828
    %6830 = vmatmul.bf16.gmra.mxu0 %v5356
    %v6831 = vpop.f32.mrf.mxu0
    %v6832 = vadd.f32 %v6709, %v6831
    %v6833 = vpop.f32.mrf.mxu0
    %v6834 = vadd.f32 %v6711, %v6833
    %6835 = vmatmul.bf16.gmra.mxu0 %v5359
    %v6836 = vpop.f32.mrf.mxu0
    %v6837 = vadd.f32 %v6714, %v6836
    %v6838 = vpop.f32.mrf.mxu0
    %6839 = vdwg.mxu0
    %6840 = vmatpush.bf16.msra.mxu0 %v6076
    %6841 = vmatpush.bf16.msra.mxu0 %v6070
    %6842 = vmatpush.bf16.msra.mxu0 %v6064
    %6843 = vmatpush.bf16.msra.mxu0 %v6058
    %6844 = vmatpush.bf16.msra.mxu0 %v6052
    %6845 = vmatpush.bf16.msra.mxu0 %v6046
    %6846 = vmatpush.bf16.msra.mxu0 %v6040
    %6847 = vmatpush.bf16.msra.mxu0 %v6034
    %6848 = vmatmul.bf16.gmra.mxu0 %v5294
    %v6849 = vpop.f32.mrf.mxu0
    %v6850 = vadd.f32 %v6727, %v6849
    %v6851 = vpop.f32.mrf.mxu0
    %v6852 = vadd.f32 %v6729, %v6851
    %6853 = vmatmul.bf16.gmra.mxu0 %v5297
    %v6854 = vpop.f32.mrf.mxu0
    %v6855 = vadd.f32 %v6732, %v6854
    %v6856 = vpop.f32.mrf.mxu0
    %v6857 = vadd.f32 %v6734, %v6856
    %6858 = vmatmul.bf16.gmra.mxu0 %v5300
    %v6859 = vpop.f32.mrf.mxu0
    %v6860 = vadd.f32 %v6737, %v6859
    %v6861 = vpop.f32.mrf.mxu0
    %v6862 = vadd.f32 %v6739, %v6861
    %6863 = vmatmul.bf16.gmra.mxu0 %v5303
    %v6864 = vpop.f32.mrf.mxu0
    %v6865 = vadd.f32 %v6742, %v6864
    %v6866 = vpop.f32.mrf.mxu0
    %v6867 = vadd.f32 %v6744, %v6866
    %6868 = vmatmul.bf16.gmra.mxu0 %v5306
    %v6869 = vpop.f32.mrf.mxu0
    %v6870 = vadd.f32 %v6747, %v6869
    %v6871 = vpop.f32.mrf.mxu0
    %v6872 = vadd.f32 %v6749, %v6871
    %6873 = vmatmul.bf16.gmra.mxu0 %v5309
    %v6874 = vpop.f32.mrf.mxu0
    %v6875 = vadd.f32 %v6752, %v6874
    %v6876 = vpop.f32.mrf.mxu0
    %v6877 = vadd.f32 %v6754, %v6876
    %6878 = vmatmul.bf16.gmra.mxu0 %v5312
    %v6879 = vpop.f32.mrf.mxu0
    %v6880 = vadd.f32 %v6757, %v6879
    %v6881 = vpop.f32.mrf.mxu0
    %v6882 = vadd.f32 %v6759, %v6881
    %6883 = vmatmul.bf16.gmra.mxu0 %v5315
    %v6884 = vpop.f32.mrf.mxu0
    %v6885 = vadd.f32 %v6762, %v6884
    %v6886 = vpop.f32.mrf.mxu0
    %v6887 = vadd.f32 %v6764, %v6886
    %6888 = vmatmul.bf16.gmra.mxu0 %v5318
    %v6889 = vpop.f32.mrf.mxu0
    %v6890 = vadd.f32 %v6767, %v6889
    %v6891 = vpop.f32.mrf.mxu0
    %v6892 = vadd.f32 %v6769, %v6891
    %6893 = vmatmul.bf16.gmra.mxu0 %v5321
    %v6894 = vpop.f32.mrf.mxu0
    %v6895 = vadd.f32 %v6772, %v6894
    %v6896 = vpop.f32.mrf.mxu0
    %v6897 = vadd.f32 %v6774, %v6896
    %6898 = vmatmul.bf16.gmra.mxu0 %v5324
    %v6899 = vpop.f32.mrf.mxu0
    %v6900 = vadd.f32 %v6777, %v6899
    %v6901 = vpop.f32.mrf.mxu0
    %v6902 = vadd.f32 %v6779, %v6901
    %6903 = vmatmul.bf16.gmra.mxu0 %v5327
    %v6904 = vpop.f32.mrf.mxu0
    %v6905 = vadd.f32 %v6782, %v6904
    %v6906 = vpop.f32.mrf.mxu0
    %v6907 = vadd.f32 %v6784, %v6906
    %6908 = vmatmul.bf16.gmra.mxu0 %v5330
    %v6909 = vpop.f32.mrf.mxu0
    %v6910 = vadd.f32 %v6787, %v6909
    %v6911 = vpop.f32.mrf.mxu0
    %v6912 = vadd.f32 %v6789, %v6911
    %6913 = vmatmul.bf16.gmra.mxu0 %v5333
    %v6914 = vpop.f32.mrf.mxu0
    %v6915 = vadd.f32 %v6792, %v6914
    %v6916 = vpop.f32.mrf.mxu0
    %v6917 = vadd.f32 %v6794, %v6916
    %6918 = vmatmul.bf16.gmra.mxu0 %v5336
    %v6919 = vpop.f32.mrf.mxu0
    %v6920 = vadd.f32 %v6797, %v6919
    %v6921 = vpop.f32.mrf.mxu0
    %v6922 = vadd.f32 %v6799, %v6921
    %6923 = vmatmul.bf16.gmra.mxu0 %v5339
    %v6924 = vpop.f32.mrf.mxu0
    %v6925 = vadd.f32 %v6802, %v6924
    %v6926 = vpop.f32.mrf.mxu0
    %v6927 = vadd.f32 %v6804, %v6926
    %6928 = vmatmul.bf16.gmra.mxu0 %v5342
    %v6929 = vpop.f32.mrf.mxu0
    %v6930 = vadd.f32 %v6807, %v6929
    %v6931 = vpop.f32.mrf.mxu0
    %v6932 = vadd.f32 %v6809, %v6931
    %6933 = vmatmul.bf16.gmra.mxu0 %v5345
    %v6934 = vpop.f32.mrf.mxu0
    %v6935 = vadd.f32 %v6812, %v6934
    %v6936 = vpop.f32.mrf.mxu0
    %v6937 = vadd.f32 %v6814, %v6936
    %6938 = vmatmul.bf16.gmra.mxu0 %v5348
    %v6939 = vpop.f32.mrf.mxu0
    %v6940 = vadd.f32 %v6817, %v6939
    %v6941 = vpop.f32.mrf.mxu0
    %v6942 = vadd.f32 %v6819, %v6941
    %6943 = vmatmul.bf16.gmra.mxu0 %v5351
    %v6944 = vpop.f32.mrf.mxu0
    %v6945 = vadd.f32 %v6822, %v6944
    %v6946 = vpop.f32.mrf.mxu0
    %v6947 = vadd.f32 %v6824, %v6946
    %6948 = vmatmul.bf16.gmra.mxu0 %v5354
    %v6949 = vpop.f32.mrf.mxu0
    %v6950 = vadd.f32 %v6827, %v6949
    %v6951 = vpop.f32.mrf.mxu0
    %v6952 = vadd.f32 %v6829, %v6951
    %6953 = vmatmul.bf16.gmra.mxu0 %v5357
    %v6954 = vpop.f32.mrf.mxu0
    %v6955 = vadd.f32 %v6832, %v6954
    %v6956 = vpop.f32.mrf.mxu0
    %v6957 = vadd.f32 %v6834, %v6956
    %6958 = vmatmul.bf16.gmra.mxu0 %v5360
    %v6959 = vpop.f32.mrf.mxu0
    %v6960 = vadd.f32 %v6837, %v6959
    %v6961 = vpop.f32.mrf.mxu0
    %6962 = vdwg.mxu0
    %6963 = vmatpush.bf16.msra.mxu0 %v5981
    %6964 = vmatpush.bf16.msra.mxu0 %v5975
    %6965 = vmatpush.bf16.msra.mxu0 %v5969
    %6966 = vmatpush.bf16.msra.mxu0 %v5963
    %6967 = vmatpush.bf16.msra.mxu0 %v5957
    %6968 = vmatpush.bf16.msra.mxu0 %v5951
    %6969 = vmatpush.bf16.msra.mxu0 %v5945
    %6970 = vmatpush.bf16.msra.mxu0 %v5939
    %6971 = vmatmul.bf16.gmra.mxu0 %v5292
    %v6972 = vpop.f32.mrf.mxu0
    %v6973 = vadd.f32 0.0, %v6972
    %v6974 = vpop.f32.mrf.mxu0
    %v6975 = vadd.f32 0.0, %v6974
    %6976 = vmatmul.bf16.gmra.mxu0 %v5295
    %v6977 = vpop.f32.mrf.mxu0
    %v6978 = vadd.f32 0.0, %v6977
    %v6979 = vpop.f32.mrf.mxu0
    %v6980 = vadd.f32 0.0, %v6979
    %6981 = vmatmul.bf16.gmra.mxu0 %v5298
    %v6982 = vpop.f32.mrf.mxu0
    %v6983 = vadd.f32 0.0, %v6982
    %v6984 = vpop.f32.mrf.mxu0
    %v6985 = vadd.f32 0.0, %v6984
    %6986 = vmatmul.bf16.gmra.mxu0 %v5301
    %v6987 = vpop.f32.mrf.mxu0
    %v6988 = vadd.f32 0.0, %v6987
    %v6989 = vpop.f32.mrf.mxu0
    %v6990 = vadd.f32 0.0, %v6989
    %6991 = vmatmul.bf16.gmra.mxu0 %v5304
    %v6992 = vpop.f32.mrf.mxu0
    %v6993 = vadd.f32 0.0, %v6992
    %v6994 = vpop.f32.mrf.mxu0
    %v6995 = vadd.f32 0.0, %v6994
    %6996 = vmatmul.bf16.gmra.mxu0 %v5307
    %v6997 = vpop.f32.mrf.mxu0
    %v6998 = vadd.f32 0.0, %v6997
    %v6999 = vpop.f32.mrf.mxu0
    %v7000 = vadd.f32 0.0, %v6999
    %7001 = vmatmul.bf16.gmra.mxu0 %v5310
    %v7002 = vpop.f32.mrf.mxu0
    %v7003 = vadd.f32 0.0, %v7002
    %v7004 = vpop.f32.mrf.mxu0
    %v7005 = vadd.f32 0.0, %v7004
    %7006 = vmatmul.bf16.gmra.mxu0 %v5313
    %v7007 = vpop.f32.mrf.mxu0
    %v7008 = vadd.f32 0.0, %v7007
    %v7009 = vpop.f32.mrf.mxu0
    %v7010 = vadd.f32 0.0, %v7009
    %7011 = vmatmul.bf16.gmra.mxu0 %v5316
    %v7012 = vpop.f32.mrf.mxu0
    %v7013 = vadd.f32 0.0, %v7012
    %v7014 = vpop.f32.mrf.mxu0
    %v7015 = vadd.f32 0.0, %v7014
    %7016 = vmatmul.bf16.gmra.mxu0 %v5319
    %v7017 = vpop.f32.mrf.mxu0
    %v7018 = vadd.f32 0.0, %v7017
    %v7019 = vpop.f32.mrf.mxu0
    %v7020 = vadd.f32 0.0, %v7019
    %7021 = vmatmul.bf16.gmra.mxu0 %v5322
    %v7022 = vpop.f32.mrf.mxu0
    %v7023 = vadd.f32 0.0, %v7022
    %v7024 = vpop.f32.mrf.mxu0
    %v7025 = vadd.f32 0.0, %v7024
    %7026 = vmatmul.bf16.gmra.mxu0 %v5325
    %v7027 = vpop.f32.mrf.mxu0
    %v7028 = vadd.f32 0.0, %v7027
    %v7029 = vpop.f32.mrf.mxu0
    %v7030 = vadd.f32 0.0, %v7029
    %7031 = vmatmul.bf16.gmra.mxu0 %v5328
    %v7032 = vpop.f32.mrf.mxu0
    %v7033 = vadd.f32 0.0, %v7032
    %v7034 = vpop.f32.mrf.mxu0
    %v7035 = vadd.f32 0.0, %v7034
    %7036 = vmatmul.bf16.gmra.mxu0 %v5331
    %v7037 = vpop.f32.mrf.mxu0
    %v7038 = vadd.f32 0.0, %v7037
    %v7039 = vpop.f32.mrf.mxu0
    %v7040 = vadd.f32 0.0, %v7039
    %7041 = vmatmul.bf16.gmra.mxu0 %v5334
    %v7042 = vpop.f32.mrf.mxu0
    %v7043 = vadd.f32 0.0, %v7042
    %v7044 = vpop.f32.mrf.mxu0
    %v7045 = vadd.f32 0.0, %v7044
    %7046 = vmatmul.bf16.gmra.mxu0 %v5337
    %v7047 = vpop.f32.mrf.mxu0
    %v7048 = vadd.f32 0.0, %v7047
    %v7049 = vpop.f32.mrf.mxu0
    %v7050 = vadd.f32 0.0, %v7049
    %7051 = vmatmul.bf16.gmra.mxu0 %v5340
    %v7052 = vpop.f32.mrf.mxu0
    %v7053 = vadd.f32 0.0, %v7052
    %v7054 = vpop.f32.mrf.mxu0
    %v7055 = vadd.f32 0.0, %v7054
    %7056 = vmatmul.bf16.gmra.mxu0 %v5343
    %v7057 = vpop.f32.mrf.mxu0
    %v7058 = vadd.f32 0.0, %v7057
    %v7059 = vpop.f32.mrf.mxu0
    %v7060 = vadd.f32 0.0, %v7059
    %7061 = vmatmul.bf16.gmra.mxu0 %v5346
    %v7062 = vpop.f32.mrf.mxu0
    %v7063 = vadd.f32 0.0, %v7062
    %v7064 = vpop.f32.mrf.mxu0
    %v7065 = vadd.f32 0.0, %v7064
    %7066 = vmatmul.bf16.gmra.mxu0 %v5349
    %v7067 = vpop.f32.mrf.mxu0
    %v7068 = vadd.f32 0.0, %v7067
    %v7069 = vpop.f32.mrf.mxu0
    %v7070 = vadd.f32 0.0, %v7069
    %7071 = vmatmul.bf16.gmra.mxu0 %v5352
    %v7072 = vpop.f32.mrf.mxu0
    %v7073 = vadd.f32 0.0, %v7072
    %v7074 = vpop.f32.mrf.mxu0
    %v7075 = vadd.f32 0.0, %v7074
    %7076 = vmatmul.bf16.gmra.mxu0 %v5355
    %v7077 = vpop.f32.mrf.mxu0
    %v7078 = vadd.f32 0.0, %v7077
    %v7079 = vpop.f32.mrf.mxu0
    %v7080 = vadd.f32 0.0, %v7079
    %7081 = vmatmul.bf16.gmra.mxu0 %v5358
    %v7082 = vpop.f32.mrf.mxu0
    %v7083 = vadd.f32 0.0, %v7082
    %v7084 = vpop.f32.mrf.mxu0
    %7085 = vdwg.mxu0
    %7086 = vmatpush.bf16.msra.mxu0 %v6029
    %7087 = vmatpush.bf16.msra.mxu0 %v6023
    %7088 = vmatpush.bf16.msra.mxu0 %v6017
    %7089 = vmatpush.bf16.msra.mxu0 %v6011
    %7090 = vmatpush.bf16.msra.mxu0 %v6005
    %7091 = vmatpush.bf16.msra.mxu0 %v5999
    %7092 = vmatpush.bf16.msra.mxu0 %v5993
    %7093 = vmatpush.bf16.msra.mxu0 %v5987
    %7094 = vmatmul.bf16.gmra.mxu0 %v5293
    %v7095 = vpop.f32.mrf.mxu0
    %v7096 = vadd.f32 %v6973, %v7095
    %v7097 = vpop.f32.mrf.mxu0
    %v7098 = vadd.f32 %v6975, %v7097
    %7099 = vmatmul.bf16.gmra.mxu0 %v5296
    %v7100 = vpop.f32.mrf.mxu0
    %v7101 = vadd.f32 %v6978, %v7100
    %v7102 = vpop.f32.mrf.mxu0
    %v7103 = vadd.f32 %v6980, %v7102
    %7104 = vmatmul.bf16.gmra.mxu0 %v5299
    %v7105 = vpop.f32.mrf.mxu0
    %v7106 = vadd.f32 %v6983, %v7105
    %v7107 = vpop.f32.mrf.mxu0
    %v7108 = vadd.f32 %v6985, %v7107
    %7109 = vmatmul.bf16.gmra.mxu0 %v5302
    %v7110 = vpop.f32.mrf.mxu0
    %v7111 = vadd.f32 %v6988, %v7110
    %v7112 = vpop.f32.mrf.mxu0
    %v7113 = vadd.f32 %v6990, %v7112
    %7114 = vmatmul.bf16.gmra.mxu0 %v5305
    %v7115 = vpop.f32.mrf.mxu0
    %v7116 = vadd.f32 %v6993, %v7115
    %v7117 = vpop.f32.mrf.mxu0
    %v7118 = vadd.f32 %v6995, %v7117
    %7119 = vmatmul.bf16.gmra.mxu0 %v5308
    %v7120 = vpop.f32.mrf.mxu0
    %v7121 = vadd.f32 %v6998, %v7120
    %v7122 = vpop.f32.mrf.mxu0
    %v7123 = vadd.f32 %v7000, %v7122
    %7124 = vmatmul.bf16.gmra.mxu0 %v5311
    %v7125 = vpop.f32.mrf.mxu0
    %v7126 = vadd.f32 %v7003, %v7125
    %v7127 = vpop.f32.mrf.mxu0
    %v7128 = vadd.f32 %v7005, %v7127
    %7129 = vmatmul.bf16.gmra.mxu0 %v5314
    %v7130 = vpop.f32.mrf.mxu0
    %v7131 = vadd.f32 %v7008, %v7130
    %v7132 = vpop.f32.mrf.mxu0
    %v7133 = vadd.f32 %v7010, %v7132
    %7134 = vmatmul.bf16.gmra.mxu0 %v5317
    %v7135 = vpop.f32.mrf.mxu0
    %v7136 = vadd.f32 %v7013, %v7135
    %v7137 = vpop.f32.mrf.mxu0
    %v7138 = vadd.f32 %v7015, %v7137
    %7139 = vmatmul.bf16.gmra.mxu0 %v5320
    %v7140 = vpop.f32.mrf.mxu0
    %v7141 = vadd.f32 %v7018, %v7140
    %v7142 = vpop.f32.mrf.mxu0
    %v7143 = vadd.f32 %v7020, %v7142
    %7144 = vmatmul.bf16.gmra.mxu0 %v5323
    %v7145 = vpop.f32.mrf.mxu0
    %v7146 = vadd.f32 %v7023, %v7145
    %v7147 = vpop.f32.mrf.mxu0
    %v7148 = vadd.f32 %v7025, %v7147
    %7149 = vmatmul.bf16.gmra.mxu0 %v5326
    %v7150 = vpop.f32.mrf.mxu0
    %v7151 = vadd.f32 %v7028, %v7150
    %v7152 = vpop.f32.mrf.mxu0
    %v7153 = vadd.f32 %v7030, %v7152
    %7154 = vmatmul.bf16.gmra.mxu0 %v5329
    %v7155 = vpop.f32.mrf.mxu0
    %v7156 = vadd.f32 %v7033, %v7155
    %v7157 = vpop.f32.mrf.mxu0
    %v7158 = vadd.f32 %v7035, %v7157
    %7159 = vmatmul.bf16.gmra.mxu0 %v5332
    %v7160 = vpop.f32.mrf.mxu0
    %v7161 = vadd.f32 %v7038, %v7160
    %v7162 = vpop.f32.mrf.mxu0
    %v7163 = vadd.f32 %v7040, %v7162
    %7164 = vmatmul.bf16.gmra.mxu0 %v5335
    %v7165 = vpop.f32.mrf.mxu0
    %v7166 = vadd.f32 %v7043, %v7165
    %v7167 = vpop.f32.mrf.mxu0
    %v7168 = vadd.f32 %v7045, %v7167
    %7169 = vmatmul.bf16.gmra.mxu0 %v5338
    %v7170 = vpop.f32.mrf.mxu0
    %v7171 = vadd.f32 %v7048, %v7170
    %v7172 = vpop.f32.mrf.mxu0
    %v7173 = vadd.f32 %v7050, %v7172
    %7174 = vmatmul.bf16.gmra.mxu0 %v5341
    %v7175 = vpop.f32.mrf.mxu0
    %v7176 = vadd.f32 %v7053, %v7175
    %v7177 = vpop.f32.mrf.mxu0
    %v7178 = vadd.f32 %v7055, %v7177
    %7179 = vmatmul.bf16.gmra.mxu0 %v5344
    %v7180 = vpop.f32.mrf.mxu0
    %v7181 = vadd.f32 %v7058, %v7180
    %v7182 = vpop.f32.mrf.mxu0
    %v7183 = vadd.f32 %v7060, %v7182
    %7184 = vmatmul.bf16.gmra.mxu0 %v5347
    %v7185 = vpop.f32.mrf.mxu0
    %v7186 = vadd.f32 %v7063, %v7185
    %v7187 = vpop.f32.mrf.mxu0
    %v7188 = vadd.f32 %v7065, %v7187
    %7189 = vmatmul.bf16.gmra.mxu0 %v5350
    %v7190 = vpop.f32.mrf.mxu0
    %v7191 = vadd.f32 %v7068, %v7190
    %v7192 = vpop.f32.mrf.mxu0
    %v7193 = vadd.f32 %v7070, %v7192
    %7194 = vmatmul.bf16.gmra.mxu0 %v5353
    %v7195 = vpop.f32.mrf.mxu0
    %v7196 = vadd.f32 %v7073, %v7195
    %v7197 = vpop.f32.mrf.mxu0
    %v7198 = vadd.f32 %v7075, %v7197
    %7199 = vmatmul.bf16.gmra.mxu0 %v5356
    %v7200 = vpop.f32.mrf.mxu0
    %v7201 = vadd.f32 %v7078, %v7200
    %v7202 = vpop.f32.mrf.mxu0
    %v7203 = vadd.f32 %v7080, %v7202
    %7204 = vmatmul.bf16.gmra.mxu0 %v5359
    %v7205 = vpop.f32.mrf.mxu0
    %v7206 = vadd.f32 %v7083, %v7205
    %v7207 = vpop.f32.mrf.mxu0
    %7208 = vdwg.mxu0
    %7209 = vmatpush.bf16.msra.mxu0 %v6077
    %7210 = vmatpush.bf16.msra.mxu0 %v6071
    %7211 = vmatpush.bf16.msra.mxu0 %v6065
    %7212 = vmatpush.bf16.msra.mxu0 %v6059
    %7213 = vmatpush.bf16.msra.mxu0 %v6053
    %7214 = vmatpush.bf16.msra.mxu0 %v6047
    %7215 = vmatpush.bf16.msra.mxu0 %v6041
    %7216 = vmatpush.bf16.msra.mxu0 %v6035
    %7217 = vmatmul.bf16.gmra.mxu0 %v5294
    %v7218 = vpop.f32.mrf.mxu0
    %v7219 = vadd.f32 %v7096, %v7218
    %v7220 = vpop.f32.mrf.mxu0
    %v7221 = vadd.f32 %v7098, %v7220
    %7222 = vmatmul.bf16.gmra.mxu0 %v5297
    %v7223 = vpop.f32.mrf.mxu0
    %v7224 = vadd.f32 %v7101, %v7223
    %v7225 = vpop.f32.mrf.mxu0
    %v7226 = vadd.f32 %v7103, %v7225
    %7227 = vmatmul.bf16.gmra.mxu0 %v5300
    %v7228 = vpop.f32.mrf.mxu0
    %v7229 = vadd.f32 %v7106, %v7228
    %v7230 = vpop.f32.mrf.mxu0
    %v7231 = vadd.f32 %v7108, %v7230
    %7232 = vmatmul.bf16.gmra.mxu0 %v5303
    %v7233 = vpop.f32.mrf.mxu0
    %v7234 = vadd.f32 %v7111, %v7233
    %v7235 = vpop.f32.mrf.mxu0
    %v7236 = vadd.f32 %v7113, %v7235
    %7237 = vmatmul.bf16.gmra.mxu0 %v5306
    %v7238 = vpop.f32.mrf.mxu0
    %v7239 = vadd.f32 %v7116, %v7238
    %v7240 = vpop.f32.mrf.mxu0
    %v7241 = vadd.f32 %v7118, %v7240
    %7242 = vmatmul.bf16.gmra.mxu0 %v5309
    %v7243 = vpop.f32.mrf.mxu0
    %v7244 = vadd.f32 %v7121, %v7243
    %v7245 = vpop.f32.mrf.mxu0
    %v7246 = vadd.f32 %v7123, %v7245
    %7247 = vmatmul.bf16.gmra.mxu0 %v5312
    %v7248 = vpop.f32.mrf.mxu0
    %v7249 = vadd.f32 %v7126, %v7248
    %v7250 = vpop.f32.mrf.mxu0
    %v7251 = vadd.f32 %v7128, %v7250
    %7252 = vmatmul.bf16.gmra.mxu0 %v5315
    %v7253 = vpop.f32.mrf.mxu0
    %v7254 = vadd.f32 %v7131, %v7253
    %v7255 = vpop.f32.mrf.mxu0
    %v7256 = vadd.f32 %v7133, %v7255
    %7257 = vmatmul.bf16.gmra.mxu0 %v5318
    %v7258 = vpop.f32.mrf.mxu0
    %v7259 = vadd.f32 %v7136, %v7258
    %v7260 = vpop.f32.mrf.mxu0
    %v7261 = vadd.f32 %v7138, %v7260
    %7262 = vmatmul.bf16.gmra.mxu0 %v5321
    %v7263 = vpop.f32.mrf.mxu0
    %v7264 = vadd.f32 %v7141, %v7263
    %v7265 = vpop.f32.mrf.mxu0
    %v7266 = vadd.f32 %v7143, %v7265
    %7267 = vmatmul.bf16.gmra.mxu0 %v5324
    %v7268 = vpop.f32.mrf.mxu0
    %v7269 = vadd.f32 %v7146, %v7268
    %v7270 = vpop.f32.mrf.mxu0
    %v7271 = vadd.f32 %v7148, %v7270
    %7272 = vmatmul.bf16.gmra.mxu0 %v5327
    %v7273 = vpop.f32.mrf.mxu0
    %v7274 = vadd.f32 %v7151, %v7273
    %v7275 = vpop.f32.mrf.mxu0
    %v7276 = vadd.f32 %v7153, %v7275
    %7277 = vmatmul.bf16.gmra.mxu0 %v5330
    %v7278 = vpop.f32.mrf.mxu0
    %v7279 = vadd.f32 %v7156, %v7278
    %v7280 = vpop.f32.mrf.mxu0
    %v7281 = vadd.f32 %v7158, %v7280
    %7282 = vmatmul.bf16.gmra.mxu0 %v5333
    %v7283 = vpop.f32.mrf.mxu0
    %v7284 = vadd.f32 %v7161, %v7283
    %v7285 = vpop.f32.mrf.mxu0
    %v7286 = vadd.f32 %v7163, %v7285
    %7287 = vmatmul.bf16.gmra.mxu0 %v5336
    %v7288 = vpop.f32.mrf.mxu0
    %v7289 = vadd.f32 %v7166, %v7288
    %v7290 = vpop.f32.mrf.mxu0
    %v7291 = vadd.f32 %v7168, %v7290
    %7292 = vmatmul.bf16.gmra.mxu0 %v5339
    %v7293 = vpop.f32.mrf.mxu0
    %v7294 = vadd.f32 %v7171, %v7293
    %v7295 = vpop.f32.mrf.mxu0
    %v7296 = vadd.f32 %v7173, %v7295
    %7297 = vmatmul.bf16.gmra.mxu0 %v5342
    %v7298 = vpop.f32.mrf.mxu0
    %v7299 = vadd.f32 %v7176, %v7298
    %v7300 = vpop.f32.mrf.mxu0
    %v7301 = vadd.f32 %v7178, %v7300
    %7302 = vmatmul.bf16.gmra.mxu0 %v5345
    %v7303 = vpop.f32.mrf.mxu0
    %v7304 = vadd.f32 %v7181, %v7303
    %v7305 = vpop.f32.mrf.mxu0
    %v7306 = vadd.f32 %v7183, %v7305
    %7307 = vmatmul.bf16.gmra.mxu0 %v5348
    %v7308 = vpop.f32.mrf.mxu0
    %v7309 = vadd.f32 %v7186, %v7308
    %v7310 = vpop.f32.mrf.mxu0
    %v7311 = vadd.f32 %v7188, %v7310
    %7312 = vmatmul.bf16.gmra.mxu0 %v5351
    %v7313 = vpop.f32.mrf.mxu0
    %v7314 = vadd.f32 %v7191, %v7313
    %v7315 = vpop.f32.mrf.mxu0
    %v7316 = vadd.f32 %v7193, %v7315
    %7317 = vmatmul.bf16.gmra.mxu0 %v5354
    %v7318 = vpop.f32.mrf.mxu0
    %v7319 = vadd.f32 %v7196, %v7318
    %v7320 = vpop.f32.mrf.mxu0
    %v7321 = vadd.f32 %v7198, %v7320
    %7322 = vmatmul.bf16.gmra.mxu0 %v5357
    %v7323 = vpop.f32.mrf.mxu0
    %v7324 = vadd.f32 %v7201, %v7323
    %v7325 = vpop.f32.mrf.mxu0
    %v7326 = vadd.f32 %v7203, %v7325
    %7327 = vmatmul.bf16.gmra.mxu0 %v5360
    %v7328 = vpop.f32.mrf.mxu0
    %v7329 = vadd.f32 %v7206, %v7328
    %v7330 = vpop.f32.mrf.mxu0
    %7331 = vdwg.mxu0
    %7332 = vmatpush.bf16.msra.mxu0 %v5982
    %7333 = vmatpush.bf16.msra.mxu0 %v5976
    %7334 = vmatpush.bf16.msra.mxu0 %v5970
    %7335 = vmatpush.bf16.msra.mxu0 %v5964
    %7336 = vmatpush.bf16.msra.mxu0 %v5958
    %7337 = vmatpush.bf16.msra.mxu0 %v5952
    %7338 = vmatpush.bf16.msra.mxu0 %v5946
    %7339 = vmatpush.bf16.msra.mxu0 %v5940
    %7340 = vmatmul.bf16.gmra.mxu0 %v5292
    %v7341 = vpop.f32.mrf.mxu0
    %v7342 = vadd.f32 0.0, %v7341
    %v7343 = vpop.f32.mrf.mxu0
    %v7344 = vadd.f32 0.0, %v7343
    %7345 = vmatmul.bf16.gmra.mxu0 %v5295
    %v7346 = vpop.f32.mrf.mxu0
    %v7347 = vadd.f32 0.0, %v7346
    %v7348 = vpop.f32.mrf.mxu0
    %v7349 = vadd.f32 0.0, %v7348
    %7350 = vmatmul.bf16.gmra.mxu0 %v5298
    %v7351 = vpop.f32.mrf.mxu0
    %v7352 = vadd.f32 0.0, %v7351
    %v7353 = vpop.f32.mrf.mxu0
    %v7354 = vadd.f32 0.0, %v7353
    %7355 = vmatmul.bf16.gmra.mxu0 %v5301
    %v7356 = vpop.f32.mrf.mxu0
    %v7357 = vadd.f32 0.0, %v7356
    %v7358 = vpop.f32.mrf.mxu0
    %v7359 = vadd.f32 0.0, %v7358
    %7360 = vmatmul.bf16.gmra.mxu0 %v5304
    %v7361 = vpop.f32.mrf.mxu0
    %v7362 = vadd.f32 0.0, %v7361
    %v7363 = vpop.f32.mrf.mxu0
    %v7364 = vadd.f32 0.0, %v7363
    %7365 = vmatmul.bf16.gmra.mxu0 %v5307
    %v7366 = vpop.f32.mrf.mxu0
    %v7367 = vadd.f32 0.0, %v7366
    %v7368 = vpop.f32.mrf.mxu0
    %v7369 = vadd.f32 0.0, %v7368
    %7370 = vmatmul.bf16.gmra.mxu0 %v5310
    %v7371 = vpop.f32.mrf.mxu0
    %v7372 = vadd.f32 0.0, %v7371
    %v7373 = vpop.f32.mrf.mxu0
    %v7374 = vadd.f32 0.0, %v7373
    %7375 = vmatmul.bf16.gmra.mxu0 %v5313
    %v7376 = vpop.f32.mrf.mxu0
    %v7377 = vadd.f32 0.0, %v7376
    %v7378 = vpop.f32.mrf.mxu0
    %v7379 = vadd.f32 0.0, %v7378
    %7380 = vmatmul.bf16.gmra.mxu0 %v5316
    %v7381 = vpop.f32.mrf.mxu0
    %v7382 = vadd.f32 0.0, %v7381
    %v7383 = vpop.f32.mrf.mxu0
    %v7384 = vadd.f32 0.0, %v7383
    %7385 = vmatmul.bf16.gmra.mxu0 %v5319
    %v7386 = vpop.f32.mrf.mxu0
    %v7387 = vadd.f32 0.0, %v7386
    %v7388 = vpop.f32.mrf.mxu0
    %v7389 = vadd.f32 0.0, %v7388
    %7390 = vmatmul.bf16.gmra.mxu0 %v5322
    %v7391 = vpop.f32.mrf.mxu0
    %v7392 = vadd.f32 0.0, %v7391
    %v7393 = vpop.f32.mrf.mxu0
    %v7394 = vadd.f32 0.0, %v7393
    %7395 = vmatmul.bf16.gmra.mxu0 %v5325
    %v7396 = vpop.f32.mrf.mxu0
    %v7397 = vadd.f32 0.0, %v7396
    %v7398 = vpop.f32.mrf.mxu0
    %v7399 = vadd.f32 0.0, %v7398
    %7400 = vmatmul.bf16.gmra.mxu0 %v5328
    %v7401 = vpop.f32.mrf.mxu0
    %v7402 = vadd.f32 0.0, %v7401
    %v7403 = vpop.f32.mrf.mxu0
    %v7404 = vadd.f32 0.0, %v7403
    %7405 = vmatmul.bf16.gmra.mxu0 %v5331
    %v7406 = vpop.f32.mrf.mxu0
    %v7407 = vadd.f32 0.0, %v7406
    %v7408 = vpop.f32.mrf.mxu0
    %v7409 = vadd.f32 0.0, %v7408
    %7410 = vmatmul.bf16.gmra.mxu0 %v5334
    %v7411 = vpop.f32.mrf.mxu0
    %v7412 = vadd.f32 0.0, %v7411
    %v7413 = vpop.f32.mrf.mxu0
    %v7414 = vadd.f32 0.0, %v7413
    %7415 = vmatmul.bf16.gmra.mxu0 %v5337
    %v7416 = vpop.f32.mrf.mxu0
    %v7417 = vadd.f32 0.0, %v7416
    %v7418 = vpop.f32.mrf.mxu0
    %v7419 = vadd.f32 0.0, %v7418
    %7420 = vmatmul.bf16.gmra.mxu0 %v5340
    %v7421 = vpop.f32.mrf.mxu0
    %v7422 = vadd.f32 0.0, %v7421
    %v7423 = vpop.f32.mrf.mxu0
    %v7424 = vadd.f32 0.0, %v7423
    %7425 = vmatmul.bf16.gmra.mxu0 %v5343
    %v7426 = vpop.f32.mrf.mxu0
    %v7427 = vadd.f32 0.0, %v7426
    %v7428 = vpop.f32.mrf.mxu0
    %v7429 = vadd.f32 0.0, %v7428
    %7430 = vmatmul.bf16.gmra.mxu0 %v5346
    %v7431 = vpop.f32.mrf.mxu0
    %v7432 = vadd.f32 0.0, %v7431
    %v7433 = vpop.f32.mrf.mxu0
    %v7434 = vadd.f32 0.0, %v7433
    %7435 = vmatmul.bf16.gmra.mxu0 %v5349
    %v7436 = vpop.f32.mrf.mxu0
    %v7437 = vadd.f32 0.0, %v7436
    %v7438 = vpop.f32.mrf.mxu0
    %v7439 = vadd.f32 0.0, %v7438
    %7440 = vmatmul.bf16.gmra.mxu0 %v5352
    %v7441 = vpop.f32.mrf.mxu0
    %v7442 = vadd.f32 0.0, %v7441
    %v7443 = vpop.f32.mrf.mxu0
    %v7444 = vadd.f32 0.0, %v7443
    %7445 = vmatmul.bf16.gmra.mxu0 %v5355
    %v7446 = vpop.f32.mrf.mxu0
    %v7447 = vadd.f32 0.0, %v7446
    %v7448 = vpop.f32.mrf.mxu0
    %v7449 = vadd.f32 0.0, %v7448
    %7450 = vmatmul.bf16.gmra.mxu0 %v5358
    %v7451 = vpop.f32.mrf.mxu0
    %v7452 = vadd.f32 0.0, %v7451
    %v7453 = vpop.f32.mrf.mxu0
    %7454 = vdwg.mxu0
    %7455 = vmatpush.bf16.msra.mxu0 %v6030
    %7456 = vmatpush.bf16.msra.mxu0 %v6024
    %7457 = vmatpush.bf16.msra.mxu0 %v6018
    %7458 = vmatpush.bf16.msra.mxu0 %v6012
    %7459 = vmatpush.bf16.msra.mxu0 %v6006
    %7460 = vmatpush.bf16.msra.mxu0 %v6000
    %7461 = vmatpush.bf16.msra.mxu0 %v5994
    %7462 = vmatpush.bf16.msra.mxu0 %v5988
    %7463 = vmatmul.bf16.gmra.mxu0 %v5293
    %v7464 = vpop.f32.mrf.mxu0
    %v7465 = vadd.f32 %v7342, %v7464
    %v7466 = vpop.f32.mrf.mxu0
    %v7467 = vadd.f32 %v7344, %v7466
    %7468 = vmatmul.bf16.gmra.mxu0 %v5296
    %v7469 = vpop.f32.mrf.mxu0
    %v7470 = vadd.f32 %v7347, %v7469
    %v7471 = vpop.f32.mrf.mxu0
    %v7472 = vadd.f32 %v7349, %v7471
    %7473 = vmatmul.bf16.gmra.mxu0 %v5299
    %v7474 = vpop.f32.mrf.mxu0
    %v7475 = vadd.f32 %v7352, %v7474
    %v7476 = vpop.f32.mrf.mxu0
    %v7477 = vadd.f32 %v7354, %v7476
    %7478 = vmatmul.bf16.gmra.mxu0 %v5302
    %v7479 = vpop.f32.mrf.mxu0
    %v7480 = vadd.f32 %v7357, %v7479
    %v7481 = vpop.f32.mrf.mxu0
    %v7482 = vadd.f32 %v7359, %v7481
    %7483 = vmatmul.bf16.gmra.mxu0 %v5305
    %v7484 = vpop.f32.mrf.mxu0
    %v7485 = vadd.f32 %v7362, %v7484
    %v7486 = vpop.f32.mrf.mxu0
    %v7487 = vadd.f32 %v7364, %v7486
    %7488 = vmatmul.bf16.gmra.mxu0 %v5308
    %v7489 = vpop.f32.mrf.mxu0
    %v7490 = vadd.f32 %v7367, %v7489
    %v7491 = vpop.f32.mrf.mxu0
    %v7492 = vadd.f32 %v7369, %v7491
    %7493 = vmatmul.bf16.gmra.mxu0 %v5311
    %v7494 = vpop.f32.mrf.mxu0
    %v7495 = vadd.f32 %v7372, %v7494
    %v7496 = vpop.f32.mrf.mxu0
    %v7497 = vadd.f32 %v7374, %v7496
    %7498 = vmatmul.bf16.gmra.mxu0 %v5314
    %v7499 = vpop.f32.mrf.mxu0
    %v7500 = vadd.f32 %v7377, %v7499
    %v7501 = vpop.f32.mrf.mxu0
    %v7502 = vadd.f32 %v7379, %v7501
    %7503 = vmatmul.bf16.gmra.mxu0 %v5317
    %v7504 = vpop.f32.mrf.mxu0
    %v7505 = vadd.f32 %v7382, %v7504
    %v7506 = vpop.f32.mrf.mxu0
    %v7507 = vadd.f32 %v7384, %v7506
    %7508 = vmatmul.bf16.gmra.mxu0 %v5320
    %v7509 = vpop.f32.mrf.mxu0
    %v7510 = vadd.f32 %v7387, %v7509
    %v7511 = vpop.f32.mrf.mxu0
    %v7512 = vadd.f32 %v7389, %v7511
    %7513 = vmatmul.bf16.gmra.mxu0 %v5323
    %v7514 = vpop.f32.mrf.mxu0
    %v7515 = vadd.f32 %v7392, %v7514
    %v7516 = vpop.f32.mrf.mxu0
    %v7517 = vadd.f32 %v7394, %v7516
    %7518 = vmatmul.bf16.gmra.mxu0 %v5326
    %v7519 = vpop.f32.mrf.mxu0
    %v7520 = vadd.f32 %v7397, %v7519
    %v7521 = vpop.f32.mrf.mxu0
    %v7522 = vadd.f32 %v7399, %v7521
    %7523 = vmatmul.bf16.gmra.mxu0 %v5329
    %v7524 = vpop.f32.mrf.mxu0
    %v7525 = vadd.f32 %v7402, %v7524
    %v7526 = vpop.f32.mrf.mxu0
    %v7527 = vadd.f32 %v7404, %v7526
    %7528 = vmatmul.bf16.gmra.mxu0 %v5332
    %v7529 = vpop.f32.mrf.mxu0
    %v7530 = vadd.f32 %v7407, %v7529
    %v7531 = vpop.f32.mrf.mxu0
    %v7532 = vadd.f32 %v7409, %v7531
    %7533 = vmatmul.bf16.gmra.mxu0 %v5335
    %v7534 = vpop.f32.mrf.mxu0
    %v7535 = vadd.f32 %v7412, %v7534
    %v7536 = vpop.f32.mrf.mxu0
    %v7537 = vadd.f32 %v7414, %v7536
    %7538 = vmatmul.bf16.gmra.mxu0 %v5338
    %v7539 = vpop.f32.mrf.mxu0
    %v7540 = vadd.f32 %v7417, %v7539
    %v7541 = vpop.f32.mrf.mxu0
    %v7542 = vadd.f32 %v7419, %v7541
    %7543 = vmatmul.bf16.gmra.mxu0 %v5341
    %v7544 = vpop.f32.mrf.mxu0
    %v7545 = vadd.f32 %v7422, %v7544
    %v7546 = vpop.f32.mrf.mxu0
    %v7547 = vadd.f32 %v7424, %v7546
    %7548 = vmatmul.bf16.gmra.mxu0 %v5344
    %v7549 = vpop.f32.mrf.mxu0
    %v7550 = vadd.f32 %v7427, %v7549
    %v7551 = vpop.f32.mrf.mxu0
    %v7552 = vadd.f32 %v7429, %v7551
    %7553 = vmatmul.bf16.gmra.mxu0 %v5347
    %v7554 = vpop.f32.mrf.mxu0
    %v7555 = vadd.f32 %v7432, %v7554
    %v7556 = vpop.f32.mrf.mxu0
    %v7557 = vadd.f32 %v7434, %v7556
    %7558 = vmatmul.bf16.gmra.mxu0 %v5350
    %v7559 = vpop.f32.mrf.mxu0
    %v7560 = vadd.f32 %v7437, %v7559
    %v7561 = vpop.f32.mrf.mxu0
    %v7562 = vadd.f32 %v7439, %v7561
    %7563 = vmatmul.bf16.gmra.mxu0 %v5353
    %v7564 = vpop.f32.mrf.mxu0
    %v7565 = vadd.f32 %v7442, %v7564
    %v7566 = vpop.f32.mrf.mxu0
    %v7567 = vadd.f32 %v7444, %v7566
    %7568 = vmatmul.bf16.gmra.mxu0 %v5356
    %v7569 = vpop.f32.mrf.mxu0
    %v7570 = vadd.f32 %v7447, %v7569
    %v7571 = vpop.f32.mrf.mxu0
    %v7572 = vadd.f32 %v7449, %v7571
    %7573 = vmatmul.bf16.gmra.mxu0 %v5359
    %v7574 = vpop.f32.mrf.mxu0
    %v7575 = vadd.f32 %v7452, %v7574
    %v7576 = vpop.f32.mrf.mxu0
    %7577 = vdwg.mxu0
    %7578 = vmatpush.bf16.msra.mxu0 %v6078
    %7579 = vmatpush.bf16.msra.mxu0 %v6072
    %7580 = vmatpush.bf16.msra.mxu0 %v6066
    %7581 = vmatpush.bf16.msra.mxu0 %v6060
    %7582 = vmatpush.bf16.msra.mxu0 %v6054
    %7583 = vmatpush.bf16.msra.mxu0 %v6048
    %7584 = vmatpush.bf16.msra.mxu0 %v6042
    %7585 = vmatpush.bf16.msra.mxu0 %v6036
    %7586 = vmatmul.bf16.gmra.mxu0 %v5294
    %v7587 = vpop.f32.mrf.mxu0
    %v7588 = vadd.f32 %v7465, %v7587
    %v7589 = vpop.f32.mrf.mxu0
    %v7590 = vadd.f32 %v7467, %v7589
    %7591 = vmatmul.bf16.gmra.mxu0 %v5297
    %v7592 = vpop.f32.mrf.mxu0
    %v7593 = vadd.f32 %v7470, %v7592
    %v7594 = vpop.f32.mrf.mxu0
    %v7595 = vadd.f32 %v7472, %v7594
    %7596 = vmatmul.bf16.gmra.mxu0 %v5300
    %v7597 = vpop.f32.mrf.mxu0
    %v7598 = vadd.f32 %v7475, %v7597
    %v7599 = vpop.f32.mrf.mxu0
    %v7600 = vadd.f32 %v7477, %v7599
    %7601 = vmatmul.bf16.gmra.mxu0 %v5303
    %v7602 = vpop.f32.mrf.mxu0
    %v7603 = vadd.f32 %v7480, %v7602
    %v7604 = vpop.f32.mrf.mxu0
    %v7605 = vadd.f32 %v7482, %v7604
    %7606 = vmatmul.bf16.gmra.mxu0 %v5306
    %v7607 = vpop.f32.mrf.mxu0
    %v7608 = vadd.f32 %v7485, %v7607
    %v7609 = vpop.f32.mrf.mxu0
    %v7610 = vadd.f32 %v7487, %v7609
    %7611 = vmatmul.bf16.gmra.mxu0 %v5309
    %v7612 = vpop.f32.mrf.mxu0
    %v7613 = vadd.f32 %v7490, %v7612
    %v7614 = vpop.f32.mrf.mxu0
    %v7615 = vadd.f32 %v7492, %v7614
    %7616 = vmatmul.bf16.gmra.mxu0 %v5312
    %v7617 = vpop.f32.mrf.mxu0
    %v7618 = vadd.f32 %v7495, %v7617
    %v7619 = vpop.f32.mrf.mxu0
    %v7620 = vadd.f32 %v7497, %v7619
    %7621 = vmatmul.bf16.gmra.mxu0 %v5315
    %v7622 = vpop.f32.mrf.mxu0
    %v7623 = vadd.f32 %v7500, %v7622
    %v7624 = vpop.f32.mrf.mxu0
    %v7625 = vadd.f32 %v7502, %v7624
    %7626 = vmatmul.bf16.gmra.mxu0 %v5318
    %v7627 = vpop.f32.mrf.mxu0
    %v7628 = vadd.f32 %v7505, %v7627
    %v7629 = vpop.f32.mrf.mxu0
    %v7630 = vadd.f32 %v7507, %v7629
    %7631 = vmatmul.bf16.gmra.mxu0 %v5321
    %v7632 = vpop.f32.mrf.mxu0
    %v7633 = vadd.f32 %v7510, %v7632
    %v7634 = vpop.f32.mrf.mxu0
    %v7635 = vadd.f32 %v7512, %v7634
    %7636 = vmatmul.bf16.gmra.mxu0 %v5324
    %v7637 = vpop.f32.mrf.mxu0
    %v7638 = vadd.f32 %v7515, %v7637
    %v7639 = vpop.f32.mrf.mxu0
    %v7640 = vadd.f32 %v7517, %v7639
    %7641 = vmatmul.bf16.gmra.mxu0 %v5327
    %v7642 = vpop.f32.mrf.mxu0
    %v7643 = vadd.f32 %v7520, %v7642
    %v7644 = vpop.f32.mrf.mxu0
    %v7645 = vadd.f32 %v7522, %v7644
    %7646 = vmatmul.bf16.gmra.mxu0 %v5330
    %v7647 = vpop.f32.mrf.mxu0
    %v7648 = vadd.f32 %v7525, %v7647
    %v7649 = vpop.f32.mrf.mxu0
    %v7650 = vadd.f32 %v7527, %v7649
    %7651 = vmatmul.bf16.gmra.mxu0 %v5333
    %v7652 = vpop.f32.mrf.mxu0
    %v7653 = vadd.f32 %v7530, %v7652
    %v7654 = vpop.f32.mrf.mxu0
    %v7655 = vadd.f32 %v7532, %v7654
    %7656 = vmatmul.bf16.gmra.mxu0 %v5336
    %v7657 = vpop.f32.mrf.mxu0
    %v7658 = vadd.f32 %v7535, %v7657
    %v7659 = vpop.f32.mrf.mxu0
    %v7660 = vadd.f32 %v7537, %v7659
    %7661 = vmatmul.bf16.gmra.mxu0 %v5339
    %v7662 = vpop.f32.mrf.mxu0
    %v7663 = vadd.f32 %v7540, %v7662
    %v7664 = vpop.f32.mrf.mxu0
    %v7665 = vadd.f32 %v7542, %v7664
    %7666 = vmatmul.bf16.gmra.mxu0 %v5342
    %v7667 = vpop.f32.mrf.mxu0
    %v7668 = vadd.f32 %v7545, %v7667
    %v7669 = vpop.f32.mrf.mxu0
    %v7670 = vadd.f32 %v7547, %v7669
    %7671 = vmatmul.bf16.gmra.mxu0 %v5345
    %v7672 = vpop.f32.mrf.mxu0
    %v7673 = vadd.f32 %v7550, %v7672
    %v7674 = vpop.f32.mrf.mxu0
    %v7675 = vadd.f32 %v7552, %v7674
    %7676 = vmatmul.bf16.gmra.mxu0 %v5348
    %v7677 = vpop.f32.mrf.mxu0
    %v7678 = vadd.f32 %v7555, %v7677
    %v7679 = vpop.f32.mrf.mxu0
    %v7680 = vadd.f32 %v7557, %v7679
    %7681 = vmatmul.bf16.gmra.mxu0 %v5351
    %v7682 = vpop.f32.mrf.mxu0
    %v7683 = vadd.f32 %v7560, %v7682
    %v7684 = vpop.f32.mrf.mxu0
    %v7685 = vadd.f32 %v7562, %v7684
    %7686 = vmatmul.bf16.gmra.mxu0 %v5354
    %v7687 = vpop.f32.mrf.mxu0
    %v7688 = vadd.f32 %v7565, %v7687
    %v7689 = vpop.f32.mrf.mxu0
    %v7690 = vadd.f32 %v7567, %v7689
    %7691 = vmatmul.bf16.gmra.mxu0 %v5357
    %v7692 = vpop.f32.mrf.mxu0
    %v7693 = vadd.f32 %v7570, %v7692
    %v7694 = vpop.f32.mrf.mxu0
    %v7695 = vadd.f32 %v7572, %v7694
    %7696 = vmatmul.bf16.gmra.mxu0 %v5360
    %v7697 = vpop.f32.mrf.mxu0
    %v7698 = vadd.f32 %v7575, %v7697
    %v7699 = vpop.f32.mrf.mxu0
    %7700 = vdwg.mxu0
    %7701 = vmatpush.bf16.msra.mxu0 %v5983
    %7702 = vmatpush.bf16.msra.mxu0 %v5977
    %7703 = vmatpush.bf16.msra.mxu0 %v5971
    %7704 = vmatpush.bf16.msra.mxu0 %v5965
    %7705 = vmatpush.bf16.msra.mxu0 %v5959
    %7706 = vmatpush.bf16.msra.mxu0 %v5953
    %7707 = vmatpush.bf16.msra.mxu0 %v5947
    %7708 = vmatpush.bf16.msra.mxu0 %v5941
    %7709 = vmatmul.bf16.gmra.mxu0 %v5292
    %v7710 = vpop.f32.mrf.mxu0
    %v7711 = vadd.f32 0.0, %v7710
    %v7712 = vpop.f32.mrf.mxu0
    %v7713 = vadd.f32 0.0, %v7712
    %7714 = vmatmul.bf16.gmra.mxu0 %v5295
    %v7715 = vpop.f32.mrf.mxu0
    %v7716 = vadd.f32 0.0, %v7715
    %v7717 = vpop.f32.mrf.mxu0
    %v7718 = vadd.f32 0.0, %v7717
    %7719 = vmatmul.bf16.gmra.mxu0 %v5298
    %v7720 = vpop.f32.mrf.mxu0
    %v7721 = vadd.f32 0.0, %v7720
    %v7722 = vpop.f32.mrf.mxu0
    %v7723 = vadd.f32 0.0, %v7722
    %7724 = vmatmul.bf16.gmra.mxu0 %v5301
    %v7725 = vpop.f32.mrf.mxu0
    %v7726 = vadd.f32 0.0, %v7725
    %v7727 = vpop.f32.mrf.mxu0
    %v7728 = vadd.f32 0.0, %v7727
    %7729 = vmatmul.bf16.gmra.mxu0 %v5304
    %v7730 = vpop.f32.mrf.mxu0
    %v7731 = vadd.f32 0.0, %v7730
    %v7732 = vpop.f32.mrf.mxu0
    %v7733 = vadd.f32 0.0, %v7732
    %7734 = vmatmul.bf16.gmra.mxu0 %v5307
    %v7735 = vpop.f32.mrf.mxu0
    %v7736 = vadd.f32 0.0, %v7735
    %v7737 = vpop.f32.mrf.mxu0
    %v7738 = vadd.f32 0.0, %v7737
    %7739 = vmatmul.bf16.gmra.mxu0 %v5310
    %v7740 = vpop.f32.mrf.mxu0
    %v7741 = vadd.f32 0.0, %v7740
    %v7742 = vpop.f32.mrf.mxu0
    %v7743 = vadd.f32 0.0, %v7742
    %7744 = vmatmul.bf16.gmra.mxu0 %v5313
    %v7745 = vpop.f32.mrf.mxu0
    %v7746 = vadd.f32 0.0, %v7745
    %v7747 = vpop.f32.mrf.mxu0
    %v7748 = vadd.f32 0.0, %v7747
    %7749 = vmatmul.bf16.gmra.mxu0 %v5316
    %v7750 = vpop.f32.mrf.mxu0
    %v7751 = vadd.f32 0.0, %v7750
    %v7752 = vpop.f32.mrf.mxu0
    %v7753 = vadd.f32 0.0, %v7752
    %7754 = vmatmul.bf16.gmra.mxu0 %v5319
    %v7755 = vpop.f32.mrf.mxu0
    %v7756 = vadd.f32 0.0, %v7755
    %v7757 = vpop.f32.mrf.mxu0
    %v7758 = vadd.f32 0.0, %v7757
    %7759 = vmatmul.bf16.gmra.mxu0 %v5322
    %v7760 = vpop.f32.mrf.mxu0
    %v7761 = vadd.f32 0.0, %v7760
    %v7762 = vpop.f32.mrf.mxu0
    %v7763 = vadd.f32 0.0, %v7762
    %7764 = vmatmul.bf16.gmra.mxu0 %v5325
    %v7765 = vpop.f32.mrf.mxu0
    %v7766 = vadd.f32 0.0, %v7765
    %v7767 = vpop.f32.mrf.mxu0
    %v7768 = vadd.f32 0.0, %v7767
    %7769 = vmatmul.bf16.gmra.mxu0 %v5328
    %v7770 = vpop.f32.mrf.mxu0
    %v7771 = vadd.f32 0.0, %v7770
    %v7772 = vpop.f32.mrf.mxu0
    %v7773 = vadd.f32 0.0, %v7772
    %7774 = vmatmul.bf16.gmra.mxu0 %v5331
    %v7775 = vpop.f32.mrf.mxu0
    %v7776 = vadd.f32 0.0, %v7775
    %v7777 = vpop.f32.mrf.mxu0
    %v7778 = vadd.f32 0.0, %v7777
    %7779 = vmatmul.bf16.gmra.mxu0 %v5334
    %v7780 = vpop.f32.mrf.mxu0
    %v7781 = vadd.f32 0.0, %v7780
    %v7782 = vpop.f32.mrf.mxu0
    %v7783 = vadd.f32 0.0, %v7782
    %7784 = vmatmul.bf16.gmra.mxu0 %v5337
    %v7785 = vpop.f32.mrf.mxu0
    %v7786 = vadd.f32 0.0, %v7785
    %v7787 = vpop.f32.mrf.mxu0
    %v7788 = vadd.f32 0.0, %v7787
    %7789 = vmatmul.bf16.gmra.mxu0 %v5340
    %v7790 = vpop.f32.mrf.mxu0
    %v7791 = vadd.f32 0.0, %v7790
    %v7792 = vpop.f32.mrf.mxu0
    %v7793 = vadd.f32 0.0, %v7792
    %7794 = vmatmul.bf16.gmra.mxu0 %v5343
    %v7795 = vpop.f32.mrf.mxu0
    %v7796 = vadd.f32 0.0, %v7795
    %v7797 = vpop.f32.mrf.mxu0
    %v7798 = vadd.f32 0.0, %v7797
    %7799 = vmatmul.bf16.gmra.mxu0 %v5346
    %v7800 = vpop.f32.mrf.mxu0
    %v7801 = vadd.f32 0.0, %v7800
    %v7802 = vpop.f32.mrf.mxu0
    %v7803 = vadd.f32 0.0, %v7802
    %7804 = vmatmul.bf16.gmra.mxu0 %v5349
    %v7805 = vpop.f32.mrf.mxu0
    %v7806 = vadd.f32 0.0, %v7805
    %v7807 = vpop.f32.mrf.mxu0
    %v7808 = vadd.f32 0.0, %v7807
    %7809 = vmatmul.bf16.gmra.mxu0 %v5352
    %v7810 = vpop.f32.mrf.mxu0
    %v7811 = vadd.f32 0.0, %v7810
    %v7812 = vpop.f32.mrf.mxu0
    %v7813 = vadd.f32 0.0, %v7812
    %7814 = vmatmul.bf16.gmra.mxu0 %v5355
    %v7815 = vpop.f32.mrf.mxu0
    %v7816 = vadd.f32 0.0, %v7815
    %v7817 = vpop.f32.mrf.mxu0
    %v7818 = vadd.f32 0.0, %v7817
    %7819 = vmatmul.bf16.gmra.mxu0 %v5358
    %v7820 = vpop.f32.mrf.mxu0
    %v7821 = vadd.f32 0.0, %v7820
    %v7822 = vpop.f32.mrf.mxu0
    %7823 = vdwg.mxu0
    %7824 = vmatpush.bf16.msra.mxu0 %v6031
    %7825 = vmatpush.bf16.msra.mxu0 %v6025
    %7826 = vmatpush.bf16.msra.mxu0 %v6019
    %7827 = vmatpush.bf16.msra.mxu0 %v6013
    %7828 = vmatpush.bf16.msra.mxu0 %v6007
    %7829 = vmatpush.bf16.msra.mxu0 %v6001
    %7830 = vmatpush.bf16.msra.mxu0 %v5995
    %7831 = vmatpush.bf16.msra.mxu0 %v5989
    %7832 = vmatmul.bf16.gmra.mxu0 %v5293
    %v7833 = vpop.f32.mrf.mxu0
    %v7834 = vadd.f32 %v7711, %v7833
    %v7835 = vpop.f32.mrf.mxu0
    %v7836 = vadd.f32 %v7713, %v7835
    %7837 = vmatmul.bf16.gmra.mxu0 %v5296
    %v7838 = vpop.f32.mrf.mxu0
    %v7839 = vadd.f32 %v7716, %v7838
    %v7840 = vpop.f32.mrf.mxu0
    %v7841 = vadd.f32 %v7718, %v7840
    %7842 = vmatmul.bf16.gmra.mxu0 %v5299
    %v7843 = vpop.f32.mrf.mxu0
    %v7844 = vadd.f32 %v7721, %v7843
    %v7845 = vpop.f32.mrf.mxu0
    %v7846 = vadd.f32 %v7723, %v7845
    %7847 = vmatmul.bf16.gmra.mxu0 %v5302
    %v7848 = vpop.f32.mrf.mxu0
    %v7849 = vadd.f32 %v7726, %v7848
    %v7850 = vpop.f32.mrf.mxu0
    %v7851 = vadd.f32 %v7728, %v7850
    %7852 = vmatmul.bf16.gmra.mxu0 %v5305
    %v7853 = vpop.f32.mrf.mxu0
    %v7854 = vadd.f32 %v7731, %v7853
    %v7855 = vpop.f32.mrf.mxu0
    %v7856 = vadd.f32 %v7733, %v7855
    %7857 = vmatmul.bf16.gmra.mxu0 %v5308
    %v7858 = vpop.f32.mrf.mxu0
    %v7859 = vadd.f32 %v7736, %v7858
    %v7860 = vpop.f32.mrf.mxu0
    %v7861 = vadd.f32 %v7738, %v7860
    %7862 = vmatmul.bf16.gmra.mxu0 %v5311
    %v7863 = vpop.f32.mrf.mxu0
    %v7864 = vadd.f32 %v7741, %v7863
    %v7865 = vpop.f32.mrf.mxu0
    %v7866 = vadd.f32 %v7743, %v7865
    %7867 = vmatmul.bf16.gmra.mxu0 %v5314
    %v7868 = vpop.f32.mrf.mxu0
    %v7869 = vadd.f32 %v7746, %v7868
    %v7870 = vpop.f32.mrf.mxu0
    %v7871 = vadd.f32 %v7748, %v7870
    %7872 = vmatmul.bf16.gmra.mxu0 %v5317
    %v7873 = vpop.f32.mrf.mxu0
    %v7874 = vadd.f32 %v7751, %v7873
    %v7875 = vpop.f32.mrf.mxu0
    %v7876 = vadd.f32 %v7753, %v7875
    %7877 = vmatmul.bf16.gmra.mxu0 %v5320
    %v7878 = vpop.f32.mrf.mxu0
    %v7879 = vadd.f32 %v7756, %v7878
    %v7880 = vpop.f32.mrf.mxu0
    %v7881 = vadd.f32 %v7758, %v7880
    %7882 = vmatmul.bf16.gmra.mxu0 %v5323
    %v7883 = vpop.f32.mrf.mxu0
    %v7884 = vadd.f32 %v7761, %v7883
    %v7885 = vpop.f32.mrf.mxu0
    %v7886 = vadd.f32 %v7763, %v7885
    %7887 = vmatmul.bf16.gmra.mxu0 %v5326
    %v7888 = vpop.f32.mrf.mxu0
    %v7889 = vadd.f32 %v7766, %v7888
    %v7890 = vpop.f32.mrf.mxu0
    %v7891 = vadd.f32 %v7768, %v7890
    %7892 = vmatmul.bf16.gmra.mxu0 %v5329
    %v7893 = vpop.f32.mrf.mxu0
    %v7894 = vadd.f32 %v7771, %v7893
    %v7895 = vpop.f32.mrf.mxu0
    %v7896 = vadd.f32 %v7773, %v7895
    %7897 = vmatmul.bf16.gmra.mxu0 %v5332
    %v7898 = vpop.f32.mrf.mxu0
    %v7899 = vadd.f32 %v7776, %v7898
    %v7900 = vpop.f32.mrf.mxu0
    %v7901 = vadd.f32 %v7778, %v7900
    %7902 = vmatmul.bf16.gmra.mxu0 %v5335
    %v7903 = vpop.f32.mrf.mxu0
    %v7904 = vadd.f32 %v7781, %v7903
    %v7905 = vpop.f32.mrf.mxu0
    %v7906 = vadd.f32 %v7783, %v7905
    %7907 = vmatmul.bf16.gmra.mxu0 %v5338
    %v7908 = vpop.f32.mrf.mxu0
    %v7909 = vadd.f32 %v7786, %v7908
    %v7910 = vpop.f32.mrf.mxu0
    %v7911 = vadd.f32 %v7788, %v7910
    %7912 = vmatmul.bf16.gmra.mxu0 %v5341
    %v7913 = vpop.f32.mrf.mxu0
    %v7914 = vadd.f32 %v7791, %v7913
    %v7915 = vpop.f32.mrf.mxu0
    %v7916 = vadd.f32 %v7793, %v7915
    %7917 = vmatmul.bf16.gmra.mxu0 %v5344
    %v7918 = vpop.f32.mrf.mxu0
    %v7919 = vadd.f32 %v7796, %v7918
    %v7920 = vpop.f32.mrf.mxu0
    %v7921 = vadd.f32 %v7798, %v7920
    %7922 = vmatmul.bf16.gmra.mxu0 %v5347
    %v7923 = vpop.f32.mrf.mxu0
    %v7924 = vadd.f32 %v7801, %v7923
    %v7925 = vpop.f32.mrf.mxu0
    %v7926 = vadd.f32 %v7803, %v7925
    %7927 = vmatmul.bf16.gmra.mxu0 %v5350
    %v7928 = vpop.f32.mrf.mxu0
    %v7929 = vadd.f32 %v7806, %v7928
    %v7930 = vpop.f32.mrf.mxu0
    %v7931 = vadd.f32 %v7808, %v7930
    %7932 = vmatmul.bf16.gmra.mxu0 %v5353
    %v7933 = vpop.f32.mrf.mxu0
    %v7934 = vadd.f32 %v7811, %v7933
    %v7935 = vpop.f32.mrf.mxu0
    %v7936 = vadd.f32 %v7813, %v7935
    %7937 = vmatmul.bf16.gmra.mxu0 %v5356
    %v7938 = vpop.f32.mrf.mxu0
    %v7939 = vadd.f32 %v7816, %v7938
    %v7940 = vpop.f32.mrf.mxu0
    %v7941 = vadd.f32 %v7818, %v7940
    %7942 = vmatmul.bf16.gmra.mxu0 %v5359
    %v7943 = vpop.f32.mrf.mxu0
    %v7944 = vadd.f32 %v7821, %v7943
    %v7945 = vpop.f32.mrf.mxu0
    %7946 = vdwg.mxu0
    %7947 = vmatpush.bf16.msra.mxu0 %v6079
    %7948 = vmatpush.bf16.msra.mxu0 %v6073
    %7949 = vmatpush.bf16.msra.mxu0 %v6067
    %7950 = vmatpush.bf16.msra.mxu0 %v6061
    %7951 = vmatpush.bf16.msra.mxu0 %v6055
    %7952 = vmatpush.bf16.msra.mxu0 %v6049
    %7953 = vmatpush.bf16.msra.mxu0 %v6043
    %7954 = vmatpush.bf16.msra.mxu0 %v6037
    %7955 = vmatmul.bf16.gmra.mxu0 %v5294
    %v7956 = vpop.f32.mrf.mxu0
    %v7957 = vadd.f32 %v7834, %v7956
    %v7958 = vpop.f32.mrf.mxu0
    %v7959 = vadd.f32 %v7836, %v7958
    %7960 = vmatmul.bf16.gmra.mxu0 %v5297
    %v7961 = vpop.f32.mrf.mxu0
    %v7962 = vadd.f32 %v7839, %v7961
    %v7963 = vpop.f32.mrf.mxu0
    %v7964 = vadd.f32 %v7841, %v7963
    %7965 = vmatmul.bf16.gmra.mxu0 %v5300
    %v7966 = vpop.f32.mrf.mxu0
    %v7967 = vadd.f32 %v7844, %v7966
    %v7968 = vpop.f32.mrf.mxu0
    %v7969 = vadd.f32 %v7846, %v7968
    %7970 = vmatmul.bf16.gmra.mxu0 %v5303
    %v7971 = vpop.f32.mrf.mxu0
    %v7972 = vadd.f32 %v7849, %v7971
    %v7973 = vpop.f32.mrf.mxu0
    %v7974 = vadd.f32 %v7851, %v7973
    %7975 = vmatmul.bf16.gmra.mxu0 %v5306
    %v7976 = vpop.f32.mrf.mxu0
    %v7977 = vadd.f32 %v7854, %v7976
    %v7978 = vpop.f32.mrf.mxu0
    %v7979 = vadd.f32 %v7856, %v7978
    %7980 = vmatmul.bf16.gmra.mxu0 %v5309
    %v7981 = vpop.f32.mrf.mxu0
    %v7982 = vadd.f32 %v7859, %v7981
    %v7983 = vpop.f32.mrf.mxu0
    %v7984 = vadd.f32 %v7861, %v7983
    %7985 = vmatmul.bf16.gmra.mxu0 %v5312
    %v7986 = vpop.f32.mrf.mxu0
    %v7987 = vadd.f32 %v7864, %v7986
    %v7988 = vpop.f32.mrf.mxu0
    %v7989 = vadd.f32 %v7866, %v7988
    %7990 = vmatmul.bf16.gmra.mxu0 %v5315
    %v7991 = vpop.f32.mrf.mxu0
    %v7992 = vadd.f32 %v7869, %v7991
    %v7993 = vpop.f32.mrf.mxu0
    %v7994 = vadd.f32 %v7871, %v7993
    %7995 = vmatmul.bf16.gmra.mxu0 %v5318
    %v7996 = vpop.f32.mrf.mxu0
    %v7997 = vadd.f32 %v7874, %v7996
    %v7998 = vpop.f32.mrf.mxu0
    %v7999 = vadd.f32 %v7876, %v7998
    %8000 = vmatmul.bf16.gmra.mxu0 %v5321
    %v8001 = vpop.f32.mrf.mxu0
    %v8002 = vadd.f32 %v7879, %v8001
    %v8003 = vpop.f32.mrf.mxu0
    %v8004 = vadd.f32 %v7881, %v8003
    %8005 = vmatmul.bf16.gmra.mxu0 %v5324
    %v8006 = vpop.f32.mrf.mxu0
    %v8007 = vadd.f32 %v7884, %v8006
    %v8008 = vpop.f32.mrf.mxu0
    %v8009 = vadd.f32 %v7886, %v8008
    %8010 = vmatmul.bf16.gmra.mxu0 %v5327
    %v8011 = vpop.f32.mrf.mxu0
    %v8012 = vadd.f32 %v7889, %v8011
    %v8013 = vpop.f32.mrf.mxu0
    %v8014 = vadd.f32 %v7891, %v8013
    %8015 = vmatmul.bf16.gmra.mxu0 %v5330
    %v8016 = vpop.f32.mrf.mxu0
    %v8017 = vadd.f32 %v7894, %v8016
    %v8018 = vpop.f32.mrf.mxu0
    %v8019 = vadd.f32 %v7896, %v8018
    %8020 = vmatmul.bf16.gmra.mxu0 %v5333
    %v8021 = vpop.f32.mrf.mxu0
    %v8022 = vadd.f32 %v7899, %v8021
    %v8023 = vpop.f32.mrf.mxu0
    %v8024 = vadd.f32 %v7901, %v8023
    %8025 = vmatmul.bf16.gmra.mxu0 %v5336
    %v8026 = vpop.f32.mrf.mxu0
    %v8027 = vadd.f32 %v7904, %v8026
    %v8028 = vpop.f32.mrf.mxu0
    %v8029 = vadd.f32 %v7906, %v8028
    %8030 = vmatmul.bf16.gmra.mxu0 %v5339
    %v8031 = vpop.f32.mrf.mxu0
    %v8032 = vadd.f32 %v7909, %v8031
    %v8033 = vpop.f32.mrf.mxu0
    %v8034 = vadd.f32 %v7911, %v8033
    %8035 = vmatmul.bf16.gmra.mxu0 %v5342
    %v8036 = vpop.f32.mrf.mxu0
    %v8037 = vadd.f32 %v7914, %v8036
    %v8038 = vpop.f32.mrf.mxu0
    %v8039 = vadd.f32 %v7916, %v8038
    %8040 = vmatmul.bf16.gmra.mxu0 %v5345
    %v8041 = vpop.f32.mrf.mxu0
    %v8042 = vadd.f32 %v7919, %v8041
    %v8043 = vpop.f32.mrf.mxu0
    %v8044 = vadd.f32 %v7921, %v8043
    %8045 = vmatmul.bf16.gmra.mxu0 %v5348
    %v8046 = vpop.f32.mrf.mxu0
    %v8047 = vadd.f32 %v7924, %v8046
    %v8048 = vpop.f32.mrf.mxu0
    %v8049 = vadd.f32 %v7926, %v8048
    %8050 = vmatmul.bf16.gmra.mxu0 %v5351
    %v8051 = vpop.f32.mrf.mxu0
    %v8052 = vadd.f32 %v7929, %v8051
    %v8053 = vpop.f32.mrf.mxu0
    %v8054 = vadd.f32 %v7931, %v8053
    %8055 = vmatmul.bf16.gmra.mxu0 %v5354
    %v8056 = vpop.f32.mrf.mxu0
    %v8057 = vadd.f32 %v7934, %v8056
    %v8058 = vpop.f32.mrf.mxu0
    %v8059 = vadd.f32 %v7936, %v8058
    %8060 = vmatmul.bf16.gmra.mxu0 %v5357
    %v8061 = vpop.f32.mrf.mxu0
    %v8062 = vadd.f32 %v7939, %v8061
    %v8063 = vpop.f32.mrf.mxu0
    %v8064 = vadd.f32 %v7941, %v8063
    %8065 = vmatmul.bf16.gmra.mxu0 %v5360
    %v8066 = vpop.f32.mrf.mxu0
    %v8067 = vadd.f32 %v7944, %v8066
    %v8068 = vpop.f32.mrf.mxu0
    %8069 = vdwg.mxu0
    %8070 = vmatpush.bf16.msra.mxu0 %v5984
    %8071 = vmatpush.bf16.msra.mxu0 %v5978
    %8072 = vmatpush.bf16.msra.mxu0 %v5972
    %8073 = vmatpush.bf16.msra.mxu0 %v5966
    %8074 = vmatpush.bf16.msra.mxu0 %v5960
    %8075 = vmatpush.bf16.msra.mxu0 %v5954
    %8076 = vmatpush.bf16.msra.mxu0 %v5948
    %8077 = vmatpush.bf16.msra.mxu0 %v5942
    %8078 = vmatmul.bf16.gmra.mxu0 %v5292
    %v8079 = vpop.f32.mrf.mxu0
    %v8080 = vadd.f32 0.0, %v8079
    %v8081 = vpop.f32.mrf.mxu0
    %v8082 = vadd.f32 0.0, %v8081
    %8083 = vmatmul.bf16.gmra.mxu0 %v5295
    %v8084 = vpop.f32.mrf.mxu0
    %v8085 = vadd.f32 0.0, %v8084
    %v8086 = vpop.f32.mrf.mxu0
    %v8087 = vadd.f32 0.0, %v8086
    %8088 = vmatmul.bf16.gmra.mxu0 %v5298
    %v8089 = vpop.f32.mrf.mxu0
    %v8090 = vadd.f32 0.0, %v8089
    %v8091 = vpop.f32.mrf.mxu0
    %v8092 = vadd.f32 0.0, %v8091
    %8093 = vmatmul.bf16.gmra.mxu0 %v5301
    %v8094 = vpop.f32.mrf.mxu0
    %v8095 = vadd.f32 0.0, %v8094
    %v8096 = vpop.f32.mrf.mxu0
    %v8097 = vadd.f32 0.0, %v8096
    %8098 = vmatmul.bf16.gmra.mxu0 %v5304
    %v8099 = vpop.f32.mrf.mxu0
    %v8100 = vadd.f32 0.0, %v8099
    %v8101 = vpop.f32.mrf.mxu0
    %v8102 = vadd.f32 0.0, %v8101
    %8103 = vmatmul.bf16.gmra.mxu0 %v5307
    %v8104 = vpop.f32.mrf.mxu0
    %v8105 = vadd.f32 0.0, %v8104
    %v8106 = vpop.f32.mrf.mxu0
    %v8107 = vadd.f32 0.0, %v8106
    %8108 = vmatmul.bf16.gmra.mxu0 %v5310
    %v8109 = vpop.f32.mrf.mxu0
    %v8110 = vadd.f32 0.0, %v8109
    %v8111 = vpop.f32.mrf.mxu0
    %v8112 = vadd.f32 0.0, %v8111
    %8113 = vmatmul.bf16.gmra.mxu0 %v5313
    %v8114 = vpop.f32.mrf.mxu0
    %v8115 = vadd.f32 0.0, %v8114
    %v8116 = vpop.f32.mrf.mxu0
    %v8117 = vadd.f32 0.0, %v8116
    %8118 = vmatmul.bf16.gmra.mxu0 %v5316
    %v8119 = vpop.f32.mrf.mxu0
    %v8120 = vadd.f32 0.0, %v8119
    %v8121 = vpop.f32.mrf.mxu0
    %v8122 = vadd.f32 0.0, %v8121
    %8123 = vmatmul.bf16.gmra.mxu0 %v5319
    %v8124 = vpop.f32.mrf.mxu0
    %v8125 = vadd.f32 0.0, %v8124
    %v8126 = vpop.f32.mrf.mxu0
    %v8127 = vadd.f32 0.0, %v8126
    %8128 = vmatmul.bf16.gmra.mxu0 %v5322
    %v8129 = vpop.f32.mrf.mxu0
    %v8130 = vadd.f32 0.0, %v8129
    %v8131 = vpop.f32.mrf.mxu0
    %v8132 = vadd.f32 0.0, %v8131
    %8133 = vmatmul.bf16.gmra.mxu0 %v5325
    %v8134 = vpop.f32.mrf.mxu0
    %v8135 = vadd.f32 0.0, %v8134
    %v8136 = vpop.f32.mrf.mxu0
    %v8137 = vadd.f32 0.0, %v8136
    %8138 = vmatmul.bf16.gmra.mxu0 %v5328
    %v8139 = vpop.f32.mrf.mxu0
    %v8140 = vadd.f32 0.0, %v8139
    %v8141 = vpop.f32.mrf.mxu0
    %v8142 = vadd.f32 0.0, %v8141
    %8143 = vmatmul.bf16.gmra.mxu0 %v5331
    %v8144 = vpop.f32.mrf.mxu0
    %v8145 = vadd.f32 0.0, %v8144
    %v8146 = vpop.f32.mrf.mxu0
    %v8147 = vadd.f32 0.0, %v8146
    %8148 = vmatmul.bf16.gmra.mxu0 %v5334
    %v8149 = vpop.f32.mrf.mxu0
    %v8150 = vadd.f32 0.0, %v8149
    %v8151 = vpop.f32.mrf.mxu0
    %v8152 = vadd.f32 0.0, %v8151
    %8153 = vmatmul.bf16.gmra.mxu0 %v5337
    %v8154 = vpop.f32.mrf.mxu0
    %v8155 = vadd.f32 0.0, %v8154
    %v8156 = vpop.f32.mrf.mxu0
    %v8157 = vadd.f32 0.0, %v8156
    %8158 = vmatmul.bf16.gmra.mxu0 %v5340
    %v8159 = vpop.f32.mrf.mxu0
    %v8160 = vadd.f32 0.0, %v8159
    %v8161 = vpop.f32.mrf.mxu0
    %v8162 = vadd.f32 0.0, %v8161
    %8163 = vmatmul.bf16.gmra.mxu0 %v5343
    %v8164 = vpop.f32.mrf.mxu0
    %v8165 = vadd.f32 0.0, %v8164
    %v8166 = vpop.f32.mrf.mxu0
    %v8167 = vadd.f32 0.0, %v8166
    %8168 = vmatmul.bf16.gmra.mxu0 %v5346
    %v8169 = vpop.f32.mrf.mxu0
    %v8170 = vadd.f32 0.0, %v8169
    %v8171 = vpop.f32.mrf.mxu0
    %v8172 = vadd.f32 0.0, %v8171
    %8173 = vmatmul.bf16.gmra.mxu0 %v5349
    %v8174 = vpop.f32.mrf.mxu0
    %v8175 = vadd.f32 0.0, %v8174
    %v8176 = vpop.f32.mrf.mxu0
    %v8177 = vadd.f32 0.0, %v8176
    %8178 = vmatmul.bf16.gmra.mxu0 %v5352
    %v8179 = vpop.f32.mrf.mxu0
    %v8180 = vadd.f32 0.0, %v8179
    %v8181 = vpop.f32.mrf.mxu0
    %v8182 = vadd.f32 0.0, %v8181
    %8183 = vmatmul.bf16.gmra.mxu0 %v5355
    %v8184 = vpop.f32.mrf.mxu0
    %v8185 = vadd.f32 0.0, %v8184
    %v8186 = vpop.f32.mrf.mxu0
    %v8187 = vadd.f32 0.0, %v8186
    %8188 = vmatmul.bf16.gmra.mxu0 %v5358
    %v8189 = vpop.f32.mrf.mxu0
    %v8190 = vadd.f32 0.0, %v8189
    %v8191 = vpop.f32.mrf.mxu0
    %8192 = vdwg.mxu0
    %8193 = vmatpush.bf16.msra.mxu0 %v6032
    %8194 = vmatpush.bf16.msra.mxu0 %v6026
    %8195 = vmatpush.bf16.msra.mxu0 %v6020
    %8196 = vmatpush.bf16.msra.mxu0 %v6014
    %8197 = vmatpush.bf16.msra.mxu0 %v6008
    %8198 = vmatpush.bf16.msra.mxu0 %v6002
    %8199 = vmatpush.bf16.msra.mxu0 %v5996
    %8200 = vmatpush.bf16.msra.mxu0 %v5990
    %8201 = vmatmul.bf16.gmra.mxu0 %v5293
    %v8202 = vpop.f32.mrf.mxu0
    %v8203 = vadd.f32 %v8080, %v8202
    %v8204 = vpop.f32.mrf.mxu0
    %v8205 = vadd.f32 %v8082, %v8204
    %8206 = vmatmul.bf16.gmra.mxu0 %v5296
    %v8207 = vpop.f32.mrf.mxu0
    %v8208 = vadd.f32 %v8085, %v8207
    %v8209 = vpop.f32.mrf.mxu0
    %v8210 = vadd.f32 %v8087, %v8209
    %8211 = vmatmul.bf16.gmra.mxu0 %v5299
    %v8212 = vpop.f32.mrf.mxu0
    %v8213 = vadd.f32 %v8090, %v8212
    %v8214 = vpop.f32.mrf.mxu0
    %v8215 = vadd.f32 %v8092, %v8214
    %8216 = vmatmul.bf16.gmra.mxu0 %v5302
    %v8217 = vpop.f32.mrf.mxu0
    %v8218 = vadd.f32 %v8095, %v8217
    %v8219 = vpop.f32.mrf.mxu0
    %v8220 = vadd.f32 %v8097, %v8219
    %8221 = vmatmul.bf16.gmra.mxu0 %v5305
    %v8222 = vpop.f32.mrf.mxu0
    %v8223 = vadd.f32 %v8100, %v8222
    %v8224 = vpop.f32.mrf.mxu0
    %v8225 = vadd.f32 %v8102, %v8224
    %8226 = vmatmul.bf16.gmra.mxu0 %v5308
    %v8227 = vpop.f32.mrf.mxu0
    %v8228 = vadd.f32 %v8105, %v8227
    %v8229 = vpop.f32.mrf.mxu0
    %v8230 = vadd.f32 %v8107, %v8229
    %8231 = vmatmul.bf16.gmra.mxu0 %v5311
    %v8232 = vpop.f32.mrf.mxu0
    %v8233 = vadd.f32 %v8110, %v8232
    %v8234 = vpop.f32.mrf.mxu0
    %v8235 = vadd.f32 %v8112, %v8234
    %8236 = vmatmul.bf16.gmra.mxu0 %v5314
    %v8237 = vpop.f32.mrf.mxu0
    %v8238 = vadd.f32 %v8115, %v8237
    %v8239 = vpop.f32.mrf.mxu0
    %v8240 = vadd.f32 %v8117, %v8239
    %8241 = vmatmul.bf16.gmra.mxu0 %v5317
    %v8242 = vpop.f32.mrf.mxu0
    %v8243 = vadd.f32 %v8120, %v8242
    %v8244 = vpop.f32.mrf.mxu0
    %v8245 = vadd.f32 %v8122, %v8244
    %8246 = vmatmul.bf16.gmra.mxu0 %v5320
    %v8247 = vpop.f32.mrf.mxu0
    %v8248 = vadd.f32 %v8125, %v8247
    %v8249 = vpop.f32.mrf.mxu0
    %v8250 = vadd.f32 %v8127, %v8249
    %8251 = vmatmul.bf16.gmra.mxu0 %v5323
    %v8252 = vpop.f32.mrf.mxu0
    %v8253 = vadd.f32 %v8130, %v8252
    %v8254 = vpop.f32.mrf.mxu0
    %v8255 = vadd.f32 %v8132, %v8254
    %8256 = vmatmul.bf16.gmra.mxu0 %v5326
    %v8257 = vpop.f32.mrf.mxu0
    %v8258 = vadd.f32 %v8135, %v8257
    %v8259 = vpop.f32.mrf.mxu0
    %v8260 = vadd.f32 %v8137, %v8259
    %8261 = vmatmul.bf16.gmra.mxu0 %v5329
    %v8262 = vpop.f32.mrf.mxu0
    %v8263 = vadd.f32 %v8140, %v8262
    %v8264 = vpop.f32.mrf.mxu0
    %v8265 = vadd.f32 %v8142, %v8264
    %8266 = vmatmul.bf16.gmra.mxu0 %v5332
    %v8267 = vpop.f32.mrf.mxu0
    %v8268 = vadd.f32 %v8145, %v8267
    %v8269 = vpop.f32.mrf.mxu0
    %v8270 = vadd.f32 %v8147, %v8269
    %8271 = vmatmul.bf16.gmra.mxu0 %v5335
    %v8272 = vpop.f32.mrf.mxu0
    %v8273 = vadd.f32 %v8150, %v8272
    %v8274 = vpop.f32.mrf.mxu0
    %v8275 = vadd.f32 %v8152, %v8274
    %8276 = vmatmul.bf16.gmra.mxu0 %v5338
    %v8277 = vpop.f32.mrf.mxu0
    %v8278 = vadd.f32 %v8155, %v8277
    %v8279 = vpop.f32.mrf.mxu0
    %v8280 = vadd.f32 %v8157, %v8279
    %8281 = vmatmul.bf16.gmra.mxu0 %v5341
    %v8282 = vpop.f32.mrf.mxu0
    %v8283 = vadd.f32 %v8160, %v8282
    %v8284 = vpop.f32.mrf.mxu0
    %v8285 = vadd.f32 %v8162, %v8284
    %8286 = vmatmul.bf16.gmra.mxu0 %v5344
    %v8287 = vpop.f32.mrf.mxu0
    %v8288 = vadd.f32 %v8165, %v8287
    %v8289 = vpop.f32.mrf.mxu0
    %v8290 = vadd.f32 %v8167, %v8289
    %8291 = vmatmul.bf16.gmra.mxu0 %v5347
    %v8292 = vpop.f32.mrf.mxu0
    %v8293 = vadd.f32 %v8170, %v8292
    %v8294 = vpop.f32.mrf.mxu0
    %v8295 = vadd.f32 %v8172, %v8294
    %8296 = vmatmul.bf16.gmra.mxu0 %v5350
    %v8297 = vpop.f32.mrf.mxu0
    %v8298 = vadd.f32 %v8175, %v8297
    %v8299 = vpop.f32.mrf.mxu0
    %v8300 = vadd.f32 %v8177, %v8299
    %8301 = vmatmul.bf16.gmra.mxu0 %v5353
    %v8302 = vpop.f32.mrf.mxu0
    %v8303 = vadd.f32 %v8180, %v8302
    %v8304 = vpop.f32.mrf.mxu0
    %v8305 = vadd.f32 %v8182, %v8304
    %8306 = vmatmul.bf16.gmra.mxu0 %v5356
    %v8307 = vpop.f32.mrf.mxu0
    %v8308 = vadd.f32 %v8185, %v8307
    %v8309 = vpop.f32.mrf.mxu0
    %v8310 = vadd.f32 %v8187, %v8309
    %8311 = vmatmul.bf16.gmra.mxu0 %v5359
    %v8312 = vpop.f32.mrf.mxu0
    %v8313 = vadd.f32 %v8190, %v8312
    %v8314 = vpop.f32.mrf.mxu0
    %8315 = vdwg.mxu0
    %8316 = vmatpush.bf16.msra.mxu0 %v6080
    %8317 = vmatpush.bf16.msra.mxu0 %v6074
    %8318 = vmatpush.bf16.msra.mxu0 %v6068
    %8319 = vmatpush.bf16.msra.mxu0 %v6062
    %8320 = vmatpush.bf16.msra.mxu0 %v6056
    %8321 = vmatpush.bf16.msra.mxu0 %v6050
    %8322 = vmatpush.bf16.msra.mxu0 %v6044
    %8323 = vmatpush.bf16.msra.mxu0 %v6038
    %8324 = vmatmul.bf16.gmra.mxu0 %v5294
    %v8325 = vpop.f32.mrf.mxu0
    %v8326 = vadd.f32 %v8203, %v8325
    %v8327 = vpop.f32.mrf.mxu0
    %v8328 = vadd.f32 %v8205, %v8327
    %8329 = vmatmul.bf16.gmra.mxu0 %v5297
    %v8330 = vpop.f32.mrf.mxu0
    %v8331 = vadd.f32 %v8208, %v8330
    %v8332 = vpop.f32.mrf.mxu0
    %v8333 = vadd.f32 %v8210, %v8332
    %8334 = vmatmul.bf16.gmra.mxu0 %v5300
    %v8335 = vpop.f32.mrf.mxu0
    %v8336 = vadd.f32 %v8213, %v8335
    %v8337 = vpop.f32.mrf.mxu0
    %v8338 = vadd.f32 %v8215, %v8337
    %8339 = vmatmul.bf16.gmra.mxu0 %v5303
    %v8340 = vpop.f32.mrf.mxu0
    %v8341 = vadd.f32 %v8218, %v8340
    %v8342 = vpop.f32.mrf.mxu0
    %v8343 = vadd.f32 %v8220, %v8342
    %8344 = vmatmul.bf16.gmra.mxu0 %v5306
    %v8345 = vpop.f32.mrf.mxu0
    %v8346 = vadd.f32 %v8223, %v8345
    %v8347 = vpop.f32.mrf.mxu0
    %v8348 = vadd.f32 %v8225, %v8347
    %8349 = vmatmul.bf16.gmra.mxu0 %v5309
    %v8350 = vpop.f32.mrf.mxu0
    %v8351 = vadd.f32 %v8228, %v8350
    %v8352 = vpop.f32.mrf.mxu0
    %v8353 = vadd.f32 %v8230, %v8352
    %8354 = vmatmul.bf16.gmra.mxu0 %v5312
    %v8355 = vpop.f32.mrf.mxu0
    %v8356 = vadd.f32 %v8233, %v8355
    %v8357 = vpop.f32.mrf.mxu0
    %v8358 = vadd.f32 %v8235, %v8357
    %8359 = vmatmul.bf16.gmra.mxu0 %v5315
    %v8360 = vpop.f32.mrf.mxu0
    %v8361 = vadd.f32 %v8238, %v8360
    %v8362 = vpop.f32.mrf.mxu0
    %v8363 = vadd.f32 %v8240, %v8362
    %8364 = vmatmul.bf16.gmra.mxu0 %v5318
    %v8365 = vpop.f32.mrf.mxu0
    %v8366 = vadd.f32 %v8243, %v8365
    %v8367 = vpop.f32.mrf.mxu0
    %v8368 = vadd.f32 %v8245, %v8367
    %8369 = vmatmul.bf16.gmra.mxu0 %v5321
    %v8370 = vpop.f32.mrf.mxu0
    %v8371 = vadd.f32 %v8248, %v8370
    %v8372 = vpop.f32.mrf.mxu0
    %v8373 = vadd.f32 %v8250, %v8372
    %8374 = vmatmul.bf16.gmra.mxu0 %v5324
    %v8375 = vpop.f32.mrf.mxu0
    %v8376 = vadd.f32 %v8253, %v8375
    %v8377 = vpop.f32.mrf.mxu0
    %v8378 = vadd.f32 %v8255, %v8377
    %8379 = vmatmul.bf16.gmra.mxu0 %v5327
    %v8380 = vpop.f32.mrf.mxu0
    %v8381 = vadd.f32 %v8258, %v8380
    %v8382 = vpop.f32.mrf.mxu0
    %v8383 = vadd.f32 %v8260, %v8382
    %8384 = vmatmul.bf16.gmra.mxu0 %v5330
    %v8385 = vpop.f32.mrf.mxu0
    %v8386 = vadd.f32 %v8263, %v8385
    %v8387 = vpop.f32.mrf.mxu0
    %v8388 = vadd.f32 %v8265, %v8387
    %8389 = vmatmul.bf16.gmra.mxu0 %v5333
    %v8390 = vpop.f32.mrf.mxu0
    %v8391 = vadd.f32 %v8268, %v8390
    %v8392 = vpop.f32.mrf.mxu0
    %v8393 = vadd.f32 %v8270, %v8392
    %8394 = vmatmul.bf16.gmra.mxu0 %v5336
    %v8395 = vpop.f32.mrf.mxu0
    %v8396 = vadd.f32 %v8273, %v8395
    %v8397 = vpop.f32.mrf.mxu0
    %v8398 = vadd.f32 %v8275, %v8397
    %8399 = vmatmul.bf16.gmra.mxu0 %v5339
    %v8400 = vpop.f32.mrf.mxu0
    %v8401 = vadd.f32 %v8278, %v8400
    %v8402 = vpop.f32.mrf.mxu0
    %v8403 = vadd.f32 %v8280, %v8402
    %8404 = vmatmul.bf16.gmra.mxu0 %v5342
    %v8405 = vpop.f32.mrf.mxu0
    %v8406 = vadd.f32 %v8283, %v8405
    %v8407 = vpop.f32.mrf.mxu0
    %v8408 = vadd.f32 %v8285, %v8407
    %8409 = vmatmul.bf16.gmra.mxu0 %v5345
    %v8410 = vpop.f32.mrf.mxu0
    %v8411 = vadd.f32 %v8288, %v8410
    %v8412 = vpop.f32.mrf.mxu0
    %v8413 = vadd.f32 %v8290, %v8412
    %8414 = vmatmul.bf16.gmra.mxu0 %v5348
    %v8415 = vpop.f32.mrf.mxu0
    %v8416 = vadd.f32 %v8293, %v8415
    %v8417 = vpop.f32.mrf.mxu0
    %v8418 = vadd.f32 %v8295, %v8417
    %8419 = vmatmul.bf16.gmra.mxu0 %v5351
    %v8420 = vpop.f32.mrf.mxu0
    %v8421 = vadd.f32 %v8298, %v8420
    %v8422 = vpop.f32.mrf.mxu0
    %v8423 = vadd.f32 %v8300, %v8422
    %8424 = vmatmul.bf16.gmra.mxu0 %v5354
    %v8425 = vpop.f32.mrf.mxu0
    %v8426 = vadd.f32 %v8303, %v8425
    %v8427 = vpop.f32.mrf.mxu0
    %v8428 = vadd.f32 %v8305, %v8427
    %8429 = vmatmul.bf16.gmra.mxu0 %v5357
    %v8430 = vpop.f32.mrf.mxu0
    %v8431 = vadd.f32 %v8308, %v8430
    %v8432 = vpop.f32.mrf.mxu0
    %v8433 = vadd.f32 %v8310, %v8432
    %8434 = vmatmul.bf16.gmra.mxu0 %v5360
    %v8435 = vpop.f32.mrf.mxu0
    %v8436 = vadd.f32 %v8313, %v8435
    %v8437 = vpop.f32.mrf.mxu0
    %8438 = vdwg.mxu0
    %v8439 = vmax.f32 %v6481, %v7219
    %v8440 = vmax.f32 %v6850, %v7588
    %v8441 = vmax.f32 %v6483, %v7221
    %v8442 = vmax.f32 %v6852, %v7590
    %v8443 = vmax.f32 %v6486, %v7224
    %v8444 = vmax.f32 %v6855, %v7593
    %v8445 = vmax.f32 %v6488, %v7226
    %v8446 = vmax.f32 %v6857, %v7595
    %v8447 = vmax.f32 %v6491, %v7229
    %v8448 = vmax.f32 %v6860, %v7598
    %v8449 = vmax.f32 %v6493, %v7231
    %v8450 = vmax.f32 %v6862, %v7600
    %v8451 = vmax.f32 %v6496, %v7234
    %v8452 = vmax.f32 %v6865, %v7603
    %v8453 = vmax.f32 %v6498, %v7236
    %v8454 = vmax.f32 %v6867, %v7605
    %v8455 = vmax.f32 %v6501, %v7239
    %v8456 = vmax.f32 %v6870, %v7608
    %v8457 = vmax.f32 %v6503, %v7241
    %v8458 = vmax.f32 %v6872, %v7610
    %v8459 = vmax.f32 %v6506, %v7244
    %v8460 = vmax.f32 %v6875, %v7613
    %v8461 = vmax.f32 %v6508, %v7246
    %v8462 = vmax.f32 %v6877, %v7615
    %v8463 = vmax.f32 %v6511, %v7249
    %v8464 = vmax.f32 %v6880, %v7618
    %v8465 = vmax.f32 %v6513, %v7251
    %v8466 = vmax.f32 %v6882, %v7620
    %v8467 = vmax.f32 %v6516, %v7254
    %v8468 = vmax.f32 %v6885, %v7623
    %v8469 = vmax.f32 %v6518, %v7256
    %v8470 = vmax.f32 %v6887, %v7625
    %v8471 = vmax.f32 %v6521, %v7259
    %v8472 = vmax.f32 %v6890, %v7628
    %v8473 = vmax.f32 %v6523, %v7261
    %v8474 = vmax.f32 %v6892, %v7630
    %v8475 = vmax.f32 %v6526, %v7264
    %v8476 = vmax.f32 %v6895, %v7633
    %v8477 = vmax.f32 %v6528, %v7266
    %v8478 = vmax.f32 %v6897, %v7635
    %v8479 = vmax.f32 %v6531, %v7269
    %v8480 = vmax.f32 %v6900, %v7638
    %v8481 = vmax.f32 %v6533, %v7271
    %v8482 = vmax.f32 %v6902, %v7640
    %v8483 = vmax.f32 %v6536, %v7274
    %v8484 = vmax.f32 %v6905, %v7643
    %v8485 = vmax.f32 %v6538, %v7276
    %v8486 = vmax.f32 %v6907, %v7645
    %v8487 = vmax.f32 %v6541, %v7279
    %v8488 = vmax.f32 %v6910, %v7648
    %v8489 = vmax.f32 %v6543, %v7281
    %v8490 = vmax.f32 %v6912, %v7650
    %v8491 = vmax.f32 %v6546, %v7284
    %v8492 = vmax.f32 %v6915, %v7653
    %v8493 = vmax.f32 %v6548, %v7286
    %v8494 = vmax.f32 %v6917, %v7655
    %v8495 = vmax.f32 %v6551, %v7289
    %v8496 = vmax.f32 %v6920, %v7658
    %v8497 = vmax.f32 %v6553, %v7291
    %v8498 = vmax.f32 %v6922, %v7660
    %v8499 = vmax.f32 %v6556, %v7294
    %v8500 = vmax.f32 %v6925, %v7663
    %v8501 = vmax.f32 %v6558, %v7296
    %v8502 = vmax.f32 %v6927, %v7665
    %v8503 = vmax.f32 %v6561, %v7299
    %v8504 = vmax.f32 %v6930, %v7668
    %v8505 = vmax.f32 %v6563, %v7301
    %v8506 = vmax.f32 %v6932, %v7670
    %v8507 = vmax.f32 %v6566, %v7304
    %v8508 = vmax.f32 %v6935, %v7673
    %v8509 = vmax.f32 %v6568, %v7306
    %v8510 = vmax.f32 %v6937, %v7675
    %v8511 = vmax.f32 %v6571, %v7309
    %v8512 = vmax.f32 %v6940, %v7678
    %v8513 = vmax.f32 %v6573, %v7311
    %v8514 = vmax.f32 %v6942, %v7680
    %v8515 = vmax.f32 %v6576, %v7314
    %v8516 = vmax.f32 %v6945, %v7683
    %v8517 = vmax.f32 %v6578, %v7316
    %v8518 = vmax.f32 %v6947, %v7685
    %v8519 = vmax.f32 %v6581, %v7319
    %v8520 = vmax.f32 %v6950, %v7688
    %v8521 = vmax.f32 %v6583, %v7321
    %v8522 = vmax.f32 %v6952, %v7690
    %v8523 = vmax.f32 %v6586, %v7324
    %v8524 = vmax.f32 %v6955, %v7693
    %v8525 = vmax.f32 %v6588, %v7326
    %v8526 = vmax.f32 %v6957, %v7695
    %v8527 = vmax.f32 %v6591, %v7329
    %v8528 = vmax.f32 %v6960, %v7698
    %v8529 = vmax.f32 %v8439, %v7957
    %v8530 = vmax.f32 %v8440, %v8326
    %v8531 = vmax.f32 %v8441, %v7959
    %v8532 = vmax.f32 %v8442, %v8328
    %v8533 = vmax.f32 %v8443, %v7962
    %v8534 = vmax.f32 %v8444, %v8331
    %v8535 = vmax.f32 %v8445, %v7964
    %v8536 = vmax.f32 %v8446, %v8333
    %v8537 = vmax.f32 %v8447, %v7967
    %v8538 = vmax.f32 %v8448, %v8336
    %v8539 = vmax.f32 %v8449, %v7969
    %v8540 = vmax.f32 %v8450, %v8338
    %v8541 = vmax.f32 %v8451, %v7972
    %v8542 = vmax.f32 %v8452, %v8341
    %v8543 = vmax.f32 %v8453, %v7974
    %v8544 = vmax.f32 %v8454, %v8343
    %v8545 = vmax.f32 %v8455, %v7977
    %v8546 = vmax.f32 %v8456, %v8346
    %v8547 = vmax.f32 %v8457, %v7979
    %v8548 = vmax.f32 %v8458, %v8348
    %v8549 = vmax.f32 %v8459, %v7982
    %v8550 = vmax.f32 %v8460, %v8351
    %v8551 = vmax.f32 %v8461, %v7984
    %v8552 = vmax.f32 %v8462, %v8353
    %v8553 = vmax.f32 %v8463, %v7987
    %v8554 = vmax.f32 %v8464, %v8356
    %v8555 = vmax.f32 %v8465, %v7989
    %v8556 = vmax.f32 %v8466, %v8358
    %v8557 = vmax.f32 %v8467, %v7992
    %v8558 = vmax.f32 %v8468, %v8361
    %v8559 = vmax.f32 %v8469, %v7994
    %v8560 = vmax.f32 %v8470, %v8363
    %v8561 = vmax.f32 %v8471, %v7997
    %v8562 = vmax.f32 %v8472, %v8366
    %v8563 = vmax.f32 %v8473, %v7999
    %v8564 = vmax.f32 %v8474, %v8368
    %v8565 = vmax.f32 %v8475, %v8002
    %v8566 = vmax.f32 %v8476, %v8371
    %v8567 = vmax.f32 %v8477, %v8004
    %v8568 = vmax.f32 %v8478, %v8373
    %v8569 = vmax.f32 %v8479, %v8007
    %v8570 = vmax.f32 %v8480, %v8376
    %v8571 = vmax.f32 %v8481, %v8009
    %v8572 = vmax.f32 %v8482, %v8378
    %v8573 = vmax.f32 %v8483, %v8012
    %v8574 = vmax.f32 %v8484, %v8381
    %v8575 = vmax.f32 %v8485, %v8014
    %v8576 = vmax.f32 %v8486, %v8383
    %v8577 = vmax.f32 %v8487, %v8017
    %v8578 = vmax.f32 %v8488, %v8386
    %v8579 = vmax.f32 %v8489, %v8019
    %v8580 = vmax.f32 %v8490, %v8388
    %v8581 = vmax.f32 %v8491, %v8022
    %v8582 = vmax.f32 %v8492, %v8391
    %v8583 = vmax.f32 %v8493, %v8024
    %v8584 = vmax.f32 %v8494, %v8393
    %v8585 = vmax.f32 %v8495, %v8027
    %v8586 = vmax.f32 %v8496, %v8396
    %v8587 = vmax.f32 %v8497, %v8029
    %v8588 = vmax.f32 %v8498, %v8398
    %v8589 = vmax.f32 %v8499, %v8032
    %v8590 = vmax.f32 %v8500, %v8401
    %v8591 = vmax.f32 %v8501, %v8034
    %v8592 = vmax.f32 %v8502, %v8403
    %v8593 = vmax.f32 %v8503, %v8037
    %v8594 = vmax.f32 %v8504, %v8406
    %v8595 = vmax.f32 %v8505, %v8039
    %v8596 = vmax.f32 %v8506, %v8408
    %v8597 = vmax.f32 %v8507, %v8042
    %v8598 = vmax.f32 %v8508, %v8411
    %v8599 = vmax.f32 %v8509, %v8044
    %v8600 = vmax.f32 %v8510, %v8413
    %v8601 = vmax.f32 %v8511, %v8047
    %v8602 = vmax.f32 %v8512, %v8416
    %v8603 = vmax.f32 %v8513, %v8049
    %v8604 = vmax.f32 %v8514, %v8418
    %v8605 = vmax.f32 %v8515, %v8052
    %v8606 = vmax.f32 %v8516, %v8421
    %v8607 = vmax.f32 %v8517, %v8054
    %v8608 = vmax.f32 %v8518, %v8423
    %v8609 = vmax.f32 %v8519, %v8057
    %v8610 = vmax.f32 %v8520, %v8426
    %v8611 = vmax.f32 %v8521, %v8059
    %v8612 = vmax.f32 %v8522, %v8428
    %v8613 = vmax.f32 %v8523, %v8062
    %v8614 = vmax.f32 %v8524, %v8431
    %v8615 = vmax.f32 %v8525, %v8064
    %v8616 = vmax.f32 %v8526, %v8433
    %v8617 = vmax.f32 %v8527, %v8067
    %v8618 = vmax.f32 %v8528, %v8436
    %v8619 = vld [vmem:[%s8] sm:$0x3]
    %v8621 = vperm.slane %v8619, 0
    %v8622 = vperm.slane %v8619, 1
    %v8625 = vadd.f32 %v8529, %v8621
    %v8626 = vadd.f32 %v8530, %v8622
    %v8627 = vadd.f32 %v8531, %v8621
    %v8628 = vadd.f32 %v8532, %v8622
    %v8629 = vadd.f32 %v8533, %v8621
    %v8630 = vadd.f32 %v8534, %v8622
    %v8631 = vadd.f32 %v8535, %v8621
    %v8632 = vadd.f32 %v8536, %v8622
    %v8633 = vadd.f32 %v8537, %v8621
    %v8634 = vadd.f32 %v8538, %v8622
    %v8635 = vadd.f32 %v8539, %v8621
    %v8636 = vadd.f32 %v8540, %v8622
    %v8637 = vadd.f32 %v8541, %v8621
    %v8638 = vadd.f32 %v8542, %v8622
    %v8639 = vadd.f32 %v8543, %v8621
    %v8640 = vadd.f32 %v8544, %v8622
    %v8641 = vadd.f32 %v8545, %v8621
    %v8642 = vadd.f32 %v8546, %v8622
    %v8643 = vadd.f32 %v8547, %v8621
    %v8644 = vadd.f32 %v8548, %v8622
    %v8645 = vadd.f32 %v8549, %v8621
    %v8646 = vadd.f32 %v8550, %v8622
    %v8647 = vadd.f32 %v8551, %v8621
    %v8648 = vadd.f32 %v8552, %v8622
    %v8649 = vadd.f32 %v8553, %v8621
    %v8650 = vadd.f32 %v8554, %v8622
    %v8651 = vadd.f32 %v8555, %v8621
    %v8652 = vadd.f32 %v8556, %v8622
    %v8653 = vadd.f32 %v8557, %v8621
    %v8654 = vadd.f32 %v8558, %v8622
    %v8655 = vadd.f32 %v8559, %v8621
    %v8656 = vadd.f32 %v8560, %v8622
    %v8657 = vadd.f32 %v8561, %v8621
    %v8658 = vadd.f32 %v8562, %v8622
    %v8659 = vadd.f32 %v8563, %v8621
    %v8660 = vadd.f32 %v8564, %v8622
    %v8661 = vadd.f32 %v8565, %v8621
    %v8662 = vadd.f32 %v8566, %v8622
    %v8663 = vadd.f32 %v8567, %v8621
    %v8664 = vadd.f32 %v8568, %v8622
    %v8665 = vadd.f32 %v8569, %v8621
    %v8666 = vadd.f32 %v8570, %v8622
    %v8667 = vadd.f32 %v8571, %v8621
    %v8668 = vadd.f32 %v8572, %v8622
    %v8669 = vadd.f32 %v8573, %v8621
    %v8670 = vadd.f32 %v8574, %v8622
    %v8671 = vadd.f32 %v8575, %v8621
    %v8672 = vadd.f32 %v8576, %v8622
    %v8673 = vadd.f32 %v8577, %v8621
    %v8674 = vadd.f32 %v8578, %v8622
    %v8675 = vadd.f32 %v8579, %v8621
    %v8676 = vadd.f32 %v8580, %v8622
    %v8677 = vadd.f32 %v8581, %v8621
    %v8678 = vadd.f32 %v8582, %v8622
    %v8679 = vadd.f32 %v8583, %v8621
    %v8680 = vadd.f32 %v8584, %v8622
    %v8681 = vadd.f32 %v8585, %v8621
    %v8682 = vadd.f32 %v8586, %v8622
    %v8683 = vadd.f32 %v8587, %v8621
    %v8684 = vadd.f32 %v8588, %v8622
    %v8685 = vadd.f32 %v8589, %v8621
    %v8686 = vadd.f32 %v8590, %v8622
    %v8687 = vadd.f32 %v8591, %v8621
    %v8688 = vadd.f32 %v8592, %v8622
    %v8689 = vadd.f32 %v8593, %v8621
    %v8690 = vadd.f32 %v8594, %v8622
    %v8691 = vadd.f32 %v8595, %v8621
    %v8692 = vadd.f32 %v8596, %v8622
    %v8693 = vadd.f32 %v8597, %v8621
    %v8694 = vadd.f32 %v8598, %v8622
    %v8695 = vadd.f32 %v8599, %v8621
    %v8696 = vadd.f32 %v8600, %v8622
    %v8697 = vadd.f32 %v8601, %v8621
    %v8698 = vadd.f32 %v8602, %v8622
    %v8699 = vadd.f32 %v8603, %v8621
    %v8700 = vadd.f32 %v8604, %v8622
    %v8701 = vadd.f32 %v8605, %v8621
    %v8702 = vadd.f32 %v8606, %v8622
    %v8703 = vadd.f32 %v8607, %v8621
    %v8704 = vadd.f32 %v8608, %v8622
    %v8705 = vadd.f32 %v8609, %v8621
    %v8706 = vadd.f32 %v8610, %v8622
    %v8707 = vadd.f32 %v8611, %v8621
    %v8708 = vadd.f32 %v8612, %v8622
    %v8709 = vadd.f32 %v8613, %v8621
    %v8710 = vadd.f32 %v8614, %v8622
    %v8711 = vadd.f32 %v8615, %v8621
    %v8712 = vadd.f32 %v8616, %v8622
    %v8713 = vadd.f32 %v8617, %v8621
    %v8714 = vadd.f32 %v8618, %v8622
    %v8715 = vpack.c.bf16 %v8627, %v8625
    %v8716 = vpack.c.bf16 %v8628, %v8626
    %v8717 = vpack.c.bf16 %v8631, %v8629
    %v8718 = vpack.c.bf16 %v8632, %v8630
    %v8719 = vpack.c.bf16 %v8635, %v8633
    %v8720 = vpack.c.bf16 %v8636, %v8634
    %v8721 = vpack.c.bf16 %v8639, %v8637
    %v8722 = vpack.c.bf16 %v8640, %v8638
    %v8723 = vpack.c.bf16 %v8643, %v8641
    %v8724 = vpack.c.bf16 %v8644, %v8642
    %v8725 = vpack.c.bf16 %v8647, %v8645
    %v8726 = vpack.c.bf16 %v8648, %v8646
    %v8727 = vpack.c.bf16 %v8651, %v8649
    %v8728 = vpack.c.bf16 %v8652, %v8650
    %v8729 = vpack.c.bf16 %v8655, %v8653
    %v8730 = vpack.c.bf16 %v8656, %v8654
    %v8731 = vpack.c.bf16 %v8659, %v8657
    %v8732 = vpack.c.bf16 %v8660, %v8658
    %v8733 = vpack.c.bf16 %v8663, %v8661
    %v8734 = vpack.c.bf16 %v8664, %v8662
    %v8735 = vpack.c.bf16 %v8667, %v8665
    %v8736 = vpack.c.bf16 %v8668, %v8666
    %v8737 = vpack.c.bf16 %v8671, %v8669
    %v8738 = vpack.c.bf16 %v8672, %v8670
    %v8739 = vpack.c.bf16 %v8675, %v8673
    %v8740 = vpack.c.bf16 %v8676, %v8674
    %v8741 = vpack.c.bf16 %v8679, %v8677
    %v8742 = vpack.c.bf16 %v8680, %v8678
    %v8743 = vpack.c.bf16 %v8683, %v8681
    %v8744 = vpack.c.bf16 %v8684, %v8682
    %v8745 = vpack.c.bf16 %v8687, %v8685
    %v8746 = vpack.c.bf16 %v8688, %v8686
    %v8747 = vpack.c.bf16 %v8691, %v8689
    %v8748 = vpack.c.bf16 %v8692, %v8690
    %v8749 = vpack.c.bf16 %v8695, %v8693
    %v8750 = vpack.c.bf16 %v8696, %v8694
    %v8751 = vpack.c.bf16 %v8699, %v8697
    %v8752 = vpack.c.bf16 %v8700, %v8698
    %v8753 = vpack.c.bf16 %v8703, %v8701
    %v8754 = vpack.c.bf16 %v8704, %v8702
    %v8755 = vpack.c.bf16 %v8707, %v8705
    %v8756 = vpack.c.bf16 %v8708, %v8706
    %v8757 = vpack.c.bf16 %v8711, %v8709
    %v8758 = vpack.c.bf16 %v8712, %v8710
    %v8759 = vpack.c.bf16 %v8713, %v8713
    %v8760 = vpack.c.bf16 %v8714, %v8714
    %v8761 = vld [vmem:[#allocation11] sm:$0xff]
    %v8762 = vld [vmem:[#allocation11 + $0x8] sm:$0xf]
    %v8763 = vld [vmem:[#allocation11 + $0xc] sm:$0xff]
    %v8764 = vld [vmem:[#allocation11 + $0x14] sm:$0xf]
    %v8765 = vld [vmem:[#allocation11 + $0x18] sm:$0xff]
    %v8766 = vld [vmem:[#allocation11 + $0x20] sm:$0xf]
    %v8767 = vld [vmem:[#allocation11 + $0x24] sm:$0xff]
    %v8768 = vld [vmem:[#allocation11 + $0x2c] sm:$0xf]
    %v8769 = vld [vmem:[#allocation11 + $0x30] sm:$0xff]
    %v8770 = vld [vmem:[#allocation11 + $0x38] sm:$0xf]
    %v8771 = vld [vmem:[#allocation11 + $0x3c] sm:$0xff]
    %v8772 = vld [vmem:[#allocation11 + $0x44] sm:$0xf]
    %v8773 = vld [vmem:[#allocation11 + $0x48] sm:$0xff]
    %v8774 = vld [vmem:[#allocation11 + $0x50] sm:$0xf]
    %v8775 = vld [vmem:[#allocation11 + $0x54] sm:$0xff]
    %v8776 = vld [vmem:[#allocation11 + $0x5c] sm:$0xf]
    %v8777 = vld [vmem:[#allocation11 + $0x60] sm:$0xff]
    %v8778 = vld [vmem:[#allocation11 + $0x68] sm:$0xf]
    %v8779 = vld [vmem:[#allocation11 + $0x6c] sm:$0xff]
    %v8780 = vld [vmem:[#allocation11 + $0x74] sm:$0xf]
    %v8781 = vld [vmem:[#allocation11 + $0x78] sm:$0xff]
    %v8782 = vld [vmem:[#allocation11 + $0x80] sm:$0xf]
    %v8783 = vld [vmem:[#allocation11 + $0x84] sm:$0xff]
    %v8784 = vld [vmem:[#allocation11 + $0x8c] sm:$0xf]
    %v8785 = vld [vmem:[#allocation11 + $0x90] sm:$0xff]
    %v8786 = vld [vmem:[#allocation11 + $0x98] sm:$0xf]
    %v8787 = vld [vmem:[#allocation11 + $0x9c] sm:$0xff]
    %v8788 = vld [vmem:[#allocation11 + $0xa4] sm:$0xf]
    %v8789 = vld [vmem:[#allocation11 + $0xa8] sm:$0xff]
    %v8790 = vld [vmem:[#allocation11 + $0xb0] sm:$0xf]
    %v8791 = vld [vmem:[#allocation11 + $0xb4] sm:$0xff]
    %v8792 = vld [vmem:[#allocation11 + $0xbc] sm:$0xf]
    %v8793 = vld [vmem:[#allocation11 + $0xc0] sm:$0xff]
    %v8794 = vld [vmem:[#allocation11 + $0xc8] sm:$0xf]
    %v8795 = vld [vmem:[#allocation11 + $0xcc] sm:$0xff]
    %v8796 = vld [vmem:[#allocation11 + $0xd4] sm:$0xf]
    %v8797 = vld [vmem:[#allocation11 + $0xd8] sm:$0xff]
    %v8798 = vld [vmem:[#allocation11 + $0xe0] sm:$0xf]
    %v8799 = vld [vmem:[#allocation11 + $0xe4] sm:$0xff]
    %v8800 = vld [vmem:[#allocation11 + $0xec] sm:$0xf]
    %v8801 = vld [vmem:[#allocation11 + $0xf0] sm:$0xff]
    %v8802 = vld [vmem:[#allocation11 + $0xf8] sm:$0xf]
    %v8803 = vld [vmem:[#allocation11 + $0xfc] sm:$0xff]
    %v8804 = vld [vmem:[#allocation11 + $0x104] sm:$0xf]
    %v8805 = vld [vmem:[#allocation11 + $0x108] sm:$0xff]
    %v8806 = vld [vmem:[#allocation11 + $0x110] sm:$0xf]
    %v8807 = vld [vmem:[#allocation11 + $0x114] sm:$0xff]
    %v8808 = vld [vmem:[#allocation11 + $0x11c] sm:$0xf]
    %v8809 = vld [vmem:[#allocation11 + $0x120] sm:$0xff]
    %v8810 = vld [vmem:[#allocation11 + $0x128] sm:$0xf]
    %v8811 = vld [vmem:[#allocation11 + $0x12c] sm:$0xff]
    %v8812 = vld [vmem:[#allocation11 + $0x134] sm:$0xf]
    %v8813 = vld [vmem:[#allocation11 + $0x138] sm:$0xff]
    %v8814 = vld [vmem:[#allocation11 + $0x140] sm:$0xf]
    %v8815 = vld [vmem:[#allocation11 + $0x144] sm:$0xff]
    %v8816 = vld [vmem:[#allocation11 + $0x14c] sm:$0xf]
    %v8817 = vld [vmem:[#allocation11 + $0x150] sm:$0xff]
    %v8818 = vld [vmem:[#allocation11 + $0x158] sm:$0xf]
    %v8819 = vld [vmem:[#allocation11 + $0x15c] sm:$0xff]
    %v8820 = vld [vmem:[#allocation11 + $0x164] sm:$0xf]
    %v8821 = vld [vmem:[#allocation11 + $0x168] sm:$0xff]
    %v8822 = vld [vmem:[#allocation11 + $0x170] sm:$0xf]
    %v8823 = vld [vmem:[#allocation11 + $0x174] sm:$0xff]
    %v8824 = vld [vmem:[#allocation11 + $0x17c] sm:$0xf]
    %v8889 = vunpack.c.l.b16 %v8761
    %v8890 = vunpack.c.h.b16 %v8761
    %v8891 = vunpack.c.l.b16 %v8762
    %v8892 = vunpack.c.l.b16 %v8763
    %v8893 = vunpack.c.h.b16 %v8763
    %v8894 = vunpack.c.l.b16 %v8764
    %v8895 = vunpack.c.l.b16 %v8765
    %v8896 = vunpack.c.h.b16 %v8765
    %v8897 = vunpack.c.l.b16 %v8766
    %v8898 = vunpack.c.l.b16 %v8767
    %v8899 = vunpack.c.h.b16 %v8767
    %v8900 = vunpack.c.l.b16 %v8768
    %v8901 = vunpack.c.l.b16 %v8769
    %v8902 = vunpack.c.h.b16 %v8769
    %v8903 = vunpack.c.l.b16 %v8770
    %v8904 = vunpack.c.l.b16 %v8771
    %v8905 = vunpack.c.h.b16 %v8771
    %v8906 = vunpack.c.l.b16 %v8772
    %v8907 = vunpack.c.l.b16 %v8773
    %v8908 = vunpack.c.h.b16 %v8773
    %v8909 = vunpack.c.l.b16 %v8774
    %v8910 = vunpack.c.l.b16 %v8775
    %v8911 = vunpack.c.h.b16 %v8775
    %v8912 = vunpack.c.l.b16 %v8776
    %v8913 = vunpack.c.l.b16 %v8777
    %v8914 = vunpack.c.h.b16 %v8777
    %v8915 = vunpack.c.l.b16 %v8778
    %v8916 = vunpack.c.l.b16 %v8779
    %v8917 = vunpack.c.h.b16 %v8779
    %v8918 = vunpack.c.l.b16 %v8780
    %v8919 = vunpack.c.l.b16 %v8781
    %v8920 = vunpack.c.h.b16 %v8781
    %v8921 = vunpack.c.l.b16 %v8782
    %v8922 = vunpack.c.l.b16 %v8783
    %v8923 = vunpack.c.h.b16 %v8783
    %v8924 = vunpack.c.l.b16 %v8784
    %v8925 = vunpack.c.l.b16 %v8785
    %v8926 = vunpack.c.h.b16 %v8785
    %v8927 = vunpack.c.l.b16 %v8786
    %v8928 = vunpack.c.l.b16 %v8787
    %v8929 = vunpack.c.h.b16 %v8787
    %v8930 = vunpack.c.l.b16 %v8788
    %v8931 = vunpack.c.l.b16 %v8789
    %v8932 = vunpack.c.h.b16 %v8789
    %v8933 = vunpack.c.l.b16 %v8790
    %v8934 = vunpack.c.l.b16 %v8791
    %v8935 = vunpack.c.h.b16 %v8791
    %v8936 = vunpack.c.l.b16 %v8792
    %v8937 = vunpack.c.l.b16 %v8793
    %v8938 = vunpack.c.h.b16 %v8793
    %v8939 = vunpack.c.l.b16 %v8794
    %v8940 = vunpack.c.l.b16 %v8795
    %v8941 = vunpack.c.h.b16 %v8795
    %v8942 = vunpack.c.l.b16 %v8796
    %v8943 = vunpack.c.l.b16 %v8797
    %v8944 = vunpack.c.h.b16 %v8797
    %v8945 = vunpack.c.l.b16 %v8798
    %v8946 = vunpack.c.l.b16 %v8799
    %v8947 = vunpack.c.h.b16 %v8799
    %v8948 = vunpack.c.l.b16 %v8800
    %v8949 = vunpack.c.l.b16 %v8801
    %v8950 = vunpack.c.h.b16 %v8801
    %v8951 = vunpack.c.l.b16 %v8802
    %v8952 = vunpack.c.l.b16 %v8803
    %v8953 = vunpack.c.h.b16 %v8803
    %v8954 = vunpack.c.l.b16 %v8804
    %v8955 = vunpack.c.l.b16 %v8805
    %v8956 = vunpack.c.h.b16 %v8805
    %v8957 = vunpack.c.l.b16 %v8806
    %v8958 = vunpack.c.l.b16 %v8807
    %v8959 = vunpack.c.h.b16 %v8807
    %v8960 = vunpack.c.l.b16 %v8808
    %v8961 = vunpack.c.l.b16 %v8809
    %v8962 = vunpack.c.h.b16 %v8809
    %v8963 = vunpack.c.l.b16 %v8810
    %v8964 = vunpack.c.l.b16 %v8811
    %v8965 = vunpack.c.h.b16 %v8811
    %v8966 = vunpack.c.l.b16 %v8812
    %v8967 = vunpack.c.l.b16 %v8813
    %v8968 = vunpack.c.h.b16 %v8813
    %v8969 = vunpack.c.l.b16 %v8814
    %v8970 = vunpack.c.l.b16 %v8815
    %v8971 = vunpack.c.h.b16 %v8815
    %v8972 = vunpack.c.l.b16 %v8816
    %v8973 = vunpack.c.l.b16 %v8817
    %v8974 = vunpack.c.h.b16 %v8817
    %v8975 = vunpack.c.l.b16 %v8818
    %v8976 = vunpack.c.l.b16 %v8819
    %v8977 = vunpack.c.h.b16 %v8819
    %v8978 = vunpack.c.l.b16 %v8820
    %v8979 = vunpack.c.l.b16 %v8821
    %v8980 = vunpack.c.h.b16 %v8821
    %v8981 = vunpack.c.l.b16 %v8822
    %v8982 = vunpack.c.l.b16 %v8823
    %v8983 = vunpack.c.h.b16 %v8823
    %v8984 = vunpack.c.l.b16 %v8824
    %v8985 = vpack.c.b16 %v8892, %v8889
    %v8986 = vpack.c.b16 %v8893, %v8890
    %v8987 = vpack.c.b16 %v8894, %v8891
    %v8988 = vpack.c.b16 %v8898, %v8895
    %v8989 = vpack.c.b16 %v8899, %v8896
    %v8990 = vpack.c.b16 %v8900, %v8897
    %v8991 = vpack.c.b16 %v8904, %v8901
    %v8992 = vpack.c.b16 %v8905, %v8902
    %v8993 = vpack.c.b16 %v8906, %v8903
    %v8994 = vpack.c.b16 %v8910, %v8907
    %v8995 = vpack.c.b16 %v8911, %v8908
    %v8996 = vpack.c.b16 %v8912, %v8909
    %v8997 = vpack.c.b16 %v8916, %v8913
    %v8998 = vpack.c.b16 %v8917, %v8914
    %v8999 = vpack.c.b16 %v8918, %v8915
    %v9000 = vpack.c.b16 %v8922, %v8919
    %v9001 = vpack.c.b16 %v8923, %v8920
    %v9002 = vpack.c.b16 %v8924, %v8921
    %v9003 = vpack.c.b16 %v8928, %v8925
    %v9004 = vpack.c.b16 %v8929, %v8926
    %v9005 = vpack.c.b16 %v8930, %v8927
    %v9006 = vpack.c.b16 %v8934, %v8931
    %v9007 = vpack.c.b16 %v8935, %v8932
    %v9008 = vpack.c.b16 %v8936, %v8933
    %v9009 = vpack.c.b16 %v8940, %v8937
    %v9010 = vpack.c.b16 %v8941, %v8938
    %v9011 = vpack.c.b16 %v8942, %v8939
    %v9012 = vpack.c.b16 %v8946, %v8943
    %v9013 = vpack.c.b16 %v8947, %v8944
    %v9014 = vpack.c.b16 %v8948, %v8945
    %v9015 = vpack.c.b16 %v8952, %v8949
    %v9016 = vpack.c.b16 %v8953, %v8950
    %v9017 = vpack.c.b16 %v8954, %v8951
    %v9018 = vpack.c.b16 %v8958, %v8955
    %v9019 = vpack.c.b16 %v8959, %v8956
    %v9020 = vpack.c.b16 %v8960, %v8957
    %v9021 = vpack.c.b16 %v8964, %v8961
    %v9022 = vpack.c.b16 %v8965, %v8962
    %v9023 = vpack.c.b16 %v8966, %v8963
    %v9024 = vpack.c.b16 %v8970, %v8967
    %v9025 = vpack.c.b16 %v8971, %v8968
    %v9026 = vpack.c.b16 %v8972, %v8969
    %v9027 = vpack.c.b16 %v8976, %v8973
    %v9028 = vpack.c.b16 %v8977, %v8974
    %v9029 = vpack.c.b16 %v8978, %v8975
    %v9030 = vpack.c.b16 %v8982, %v8979
    %v9031 = vpack.c.b16 %v8983, %v8980
    %v9032 = vpack.c.b16 %v8984, %v8981
    %9081 = vmatpush.bf16.msra.mxu0 %v9006
    %9082 = vmatpush.bf16.msra.mxu0 %v9003
    %9083 = vmatpush.bf16.msra.mxu0 %v9000
    %9084 = vmatpush.bf16.msra.mxu0 %v8997
    %9085 = vmatpush.bf16.msra.mxu0 %v8994
    %9086 = vmatpush.bf16.msra.mxu0 %v8991
    %9087 = vmatpush.bf16.msra.mxu0 %v8988
    %9088 = vmatpush.bf16.msra.mxu0 %v8985
    %9089 = vmatmul.bf16.gmra.mxu0 %v8715
    %v9090 = vpop.f32.mrf.mxu0
    %v9091 = vadd.f32 0.0, %v9090
    %v9092 = vpop.f32.mrf.mxu0
    %v9093 = vadd.f32 0.0, %v9092
    %9094 = vmatmul.bf16.gmra.mxu0 %v8717
    %v9095 = vpop.f32.mrf.mxu0
    %v9096 = vadd.f32 0.0, %v9095
    %v9097 = vpop.f32.mrf.mxu0
    %v9098 = vadd.f32 0.0, %v9097
    %9099 = vmatmul.bf16.gmra.mxu0 %v8719
    %v9100 = vpop.f32.mrf.mxu0
    %v9101 = vadd.f32 0.0, %v9100
    %v9102 = vpop.f32.mrf.mxu0
    %v9103 = vadd.f32 0.0, %v9102
    %9104 = vmatmul.bf16.gmra.mxu0 %v8721
    %v9105 = vpop.f32.mrf.mxu0
    %v9106 = vadd.f32 0.0, %v9105
    %v9107 = vpop.f32.mrf.mxu0
    %v9108 = vadd.f32 0.0, %v9107
    %9109 = vmatmul.bf16.gmra.mxu0 %v8723
    %v9110 = vpop.f32.mrf.mxu0
    %v9111 = vadd.f32 0.0, %v9110
    %v9112 = vpop.f32.mrf.mxu0
    %v9113 = vadd.f32 0.0, %v9112
    %9114 = vmatmul.bf16.gmra.mxu0 %v8725
    %v9115 = vpop.f32.mrf.mxu0
    %v9116 = vadd.f32 0.0, %v9115
    %v9117 = vpop.f32.mrf.mxu0
    %v9118 = vadd.f32 0.0, %v9117
    %9119 = vmatmul.bf16.gmra.mxu0 %v8727
    %v9120 = vpop.f32.mrf.mxu0
    %v9121 = vadd.f32 0.0, %v9120
    %v9122 = vpop.f32.mrf.mxu0
    %v9123 = vadd.f32 0.0, %v9122
    %9124 = vmatmul.bf16.gmra.mxu0 %v8729
    %v9125 = vpop.f32.mrf.mxu0
    %v9126 = vadd.f32 0.0, %v9125
    %v9127 = vpop.f32.mrf.mxu0
    %v9128 = vadd.f32 0.0, %v9127
    %9129 = vmatmul.bf16.gmra.mxu0 %v8731
    %v9130 = vpop.f32.mrf.mxu0
    %v9131 = vadd.f32 0.0, %v9130
    %v9132 = vpop.f32.mrf.mxu0
    %v9133 = vadd.f32 0.0, %v9132
    %9134 = vmatmul.bf16.gmra.mxu0 %v8733
    %v9135 = vpop.f32.mrf.mxu0
    %v9136 = vadd.f32 0.0, %v9135
    %v9137 = vpop.f32.mrf.mxu0
    %v9138 = vadd.f32 0.0, %v9137
    %9139 = vmatmul.bf16.gmra.mxu0 %v8735
    %v9140 = vpop.f32.mrf.mxu0
    %v9141 = vadd.f32 0.0, %v9140
    %v9142 = vpop.f32.mrf.mxu0
    %v9143 = vadd.f32 0.0, %v9142
    %9144 = vmatmul.bf16.gmra.mxu0 %v8737
    %v9145 = vpop.f32.mrf.mxu0
    %v9146 = vadd.f32 0.0, %v9145
    %v9147 = vpop.f32.mrf.mxu0
    %v9148 = vadd.f32 0.0, %v9147
    %9149 = vmatmul.bf16.gmra.mxu0 %v8739
    %v9150 = vpop.f32.mrf.mxu0
    %v9151 = vadd.f32 0.0, %v9150
    %v9152 = vpop.f32.mrf.mxu0
    %v9153 = vadd.f32 0.0, %v9152
    %9154 = vmatmul.bf16.gmra.mxu0 %v8741
    %v9155 = vpop.f32.mrf.mxu0
    %v9156 = vadd.f32 0.0, %v9155
    %v9157 = vpop.f32.mrf.mxu0
    %v9158 = vadd.f32 0.0, %v9157
    %9159 = vmatmul.bf16.gmra.mxu0 %v8743
    %v9160 = vpop.f32.mrf.mxu0
    %v9161 = vadd.f32 0.0, %v9160
    %v9162 = vpop.f32.mrf.mxu0
    %v9163 = vadd.f32 0.0, %v9162
    %9164 = vmatmul.bf16.gmra.mxu0 %v8745
    %v9165 = vpop.f32.mrf.mxu0
    %v9166 = vadd.f32 0.0, %v9165
    %v9167 = vpop.f32.mrf.mxu0
    %v9168 = vadd.f32 0.0, %v9167
    %9169 = vmatmul.bf16.gmra.mxu0 %v8747
    %v9170 = vpop.f32.mrf.mxu0
    %v9171 = vadd.f32 0.0, %v9170
    %v9172 = vpop.f32.mrf.mxu0
    %v9173 = vadd.f32 0.0, %v9172
    %9174 = vmatmul.bf16.gmra.mxu0 %v8749
    %v9175 = vpop.f32.mrf.mxu0
    %v9176 = vadd.f32 0.0, %v9175
    %v9177 = vpop.f32.mrf.mxu0
    %v9178 = vadd.f32 0.0, %v9177
    %9179 = vmatmul.bf16.gmra.mxu0 %v8751
    %v9180 = vpop.f32.mrf.mxu0
    %v9181 = vadd.f32 0.0, %v9180
    %v9182 = vpop.f32.mrf.mxu0
    %v9183 = vadd.f32 0.0, %v9182
    %9184 = vmatmul.bf16.gmra.mxu0 %v8753
    %v9185 = vpop.f32.mrf.mxu0
    %v9186 = vadd.f32 0.0, %v9185
    %v9187 = vpop.f32.mrf.mxu0
    %v9188 = vadd.f32 0.0, %v9187
    %9189 = vmatmul.bf16.gmra.mxu0 %v8755
    %v9190 = vpop.f32.mrf.mxu0
    %v9191 = vadd.f32 0.0, %v9190
    %v9192 = vpop.f32.mrf.mxu0
    %v9193 = vadd.f32 0.0, %v9192
    %9194 = vmatmul.bf16.gmra.mxu0 %v8757
    %v9195 = vpop.f32.mrf.mxu0
    %v9196 = vadd.f32 0.0, %v9195
    %v9197 = vpop.f32.mrf.mxu0
    %v9198 = vadd.f32 0.0, %v9197
    %9199 = vmatmul.bf16.gmra.mxu0 %v8759
    %v9200 = vpop.f32.mrf.mxu0
    %v9201 = vadd.f32 0.0, %v9200
    %v9202 = vpop.f32.mrf.mxu0
    %9203 = vdwg.mxu0
    %9204 = vmatpush.bf16.msra.mxu0 %v9030
    %9205 = vmatpush.bf16.msra.mxu0 %v9027
    %9206 = vmatpush.bf16.msra.mxu0 %v9024
    %9207 = vmatpush.bf16.msra.mxu0 %v9021
    %9208 = vmatpush.bf16.msra.mxu0 %v9018
    %9209 = vmatpush.bf16.msra.mxu0 %v9015
    %9210 = vmatpush.bf16.msra.mxu0 %v9012
    %9211 = vmatpush.bf16.msra.mxu0 %v9009
    %9212 = vmatmul.bf16.gmra.mxu0 %v8716
    %v9213 = vpop.f32.mrf.mxu0
    %v9214 = vadd.f32 %v9091, %v9213
    %v9215 = vpop.f32.mrf.mxu0
    %v9216 = vadd.f32 %v9093, %v9215
    %9217 = vmatmul.bf16.gmra.mxu0 %v8718
    %v9218 = vpop.f32.mrf.mxu0
    %v9219 = vadd.f32 %v9096, %v9218
    %v9220 = vpop.f32.mrf.mxu0
    %v9221 = vadd.f32 %v9098, %v9220
    %9222 = vmatmul.bf16.gmra.mxu0 %v8720
    %v9223 = vpop.f32.mrf.mxu0
    %v9224 = vadd.f32 %v9101, %v9223
    %v9225 = vpop.f32.mrf.mxu0
    %v9226 = vadd.f32 %v9103, %v9225
    %9227 = vmatmul.bf16.gmra.mxu0 %v8722
    %v9228 = vpop.f32.mrf.mxu0
    %v9229 = vadd.f32 %v9106, %v9228
    %v9230 = vpop.f32.mrf.mxu0
    %v9231 = vadd.f32 %v9108, %v9230
    %9232 = vmatmul.bf16.gmra.mxu0 %v8724
    %v9233 = vpop.f32.mrf.mxu0
    %v9234 = vadd.f32 %v9111, %v9233
    %v9235 = vpop.f32.mrf.mxu0
    %v9236 = vadd.f32 %v9113, %v9235
    %9237 = vmatmul.bf16.gmra.mxu0 %v8726
    %v9238 = vpop.f32.mrf.mxu0
    %v9239 = vadd.f32 %v9116, %v9238
    %v9240 = vpop.f32.mrf.mxu0
    %v9241 = vadd.f32 %v9118, %v9240
    %9242 = vmatmul.bf16.gmra.mxu0 %v8728
    %v9243 = vpop.f32.mrf.mxu0
    %v9244 = vadd.f32 %v9121, %v9243
    %v9245 = vpop.f32.mrf.mxu0
    %v9246 = vadd.f32 %v9123, %v9245
    %9247 = vmatmul.bf16.gmra.mxu0 %v8730
    %v9248 = vpop.f32.mrf.mxu0
    %v9249 = vadd.f32 %v9126, %v9248
    %v9250 = vpop.f32.mrf.mxu0
    %v9251 = vadd.f32 %v9128, %v9250
    %9252 = vmatmul.bf16.gmra.mxu0 %v8732
    %v9253 = vpop.f32.mrf.mxu0
    %v9254 = vadd.f32 %v9131, %v9253
    %v9255 = vpop.f32.mrf.mxu0
    %v9256 = vadd.f32 %v9133, %v9255
    %9257 = vmatmul.bf16.gmra.mxu0 %v8734
    %v9258 = vpop.f32.mrf.mxu0
    %v9259 = vadd.f32 %v9136, %v9258
    %v9260 = vpop.f32.mrf.mxu0
    %v9261 = vadd.f32 %v9138, %v9260
    %9262 = vmatmul.bf16.gmra.mxu0 %v8736
    %v9263 = vpop.f32.mrf.mxu0
    %v9264 = vadd.f32 %v9141, %v9263
    %v9265 = vpop.f32.mrf.mxu0
    %v9266 = vadd.f32 %v9143, %v9265
    %9267 = vmatmul.bf16.gmra.mxu0 %v8738
    %v9268 = vpop.f32.mrf.mxu0
    %v9269 = vadd.f32 %v9146, %v9268
    %v9270 = vpop.f32.mrf.mxu0
    %v9271 = vadd.f32 %v9148, %v9270
    %9272 = vmatmul.bf16.gmra.mxu0 %v8740
    %v9273 = vpop.f32.mrf.mxu0
    %v9274 = vadd.f32 %v9151, %v9273
    %v9275 = vpop.f32.mrf.mxu0
    %v9276 = vadd.f32 %v9153, %v9275
    %9277 = vmatmul.bf16.gmra.mxu0 %v8742
    %v9278 = vpop.f32.mrf.mxu0
    %v9279 = vadd.f32 %v9156, %v9278
    %v9280 = vpop.f32.mrf.mxu0
    %v9281 = vadd.f32 %v9158, %v9280
    %9282 = vmatmul.bf16.gmra.mxu0 %v8744
    %v9283 = vpop.f32.mrf.mxu0
    %v9284 = vadd.f32 %v9161, %v9283
    %v9285 = vpop.f32.mrf.mxu0
    %v9286 = vadd.f32 %v9163, %v9285
    %9287 = vmatmul.bf16.gmra.mxu0 %v8746
    %v9288 = vpop.f32.mrf.mxu0
    %v9289 = vadd.f32 %v9166, %v9288
    %v9290 = vpop.f32.mrf.mxu0
    %v9291 = vadd.f32 %v9168, %v9290
    %9292 = vmatmul.bf16.gmra.mxu0 %v8748
    %v9293 = vpop.f32.mrf.mxu0
    %v9294 = vadd.f32 %v9171, %v9293
    %v9295 = vpop.f32.mrf.mxu0
    %v9296 = vadd.f32 %v9173, %v9295
    %9297 = vmatmul.bf16.gmra.mxu0 %v8750
    %v9298 = vpop.f32.mrf.mxu0
    %v9299 = vadd.f32 %v9176, %v9298
    %v9300 = vpop.f32.mrf.mxu0
    %v9301 = vadd.f32 %v9178, %v9300
    %9302 = vmatmul.bf16.gmra.mxu0 %v8752
    %v9303 = vpop.f32.mrf.mxu0
    %v9304 = vadd.f32 %v9181, %v9303
    %v9305 = vpop.f32.mrf.mxu0
    %v9306 = vadd.f32 %v9183, %v9305
    %9307 = vmatmul.bf16.gmra.mxu0 %v8754
    %v9308 = vpop.f32.mrf.mxu0
    %v9309 = vadd.f32 %v9186, %v9308
    %v9310 = vpop.f32.mrf.mxu0
    %v9311 = vadd.f32 %v9188, %v9310
    %9312 = vmatmul.bf16.gmra.mxu0 %v8756
    %v9313 = vpop.f32.mrf.mxu0
    %v9314 = vadd.f32 %v9191, %v9313
    %v9315 = vpop.f32.mrf.mxu0
    %v9316 = vadd.f32 %v9193, %v9315
    %9317 = vmatmul.bf16.gmra.mxu0 %v8758
    %v9318 = vpop.f32.mrf.mxu0
    %v9319 = vadd.f32 %v9196, %v9318
    %v9320 = vpop.f32.mrf.mxu0
    %v9321 = vadd.f32 %v9198, %v9320
    %9322 = vmatmul.bf16.gmra.mxu0 %v8760
    %v9323 = vpop.f32.mrf.mxu0
    %v9324 = vadd.f32 %v9201, %v9323
    %v9325 = vpop.f32.mrf.mxu0
    %9326 = vdwg.mxu0
    %9327 = vmatpush.bf16.msra.mxu0 %v9007
    %9328 = vmatpush.bf16.msra.mxu0 %v9004
    %9329 = vmatpush.bf16.msra.mxu0 %v9001
    %9330 = vmatpush.bf16.msra.mxu0 %v8998
    %9331 = vmatpush.bf16.msra.mxu0 %v8995
    %9332 = vmatpush.bf16.msra.mxu0 %v8992
    %9333 = vmatpush.bf16.msra.mxu0 %v8989
    %9334 = vmatpush.bf16.msra.mxu0 %v8986
    %9335 = vmatmul.bf16.gmra.mxu0 %v8715
    %v9336 = vpop.f32.mrf.mxu0
    %v9337 = vadd.f32 0.0, %v9336
    %v9338 = vpop.f32.mrf.mxu0
    %v9339 = vadd.f32 0.0, %v9338
    %9340 = vmatmul.bf16.gmra.mxu0 %v8717
    %v9341 = vpop.f32.mrf.mxu0
    %v9342 = vadd.f32 0.0, %v9341
    %v9343 = vpop.f32.mrf.mxu0
    %v9344 = vadd.f32 0.0, %v9343
    %9345 = vmatmul.bf16.gmra.mxu0 %v8719
    %v9346 = vpop.f32.mrf.mxu0
    %v9347 = vadd.f32 0.0, %v9346
    %v9348 = vpop.f32.mrf.mxu0
    %v9349 = vadd.f32 0.0, %v9348
    %9350 = vmatmul.bf16.gmra.mxu0 %v8721
    %v9351 = vpop.f32.mrf.mxu0
    %v9352 = vadd.f32 0.0, %v9351
    %v9353 = vpop.f32.mrf.mxu0
    %v9354 = vadd.f32 0.0, %v9353
    %9355 = vmatmul.bf16.gmra.mxu0 %v8723
    %v9356 = vpop.f32.mrf.mxu0
    %v9357 = vadd.f32 0.0, %v9356
    %v9358 = vpop.f32.mrf.mxu0
    %v9359 = vadd.f32 0.0, %v9358
    %9360 = vmatmul.bf16.gmra.mxu0 %v8725
    %v9361 = vpop.f32.mrf.mxu0
    %v9362 = vadd.f32 0.0, %v9361
    %v9363 = vpop.f32.mrf.mxu0
    %v9364 = vadd.f32 0.0, %v9363
    %9365 = vmatmul.bf16.gmra.mxu0 %v8727
    %v9366 = vpop.f32.mrf.mxu0
    %v9367 = vadd.f32 0.0, %v9366
    %v9368 = vpop.f32.mrf.mxu0
    %v9369 = vadd.f32 0.0, %v9368
    %9370 = vmatmul.bf16.gmra.mxu0 %v8729
    %v9371 = vpop.f32.mrf.mxu0
    %v9372 = vadd.f32 0.0, %v9371
    %v9373 = vpop.f32.mrf.mxu0
    %v9374 = vadd.f32 0.0, %v9373
    %9375 = vmatmul.bf16.gmra.mxu0 %v8731
    %v9376 = vpop.f32.mrf.mxu0
    %v9377 = vadd.f32 0.0, %v9376
    %v9378 = vpop.f32.mrf.mxu0
    %v9379 = vadd.f32 0.0, %v9378
    %9380 = vmatmul.bf16.gmra.mxu0 %v8733
    %v9381 = vpop.f32.mrf.mxu0
    %v9382 = vadd.f32 0.0, %v9381
    %v9383 = vpop.f32.mrf.mxu0
    %v9384 = vadd.f32 0.0, %v9383
    %9385 = vmatmul.bf16.gmra.mxu0 %v8735
    %v9386 = vpop.f32.mrf.mxu0
    %v9387 = vadd.f32 0.0, %v9386
    %v9388 = vpop.f32.mrf.mxu0
    %v9389 = vadd.f32 0.0, %v9388
    %9390 = vmatmul.bf16.gmra.mxu0 %v8737
    %v9391 = vpop.f32.mrf.mxu0
    %v9392 = vadd.f32 0.0, %v9391
    %v9393 = vpop.f32.mrf.mxu0
    %v9394 = vadd.f32 0.0, %v9393
    %9395 = vmatmul.bf16.gmra.mxu0 %v8739
    %v9396 = vpop.f32.mrf.mxu0
    %v9397 = vadd.f32 0.0, %v9396
    %v9398 = vpop.f32.mrf.mxu0
    %v9399 = vadd.f32 0.0, %v9398
    %9400 = vmatmul.bf16.gmra.mxu0 %v8741
    %v9401 = vpop.f32.mrf.mxu0
    %v9402 = vadd.f32 0.0, %v9401
    %v9403 = vpop.f32.mrf.mxu0
    %v9404 = vadd.f32 0.0, %v9403
    %9405 = vmatmul.bf16.gmra.mxu0 %v8743
    %v9406 = vpop.f32.mrf.mxu0
    %v9407 = vadd.f32 0.0, %v9406
    %v9408 = vpop.f32.mrf.mxu0
    %v9409 = vadd.f32 0.0, %v9408
    %9410 = vmatmul.bf16.gmra.mxu0 %v8745
    %v9411 = vpop.f32.mrf.mxu0
    %v9412 = vadd.f32 0.0, %v9411
    %v9413 = vpop.f32.mrf.mxu0
    %v9414 = vadd.f32 0.0, %v9413
    %9415 = vmatmul.bf16.gmra.mxu0 %v8747
    %v9416 = vpop.f32.mrf.mxu0
    %v9417 = vadd.f32 0.0, %v9416
    %v9418 = vpop.f32.mrf.mxu0
    %v9419 = vadd.f32 0.0, %v9418
    %9420 = vmatmul.bf16.gmra.mxu0 %v8749
    %v9421 = vpop.f32.mrf.mxu0
    %v9422 = vadd.f32 0.0, %v9421
    %v9423 = vpop.f32.mrf.mxu0
    %v9424 = vadd.f32 0.0, %v9423
    %9425 = vmatmul.bf16.gmra.mxu0 %v8751
    %v9426 = vpop.f32.mrf.mxu0
    %v9427 = vadd.f32 0.0, %v9426
    %v9428 = vpop.f32.mrf.mxu0
    %v9429 = vadd.f32 0.0, %v9428
    %9430 = vmatmul.bf16.gmra.mxu0 %v8753
    %v9431 = vpop.f32.mrf.mxu0
    %v9432 = vadd.f32 0.0, %v9431
    %v9433 = vpop.f32.mrf.mxu0
    %v9434 = vadd.f32 0.0, %v9433
    %9435 = vmatmul.bf16.gmra.mxu0 %v8755
    %v9436 = vpop.f32.mrf.mxu0
    %v9437 = vadd.f32 0.0, %v9436
    %v9438 = vpop.f32.mrf.mxu0
    %v9439 = vadd.f32 0.0, %v9438
    %9440 = vmatmul.bf16.gmra.mxu0 %v8757
    %v9441 = vpop.f32.mrf.mxu0
    %v9442 = vadd.f32 0.0, %v9441
    %v9443 = vpop.f32.mrf.mxu0
    %v9444 = vadd.f32 0.0, %v9443
    %9445 = vmatmul.bf16.gmra.mxu0 %v8759
    %v9446 = vpop.f32.mrf.mxu0
    %v9447 = vadd.f32 0.0, %v9446
    %v9448 = vpop.f32.mrf.mxu0
    %9449 = vdwg.mxu0
    %9450 = vmatpush.bf16.msra.mxu0 %v9031
    %9451 = vmatpush.bf16.msra.mxu0 %v9028
    %9452 = vmatpush.bf16.msra.mxu0 %v9025
    %9453 = vmatpush.bf16.msra.mxu0 %v9022
    %9454 = vmatpush.bf16.msra.mxu0 %v9019
    %9455 = vmatpush.bf16.msra.mxu0 %v9016
    %9456 = vmatpush.bf16.msra.mxu0 %v9013
    %9457 = vmatpush.bf16.msra.mxu0 %v9010
    %9458 = vmatmul.bf16.gmra.mxu0 %v8716
    %v9459 = vpop.f32.mrf.mxu0
    %v9460 = vadd.f32 %v9337, %v9459
    %v9461 = vpop.f32.mrf.mxu0
    %v9462 = vadd.f32 %v9339, %v9461
    %9463 = vmatmul.bf16.gmra.mxu0 %v8718
    %v9464 = vpop.f32.mrf.mxu0
    %v9465 = vadd.f32 %v9342, %v9464
    %v9466 = vpop.f32.mrf.mxu0
    %v9467 = vadd.f32 %v9344, %v9466
    %9468 = vmatmul.bf16.gmra.mxu0 %v8720
    %v9469 = vpop.f32.mrf.mxu0
    %v9470 = vadd.f32 %v9347, %v9469
    %v9471 = vpop.f32.mrf.mxu0
    %v9472 = vadd.f32 %v9349, %v9471
    %9473 = vmatmul.bf16.gmra.mxu0 %v8722
    %v9474 = vpop.f32.mrf.mxu0
    %v9475 = vadd.f32 %v9352, %v9474
    %v9476 = vpop.f32.mrf.mxu0
    %v9477 = vadd.f32 %v9354, %v9476
    %9478 = vmatmul.bf16.gmra.mxu0 %v8724
    %v9479 = vpop.f32.mrf.mxu0
    %v9480 = vadd.f32 %v9357, %v9479
    %v9481 = vpop.f32.mrf.mxu0
    %v9482 = vadd.f32 %v9359, %v9481
    %9483 = vmatmul.bf16.gmra.mxu0 %v8726
    %v9484 = vpop.f32.mrf.mxu0
    %v9485 = vadd.f32 %v9362, %v9484
    %v9486 = vpop.f32.mrf.mxu0
    %v9487 = vadd.f32 %v9364, %v9486
    %9488 = vmatmul.bf16.gmra.mxu0 %v8728
    %v9489 = vpop.f32.mrf.mxu0
    %v9490 = vadd.f32 %v9367, %v9489
    %v9491 = vpop.f32.mrf.mxu0
    %v9492 = vadd.f32 %v9369, %v9491
    %9493 = vmatmul.bf16.gmra.mxu0 %v8730
    %v9494 = vpop.f32.mrf.mxu0
    %v9495 = vadd.f32 %v9372, %v9494
    %v9496 = vpop.f32.mrf.mxu0
    %v9497 = vadd.f32 %v9374, %v9496
    %9498 = vmatmul.bf16.gmra.mxu0 %v8732
    %v9499 = vpop.f32.mrf.mxu0
    %v9500 = vadd.f32 %v9377, %v9499
    %v9501 = vpop.f32.mrf.mxu0
    %v9502 = vadd.f32 %v9379, %v9501
    %9503 = vmatmul.bf16.gmra.mxu0 %v8734
    %v9504 = vpop.f32.mrf.mxu0
    %v9505 = vadd.f32 %v9382, %v9504
    %v9506 = vpop.f32.mrf.mxu0
    %v9507 = vadd.f32 %v9384, %v9506
    %9508 = vmatmul.bf16.gmra.mxu0 %v8736
    %v9509 = vpop.f32.mrf.mxu0
    %v9510 = vadd.f32 %v9387, %v9509
    %v9511 = vpop.f32.mrf.mxu0
    %v9512 = vadd.f32 %v9389, %v9511
    %9513 = vmatmul.bf16.gmra.mxu0 %v8738
    %v9514 = vpop.f32.mrf.mxu0
    %v9515 = vadd.f32 %v9392, %v9514
    %v9516 = vpop.f32.mrf.mxu0
    %v9517 = vadd.f32 %v9394, %v9516
    %9518 = vmatmul.bf16.gmra.mxu0 %v8740
    %v9519 = vpop.f32.mrf.mxu0
    %v9520 = vadd.f32 %v9397, %v9519
    %v9521 = vpop.f32.mrf.mxu0
    %v9522 = vadd.f32 %v9399, %v9521
    %9523 = vmatmul.bf16.gmra.mxu0 %v8742
    %v9524 = vpop.f32.mrf.mxu0
    %v9525 = vadd.f32 %v9402, %v9524
    %v9526 = vpop.f32.mrf.mxu0
    %v9527 = vadd.f32 %v9404, %v9526
    %9528 = vmatmul.bf16.gmra.mxu0 %v8744
    %v9529 = vpop.f32.mrf.mxu0
    %v9530 = vadd.f32 %v9407, %v9529
    %v9531 = vpop.f32.mrf.mxu0
    %v9532 = vadd.f32 %v9409, %v9531
    %9533 = vmatmul.bf16.gmra.mxu0 %v8746
    %v9534 = vpop.f32.mrf.mxu0
    %v9535 = vadd.f32 %v9412, %v9534
    %v9536 = vpop.f32.mrf.mxu0
    %v9537 = vadd.f32 %v9414, %v9536
    %9538 = vmatmul.bf16.gmra.mxu0 %v8748
    %v9539 = vpop.f32.mrf.mxu0
    %v9540 = vadd.f32 %v9417, %v9539
    %v9541 = vpop.f32.mrf.mxu0
    %v9542 = vadd.f32 %v9419, %v9541
    %9543 = vmatmul.bf16.gmra.mxu0 %v8750
    %v9544 = vpop.f32.mrf.mxu0
    %v9545 = vadd.f32 %v9422, %v9544
    %v9546 = vpop.f32.mrf.mxu0
    %v9547 = vadd.f32 %v9424, %v9546
    %9548 = vmatmul.bf16.gmra.mxu0 %v8752
    %v9549 = vpop.f32.mrf.mxu0
    %v9550 = vadd.f32 %v9427, %v9549
    %v9551 = vpop.f32.mrf.mxu0
    %v9552 = vadd.f32 %v9429, %v9551
    %9553 = vmatmul.bf16.gmra.mxu0 %v8754
    %v9554 = vpop.f32.mrf.mxu0
    %v9555 = vadd.f32 %v9432, %v9554
    %v9556 = vpop.f32.mrf.mxu0
    %v9557 = vadd.f32 %v9434, %v9556
    %9558 = vmatmul.bf16.gmra.mxu0 %v8756
    %v9559 = vpop.f32.mrf.mxu0
    %v9560 = vadd.f32 %v9437, %v9559
    %v9561 = vpop.f32.mrf.mxu0
    %v9562 = vadd.f32 %v9439, %v9561
    %9563 = vmatmul.bf16.gmra.mxu0 %v8758
    %v9564 = vpop.f32.mrf.mxu0
    %v9565 = vadd.f32 %v9442, %v9564
    %v9566 = vpop.f32.mrf.mxu0
    %v9567 = vadd.f32 %v9444, %v9566
    %9568 = vmatmul.bf16.gmra.mxu0 %v8760
    %v9569 = vpop.f32.mrf.mxu0
    %v9570 = vadd.f32 %v9447, %v9569
    %v9571 = vpop.f32.mrf.mxu0
    %9572 = vdwg.mxu0
    %9573 = vmatpush.bf16.msra.mxu0 %v9008
    %9574 = vmatpush.bf16.msra.mxu0 %v9005
    %9575 = vmatpush.bf16.msra.mxu0 %v9002
    %9576 = vmatpush.bf16.msra.mxu0 %v8999
    %9577 = vmatpush.bf16.msra.mxu0 %v8996
    %9578 = vmatpush.bf16.msra.mxu0 %v8993
    %9579 = vmatpush.bf16.msra.mxu0 %v8990
    %9580 = vmatpush.bf16.msra.mxu0 %v8987
    %9581 = vmatmul.bf16.gmra.mxu0 %v8715
    %v9582 = vpop.f32.mrf.mxu0
    %v9583 = vadd.f32 0.0, %v9582
    %v9584 = vpop.f32.mrf.mxu0
    %v9585 = vadd.f32 0.0, %v9584
    %9586 = vmatmul.bf16.gmra.mxu0 %v8717
    %v9587 = vpop.f32.mrf.mxu0
    %v9588 = vadd.f32 0.0, %v9587
    %v9589 = vpop.f32.mrf.mxu0
    %v9590 = vadd.f32 0.0, %v9589
    %9591 = vmatmul.bf16.gmra.mxu0 %v8719
    %v9592 = vpop.f32.mrf.mxu0
    %v9593 = vadd.f32 0.0, %v9592
    %v9594 = vpop.f32.mrf.mxu0
    %v9595 = vadd.f32 0.0, %v9594
    %9596 = vmatmul.bf16.gmra.mxu0 %v8721
    %v9597 = vpop.f32.mrf.mxu0
    %v9598 = vadd.f32 0.0, %v9597
    %v9599 = vpop.f32.mrf.mxu0
    %v9600 = vadd.f32 0.0, %v9599
    %9601 = vmatmul.bf16.gmra.mxu0 %v8723
    %v9602 = vpop.f32.mrf.mxu0
    %v9603 = vadd.f32 0.0, %v9602
    %v9604 = vpop.f32.mrf.mxu0
    %v9605 = vadd.f32 0.0, %v9604
    %9606 = vmatmul.bf16.gmra.mxu0 %v8725
    %v9607 = vpop.f32.mrf.mxu0
    %v9608 = vadd.f32 0.0, %v9607
    %v9609 = vpop.f32.mrf.mxu0
    %v9610 = vadd.f32 0.0, %v9609
    %9611 = vmatmul.bf16.gmra.mxu0 %v8727
    %v9612 = vpop.f32.mrf.mxu0
    %v9613 = vadd.f32 0.0, %v9612
    %v9614 = vpop.f32.mrf.mxu0
    %v9615 = vadd.f32 0.0, %v9614
    %9616 = vmatmul.bf16.gmra.mxu0 %v8729
    %v9617 = vpop.f32.mrf.mxu0
    %v9618 = vadd.f32 0.0, %v9617
    %v9619 = vpop.f32.mrf.mxu0
    %v9620 = vadd.f32 0.0, %v9619
    %9621 = vmatmul.bf16.gmra.mxu0 %v8731
    %v9622 = vpop.f32.mrf.mxu0
    %v9623 = vadd.f32 0.0, %v9622
    %v9624 = vpop.f32.mrf.mxu0
    %v9625 = vadd.f32 0.0, %v9624
    %9626 = vmatmul.bf16.gmra.mxu0 %v8733
    %v9627 = vpop.f32.mrf.mxu0
    %v9628 = vadd.f32 0.0, %v9627
    %v9629 = vpop.f32.mrf.mxu0
    %v9630 = vadd.f32 0.0, %v9629
    %9631 = vmatmul.bf16.gmra.mxu0 %v8735
    %v9632 = vpop.f32.mrf.mxu0
    %v9633 = vadd.f32 0.0, %v9632
    %v9634 = vpop.f32.mrf.mxu0
    %v9635 = vadd.f32 0.0, %v9634
    %9636 = vmatmul.bf16.gmra.mxu0 %v8737
    %v9637 = vpop.f32.mrf.mxu0
    %v9638 = vadd.f32 0.0, %v9637
    %v9639 = vpop.f32.mrf.mxu0
    %v9640 = vadd.f32 0.0, %v9639
    %9641 = vmatmul.bf16.gmra.mxu0 %v8739
    %v9642 = vpop.f32.mrf.mxu0
    %v9643 = vadd.f32 0.0, %v9642
    %v9644 = vpop.f32.mrf.mxu0
    %v9645 = vadd.f32 0.0, %v9644
    %9646 = vmatmul.bf16.gmra.mxu0 %v8741
    %v9647 = vpop.f32.mrf.mxu0
    %v9648 = vadd.f32 0.0, %v9647
    %v9649 = vpop.f32.mrf.mxu0
    %v9650 = vadd.f32 0.0, %v9649
    %9651 = vmatmul.bf16.gmra.mxu0 %v8743
    %v9652 = vpop.f32.mrf.mxu0
    %v9653 = vadd.f32 0.0, %v9652
    %v9654 = vpop.f32.mrf.mxu0
    %v9655 = vadd.f32 0.0, %v9654
    %9656 = vmatmul.bf16.gmra.mxu0 %v8745
    %v9657 = vpop.f32.mrf.mxu0
    %v9658 = vadd.f32 0.0, %v9657
    %v9659 = vpop.f32.mrf.mxu0
    %v9660 = vadd.f32 0.0, %v9659
    %9661 = vmatmul.bf16.gmra.mxu0 %v8747
    %v9662 = vpop.f32.mrf.mxu0
    %v9663 = vadd.f32 0.0, %v9662
    %v9664 = vpop.f32.mrf.mxu0
    %v9665 = vadd.f32 0.0, %v9664
    %9666 = vmatmul.bf16.gmra.mxu0 %v8749
    %v9667 = vpop.f32.mrf.mxu0
    %v9668 = vadd.f32 0.0, %v9667
    %v9669 = vpop.f32.mrf.mxu0
    %v9670 = vadd.f32 0.0, %v9669
    %9671 = vmatmul.bf16.gmra.mxu0 %v8751
    %v9672 = vpop.f32.mrf.mxu0
    %v9673 = vadd.f32 0.0, %v9672
    %v9674 = vpop.f32.mrf.mxu0
    %v9675 = vadd.f32 0.0, %v9674
    %9676 = vmatmul.bf16.gmra.mxu0 %v8753
    %v9677 = vpop.f32.mrf.mxu0
    %v9678 = vadd.f32 0.0, %v9677
    %v9679 = vpop.f32.mrf.mxu0
    %v9680 = vadd.f32 0.0, %v9679
    %9681 = vmatmul.bf16.gmra.mxu0 %v8755
    %v9682 = vpop.f32.mrf.mxu0
    %v9683 = vadd.f32 0.0, %v9682
    %v9684 = vpop.f32.mrf.mxu0
    %v9685 = vadd.f32 0.0, %v9684
    %9686 = vmatmul.bf16.gmra.mxu0 %v8757
    %v9687 = vpop.f32.mrf.mxu0
    %v9688 = vadd.f32 0.0, %v9687
    %v9689 = vpop.f32.mrf.mxu0
    %v9690 = vadd.f32 0.0, %v9689
    %9691 = vmatmul.bf16.gmra.mxu0 %v8759
    %v9692 = vpop.f32.mrf.mxu0
    %v9693 = vadd.f32 0.0, %v9692
    %v9694 = vpop.f32.mrf.mxu0
    %9695 = vdwg.mxu0
    %9696 = vmatpush.bf16.msra.mxu0 %v9032
    %9697 = vmatpush.bf16.msra.mxu0 %v9029
    %9698 = vmatpush.bf16.msra.mxu0 %v9026
    %9699 = vmatpush.bf16.msra.mxu0 %v9023
    %9700 = vmatpush.bf16.msra.mxu0 %v9020
    %9701 = vmatpush.bf16.msra.mxu0 %v9017
    %9702 = vmatpush.bf16.msra.mxu0 %v9014
    %9703 = vmatpush.bf16.msra.mxu0 %v9011
    %9704 = vmatmul.bf16.gmra.mxu0 %v8716
    %v9705 = vpop.f32.mrf.mxu0
    %v9706 = vadd.f32 %v9583, %v9705
    %v9707 = vpop.f32.mrf.mxu0
    %v9708 = vadd.f32 %v9585, %v9707
    %9709 = vmatmul.bf16.gmra.mxu0 %v8718
    %v9710 = vpop.f32.mrf.mxu0
    %v9711 = vadd.f32 %v9588, %v9710
    %v9712 = vpop.f32.mrf.mxu0
    %v9713 = vadd.f32 %v9590, %v9712
    %9714 = vmatmul.bf16.gmra.mxu0 %v8720
    %v9715 = vpop.f32.mrf.mxu0
    %v9716 = vadd.f32 %v9593, %v9715
    %v9717 = vpop.f32.mrf.mxu0
    %v9718 = vadd.f32 %v9595, %v9717
    %9719 = vmatmul.bf16.gmra.mxu0 %v8722
    %v9720 = vpop.f32.mrf.mxu0
    %v9721 = vadd.f32 %v9598, %v9720
    %v9722 = vpop.f32.mrf.mxu0
    %v9723 = vadd.f32 %v9600, %v9722
    %9724 = vmatmul.bf16.gmra.mxu0 %v8724
    %v9725 = vpop.f32.mrf.mxu0
    %v9726 = vadd.f32 %v9603, %v9725
    %v9727 = vpop.f32.mrf.mxu0
    %v9728 = vadd.f32 %v9605, %v9727
    %9729 = vmatmul.bf16.gmra.mxu0 %v8726
    %v9730 = vpop.f32.mrf.mxu0
    %v9731 = vadd.f32 %v9608, %v9730
    %v9732 = vpop.f32.mrf.mxu0
    %v9733 = vadd.f32 %v9610, %v9732
    %9734 = vmatmul.bf16.gmra.mxu0 %v8728
    %v9735 = vpop.f32.mrf.mxu0
    %v9736 = vadd.f32 %v9613, %v9735
    %v9737 = vpop.f32.mrf.mxu0
    %v9738 = vadd.f32 %v9615, %v9737
    %9739 = vmatmul.bf16.gmra.mxu0 %v8730
    %v9740 = vpop.f32.mrf.mxu0
    %v9741 = vadd.f32 %v9618, %v9740
    %v9742 = vpop.f32.mrf.mxu0
    %v9743 = vadd.f32 %v9620, %v9742
    %9744 = vmatmul.bf16.gmra.mxu0 %v8732
    %v9745 = vpop.f32.mrf.mxu0
    %v9746 = vadd.f32 %v9623, %v9745
    %v9747 = vpop.f32.mrf.mxu0
    %v9748 = vadd.f32 %v9625, %v9747
    %9749 = vmatmul.bf16.gmra.mxu0 %v8734
    %v9750 = vpop.f32.mrf.mxu0
    %v9751 = vadd.f32 %v9628, %v9750
    %v9752 = vpop.f32.mrf.mxu0
    %v9753 = vadd.f32 %v9630, %v9752
    %9754 = vmatmul.bf16.gmra.mxu0 %v8736
    %v9755 = vpop.f32.mrf.mxu0
    %v9756 = vadd.f32 %v9633, %v9755
    %v9757 = vpop.f32.mrf.mxu0
    %v9758 = vadd.f32 %v9635, %v9757
    %9759 = vmatmul.bf16.gmra.mxu0 %v8738
    %v9760 = vpop.f32.mrf.mxu0
    %v9761 = vadd.f32 %v9638, %v9760
    %v9762 = vpop.f32.mrf.mxu0
    %v9763 = vadd.f32 %v9640, %v9762
    %9764 = vmatmul.bf16.gmra.mxu0 %v8740
    %v9765 = vpop.f32.mrf.mxu0
    %v9766 = vadd.f32 %v9643, %v9765
    %v9767 = vpop.f32.mrf.mxu0
    %v9768 = vadd.f32 %v9645, %v9767
    %9769 = vmatmul.bf16.gmra.mxu0 %v8742
    %v9770 = vpop.f32.mrf.mxu0
    %v9771 = vadd.f32 %v9648, %v9770
    %v9772 = vpop.f32.mrf.mxu0
    %v9773 = vadd.f32 %v9650, %v9772
    %9774 = vmatmul.bf16.gmra.mxu0 %v8744
    %v9775 = vpop.f32.mrf.mxu0
    %v9776 = vadd.f32 %v9653, %v9775
    %v9777 = vpop.f32.mrf.mxu0
    %v9778 = vadd.f32 %v9655, %v9777
    %9779 = vmatmul.bf16.gmra.mxu0 %v8746
    %v9780 = vpop.f32.mrf.mxu0
    %v9781 = vadd.f32 %v9658, %v9780
    %v9782 = vpop.f32.mrf.mxu0
    %v9783 = vadd.f32 %v9660, %v9782
    %9784 = vmatmul.bf16.gmra.mxu0 %v8748
    %v9785 = vpop.f32.mrf.mxu0
    %v9786 = vadd.f32 %v9663, %v9785
    %v9787 = vpop.f32.mrf.mxu0
    %v9788 = vadd.f32 %v9665, %v9787
    %9789 = vmatmul.bf16.gmra.mxu0 %v8750
    %v9790 = vpop.f32.mrf.mxu0
    %v9791 = vadd.f32 %v9668, %v9790
    %v9792 = vpop.f32.mrf.mxu0
    %v9793 = vadd.f32 %v9670, %v9792
    %9794 = vmatmul.bf16.gmra.mxu0 %v8752
    %v9795 = vpop.f32.mrf.mxu0
    %v9796 = vadd.f32 %v9673, %v9795
    %v9797 = vpop.f32.mrf.mxu0
    %v9798 = vadd.f32 %v9675, %v9797
    %9799 = vmatmul.bf16.gmra.mxu0 %v8754
    %v9800 = vpop.f32.mrf.mxu0
    %v9801 = vadd.f32 %v9678, %v9800
    %v9802 = vpop.f32.mrf.mxu0
    %v9803 = vadd.f32 %v9680, %v9802
    %9804 = vmatmul.bf16.gmra.mxu0 %v8756
    %v9805 = vpop.f32.mrf.mxu0
    %v9806 = vadd.f32 %v9683, %v9805
    %v9807 = vpop.f32.mrf.mxu0
    %v9808 = vadd.f32 %v9685, %v9807
    %9809 = vmatmul.bf16.gmra.mxu0 %v8758
    %v9810 = vpop.f32.mrf.mxu0
    %v9811 = vadd.f32 %v9688, %v9810
    %v9812 = vpop.f32.mrf.mxu0
    %v9813 = vadd.f32 %v9690, %v9812
    %9814 = vmatmul.bf16.gmra.mxu0 %v8760
    %v9815 = vpop.f32.mrf.mxu0
    %v9816 = vadd.f32 %v9693, %v9815
    %v9817 = vpop.f32.mrf.mxu0
    %9818 = vdwg.mxu0
    %v9819 = vmax.f32 %v9214, %v9460
    %v9820 = vmax.f32 %v9216, %v9462
    %v9821 = vmax.f32 %v9219, %v9465
    %v9822 = vmax.f32 %v9221, %v9467
    %v9823 = vmax.f32 %v9224, %v9470
    %v9824 = vmax.f32 %v9226, %v9472
    %v9825 = vmax.f32 %v9229, %v9475
    %v9826 = vmax.f32 %v9231, %v9477
    %v9827 = vmax.f32 %v9234, %v9480
    %v9828 = vmax.f32 %v9236, %v9482
    %v9829 = vmax.f32 %v9239, %v9485
    %v9830 = vmax.f32 %v9241, %v9487
    %v9831 = vmax.f32 %v9244, %v9490
    %v9832 = vmax.f32 %v9246, %v9492
    %v9833 = vmax.f32 %v9249, %v9495
    %v9834 = vmax.f32 %v9251, %v9497
    %v9835 = vmax.f32 %v9254, %v9500
    %v9836 = vmax.f32 %v9256, %v9502
    %v9837 = vmax.f32 %v9259, %v9505
    %v9838 = vmax.f32 %v9261, %v9507
    %v9839 = vmax.f32 %v9264, %v9510
    %v9840 = vmax.f32 %v9266, %v9512
    %v9841 = vmax.f32 %v9269, %v9515
    %v9842 = vmax.f32 %v9271, %v9517
    %v9843 = vmax.f32 %v9274, %v9520
    %v9844 = vmax.f32 %v9276, %v9522
    %v9845 = vmax.f32 %v9279, %v9525
    %v9846 = vmax.f32 %v9281, %v9527
    %v9847 = vmax.f32 %v9284, %v9530
    %v9848 = vmax.f32 %v9286, %v9532
    %v9849 = vmax.f32 %v9289, %v9535
    %v9850 = vmax.f32 %v9291, %v9537
    %v9851 = vmax.f32 %v9294, %v9540
    %v9852 = vmax.f32 %v9296, %v9542
    %v9853 = vmax.f32 %v9299, %v9545
    %v9854 = vmax.f32 %v9301, %v9547
    %v9855 = vmax.f32 %v9304, %v9550
    %v9856 = vmax.f32 %v9306, %v9552
    %v9857 = vmax.f32 %v9309, %v9555
    %v9858 = vmax.f32 %v9311, %v9557
    %v9859 = vmax.f32 %v9314, %v9560
    %v9860 = vmax.f32 %v9316, %v9562
    %v9861 = vmax.f32 %v9319, %v9565
    %v9862 = vmax.f32 %v9321, %v9567
    %v9863 = vmax.f32 %v9324, %v9570
    %v9864 = vmax.f32 %v9819, %v9706
    %v9865 = vmax.f32 %v9820, %v9708
    %v9866 = vmax.f32 %v9821, %v9711
    %v9867 = vmax.f32 %v9822, %v9713
    %v9868 = vmax.f32 %v9823, %v9716
    %v9869 = vmax.f32 %v9824, %v9718
    %v9870 = vmax.f32 %v9825, %v9721
    %v9871 = vmax.f32 %v9826, %v9723
    %v9872 = vmax.f32 %v9827, %v9726
    %v9873 = vmax.f32 %v9828, %v9728
    %v9874 = vmax.f32 %v9829, %v9731
    %v9875 = vmax.f32 %v9830, %v9733
    %v9876 = vmax.f32 %v9831, %v9736
    %v9877 = vmax.f32 %v9832, %v9738
    %v9878 = vmax.f32 %v9833, %v9741
    %v9879 = vmax.f32 %v9834, %v9743
    %v9880 = vmax.f32 %v9835, %v9746
    %v9881 = vmax.f32 %v9836, %v9748
    %v9882 = vmax.f32 %v9837, %v9751
    %v9883 = vmax.f32 %v9838, %v9753
    %v9884 = vmax.f32 %v9839, %v9756
    %v9885 = vmax.f32 %v9840, %v9758
    %v9886 = vmax.f32 %v9841, %v9761
    %v9887 = vmax.f32 %v9842, %v9763
    %v9888 = vmax.f32 %v9843, %v9766
    %v9889 = vmax.f32 %v9844, %v9768
    %v9890 = vmax.f32 %v9845, %v9771
    %v9891 = vmax.f32 %v9846, %v9773
    %v9892 = vmax.f32 %v9847, %v9776
    %v9893 = vmax.f32 %v9848, %v9778
    %v9894 = vmax.f32 %v9849, %v9781
    %v9895 = vmax.f32 %v9850, %v9783
    %v9896 = vmax.f32 %v9851, %v9786
    %v9897 = vmax.f32 %v9852, %v9788
    %v9898 = vmax.f32 %v9853, %v9791
    %v9899 = vmax.f32 %v9854, %v9793
    %v9900 = vmax.f32 %v9855, %v9796
    %v9901 = vmax.f32 %v9856, %v9798
    %v9902 = vmax.f32 %v9857, %v9801
    %v9903 = vmax.f32 %v9858, %v9803
    %v9904 = vmax.f32 %v9859, %v9806
    %v9905 = vmax.f32 %v9860, %v9808
    %v9906 = vmax.f32 %v9861, %v9811
    %v9907 = vmax.f32 %v9862, %v9813
    %v9908 = vmax.f32 %v9863, %v9816
    %v9909 = vld [vmem:[#allocation13] sm:$0x1]
    %v9911 = vperm.slane %v9909, 0
    %v9913 = vadd.f32 %v9864, %v9911
    %v9914 = vadd.f32 %v9865, %v9911
    %v9915 = vadd.f32 %v9866, %v9911
    %v9916 = vadd.f32 %v9867, %v9911
    %v9917 = vadd.f32 %v9868, %v9911
    %v9918 = vadd.f32 %v9869, %v9911
    %v9919 = vadd.f32 %v9870, %v9911
    %v9920 = vadd.f32 %v9871, %v9911
    %v9921 = vadd.f32 %v9872, %v9911
    %v9922 = vadd.f32 %v9873, %v9911
    %v9923 = vadd.f32 %v9874, %v9911
    %v9924 = vadd.f32 %v9875, %v9911
    %v9925 = vadd.f32 %v9876, %v9911
    %v9926 = vadd.f32 %v9877, %v9911
    %v9927 = vadd.f32 %v9878, %v9911
    %v9928 = vadd.f32 %v9879, %v9911
    %v9929 = vadd.f32 %v9880, %v9911
    %v9930 = vadd.f32 %v9881, %v9911
    %v9931 = vadd.f32 %v9882, %v9911
    %v9932 = vadd.f32 %v9883, %v9911
    %v9933 = vadd.f32 %v9884, %v9911
    %v9934 = vadd.f32 %v9885, %v9911
    %v9935 = vadd.f32 %v9886, %v9911
    %v9936 = vadd.f32 %v9887, %v9911
    %v9937 = vadd.f32 %v9888, %v9911
    %v9938 = vadd.f32 %v9889, %v9911
    %v9939 = vadd.f32 %v9890, %v9911
    %v9940 = vadd.f32 %v9891, %v9911
    %v9941 = vadd.f32 %v9892, %v9911
    %v9942 = vadd.f32 %v9893, %v9911
    %v9943 = vadd.f32 %v9894, %v9911
    %v9944 = vadd.f32 %v9895, %v9911
    %v9945 = vadd.f32 %v9896, %v9911
    %v9946 = vadd.f32 %v9897, %v9911
    %v9947 = vadd.f32 %v9898, %v9911
    %v9948 = vadd.f32 %v9899, %v9911
    %v9949 = vadd.f32 %v9900, %v9911
    %v9950 = vadd.f32 %v9901, %v9911
    %v9951 = vadd.f32 %v9902, %v9911
    %v9952 = vadd.f32 %v9903, %v9911
    %v9953 = vadd.f32 %v9904, %v9911
    %v9954 = vadd.f32 %v9905, %v9911
    %v9955 = vadd.f32 %v9906, %v9911
    %v9956 = vadd.f32 %v9907, %v9911
    %v9957 = vadd.f32 %v9908, %v9911
    %v9958 = vld [vmem:[#allocation14] sm:$0xff]
    %v9959 = vld [vmem:[#allocation14 + $0x8] sm:$0xff]
    %v9960 = vld [vmem:[#allocation14 + $0x10] sm:$0xff]
    %v9961 = vld [vmem:[#allocation14 + $0x18] sm:$0xff]
    %v9962 = vld [vmem:[#allocation14 + $0x20] sm:$0xff]
    %v9963 = vld [vmem:[#allocation14 + $0x28] sm:$0xff]
    %v9964 = vld [vmem:[#allocation14 + $0x30] sm:$0xff]
    %v9965 = vld [vmem:[#allocation14 + $0x38] sm:$0xff]
    %v9966 = vld [vmem:[#allocation14 + $0x40] sm:$0xff]
    %v9967 = vld [vmem:[#allocation14 + $0x48] sm:$0xff]
    %v9968 = vld [vmem:[#allocation14 + $0x50] sm:$0xff]
    %v9969 = vld [vmem:[#allocation14 + $0x58] sm:$0xff]
    %v9970 = vld [vmem:[#allocation14 + $0x60] sm:$0xff]
    %v9971 = vld [vmem:[#allocation14 + $0x68] sm:$0xff]
    %v9972 = vld [vmem:[#allocation14 + $0x70] sm:$0xff]
    %v9973 = vld [vmem:[#allocation14 + $0x78] sm:$0xff]
    %v9974 = vld [vmem:[#allocation16] sm:$0x1]
    %v9976 = vperm.slane %v9974, 0
    %9978 = vmatpush.msra.mxu0 %v9973
    %9979 = vmatpush.msra.mxu0 %v9972
    %9980 = vmatpush.msra.mxu0 %v9971
    %9981 = vmatpush.msra.mxu0 %v9970
    %9982 = vmatpush.msra.mxu0 %v9969
    %9983 = vmatpush.msra.mxu0 %v9968
    %9984 = vmatpush.msra.mxu0 %v9967
    %9985 = vmatpush.msra.mxu0 %v9966
    %9986 = vmatpush.msra.mxu0 %v9965
    %9987 = vmatpush.msra.mxu0 %v9964
    %9988 = vmatpush.msra.mxu0 %v9963
    %9989 = vmatpush.msra.mxu0 %v9962
    %9990 = vmatpush.msra.mxu0 %v9961
    %9991 = vmatpush.msra.mxu0 %v9960
    %9992 = vmatpush.msra.mxu0 %v9959
    %9993 = vmatpush.msra.mxu0 %v9958
    %9994 = vmatmul.f32.gmra.mxu0 %v9913
    %v9995 = vpop.f32.mrf.mxu0
    %v9996 = vadd.f32 %v9976, %v9995
    %9997 = vmatmul.f32.gmra.mxu0 %v9914
    %v9998 = vpop.f32.mrf.mxu0
    %v9999 = vadd.f32 %v9976, %v9998
    %10000 = vmatmul.f32.gmra.mxu0 %v9915
    %v10001 = vpop.f32.mrf.mxu0
    %v10002 = vadd.f32 %v9976, %v10001
    %10003 = vmatmul.f32.gmra.mxu0 %v9916
    %v10004 = vpop.f32.mrf.mxu0
    %v10005 = vadd.f32 %v9976, %v10004
    %10006 = vmatmul.f32.gmra.mxu0 %v9917
    %v10007 = vpop.f32.mrf.mxu0
    %v10008 = vadd.f32 %v9976, %v10007
    %10009 = vmatmul.f32.gmra.mxu0 %v9918
    %v10010 = vpop.f32.mrf.mxu0
    %v10011 = vadd.f32 %v9976, %v10010
    %10012 = vmatmul.f32.gmra.mxu0 %v9919
    %v10013 = vpop.f32.mrf.mxu0
    %v10014 = vadd.f32 %v9976, %v10013
    %10015 = vmatmul.f32.gmra.mxu0 %v9920
    %v10016 = vpop.f32.mrf.mxu0
    %v10017 = vadd.f32 %v9976, %v10016
    %10018 = vmatmul.f32.gmra.mxu0 %v9921
    %v10019 = vpop.f32.mrf.mxu0
    %v10020 = vadd.f32 %v9976, %v10019
    %10021 = vmatmul.f32.gmra.mxu0 %v9922
    %v10022 = vpop.f32.mrf.mxu0
    %v10023 = vadd.f32 %v9976, %v10022
    %10024 = vmatmul.f32.gmra.mxu0 %v9923
    %v10025 = vpop.f32.mrf.mxu0
    %v10026 = vadd.f32 %v9976, %v10025
    %10027 = vmatmul.f32.gmra.mxu0 %v9924
    %v10028 = vpop.f32.mrf.mxu0
    %v10029 = vadd.f32 %v9976, %v10028
    %10030 = vmatmul.f32.gmra.mxu0 %v9925
    %v10031 = vpop.f32.mrf.mxu0
    %v10032 = vadd.f32 %v9976, %v10031
    %10033 = vmatmul.f32.gmra.mxu0 %v9926
    %v10034 = vpop.f32.mrf.mxu0
    %v10035 = vadd.f32 %v9976, %v10034
    %10036 = vmatmul.f32.gmra.mxu0 %v9927
    %v10037 = vpop.f32.mrf.mxu0
    %v10038 = vadd.f32 %v9976, %v10037
    %10039 = vmatmul.f32.gmra.mxu0 %v9928
    %v10040 = vpop.f32.mrf.mxu0
    %v10041 = vadd.f32 %v9976, %v10040
    %10042 = vmatmul.f32.gmra.mxu0 %v9929
    %v10043 = vpop.f32.mrf.mxu0
    %v10044 = vadd.f32 %v9976, %v10043
    %10045 = vmatmul.f32.gmra.mxu0 %v9930
    %v10046 = vpop.f32.mrf.mxu0
    %v10047 = vadd.f32 %v9976, %v10046
    %10048 = vmatmul.f32.gmra.mxu0 %v9931
    %v10049 = vpop.f32.mrf.mxu0
    %v10050 = vadd.f32 %v9976, %v10049
    %10051 = vmatmul.f32.gmra.mxu0 %v9932
    %v10052 = vpop.f32.mrf.mxu0
    %v10053 = vadd.f32 %v9976, %v10052
    %10054 = vmatmul.f32.gmra.mxu0 %v9933
    %v10055 = vpop.f32.mrf.mxu0
    %v10056 = vadd.f32 %v9976, %v10055
    %10057 = vmatmul.f32.gmra.mxu0 %v9934
    %v10058 = vpop.f32.mrf.mxu0
    %v10059 = vadd.f32 %v9976, %v10058
    %10060 = vmatmul.f32.gmra.mxu0 %v9935
    %v10061 = vpop.f32.mrf.mxu0
    %v10062 = vadd.f32 %v9976, %v10061
    %10063 = vmatmul.f32.gmra.mxu0 %v9936
    %v10064 = vpop.f32.mrf.mxu0
    %v10065 = vadd.f32 %v9976, %v10064
    %10066 = vmatmul.f32.gmra.mxu0 %v9937
    %v10067 = vpop.f32.mrf.mxu0
    %v10068 = vadd.f32 %v9976, %v10067
    %10069 = vmatmul.f32.gmra.mxu0 %v9938
    %v10070 = vpop.f32.mrf.mxu0
    %v10071 = vadd.f32 %v9976, %v10070
    %10072 = vmatmul.f32.gmra.mxu0 %v9939
    %v10073 = vpop.f32.mrf.mxu0
    %v10074 = vadd.f32 %v9976, %v10073
    %10075 = vmatmul.f32.gmra.mxu0 %v9940
    %v10076 = vpop.f32.mrf.mxu0
    %v10077 = vadd.f32 %v9976, %v10076
    %10078 = vmatmul.f32.gmra.mxu0 %v9941
    %v10079 = vpop.f32.mrf.mxu0
    %v10080 = vadd.f32 %v9976, %v10079
    %10081 = vmatmul.f32.gmra.mxu0 %v9942
    %v10082 = vpop.f32.mrf.mxu0
    %v10083 = vadd.f32 %v9976, %v10082
    %10084 = vmatmul.f32.gmra.mxu0 %v9943
    %v10085 = vpop.f32.mrf.mxu0
    %v10086 = vadd.f32 %v9976, %v10085
    %10087 = vmatmul.f32.gmra.mxu0 %v9944
    %v10088 = vpop.f32.mrf.mxu0
    %v10089 = vadd.f32 %v9976, %v10088
    %10090 = vmatmul.f32.gmra.mxu0 %v9945
    %v10091 = vpop.f32.mrf.mxu0
    %v10092 = vadd.f32 %v9976, %v10091
    %10093 = vmatmul.f32.gmra.mxu0 %v9946
    %v10094 = vpop.f32.mrf.mxu0
    %v10095 = vadd.f32 %v9976, %v10094
    %10096 = vmatmul.f32.gmra.mxu0 %v9947
    %v10097 = vpop.f32.mrf.mxu0
    %v10098 = vadd.f32 %v9976, %v10097
    %10099 = vmatmul.f32.gmra.mxu0 %v9948
    %v10100 = vpop.f32.mrf.mxu0
    %v10101 = vadd.f32 %v9976, %v10100
    %10102 = vmatmul.f32.gmra.mxu0 %v9949
    %v10103 = vpop.f32.mrf.mxu0
    %v10104 = vadd.f32 %v9976, %v10103
    %10105 = vmatmul.f32.gmra.mxu0 %v9950
    %v10106 = vpop.f32.mrf.mxu0
    %v10107 = vadd.f32 %v9976, %v10106
    %10108 = vmatmul.f32.gmra.mxu0 %v9951
    %v10109 = vpop.f32.mrf.mxu0
    %v10110 = vadd.f32 %v9976, %v10109
    %10111 = vmatmul.f32.gmra.mxu0 %v9952
    %v10112 = vpop.f32.mrf.mxu0
    %v10113 = vadd.f32 %v9976, %v10112
    %10114 = vmatmul.f32.gmra.mxu0 %v9953
    %v10115 = vpop.f32.mrf.mxu0
    %v10116 = vadd.f32 %v9976, %v10115
    %10117 = vmatmul.f32.gmra.mxu0 %v9954
    %v10118 = vpop.f32.mrf.mxu0
    %v10119 = vadd.f32 %v9976, %v10118
    %10120 = vmatmul.f32.gmra.mxu0 %v9955
    %v10121 = vpop.f32.mrf.mxu0
    %v10122 = vadd.f32 %v9976, %v10121
    %10123 = vmatmul.f32.gmra.mxu0 %v9956
    %v10124 = vpop.f32.mrf.mxu0
    %v10125 = vadd.f32 %v9976, %v10124
    %10126 = vmatmul.f32.gmra.mxu0 %v9957
    %v10127 = vpop.f32.mrf.mxu0
    %v10128 = vadd.f32 %v9976, %v10127
    %10129 = vdwg.mxu0
    %v10130 = vld [vmem:[#allocation17] sm:$0xff]
    %v10131 = vld [vmem:[#allocation17 + $0x8] sm:$0xff]
    %v10132 = vld [vmem:[#allocation17 + $0x10] sm:$0xff]
    %v10133 = vld [vmem:[#allocation17 + $0x18] sm:$0xff]
    %v10134 = vld [vmem:[#allocation17 + $0x20] sm:$0xff]
    %v10135 = vld [vmem:[#allocation17 + $0x28] sm:$0xff]
    %v10136 = vld [vmem:[#allocation17 + $0x30] sm:$0xff]
    %v10137 = vld [vmem:[#allocation17 + $0x38] sm:$0xff]
    %v10138 = vld [vmem:[#allocation17 + $0x40] sm:$0xff]
    %v10139 = vld [vmem:[#allocation17 + $0x48] sm:$0xff]
    %v10140 = vld [vmem:[#allocation17 + $0x50] sm:$0xff]
    %v10141 = vld [vmem:[#allocation17 + $0x58] sm:$0xff]
    %v10142 = vld [vmem:[#allocation17 + $0x60] sm:$0xff]
    %v10143 = vld [vmem:[#allocation17 + $0x68] sm:$0xff]
    %v10144 = vld [vmem:[#allocation17 + $0x70] sm:$0xff]
    %v10145 = vld [vmem:[#allocation17 + $0x78] sm:$0xff]
    %v10146 = vld [vmem:[%s14] sm:$0x1]
    %10148 = vset.pattern.permute.xlu0 0
    %10149 = vperm.xlu0 %10148, %v1727
    %v10150 = vpop.permute.xlu0 %10149
    %10153 = vset.pattern.permute.xlu0 0
    %10154 = vperm.xlu0 %10153, %v1728
    %v10155 = vpop.permute.xlu0 %10154
    %10158 = vset.pattern.permute.xlu0 0
    %10159 = vperm.xlu0 %10158, %v1729
    %v10160 = vpop.permute.xlu0 %10159
    %10163 = vset.pattern.permute.xlu0 0
    %10164 = vperm.xlu0 %10163, %v1730
    %v10165 = vpop.permute.xlu0 %10164
    %10168 = vset.pattern.permute.xlu0 0
    %10169 = vperm.xlu0 %10168, %v1731
    %v10170 = vpop.permute.xlu0 %10169
    %10173 = vset.pattern.permute.xlu0 0
    %10174 = vperm.xlu0 %10173, %v1732
    %v10175 = vpop.permute.xlu0 %10174
    %10178 = vset.pattern.permute.xlu0 0
    %10179 = vperm.xlu0 %10178, %v1733
    %v10180 = vpop.permute.xlu0 %10179
    %10183 = vset.pattern.permute.xlu0 0
    %10184 = vperm.xlu0 %10183, %v1734
    %v10185 = vpop.permute.xlu0 %10184
    %10188 = vset.pattern.permute.xlu0 0
    %10189 = vperm.xlu0 %10188, %v1735
    %v10190 = vpop.permute.xlu0 %10189
    %10193 = vset.pattern.permute.xlu0 0
    %10194 = vperm.xlu0 %10193, %v1736
    %v10195 = vpop.permute.xlu0 %10194
    %10198 = vset.pattern.permute.xlu0 0
    %10199 = vperm.xlu0 %10198, %v1737
    %v10200 = vpop.permute.xlu0 %10199
    %10203 = vset.pattern.permute.xlu0 0
    %10204 = vperm.xlu0 %10203, %v1738
    %v10205 = vpop.permute.xlu0 %10204
    %10208 = vset.pattern.permute.xlu0 0
    %10209 = vperm.xlu0 %10208, %v1739
    %v10210 = vpop.permute.xlu0 %10209
    %10213 = vset.pattern.permute.xlu0 0
    %10214 = vperm.xlu0 %10213, %v1740
    %v10215 = vpop.permute.xlu0 %10214
    %10218 = vset.pattern.permute.xlu0 0
    %10219 = vperm.xlu0 %10218, %v1741
    %v10220 = vpop.permute.xlu0 %10219
    %10223 = vset.pattern.permute.xlu0 0
    %10224 = vperm.xlu0 %10223, %v1742
    %v10225 = vpop.permute.xlu0 %10224
    %10228 = vset.pattern.permute.xlu0 0
    %10229 = vperm.xlu0 %10228, %v1743
    %v10230 = vpop.permute.xlu0 %10229
    %10233 = vset.pattern.permute.xlu0 0
    %10234 = vperm.xlu0 %10233, %v1744
    %v10235 = vpop.permute.xlu0 %10234
    %10238 = vset.pattern.permute.xlu0 0
    %10239 = vperm.xlu0 %10238, %v1745
    %v10240 = vpop.permute.xlu0 %10239
    %10243 = vset.pattern.permute.xlu0 0
    %10244 = vperm.xlu0 %10243, %v1746
    %v10245 = vpop.permute.xlu0 %10244
    %10248 = vset.pattern.permute.xlu0 0
    %10249 = vperm.xlu0 %10248, %v1747
    %v10250 = vpop.permute.xlu0 %10249
    %10253 = vset.pattern.permute.xlu0 0
    %10254 = vperm.xlu0 %10253, %v1748
    %v10255 = vpop.permute.xlu0 %10254
    %10258 = vset.pattern.permute.xlu0 0
    %10259 = vperm.xlu0 %10258, %v1749
    %v10260 = vpop.permute.xlu0 %10259
    %10263 = vset.pattern.permute.xlu0 0
    %10264 = vperm.xlu0 %10263, %v1750
    %v10265 = vpop.permute.xlu0 %10264
    %10268 = vset.pattern.permute.xlu0 0
    %10269 = vperm.xlu0 %10268, %v1751
    %v10270 = vpop.permute.xlu0 %10269
    %10273 = vset.pattern.permute.xlu0 0
    %10274 = vperm.xlu0 %10273, %v1752
    %v10275 = vpop.permute.xlu0 %10274
    %10278 = vset.pattern.permute.xlu0 0
    %10279 = vperm.xlu0 %10278, %v1753
    %v10280 = vpop.permute.xlu0 %10279
    %10283 = vset.pattern.permute.xlu0 0
    %10284 = vperm.xlu0 %10283, %v1754
    %v10285 = vpop.permute.xlu0 %10284
    %10288 = vset.pattern.permute.xlu0 0
    %10289 = vperm.xlu0 %10288, %v1755
    %v10290 = vpop.permute.xlu0 %10289
    %10293 = vset.pattern.permute.xlu0 0
    %10294 = vperm.xlu0 %10293, %v1756
    %v10295 = vpop.permute.xlu0 %10294
    %10298 = vset.pattern.permute.xlu0 0
    %10299 = vperm.xlu0 %10298, %v1757
    %v10300 = vpop.permute.xlu0 %10299
    %10303 = vset.pattern.permute.xlu0 0
    %10304 = vperm.xlu0 %10303, %v1758
    %v10305 = vpop.permute.xlu0 %10304
    %10308 = vset.pattern.permute.xlu0 0
    %10309 = vperm.xlu0 %10308, %v1759
    %v10310 = vpop.permute.xlu0 %10309
    %10313 = vset.pattern.permute.xlu0 0
    %10314 = vperm.xlu0 %10313, %v1760
    %v10315 = vpop.permute.xlu0 %10314
    %10318 = vset.pattern.permute.xlu0 0
    %10319 = vperm.xlu0 %10318, %v1761
    %v10320 = vpop.permute.xlu0 %10319
    %10323 = vset.pattern.permute.xlu0 0
    %10324 = vperm.xlu0 %10323, %v1762
    %v10325 = vpop.permute.xlu0 %10324
    %10328 = vset.pattern.permute.xlu0 0
    %10329 = vperm.xlu0 %10328, %v1763
    %v10330 = vpop.permute.xlu0 %10329
    %10333 = vset.pattern.permute.xlu0 0
    %10334 = vperm.xlu0 %10333, %v1764
    %v10335 = vpop.permute.xlu0 %10334
    %10338 = vset.pattern.permute.xlu0 0
    %10339 = vperm.xlu0 %10338, %v1765
    %v10340 = vpop.permute.xlu0 %10339
    %10343 = vset.pattern.permute.xlu0 0
    %10344 = vperm.xlu0 %10343, %v1766
    %v10345 = vpop.permute.xlu0 %10344
    %10348 = vset.pattern.permute.xlu0 0
    %10349 = vperm.xlu0 %10348, %v1767
    %v10350 = vpop.permute.xlu0 %10349
    %10353 = vset.pattern.permute.xlu0 0
    %10354 = vperm.xlu0 %10353, %v1768
    %v10355 = vpop.permute.xlu0 %10354
    %10358 = vset.pattern.permute.xlu0 0
    %10359 = vperm.xlu0 %10358, %v1769
    %v10360 = vpop.permute.xlu0 %10359
    %10363 = vset.pattern.permute.xlu0 0
    %10364 = vperm.xlu0 %10363, %v1770
    %v10365 = vpop.permute.xlu0 %10364
    %10368 = vset.pattern.permute.xlu0 0
    %10369 = vperm.xlu0 %10368, %v1771
    %v10370 = vpop.permute.xlu0 %10369
    %v10373 = vperm.slane %v10146, 0
    %v10375 = vmul.f32 %v10150, %v10373
    %v10376 = vmul.f32 %v10155, %v10373
    %v10377 = vmul.f32 %v10160, %v10373
    %v10378 = vmul.f32 %v10165, %v10373
    %v10379 = vmul.f32 %v10170, %v10373
    %v10380 = vmul.f32 %v10175, %v10373
    %v10381 = vmul.f32 %v10180, %v10373
    %v10382 = vmul.f32 %v10185, %v10373
    %v10383 = vmul.f32 %v10190, %v10373
    %v10384 = vmul.f32 %v10195, %v10373
    %v10385 = vmul.f32 %v10200, %v10373
    %v10386 = vmul.f32 %v10205, %v10373
    %v10387 = vmul.f32 %v10210, %v10373
    %v10388 = vmul.f32 %v10215, %v10373
    %v10389 = vmul.f32 %v10220, %v10373
    %v10390 = vmul.f32 %v10225, %v10373
    %v10391 = vmul.f32 %v10230, %v10373
    %v10392 = vmul.f32 %v10235, %v10373
    %v10393 = vmul.f32 %v10240, %v10373
    %v10394 = vmul.f32 %v10245, %v10373
    %v10395 = vmul.f32 %v10250, %v10373
    %v10396 = vmul.f32 %v10255, %v10373
    %v10397 = vmul.f32 %v10260, %v10373
    %v10398 = vmul.f32 %v10265, %v10373
    %v10399 = vmul.f32 %v10270, %v10373
    %v10400 = vmul.f32 %v10275, %v10373
    %v10401 = vmul.f32 %v10280, %v10373
    %v10402 = vmul.f32 %v10285, %v10373
    %v10403 = vmul.f32 %v10290, %v10373
    %v10404 = vmul.f32 %v10295, %v10373
    %v10405 = vmul.f32 %v10300, %v10373
    %v10406 = vmul.f32 %v10305, %v10373
    %v10407 = vmul.f32 %v10310, %v10373
    %v10408 = vmul.f32 %v10315, %v10373
    %v10409 = vmul.f32 %v10320, %v10373
    %v10410 = vmul.f32 %v10325, %v10373
    %v10411 = vmul.f32 %v10330, %v10373
    %v10412 = vmul.f32 %v10335, %v10373
    %v10413 = vmul.f32 %v10340, %v10373
    %v10414 = vmul.f32 %v10345, %v10373
    %v10415 = vmul.f32 %v10350, %v10373
    %v10416 = vmul.f32 %v10355, %v10373
    %v10417 = vmul.f32 %v10360, %v10373
    %v10418 = vmul.f32 %v10365, %v10373
    %v10419 = vmul.f32 %v10370, %v10373
    %10420 = vmatpush.msra.mxu0 %v10145
    %10421 = vmatpush.msra.mxu0 %v10144
    %10422 = vmatpush.msra.mxu0 %v10143
    %10423 = vmatpush.msra.mxu0 %v10142
    %10424 = vmatpush.msra.mxu0 %v10141
    %10425 = vmatpush.msra.mxu0 %v10140
    %10426 = vmatpush.msra.mxu0 %v10139
    %10427 = vmatpush.msra.mxu0 %v10138
    %10428 = vmatpush.msra.mxu0 %v10137
    %10429 = vmatpush.msra.mxu0 %v10136
    %10430 = vmatpush.msra.mxu0 %v10135
    %10431 = vmatpush.msra.mxu0 %v10134
    %10432 = vmatpush.msra.mxu0 %v10133
    %10433 = vmatpush.msra.mxu0 %v10132
    %10434 = vmatpush.msra.mxu0 %v10131
    %10435 = vmatpush.msra.mxu0 %v10130
    %10436 = vmatmul.f32.gmra.mxu0 %v9996
    %v10437 = vpop.f32.mrf.mxu0
    %v10438 = vadd.f32 %v10375, %v10437
    %10439 = vmatmul.f32.gmra.mxu0 %v9999
    %v10440 = vpop.f32.mrf.mxu0
    %v10441 = vadd.f32 %v10376, %v10440
    %10442 = vmatmul.f32.gmra.mxu0 %v10002
    %v10443 = vpop.f32.mrf.mxu0
    %v10444 = vadd.f32 %v10377, %v10443
    %10445 = vmatmul.f32.gmra.mxu0 %v10005
    %v10446 = vpop.f32.mrf.mxu0
    %v10447 = vadd.f32 %v10378, %v10446
    %10448 = vmatmul.f32.gmra.mxu0 %v10008
    %v10449 = vpop.f32.mrf.mxu0
    %v10450 = vadd.f32 %v10379, %v10449
    %10451 = vmatmul.f32.gmra.mxu0 %v10011
    %v10452 = vpop.f32.mrf.mxu0
    %v10453 = vadd.f32 %v10380, %v10452
    %10454 = vmatmul.f32.gmra.mxu0 %v10014
    %v10455 = vpop.f32.mrf.mxu0
    %v10456 = vadd.f32 %v10381, %v10455
    %10457 = vmatmul.f32.gmra.mxu0 %v10017
    %v10458 = vpop.f32.mrf.mxu0
    %v10459 = vadd.f32 %v10382, %v10458
    %10460 = vmatmul.f32.gmra.mxu0 %v10020
    %v10461 = vpop.f32.mrf.mxu0
    %v10462 = vadd.f32 %v10383, %v10461
    %10463 = vmatmul.f32.gmra.mxu0 %v10023
    %v10464 = vpop.f32.mrf.mxu0
    %v10465 = vadd.f32 %v10384, %v10464
    %10466 = vmatmul.f32.gmra.mxu0 %v10026
    %v10467 = vpop.f32.mrf.mxu0
    %v10468 = vadd.f32 %v10385, %v10467
    %10469 = vmatmul.f32.gmra.mxu0 %v10029
    %v10470 = vpop.f32.mrf.mxu0
    %v10471 = vadd.f32 %v10386, %v10470
    %10472 = vmatmul.f32.gmra.mxu0 %v10032
    %v10473 = vpop.f32.mrf.mxu0
    %v10474 = vadd.f32 %v10387, %v10473
    %10475 = vmatmul.f32.gmra.mxu0 %v10035
    %v10476 = vpop.f32.mrf.mxu0
    %v10477 = vadd.f32 %v10388, %v10476
    %10478 = vmatmul.f32.gmra.mxu0 %v10038
    %v10479 = vpop.f32.mrf.mxu0
    %v10480 = vadd.f32 %v10389, %v10479
    %10481 = vmatmul.f32.gmra.mxu0 %v10041
    %v10482 = vpop.f32.mrf.mxu0
    %v10483 = vadd.f32 %v10390, %v10482
    %10484 = vmatmul.f32.gmra.mxu0 %v10044
    %v10485 = vpop.f32.mrf.mxu0
    %v10486 = vadd.f32 %v10391, %v10485
    %10487 = vmatmul.f32.gmra.mxu0 %v10047
    %v10488 = vpop.f32.mrf.mxu0
    %v10489 = vadd.f32 %v10392, %v10488
    %10490 = vmatmul.f32.gmra.mxu0 %v10050
    %v10491 = vpop.f32.mrf.mxu0
    %v10492 = vadd.f32 %v10393, %v10491
    %10493 = vmatmul.f32.gmra.mxu0 %v10053
    %v10494 = vpop.f32.mrf.mxu0
    %v10495 = vadd.f32 %v10394, %v10494
    %10496 = vmatmul.f32.gmra.mxu0 %v10056
    %v10497 = vpop.f32.mrf.mxu0
    %v10498 = vadd.f32 %v10395, %v10497
    %10499 = vmatmul.f32.gmra.mxu0 %v10059
    %v10500 = vpop.f32.mrf.mxu0
    %v10501 = vadd.f32 %v10396, %v10500
    %10502 = vmatmul.f32.gmra.mxu0 %v10062
    %v10503 = vpop.f32.mrf.mxu0
    %v10504 = vadd.f32 %v10397, %v10503
    %10505 = vmatmul.f32.gmra.mxu0 %v10065
    %v10506 = vpop.f32.mrf.mxu0
    %v10507 = vadd.f32 %v10398, %v10506
    %10508 = vmatmul.f32.gmra.mxu0 %v10068
    %v10509 = vpop.f32.mrf.mxu0
    %v10510 = vadd.f32 %v10399, %v10509
    %10511 = vmatmul.f32.gmra.mxu0 %v10071
    %v10512 = vpop.f32.mrf.mxu0
    %v10513 = vadd.f32 %v10400, %v10512
    %10514 = vmatmul.f32.gmra.mxu0 %v10074
    %v10515 = vpop.f32.mrf.mxu0
    %v10516 = vadd.f32 %v10401, %v10515
    %10517 = vmatmul.f32.gmra.mxu0 %v10077
    %v10518 = vpop.f32.mrf.mxu0
    %v10519 = vadd.f32 %v10402, %v10518
    %10520 = vmatmul.f32.gmra.mxu0 %v10080
    %v10521 = vpop.f32.mrf.mxu0
    %v10522 = vadd.f32 %v10403, %v10521
    %10523 = vmatmul.f32.gmra.mxu0 %v10083
    %v10524 = vpop.f32.mrf.mxu0
    %v10525 = vadd.f32 %v10404, %v10524
    %10526 = vmatmul.f32.gmra.mxu0 %v10086
    %v10527 = vpop.f32.mrf.mxu0
    %v10528 = vadd.f32 %v10405, %v10527
    %10529 = vmatmul.f32.gmra.mxu0 %v10089
    %v10530 = vpop.f32.mrf.mxu0
    %v10531 = vadd.f32 %v10406, %v10530
    %10532 = vmatmul.f32.gmra.mxu0 %v10092
    %v10533 = vpop.f32.mrf.mxu0
    %v10534 = vadd.f32 %v10407, %v10533
    %10535 = vmatmul.f32.gmra.mxu0 %v10095
    %v10536 = vpop.f32.mrf.mxu0
    %v10537 = vadd.f32 %v10408, %v10536
    %10538 = vmatmul.f32.gmra.mxu0 %v10098
    %v10539 = vpop.f32.mrf.mxu0
    %v10540 = vadd.f32 %v10409, %v10539
    %10541 = vmatmul.f32.gmra.mxu0 %v10101
    %v10542 = vpop.f32.mrf.mxu0
    %v10543 = vadd.f32 %v10410, %v10542
    %10544 = vmatmul.f32.gmra.mxu0 %v10104
    %v10545 = vpop.f32.mrf.mxu0
    %v10546 = vadd.f32 %v10411, %v10545
    %10547 = vmatmul.f32.gmra.mxu0 %v10107
    %v10548 = vpop.f32.mrf.mxu0
    %v10549 = vadd.f32 %v10412, %v10548
    %10550 = vmatmul.f32.gmra.mxu0 %v10110
    %v10551 = vpop.f32.mrf.mxu0
    %v10552 = vadd.f32 %v10413, %v10551
    %10553 = vmatmul.f32.gmra.mxu0 %v10113
    %v10554 = vpop.f32.mrf.mxu0
    %v10555 = vadd.f32 %v10414, %v10554
    %10556 = vmatmul.f32.gmra.mxu0 %v10116
    %v10557 = vpop.f32.mrf.mxu0
    %v10558 = vadd.f32 %v10415, %v10557
    %10559 = vmatmul.f32.gmra.mxu0 %v10119
    %v10560 = vpop.f32.mrf.mxu0
    %v10561 = vadd.f32 %v10416, %v10560
    %10562 = vmatmul.f32.gmra.mxu0 %v10122
    %v10563 = vpop.f32.mrf.mxu0
    %v10564 = vadd.f32 %v10417, %v10563
    %10565 = vmatmul.f32.gmra.mxu0 %v10125
    %v10566 = vpop.f32.mrf.mxu0
    %v10567 = vadd.f32 %v10418, %v10566
    %10568 = vmatmul.f32.gmra.mxu0 %v10128
    %v10569 = vpop.f32.mrf.mxu0
    %v10570 = vadd.f32 %v10419, %v10569
    %10571 = vdwg.mxu0
    %v10572 = vld [vmem:[%s15] sm:$0x1]
    %v10574 = vperm.slane %v10572, 0
    %v10576 = vadd.f32 %v10438, %v10574
    %v10577 = vadd.f32 %v10441, %v10574
    %v10578 = vadd.f32 %v10444, %v10574
    %v10579 = vadd.f32 %v10447, %v10574
    %v10580 = vadd.f32 %v10450, %v10574
    %v10581 = vadd.f32 %v10453, %v10574
    %v10582 = vadd.f32 %v10456, %v10574
    %v10583 = vadd.f32 %v10459, %v10574
    %v10584 = vadd.f32 %v10462, %v10574
    %v10585 = vadd.f32 %v10465, %v10574
    %v10586 = vadd.f32 %v10468, %v10574
    %v10587 = vadd.f32 %v10471, %v10574
    %v10588 = vadd.f32 %v10474, %v10574
    %v10589 = vadd.f32 %v10477, %v10574
    %v10590 = vadd.f32 %v10480, %v10574
    %v10591 = vadd.f32 %v10483, %v10574
    %v10592 = vadd.f32 %v10486, %v10574
    %v10593 = vadd.f32 %v10489, %v10574
    %v10594 = vadd.f32 %v10492, %v10574
    %v10595 = vadd.f32 %v10495, %v10574
    %v10596 = vadd.f32 %v10498, %v10574
    %v10597 = vadd.f32 %v10501, %v10574
    %v10598 = vadd.f32 %v10504, %v10574
    %v10599 = vadd.f32 %v10507, %v10574
    %v10600 = vadd.f32 %v10510, %v10574
    %v10601 = vadd.f32 %v10513, %v10574
    %v10602 = vadd.f32 %v10516, %v10574
    %v10603 = vadd.f32 %v10519, %v10574
    %v10604 = vadd.f32 %v10522, %v10574
    %v10605 = vadd.f32 %v10525, %v10574
    %v10606 = vadd.f32 %v10528, %v10574
    %v10607 = vadd.f32 %v10531, %v10574
    %v10608 = vadd.f32 %v10534, %v10574
    %v10609 = vadd.f32 %v10537, %v10574
    %v10610 = vadd.f32 %v10540, %v10574
    %v10611 = vadd.f32 %v10543, %v10574
    %v10612 = vadd.f32 %v10546, %v10574
    %v10613 = vadd.f32 %v10549, %v10574
    %v10614 = vadd.f32 %v10552, %v10574
    %v10615 = vadd.f32 %v10555, %v10574
    %v10616 = vadd.f32 %v10558, %v10574
    %v10617 = vadd.f32 %v10561, %v10574
    %v10618 = vadd.f32 %v10564, %v10574
    %v10619 = vadd.f32 %v10567, %v10574
    %v10620 = vadd.f32 %v10570, %v10574
    %v10621 = vlaneseq
    %v10622 = vand.u32 %v10621, 127
    %vm10623 = vcmp.lt.s32.totalorder %v10622, 32
    %v10624 = vsel %vm10623, 1e-06, 0.0
    %v10625 = vsub.f32 %v10591, %v10606
    %v10626 = vsub.f32 %v10592, %v10607
    %v10627 = vsub.f32 %v10593, %v10608
    %v10628 = vsub.f32 %v10594, %v10609
    %v10629 = vsub.f32 %v10595, %v10610
    %v10630 = vsub.f32 %v10596, %v10611
    %v10631 = vsub.f32 %v10597, %v10612
    %v10632 = vsub.f32 %v10598, %v10613
    %v10633 = vsub.f32 %v10599, %v10614
    %v10634 = vsub.f32 %v10600, %v10615
    %v10635 = vsub.f32 %v10601, %v10616
    %v10636 = vsub.f32 %v10602, %v10617
    %v10637 = vsub.f32 %v10603, %v10618
    %v10638 = vsub.f32 %v10604, %v10619
    %v10639 = vsub.f32 %v10605, %v10620
    %v10640 = vadd.f32 %v10625, %v10624
    %v10641 = vadd.f32 %v10626, %v10624
    %v10642 = vadd.f32 %v10627, %v10624
    %v10643 = vadd.f32 %v10628, %v10624
    %v10644 = vadd.f32 %v10629, %v10624
    %v10645 = vadd.f32 %v10630, %v10624
    %v10646 = vadd.f32 %v10631, %v10624
    %v10647 = vadd.f32 %v10632, %v10624
    %v10648 = vadd.f32 %v10633, %v10624
    %v10649 = vadd.f32 %v10634, %v10624
    %v10650 = vadd.f32 %v10635, %v10624
    %v10651 = vadd.f32 %v10636, %v10624
    %v10652 = vadd.f32 %v10637, %v10624
    %v10653 = vadd.f32 %v10638, %v10624
    %v10654 = vadd.f32 %v10639, %v10624
    %v10655 = vmul.f32 %v10640, %v10640
    %v10656 = vmul.f32 %v10641, %v10641
    %v10657 = vmul.f32 %v10642, %v10642
    %v10658 = vmul.f32 %v10643, %v10643
    %v10659 = vmul.f32 %v10644, %v10644
    %v10660 = vmul.f32 %v10645, %v10645
    %v10661 = vmul.f32 %v10646, %v10646
    %v10662 = vmul.f32 %v10647, %v10647
    %v10663 = vmul.f32 %v10648, %v10648
    %v10664 = vmul.f32 %v10649, %v10649
    %v10665 = vmul.f32 %v10650, %v10650
    %v10666 = vmul.f32 %v10651, %v10651
    %v10667 = vmul.f32 %v10652, %v10652
    %v10668 = vmul.f32 %v10653, %v10653
    %v10669 = vmul.f32 %v10654, %v10654
    %10670 = vadd.xlane.f32.xlu0 %v10655
    %v10671 = vpop.xlane.xlu0 %10670
    %10672 = vadd.xlane.f32.xlu0 %v10656
    %v10673 = vpop.xlane.xlu0 %10672
    %10674 = vadd.xlane.f32.xlu0 %v10657
    %v10675 = vpop.xlane.xlu0 %10674
    %10676 = vadd.xlane.f32.xlu0 %v10658
    %v10677 = vpop.xlane.xlu0 %10676
    %10678 = vadd.xlane.f32.xlu0 %v10659
    %v10679 = vpop.xlane.xlu0 %10678
    %10680 = vadd.xlane.f32.xlu0 %v10660
    %v10681 = vpop.xlane.xlu0 %10680
    %10682 = vadd.xlane.f32.xlu0 %v10661
    %v10683 = vpop.xlane.xlu0 %10682
    %10684 = vadd.xlane.f32.xlu0 %v10662
    %v10685 = vpop.xlane.xlu0 %10684
    %10686 = vadd.xlane.f32.xlu0 %v10663
    %v10687 = vpop.xlane.xlu0 %10686
    %10688 = vadd.xlane.f32.xlu0 %v10664
    %v10689 = vpop.xlane.xlu0 %10688
    %10690 = vadd.xlane.f32.xlu0 %v10665
    %v10691 = vpop.xlane.xlu0 %10690
    %10692 = vadd.xlane.f32.xlu0 %v10666
    %v10693 = vpop.xlane.xlu0 %10692
    %10694 = vadd.xlane.f32.xlu0 %v10667
    %v10695 = vpop.xlane.xlu0 %10694
    %10696 = vadd.xlane.f32.xlu0 %v10668
    %v10697 = vpop.xlane.xlu0 %10696
    %10698 = vadd.xlane.f32.xlu0 %v10669
    %v10699 = vpop.xlane.xlu0 %10698
    %v10700 = vrsqrt.pop %v10671
    %v10701 = vmul.f32 %v10700, %v10671
    %v10702 = vmul.f32 %v10701, %v10700
    %v10703 = vmul.f32 0.5, %v10702
    %v10704 = vsub.f32 1.5, %v10703
    %v10705 = vmul.f32 %v10700, %v10704
    %v10706 = vmul.f32 %v10671, %v10705
    %vm10707 = vcmp.eq.f32.partialorder %v10671, inf
    %v10708 = vsel %vm10707, %v10671, %v10706
    %vm10709 = vcmp.eq.f32.partialorder %v10671, 0.0
    %v10710 = vand.u32 %v10671, 2147483648
    %v10711 = vsel %vm10709, %v10710, %v10708
    %v10712 = vrsqrt.pop %v10673
    %v10713 = vmul.f32 %v10712, %v10673
    %v10714 = vmul.f32 %v10713, %v10712
    %v10715 = vmul.f32 0.5, %v10714
    %v10716 = vsub.f32 1.5, %v10715
    %v10717 = vmul.f32 %v10712, %v10716
    %v10718 = vmul.f32 %v10673, %v10717
    %vm10719 = vcmp.eq.f32.partialorder %v10673, inf
    %v10720 = vsel %vm10719, %v10673, %v10718
    %vm10721 = vcmp.eq.f32.partialorder %v10673, 0.0
    %v10722 = vand.u32 %v10673, 2147483648
    %v10723 = vsel %vm10721, %v10722, %v10720
    %v10724 = vrsqrt.pop %v10675
    %v10725 = vmul.f32 %v10724, %v10675
    %v10726 = vmul.f32 %v10725, %v10724
    %v10727 = vmul.f32 0.5, %v10726
    %v10728 = vsub.f32 1.5, %v10727
    %v10729 = vmul.f32 %v10724, %v10728
    %v10730 = vmul.f32 %v10675, %v10729
    %vm10731 = vcmp.eq.f32.partialorder %v10675, inf
    %v10732 = vsel %vm10731, %v10675, %v10730
    %vm10733 = vcmp.eq.f32.partialorder %v10675, 0.0
    %v10734 = vand.u32 %v10675, 2147483648
    %v10735 = vsel %vm10733, %v10734, %v10732
    %v10736 = vrsqrt.pop %v10677
    %v10737 = vmul.f32 %v10736, %v10677
    %v10738 = vmul.f32 %v10737, %v10736
    %v10739 = vmul.f32 0.5, %v10738
    %v10740 = vsub.f32 1.5, %v10739
    %v10741 = vmul.f32 %v10736, %v10740
    %v10742 = vmul.f32 %v10677, %v10741
    %vm10743 = vcmp.eq.f32.partialorder %v10677, inf
    %v10744 = vsel %vm10743, %v10677, %v10742
    %vm10745 = vcmp.eq.f32.partialorder %v10677, 0.0
    %v10746 = vand.u32 %v10677, 2147483648
    %v10747 = vsel %vm10745, %v10746, %v10744
    %v10748 = vrsqrt.pop %v10679
    %v10749 = vmul.f32 %v10748, %v10679
    %v10750 = vmul.f32 %v10749, %v10748
    %v10751 = vmul.f32 0.5, %v10750
    %v10752 = vsub.f32 1.5, %v10751
    %v10753 = vmul.f32 %v10748, %v10752
    %v10754 = vmul.f32 %v10679, %v10753
    %vm10755 = vcmp.eq.f32.partialorder %v10679, inf
    %v10756 = vsel %vm10755, %v10679, %v10754
    %vm10757 = vcmp.eq.f32.partialorder %v10679, 0.0
    %v10758 = vand.u32 %v10679, 2147483648
    %v10759 = vsel %vm10757, %v10758, %v10756
    %v10760 = vrsqrt.pop %v10681
    %v10761 = vmul.f32 %v10760, %v10681
    %v10762 = vmul.f32 %v10761, %v10760
    %v10763 = vmul.f32 0.5, %v10762
    %v10764 = vsub.f32 1.5, %v10763
    %v10765 = vmul.f32 %v10760, %v10764
    %v10766 = vmul.f32 %v10681, %v10765
    %vm10767 = vcmp.eq.f32.partialorder %v10681, inf
    %v10768 = vsel %vm10767, %v10681, %v10766
    %vm10769 = vcmp.eq.f32.partialorder %v10681, 0.0
    %v10770 = vand.u32 %v10681, 2147483648
    %v10771 = vsel %vm10769, %v10770, %v10768
    %v10772 = vrsqrt.pop %v10683
    %v10773 = vmul.f32 %v10772, %v10683
    %v10774 = vmul.f32 %v10773, %v10772
    %v10775 = vmul.f32 0.5, %v10774
    %v10776 = vsub.f32 1.5, %v10775
    %v10777 = vmul.f32 %v10772, %v10776
    %v10778 = vmul.f32 %v10683, %v10777
    %vm10779 = vcmp.eq.f32.partialorder %v10683, inf
    %v10780 = vsel %vm10779, %v10683, %v10778
    %vm10781 = vcmp.eq.f32.partialorder %v10683, 0.0
    %v10782 = vand.u32 %v10683, 2147483648
    %v10783 = vsel %vm10781, %v10782, %v10780
    %v10784 = vrsqrt.pop %v10685
    %v10785 = vmul.f32 %v10784, %v10685
    %v10786 = vmul.f32 %v10785, %v10784
    %v10787 = vmul.f32 0.5, %v10786
    %v10788 = vsub.f32 1.5, %v10787
    %v10789 = vmul.f32 %v10784, %v10788
    %v10790 = vmul.f32 %v10685, %v10789
    %vm10791 = vcmp.eq.f32.partialorder %v10685, inf
    %v10792 = vsel %vm10791, %v10685, %v10790
    %vm10793 = vcmp.eq.f32.partialorder %v10685, 0.0
    %v10794 = vand.u32 %v10685, 2147483648
    %v10795 = vsel %vm10793, %v10794, %v10792
    %v10796 = vrsqrt.pop %v10687
    %v10797 = vmul.f32 %v10796, %v10687
    %v10798 = vmul.f32 %v10797, %v10796
    %v10799 = vmul.f32 0.5, %v10798
    %v10800 = vsub.f32 1.5, %v10799
    %v10801 = vmul.f32 %v10796, %v10800
    %v10802 = vmul.f32 %v10687, %v10801
    %vm10803 = vcmp.eq.f32.partialorder %v10687, inf
    %v10804 = vsel %vm10803, %v10687, %v10802
    %vm10805 = vcmp.eq.f32.partialorder %v10687, 0.0
    %v10806 = vand.u32 %v10687, 2147483648
    %v10807 = vsel %vm10805, %v10806, %v10804
    %v10808 = vrsqrt.pop %v10689
    %v10809 = vmul.f32 %v10808, %v10689
    %v10810 = vmul.f32 %v10809, %v10808
    %v10811 = vmul.f32 0.5, %v10810
    %v10812 = vsub.f32 1.5, %v10811
    %v10813 = vmul.f32 %v10808, %v10812
    %v10814 = vmul.f32 %v10689, %v10813
    %vm10815 = vcmp.eq.f32.partialorder %v10689, inf
    %v10816 = vsel %vm10815, %v10689, %v10814
    %vm10817 = vcmp.eq.f32.partialorder %v10689, 0.0
    %v10818 = vand.u32 %v10689, 2147483648
    %v10819 = vsel %vm10817, %v10818, %v10816
    %v10820 = vrsqrt.pop %v10691
    %v10821 = vmul.f32 %v10820, %v10691
    %v10822 = vmul.f32 %v10821, %v10820
    %v10823 = vmul.f32 0.5, %v10822
    %v10824 = vsub.f32 1.5, %v10823
    %v10825 = vmul.f32 %v10820, %v10824
    %v10826 = vmul.f32 %v10691, %v10825
    %vm10827 = vcmp.eq.f32.partialorder %v10691, inf
    %v10828 = vsel %vm10827, %v10691, %v10826
    %vm10829 = vcmp.eq.f32.partialorder %v10691, 0.0
    %v10830 = vand.u32 %v10691, 2147483648
    %v10831 = vsel %vm10829, %v10830, %v10828
    %v10832 = vrsqrt.pop %v10693
    %v10833 = vmul.f32 %v10832, %v10693
    %v10834 = vmul.f32 %v10833, %v10832
    %v10835 = vmul.f32 0.5, %v10834
    %v10836 = vsub.f32 1.5, %v10835
    %v10837 = vmul.f32 %v10832, %v10836
    %v10838 = vmul.f32 %v10693, %v10837
    %vm10839 = vcmp.eq.f32.partialorder %v10693, inf
    %v10840 = vsel %vm10839, %v10693, %v10838
    %vm10841 = vcmp.eq.f32.partialorder %v10693, 0.0
    %v10842 = vand.u32 %v10693, 2147483648
    %v10843 = vsel %vm10841, %v10842, %v10840
    %v10844 = vrsqrt.pop %v10695
    %v10845 = vmul.f32 %v10844, %v10695
    %v10846 = vmul.f32 %v10845, %v10844
    %v10847 = vmul.f32 0.5, %v10846
    %v10848 = vsub.f32 1.5, %v10847
    %v10849 = vmul.f32 %v10844, %v10848
    %v10850 = vmul.f32 %v10695, %v10849
    %vm10851 = vcmp.eq.f32.partialorder %v10695, inf
    %v10852 = vsel %vm10851, %v10695, %v10850
    %vm10853 = vcmp.eq.f32.partialorder %v10695, 0.0
    %v10854 = vand.u32 %v10695, 2147483648
    %v10855 = vsel %vm10853, %v10854, %v10852
    %v10856 = vrsqrt.pop %v10697
    %v10857 = vmul.f32 %v10856, %v10697
    %v10858 = vmul.f32 %v10857, %v10856
    %v10859 = vmul.f32 0.5, %v10858
    %v10860 = vsub.f32 1.5, %v10859
    %v10861 = vmul.f32 %v10856, %v10860
    %v10862 = vmul.f32 %v10697, %v10861
    %vm10863 = vcmp.eq.f32.partialorder %v10697, inf
    %v10864 = vsel %vm10863, %v10697, %v10862
    %vm10865 = vcmp.eq.f32.partialorder %v10697, 0.0
    %v10866 = vand.u32 %v10697, 2147483648
    %v10867 = vsel %vm10865, %v10866, %v10864
    %v10868 = vrsqrt.pop %v10699
    %v10869 = vmul.f32 %v10868, %v10699
    %v10870 = vmul.f32 %v10869, %v10868
    %v10871 = vmul.f32 0.5, %v10870
    %v10872 = vsub.f32 1.5, %v10871
    %v10873 = vmul.f32 %v10868, %v10872
    %v10874 = vmul.f32 %v10699, %v10873
    %vm10875 = vcmp.eq.f32.partialorder %v10699, inf
    %v10876 = vsel %vm10875, %v10699, %v10874
    %vm10877 = vcmp.eq.f32.partialorder %v10699, 0.0
    %v10878 = vand.u32 %v10699, 2147483648
    %v10879 = vsel %vm10877, %v10878, %v10876
    %v10880 = vsub.f32 %v10591, %v10576
    %v10881 = vsub.f32 %v10592, %v10577
    %v10882 = vsub.f32 %v10593, %v10578
    %v10883 = vsub.f32 %v10594, %v10579
    %v10884 = vsub.f32 %v10595, %v10580
    %v10885 = vsub.f32 %v10596, %v10581
    %v10886 = vsub.f32 %v10597, %v10582
    %v10887 = vsub.f32 %v10598, %v10583
    %v10888 = vsub.f32 %v10599, %v10584
    %v10889 = vsub.f32 %v10600, %v10585
    %v10890 = vsub.f32 %v10601, %v10586
    %v10891 = vsub.f32 %v10602, %v10587
    %v10892 = vsub.f32 %v10603, %v10588
    %v10893 = vsub.f32 %v10604, %v10589
    %v10894 = vsub.f32 %v10605, %v10590
    %v10895 = vadd.f32 %v10880, %v10624
    %v10896 = vadd.f32 %v10881, %v10624
    %v10897 = vadd.f32 %v10882, %v10624
    %v10898 = vadd.f32 %v10883, %v10624
    %v10899 = vadd.f32 %v10884, %v10624
    %v10900 = vadd.f32 %v10885, %v10624
    %v10901 = vadd.f32 %v10886, %v10624
    %v10902 = vadd.f32 %v10887, %v10624
    %v10903 = vadd.f32 %v10888, %v10624
    %v10904 = vadd.f32 %v10889, %v10624
    %v10905 = vadd.f32 %v10890, %v10624
    %v10906 = vadd.f32 %v10891, %v10624
    %v10907 = vadd.f32 %v10892, %v10624
    %v10908 = vadd.f32 %v10893, %v10624
    %v10909 = vadd.f32 %v10894, %v10624
    %v10910 = vmul.f32 %v10895, %v10895
    %v10911 = vmul.f32 %v10896, %v10896
    %v10912 = vmul.f32 %v10897, %v10897
    %v10913 = vmul.f32 %v10898, %v10898
    %v10914 = vmul.f32 %v10899, %v10899
    %v10915 = vmul.f32 %v10900, %v10900
    %v10916 = vmul.f32 %v10901, %v10901
    %v10917 = vmul.f32 %v10902, %v10902
    %v10918 = vmul.f32 %v10903, %v10903
    %v10919 = vmul.f32 %v10904, %v10904
    %v10920 = vmul.f32 %v10905, %v10905
    %v10921 = vmul.f32 %v10906, %v10906
    %v10922 = vmul.f32 %v10907, %v10907
    %v10923 = vmul.f32 %v10908, %v10908
    %v10924 = vmul.f32 %v10909, %v10909
    %10925 = vadd.xlane.f32.xlu0 %v10910
    %v10926 = vpop.xlane.xlu0 %10925
    %10927 = vadd.xlane.f32.xlu0 %v10911
    %v10928 = vpop.xlane.xlu0 %10927
    %10929 = vadd.xlane.f32.xlu0 %v10912
    %v10930 = vpop.xlane.xlu0 %10929
    %10931 = vadd.xlane.f32.xlu0 %v10913
    %v10932 = vpop.xlane.xlu0 %10931
    %10933 = vadd.xlane.f32.xlu0 %v10914
    %v10934 = vpop.xlane.xlu0 %10933
    %10935 = vadd.xlane.f32.xlu0 %v10915
    %v10936 = vpop.xlane.xlu0 %10935
    %10937 = vadd.xlane.f32.xlu0 %v10916
    %v10938 = vpop.xlane.xlu0 %10937
    %10939 = vadd.xlane.f32.xlu0 %v10917
    %v10940 = vpop.xlane.xlu0 %10939
    %10941 = vadd.xlane.f32.xlu0 %v10918
    %v10942 = vpop.xlane.xlu0 %10941
    %10943 = vadd.xlane.f32.xlu0 %v10919
    %v10944 = vpop.xlane.xlu0 %10943
    %10945 = vadd.xlane.f32.xlu0 %v10920
    %v10946 = vpop.xlane.xlu0 %10945
    %10947 = vadd.xlane.f32.xlu0 %v10921
    %v10948 = vpop.xlane.xlu0 %10947
    %10949 = vadd.xlane.f32.xlu0 %v10922
    %v10950 = vpop.xlane.xlu0 %10949
    %10951 = vadd.xlane.f32.xlu0 %v10923
    %v10952 = vpop.xlane.xlu0 %10951
    %10953 = vadd.xlane.f32.xlu0 %v10924
    %v10954 = vpop.xlane.xlu0 %10953
    %v10955 = vrsqrt.pop %v10926
    %v10956 = vmul.f32 %v10955, %v10926
    %v10957 = vmul.f32 %v10956, %v10955
    %v10958 = vmul.f32 0.5, %v10957
    %v10959 = vsub.f32 1.5, %v10958
    %v10960 = vmul.f32 %v10955, %v10959
    %v10961 = vmul.f32 %v10926, %v10960
    %vm10962 = vcmp.eq.f32.partialorder %v10926, inf
    %v10963 = vsel %vm10962, %v10926, %v10961
    %vm10964 = vcmp.eq.f32.partialorder %v10926, 0.0
    %v10965 = vand.u32 %v10926, 2147483648
    %v10966 = vsel %vm10964, %v10965, %v10963
    %v10967 = vrsqrt.pop %v10928
    %v10968 = vmul.f32 %v10967, %v10928
    %v10969 = vmul.f32 %v10968, %v10967
    %v10970 = vmul.f32 0.5, %v10969
    %v10971 = vsub.f32 1.5, %v10970
    %v10972 = vmul.f32 %v10967, %v10971
    %v10973 = vmul.f32 %v10928, %v10972
    %vm10974 = vcmp.eq.f32.partialorder %v10928, inf
    %v10975 = vsel %vm10974, %v10928, %v10973
    %vm10976 = vcmp.eq.f32.partialorder %v10928, 0.0
    %v10977 = vand.u32 %v10928, 2147483648
    %v10978 = vsel %vm10976, %v10977, %v10975
    %v10979 = vrsqrt.pop %v10930
    %v10980 = vmul.f32 %v10979, %v10930
    %v10981 = vmul.f32 %v10980, %v10979
    %v10982 = vmul.f32 0.5, %v10981
    %v10983 = vsub.f32 1.5, %v10982
    %v10984 = vmul.f32 %v10979, %v10983
    %v10985 = vmul.f32 %v10930, %v10984
    %vm10986 = vcmp.eq.f32.partialorder %v10930, inf
    %v10987 = vsel %vm10986, %v10930, %v10985
    %vm10988 = vcmp.eq.f32.partialorder %v10930, 0.0
    %v10989 = vand.u32 %v10930, 2147483648
    %v10990 = vsel %vm10988, %v10989, %v10987
    %v10991 = vrsqrt.pop %v10932
    %v10992 = vmul.f32 %v10991, %v10932
    %v10993 = vmul.f32 %v10992, %v10991
    %v10994 = vmul.f32 0.5, %v10993
    %v10995 = vsub.f32 1.5, %v10994
    %v10996 = vmul.f32 %v10991, %v10995
    %v10997 = vmul.f32 %v10932, %v10996
    %vm10998 = vcmp.eq.f32.partialorder %v10932, inf
    %v10999 = vsel %vm10998, %v10932, %v10997
    %vm11000 = vcmp.eq.f32.partialorder %v10932, 0.0
    %v11001 = vand.u32 %v10932, 2147483648
    %v11002 = vsel %vm11000, %v11001, %v10999
    %v11003 = vrsqrt.pop %v10934
    %v11004 = vmul.f32 %v11003, %v10934
    %v11005 = vmul.f32 %v11004, %v11003
    %v11006 = vmul.f32 0.5, %v11005
    %v11007 = vsub.f32 1.5, %v11006
    %v11008 = vmul.f32 %v11003, %v11007
    %v11009 = vmul.f32 %v10934, %v11008
    %vm11010 = vcmp.eq.f32.partialorder %v10934, inf
    %v11011 = vsel %vm11010, %v10934, %v11009
    %vm11012 = vcmp.eq.f32.partialorder %v10934, 0.0
    %v11013 = vand.u32 %v10934, 2147483648
    %v11014 = vsel %vm11012, %v11013, %v11011
    %v11015 = vrsqrt.pop %v10936
    %v11016 = vmul.f32 %v11015, %v10936
    %v11017 = vmul.f32 %v11016, %v11015
    %v11018 = vmul.f32 0.5, %v11017
    %v11019 = vsub.f32 1.5, %v11018
    %v11020 = vmul.f32 %v11015, %v11019
    %v11021 = vmul.f32 %v10936, %v11020
    %vm11022 = vcmp.eq.f32.partialorder %v10936, inf
    %v11023 = vsel %vm11022, %v10936, %v11021
    %vm11024 = vcmp.eq.f32.partialorder %v10936, 0.0
    %v11025 = vand.u32 %v10936, 2147483648
    %v11026 = vsel %vm11024, %v11025, %v11023
    %v11027 = vrsqrt.pop %v10938
    %v11028 = vmul.f32 %v11027, %v10938
    %v11029 = vmul.f32 %v11028, %v11027
    %v11030 = vmul.f32 0.5, %v11029
    %v11031 = vsub.f32 1.5, %v11030
    %v11032 = vmul.f32 %v11027, %v11031
    %v11033 = vmul.f32 %v10938, %v11032
    %vm11034 = vcmp.eq.f32.partialorder %v10938, inf
    %v11035 = vsel %vm11034, %v10938, %v11033
    %vm11036 = vcmp.eq.f32.partialorder %v10938, 0.0
    %v11037 = vand.u32 %v10938, 2147483648
    %v11038 = vsel %vm11036, %v11037, %v11035
    %v11039 = vrsqrt.pop %v10940
    %v11040 = vmul.f32 %v11039, %v10940
    %v11041 = vmul.f32 %v11040, %v11039
    %v11042 = vmul.f32 0.5, %v11041
    %v11043 = vsub.f32 1.5, %v11042
    %v11044 = vmul.f32 %v11039, %v11043
    %v11045 = vmul.f32 %v10940, %v11044
    %vm11046 = vcmp.eq.f32.partialorder %v10940, inf
    %v11047 = vsel %vm11046, %v10940, %v11045
    %vm11048 = vcmp.eq.f32.partialorder %v10940, 0.0
    %v11049 = vand.u32 %v10940, 2147483648
    %v11050 = vsel %vm11048, %v11049, %v11047
    %v11051 = vrsqrt.pop %v10942
    %v11052 = vmul.f32 %v11051, %v10942
    %v11053 = vmul.f32 %v11052, %v11051
    %v11054 = vmul.f32 0.5, %v11053
    %v11055 = vsub.f32 1.5, %v11054
    %v11056 = vmul.f32 %v11051, %v11055
    %v11057 = vmul.f32 %v10942, %v11056
    %vm11058 = vcmp.eq.f32.partialorder %v10942, inf
    %v11059 = vsel %vm11058, %v10942, %v11057
    %vm11060 = vcmp.eq.f32.partialorder %v10942, 0.0
    %v11061 = vand.u32 %v10942, 2147483648
    %v11062 = vsel %vm11060, %v11061, %v11059
    %v11063 = vrsqrt.pop %v10944
    %v11064 = vmul.f32 %v11063, %v10944
    %v11065 = vmul.f32 %v11064, %v11063
    %v11066 = vmul.f32 0.5, %v11065
    %v11067 = vsub.f32 1.5, %v11066
    %v11068 = vmul.f32 %v11063, %v11067
    %v11069 = vmul.f32 %v10944, %v11068
    %vm11070 = vcmp.eq.f32.partialorder %v10944, inf
    %v11071 = vsel %vm11070, %v10944, %v11069
    %vm11072 = vcmp.eq.f32.partialorder %v10944, 0.0
    %v11073 = vand.u32 %v10944, 2147483648
    %v11074 = vsel %vm11072, %v11073, %v11071
    %v11075 = vrsqrt.pop %v10946
    %v11076 = vmul.f32 %v11075, %v10946
    %v11077 = vmul.f32 %v11076, %v11075
    %v11078 = vmul.f32 0.5, %v11077
    %v11079 = vsub.f32 1.5, %v11078
    %v11080 = vmul.f32 %v11075, %v11079
    %v11081 = vmul.f32 %v10946, %v11080
    %vm11082 = vcmp.eq.f32.partialorder %v10946, inf
    %v11083 = vsel %vm11082, %v10946, %v11081
    %vm11084 = vcmp.eq.f32.partialorder %v10946, 0.0
    %v11085 = vand.u32 %v10946, 2147483648
    %v11086 = vsel %vm11084, %v11085, %v11083
    %v11087 = vrsqrt.pop %v10948
    %v11088 = vmul.f32 %v11087, %v10948
    %v11089 = vmul.f32 %v11088, %v11087
    %v11090 = vmul.f32 0.5, %v11089
    %v11091 = vsub.f32 1.5, %v11090
    %v11092 = vmul.f32 %v11087, %v11091
    %v11093 = vmul.f32 %v10948, %v11092
    %vm11094 = vcmp.eq.f32.partialorder %v10948, inf
    %v11095 = vsel %vm11094, %v10948, %v11093
    %vm11096 = vcmp.eq.f32.partialorder %v10948, 0.0
    %v11097 = vand.u32 %v10948, 2147483648
    %v11098 = vsel %vm11096, %v11097, %v11095
    %v11099 = vrsqrt.pop %v10950
    %v11100 = vmul.f32 %v11099, %v10950
    %v11101 = vmul.f32 %v11100, %v11099
    %v11102 = vmul.f32 0.5, %v11101
    %v11103 = vsub.f32 1.5, %v11102
    %v11104 = vmul.f32 %v11099, %v11103
    %v11105 = vmul.f32 %v10950, %v11104
    %vm11106 = vcmp.eq.f32.partialorder %v10950, inf
    %v11107 = vsel %vm11106, %v10950, %v11105
    %vm11108 = vcmp.eq.f32.partialorder %v10950, 0.0
    %v11109 = vand.u32 %v10950, 2147483648
    %v11110 = vsel %vm11108, %v11109, %v11107
    %v11111 = vrsqrt.pop %v10952
    %v11112 = vmul.f32 %v11111, %v10952
    %v11113 = vmul.f32 %v11112, %v11111
    %v11114 = vmul.f32 0.5, %v11113
    %v11115 = vsub.f32 1.5, %v11114
    %v11116 = vmul.f32 %v11111, %v11115
    %v11117 = vmul.f32 %v10952, %v11116
    %vm11118 = vcmp.eq.f32.partialorder %v10952, inf
    %v11119 = vsel %vm11118, %v10952, %v11117
    %vm11120 = vcmp.eq.f32.partialorder %v10952, 0.0
    %v11121 = vand.u32 %v10952, 2147483648
    %v11122 = vsel %vm11120, %v11121, %v11119
    %v11123 = vrsqrt.pop %v10954
    %v11124 = vmul.f32 %v11123, %v10954
    %v11125 = vmul.f32 %v11124, %v11123
    %v11126 = vmul.f32 0.5, %v11125
    %v11127 = vsub.f32 1.5, %v11126
    %v11128 = vmul.f32 %v11123, %v11127
    %v11129 = vmul.f32 %v10954, %v11128
    %vm11130 = vcmp.eq.f32.partialorder %v10954, inf
    %v11131 = vsel %vm11130, %v10954, %v11129
    %vm11132 = vcmp.eq.f32.partialorder %v10954, 0.0
    %v11133 = vand.u32 %v10954, 2147483648
    %v11134 = vsel %vm11132, %v11133, %v11131
    %v11135 = vrcp.pop %v10966
    %v11136 = vmul.f32 %v10966, %v11135
    %v11137 = vsub.f32 1.0, %v11136
    %v11138 = vmul.f32 %v11135, %v11137
    %v11139 = vadd.f32 %v11135, %v11138
    %vm11140 = vweird.f32 %v10966
    %vm11141 = vweird.f32 %v11135
    %vm11142 = vmor %vm11140, %vm11141
    %v11143 = vsel %vm11142, %v11135, %v11139
    %v11144 = vand.u32 2147483647, %v10966
    %vm11145 = vcmp.eq.f32.partialorder %v11144, 8.507059e+37
    %v11146 = vand.u32 %v10966, 2147483648
    %v11147 = vor.u32 1.1754944e-38, %v11146
    %v11148 = vsel %vm11145, %v11147, %v11143
    %v11149 = vmul.f32 %v10711, %v11148
    %v11150 = vrcp.pop %v10978
    %v11151 = vmul.f32 %v10978, %v11150
    %v11152 = vsub.f32 1.0, %v11151
    %v11153 = vmul.f32 %v11150, %v11152
    %v11154 = vadd.f32 %v11150, %v11153
    %vm11155 = vweird.f32 %v10978
    %vm11156 = vweird.f32 %v11150
    %vm11157 = vmor %vm11155, %vm11156
    %v11158 = vsel %vm11157, %v11150, %v11154
    %v11159 = vand.u32 2147483647, %v10978
    %vm11160 = vcmp.eq.f32.partialorder %v11159, 8.507059e+37
    %v11161 = vand.u32 %v10978, 2147483648
    %v11162 = vor.u32 1.1754944e-38, %v11161
    %v11163 = vsel %vm11160, %v11162, %v11158
    %v11164 = vmul.f32 %v10723, %v11163
    %v11165 = vrcp.pop %v10990
    %v11166 = vmul.f32 %v10990, %v11165
    %v11167 = vsub.f32 1.0, %v11166
    %v11168 = vmul.f32 %v11165, %v11167
    %v11169 = vadd.f32 %v11165, %v11168
    %vm11170 = vweird.f32 %v10990
    %vm11171 = vweird.f32 %v11165
    %vm11172 = vmor %vm11170, %vm11171
    %v11173 = vsel %vm11172, %v11165, %v11169
    %v11174 = vand.u32 2147483647, %v10990
    %vm11175 = vcmp.eq.f32.partialorder %v11174, 8.507059e+37
    %v11176 = vand.u32 %v10990, 2147483648
    %v11177 = vor.u32 1.1754944e-38, %v11176
    %v11178 = vsel %vm11175, %v11177, %v11173
    %v11179 = vmul.f32 %v10735, %v11178
    %v11180 = vrcp.pop %v11002
    %v11181 = vmul.f32 %v11002, %v11180
    %v11182 = vsub.f32 1.0, %v11181
    %v11183 = vmul.f32 %v11180, %v11182
    %v11184 = vadd.f32 %v11180, %v11183
    %vm11185 = vweird.f32 %v11002
    %vm11186 = vweird.f32 %v11180
    %vm11187 = vmor %vm11185, %vm11186
    %v11188 = vsel %vm11187, %v11180, %v11184
    %v11189 = vand.u32 2147483647, %v11002
    %vm11190 = vcmp.eq.f32.partialorder %v11189, 8.507059e+37
    %v11191 = vand.u32 %v11002, 2147483648
    %v11192 = vor.u32 1.1754944e-38, %v11191
    %v11193 = vsel %vm11190, %v11192, %v11188
    %v11194 = vmul.f32 %v10747, %v11193
    %v11195 = vrcp.pop %v11014
    %v11196 = vmul.f32 %v11014, %v11195
    %v11197 = vsub.f32 1.0, %v11196
    %v11198 = vmul.f32 %v11195, %v11197
    %v11199 = vadd.f32 %v11195, %v11198
    %vm11200 = vweird.f32 %v11014
    %vm11201 = vweird.f32 %v11195
    %vm11202 = vmor %vm11200, %vm11201
    %v11203 = vsel %vm11202, %v11195, %v11199
    %v11204 = vand.u32 2147483647, %v11014
    %vm11205 = vcmp.eq.f32.partialorder %v11204, 8.507059e+37
    %v11206 = vand.u32 %v11014, 2147483648
    %v11207 = vor.u32 1.1754944e-38, %v11206
    %v11208 = vsel %vm11205, %v11207, %v11203
    %v11209 = vmul.f32 %v10759, %v11208
    %v11210 = vrcp.pop %v11026
    %v11211 = vmul.f32 %v11026, %v11210
    %v11212 = vsub.f32 1.0, %v11211
    %v11213 = vmul.f32 %v11210, %v11212
    %v11214 = vadd.f32 %v11210, %v11213
    %vm11215 = vweird.f32 %v11026
    %vm11216 = vweird.f32 %v11210
    %vm11217 = vmor %vm11215, %vm11216
    %v11218 = vsel %vm11217, %v11210, %v11214
    %v11219 = vand.u32 2147483647, %v11026
    %vm11220 = vcmp.eq.f32.partialorder %v11219, 8.507059e+37
    %v11221 = vand.u32 %v11026, 2147483648
    %v11222 = vor.u32 1.1754944e-38, %v11221
    %v11223 = vsel %vm11220, %v11222, %v11218
    %v11224 = vmul.f32 %v10771, %v11223
    %v11225 = vrcp.pop %v11038
    %v11226 = vmul.f32 %v11038, %v11225
    %v11227 = vsub.f32 1.0, %v11226
    %v11228 = vmul.f32 %v11225, %v11227
    %v11229 = vadd.f32 %v11225, %v11228
    %vm11230 = vweird.f32 %v11038
    %vm11231 = vweird.f32 %v11225
    %vm11232 = vmor %vm11230, %vm11231
    %v11233 = vsel %vm11232, %v11225, %v11229
    %v11234 = vand.u32 2147483647, %v11038
    %vm11235 = vcmp.eq.f32.partialorder %v11234, 8.507059e+37
    %v11236 = vand.u32 %v11038, 2147483648
    %v11237 = vor.u32 1.1754944e-38, %v11236
    %v11238 = vsel %vm11235, %v11237, %v11233
    %v11239 = vmul.f32 %v10783, %v11238
    %v11240 = vrcp.pop %v11050
    %v11241 = vmul.f32 %v11050, %v11240
    %v11242 = vsub.f32 1.0, %v11241
    %v11243 = vmul.f32 %v11240, %v11242
    %v11244 = vadd.f32 %v11240, %v11243
    %vm11245 = vweird.f32 %v11050
    %vm11246 = vweird.f32 %v11240
    %vm11247 = vmor %vm11245, %vm11246
    %v11248 = vsel %vm11247, %v11240, %v11244
    %v11249 = vand.u32 2147483647, %v11050
    %vm11250 = vcmp.eq.f32.partialorder %v11249, 8.507059e+37
    %v11251 = vand.u32 %v11050, 2147483648
    %v11252 = vor.u32 1.1754944e-38, %v11251
    %v11253 = vsel %vm11250, %v11252, %v11248
    %v11254 = vmul.f32 %v10795, %v11253
    %v11255 = vrcp.pop %v11062
    %v11256 = vmul.f32 %v11062, %v11255
    %v11257 = vsub.f32 1.0, %v11256
    %v11258 = vmul.f32 %v11255, %v11257
    %v11259 = vadd.f32 %v11255, %v11258
    %vm11260 = vweird.f32 %v11062
    %vm11261 = vweird.f32 %v11255
    %vm11262 = vmor %vm11260, %vm11261
    %v11263 = vsel %vm11262, %v11255, %v11259
    %v11264 = vand.u32 2147483647, %v11062
    %vm11265 = vcmp.eq.f32.partialorder %v11264, 8.507059e+37
    %v11266 = vand.u32 %v11062, 2147483648
    %v11267 = vor.u32 1.1754944e-38, %v11266
    %v11268 = vsel %vm11265, %v11267, %v11263
    %v11269 = vmul.f32 %v10807, %v11268
    %v11270 = vrcp.pop %v11074
    %v11271 = vmul.f32 %v11074, %v11270
    %v11272 = vsub.f32 1.0, %v11271
    %v11273 = vmul.f32 %v11270, %v11272
    %v11274 = vadd.f32 %v11270, %v11273
    %vm11275 = vweird.f32 %v11074
    %vm11276 = vweird.f32 %v11270
    %vm11277 = vmor %vm11275, %vm11276
    %v11278 = vsel %vm11277, %v11270, %v11274
    %v11279 = vand.u32 2147483647, %v11074
    %vm11280 = vcmp.eq.f32.partialorder %v11279, 8.507059e+37
    %v11281 = vand.u32 %v11074, 2147483648
    %v11282 = vor.u32 1.1754944e-38, %v11281
    %v11283 = vsel %vm11280, %v11282, %v11278
    %v11284 = vmul.f32 %v10819, %v11283
    %v11285 = vrcp.pop %v11086
    %v11286 = vmul.f32 %v11086, %v11285
    %v11287 = vsub.f32 1.0, %v11286
    %v11288 = vmul.f32 %v11285, %v11287
    %v11289 = vadd.f32 %v11285, %v11288
    %vm11290 = vweird.f32 %v11086
    %vm11291 = vweird.f32 %v11285
    %vm11292 = vmor %vm11290, %vm11291
    %v11293 = vsel %vm11292, %v11285, %v11289
    %v11294 = vand.u32 2147483647, %v11086
    %vm11295 = vcmp.eq.f32.partialorder %v11294, 8.507059e+37
    %v11296 = vand.u32 %v11086, 2147483648
    %v11297 = vor.u32 1.1754944e-38, %v11296
    %v11298 = vsel %vm11295, %v11297, %v11293
    %v11299 = vmul.f32 %v10831, %v11298
    %v11300 = vrcp.pop %v11098
    %v11301 = vmul.f32 %v11098, %v11300
    %v11302 = vsub.f32 1.0, %v11301
    %v11303 = vmul.f32 %v11300, %v11302
    %v11304 = vadd.f32 %v11300, %v11303
    %vm11305 = vweird.f32 %v11098
    %vm11306 = vweird.f32 %v11300
    %vm11307 = vmor %vm11305, %vm11306
    %v11308 = vsel %vm11307, %v11300, %v11304
    %v11309 = vand.u32 2147483647, %v11098
    %vm11310 = vcmp.eq.f32.partialorder %v11309, 8.507059e+37
    %v11311 = vand.u32 %v11098, 2147483648
    %v11312 = vor.u32 1.1754944e-38, %v11311
    %v11313 = vsel %vm11310, %v11312, %v11308
    %v11314 = vmul.f32 %v10843, %v11313
    %v11315 = vrcp.pop %v11110
    %v11316 = vmul.f32 %v11110, %v11315
    %v11317 = vsub.f32 1.0, %v11316
    %v11318 = vmul.f32 %v11315, %v11317
    %v11319 = vadd.f32 %v11315, %v11318
    %vm11320 = vweird.f32 %v11110
    %vm11321 = vweird.f32 %v11315
    %vm11322 = vmor %vm11320, %vm11321
    %v11323 = vsel %vm11322, %v11315, %v11319
    %v11324 = vand.u32 2147483647, %v11110
    %vm11325 = vcmp.eq.f32.partialorder %v11324, 8.507059e+37
    %v11326 = vand.u32 %v11110, 2147483648
    %v11327 = vor.u32 1.1754944e-38, %v11326
    %v11328 = vsel %vm11325, %v11327, %v11323
    %v11329 = vmul.f32 %v10855, %v11328
    %v11330 = vrcp.pop %v11122
    %v11331 = vmul.f32 %v11122, %v11330
    %v11332 = vsub.f32 1.0, %v11331
    %v11333 = vmul.f32 %v11330, %v11332
    %v11334 = vadd.f32 %v11330, %v11333
    %vm11335 = vweird.f32 %v11122
    %vm11336 = vweird.f32 %v11330
    %vm11337 = vmor %vm11335, %vm11336
    %v11338 = vsel %vm11337, %v11330, %v11334
    %v11339 = vand.u32 2147483647, %v11122
    %vm11340 = vcmp.eq.f32.partialorder %v11339, 8.507059e+37
    %v11341 = vand.u32 %v11122, 2147483648
    %v11342 = vor.u32 1.1754944e-38, %v11341
    %v11343 = vsel %vm11340, %v11342, %v11338
    %v11344 = vmul.f32 %v10867, %v11343
    %v11345 = vrcp.pop %v11134
    %v11346 = vmul.f32 %v11134, %v11345
    %v11347 = vsub.f32 1.0, %v11346
    %v11348 = vmul.f32 %v11345, %v11347
    %v11349 = vadd.f32 %v11345, %v11348
    %vm11350 = vweird.f32 %v11134
    %vm11351 = vweird.f32 %v11345
    %vm11352 = vmor %vm11350, %vm11351
    %v11353 = vsel %vm11352, %v11345, %v11349
    %v11354 = vand.u32 2147483647, %v11134
    %vm11355 = vcmp.eq.f32.partialorder %v11354, 8.507059e+37
    %v11356 = vand.u32 %v11134, 2147483648
    %v11357 = vor.u32 1.1754944e-38, %v11356
    %v11358 = vsel %vm11355, %v11357, %v11353
    %v11359 = vmul.f32 %v10879, %v11358
    %v11360 = vadd.f32 %v11149, 0.2
    %v11361 = vadd.f32 %v11164, 0.2
    %v11362 = vadd.f32 %v11179, 0.2
    %v11363 = vadd.f32 %v11194, 0.2
    %v11364 = vadd.f32 %v11209, 0.2
    %v11365 = vadd.f32 %v11224, 0.2
    %v11366 = vadd.f32 %v11239, 0.2
    %v11367 = vadd.f32 %v11254, 0.2
    %v11368 = vadd.f32 %v11269, 0.2
    %v11369 = vadd.f32 %v11284, 0.2
    %v11370 = vadd.f32 %v11299, 0.2
    %v11371 = vadd.f32 %v11314, 0.2
    %v11372 = vadd.f32 %v11329, 0.2
    %v11373 = vadd.f32 %v11344, 0.2
    %v11374 = vadd.f32 %v11359, 0.2
    %v11375 = vxor.u32 %v11360, 2147483648
    %v11376 = vxor.u32 %v11361, 2147483648
    %v11377 = vxor.u32 %v11362, 2147483648
    %v11378 = vxor.u32 %v11363, 2147483648
    %v11379 = vxor.u32 %v11364, 2147483648
    %v11380 = vxor.u32 %v11365, 2147483648
    %v11381 = vxor.u32 %v11366, 2147483648
    %v11382 = vxor.u32 %v11367, 2147483648
    %v11383 = vxor.u32 %v11368, 2147483648
    %v11384 = vxor.u32 %v11369, 2147483648
    %v11385 = vxor.u32 %v11370, 2147483648
    %v11386 = vxor.u32 %v11371, 2147483648
    %v11387 = vxor.u32 %v11372, 2147483648
    %v11388 = vxor.u32 %v11373, 2147483648
    %v11389 = vxor.u32 %v11374, 2147483648
    %v11390 = vmul.f32 %v11375, 1.442695
    %v11391 = vpow.pop %v11390
    %v11392 = vmul.f32 %v11376, 1.442695
    %v11393 = vpow.pop %v11392
    %v11394 = vmul.f32 %v11377, 1.442695
    %v11395 = vpow.pop %v11394
    %v11396 = vmul.f32 %v11378, 1.442695
    %v11397 = vpow.pop %v11396
    %v11398 = vmul.f32 %v11379, 1.442695
    %v11399 = vpow.pop %v11398
    %v11400 = vmul.f32 %v11380, 1.442695
    %v11401 = vpow.pop %v11400
    %v11402 = vmul.f32 %v11381, 1.442695
    %v11403 = vpow.pop %v11402
    %v11404 = vmul.f32 %v11382, 1.442695
    %v11405 = vpow.pop %v11404
    %v11406 = vmul.f32 %v11383, 1.442695
    %v11407 = vpow.pop %v11406
    %v11408 = vmul.f32 %v11384, 1.442695
    %v11409 = vpow.pop %v11408
    %v11410 = vmul.f32 %v11385, 1.442695
    %v11411 = vpow.pop %v11410
    %v11412 = vmul.f32 %v11386, 1.442695
    %v11413 = vpow.pop %v11412
    %v11414 = vmul.f32 %v11387, 1.442695
    %v11415 = vpow.pop %v11414
    %v11416 = vmul.f32 %v11388, 1.442695
    %v11417 = vpow.pop %v11416
    %v11418 = vmul.f32 %v11389, 1.442695
    %v11419 = vpow.pop %v11418
    %v11420 = vadd.f32 %v11391, 1.0
    %v11421 = vadd.f32 %v11393, 1.0
    %v11422 = vadd.f32 %v11395, 1.0
    %v11423 = vadd.f32 %v11397, 1.0
    %v11424 = vadd.f32 %v11399, 1.0
    %v11425 = vadd.f32 %v11401, 1.0
    %v11426 = vadd.f32 %v11403, 1.0
    %v11427 = vadd.f32 %v11405, 1.0
    %v11428 = vadd.f32 %v11407, 1.0
    %v11429 = vadd.f32 %v11409, 1.0
    %v11430 = vadd.f32 %v11411, 1.0
    %v11431 = vadd.f32 %v11413, 1.0
    %v11432 = vadd.f32 %v11415, 1.0
    %v11433 = vadd.f32 %v11417, 1.0
    %v11434 = vadd.f32 %v11419, 1.0
    %v11435 = vrcp.pop %v11420
    %v11436 = vmul.f32 %v11420, %v11435
    %v11437 = vsub.f32 1.0, %v11436
    %v11438 = vmul.f32 %v11435, %v11437
    %v11439 = vadd.f32 %v11435, %v11438
    %vm11440 = vweird.f32 %v11420
    %vm11441 = vweird.f32 %v11435
    %vm11442 = vmor %vm11440, %vm11441
    %v11443 = vsel %vm11442, %v11435, %v11439
    %v11444 = vand.u32 2147483647, %v11420
    %vm11445 = vcmp.eq.f32.partialorder %v11444, 8.507059e+37
    %v11446 = vand.u32 %v11420, 2147483648
    %v11447 = vor.u32 1.1754944e-38, %v11446
    %v11448 = vsel %vm11445, %v11447, %v11443
    %v11449 = vmul.f32 1.0, %v11448
    %v11450 = vrcp.pop %v11421
    %v11451 = vmul.f32 %v11421, %v11450
    %v11452 = vsub.f32 1.0, %v11451
    %v11453 = vmul.f32 %v11450, %v11452
    %v11454 = vadd.f32 %v11450, %v11453
    %vm11455 = vweird.f32 %v11421
    %vm11456 = vweird.f32 %v11450
    %vm11457 = vmor %vm11455, %vm11456
    %v11458 = vsel %vm11457, %v11450, %v11454
    %v11459 = vand.u32 2147483647, %v11421
    %vm11460 = vcmp.eq.f32.partialorder %v11459, 8.507059e+37
    %v11461 = vand.u32 %v11421, 2147483648
    %v11462 = vor.u32 1.1754944e-38, %v11461
    %v11463 = vsel %vm11460, %v11462, %v11458
    %v11464 = vmul.f32 1.0, %v11463
    %v11465 = vrcp.pop %v11422
    %v11466 = vmul.f32 %v11422, %v11465
    %v11467 = vsub.f32 1.0, %v11466
    %v11468 = vmul.f32 %v11465, %v11467
    %v11469 = vadd.f32 %v11465, %v11468
    %vm11470 = vweird.f32 %v11422
    %vm11471 = vweird.f32 %v11465
    %vm11472 = vmor %vm11470, %vm11471
    %v11473 = vsel %vm11472, %v11465, %v11469
    %v11474 = vand.u32 2147483647, %v11422
    %vm11475 = vcmp.eq.f32.partialorder %v11474, 8.507059e+37
    %v11476 = vand.u32 %v11422, 2147483648
    %v11477 = vor.u32 1.1754944e-38, %v11476
    %v11478 = vsel %vm11475, %v11477, %v11473
    %v11479 = vmul.f32 1.0, %v11478
    %v11480 = vrcp.pop %v11423
    %v11481 = vmul.f32 %v11423, %v11480
    %v11482 = vsub.f32 1.0, %v11481
    %v11483 = vmul.f32 %v11480, %v11482
    %v11484 = vadd.f32 %v11480, %v11483
    %vm11485 = vweird.f32 %v11423
    %vm11486 = vweird.f32 %v11480
    %vm11487 = vmor %vm11485, %vm11486
    %v11488 = vsel %vm11487, %v11480, %v11484
    %v11489 = vand.u32 2147483647, %v11423
    %vm11490 = vcmp.eq.f32.partialorder %v11489, 8.507059e+37
    %v11491 = vand.u32 %v11423, 2147483648
    %v11492 = vor.u32 1.1754944e-38, %v11491
    %v11493 = vsel %vm11490, %v11492, %v11488
    %v11494 = vmul.f32 1.0, %v11493
    %v11495 = vrcp.pop %v11424
    %v11496 = vmul.f32 %v11424, %v11495
    %v11497 = vsub.f32 1.0, %v11496
    %v11498 = vmul.f32 %v11495, %v11497
    %v11499 = vadd.f32 %v11495, %v11498
    %vm11500 = vweird.f32 %v11424
    %vm11501 = vweird.f32 %v11495
    %vm11502 = vmor %vm11500, %vm11501
    %v11503 = vsel %vm11502, %v11495, %v11499
    %v11504 = vand.u32 2147483647, %v11424
    %vm11505 = vcmp.eq.f32.partialorder %v11504, 8.507059e+37
    %v11506 = vand.u32 %v11424, 2147483648
    %v11507 = vor.u32 1.1754944e-38, %v11506
    %v11508 = vsel %vm11505, %v11507, %v11503
    %v11509 = vmul.f32 1.0, %v11508
    %v11510 = vrcp.pop %v11425
    %v11511 = vmul.f32 %v11425, %v11510
    %v11512 = vsub.f32 1.0, %v11511
    %v11513 = vmul.f32 %v11510, %v11512
    %v11514 = vadd.f32 %v11510, %v11513
    %vm11515 = vweird.f32 %v11425
    %vm11516 = vweird.f32 %v11510
    %vm11517 = vmor %vm11515, %vm11516
    %v11518 = vsel %vm11517, %v11510, %v11514
    %v11519 = vand.u32 2147483647, %v11425
    %vm11520 = vcmp.eq.f32.partialorder %v11519, 8.507059e+37
    %v11521 = vand.u32 %v11425, 2147483648
    %v11522 = vor.u32 1.1754944e-38, %v11521
    %v11523 = vsel %vm11520, %v11522, %v11518
    %v11524 = vmul.f32 1.0, %v11523
    %v11525 = vrcp.pop %v11426
    %v11526 = vmul.f32 %v11426, %v11525
    %v11527 = vsub.f32 1.0, %v11526
    %v11528 = vmul.f32 %v11525, %v11527
    %v11529 = vadd.f32 %v11525, %v11528
    %vm11530 = vweird.f32 %v11426
    %vm11531 = vweird.f32 %v11525
    %vm11532 = vmor %vm11530, %vm11531
    %v11533 = vsel %vm11532, %v11525, %v11529
    %v11534 = vand.u32 2147483647, %v11426
    %vm11535 = vcmp.eq.f32.partialorder %v11534, 8.507059e+37
    %v11536 = vand.u32 %v11426, 2147483648
    %v11537 = vor.u32 1.1754944e-38, %v11536
    %v11538 = vsel %vm11535, %v11537, %v11533
    %v11539 = vmul.f32 1.0, %v11538
    %v11540 = vrcp.pop %v11427
    %v11541 = vmul.f32 %v11427, %v11540
    %v11542 = vsub.f32 1.0, %v11541
    %v11543 = vmul.f32 %v11540, %v11542
    %v11544 = vadd.f32 %v11540, %v11543
    %vm11545 = vweird.f32 %v11427
    %vm11546 = vweird.f32 %v11540
    %vm11547 = vmor %vm11545, %vm11546
    %v11548 = vsel %vm11547, %v11540, %v11544
    %v11549 = vand.u32 2147483647, %v11427
    %vm11550 = vcmp.eq.f32.partialorder %v11549, 8.507059e+37
    %v11551 = vand.u32 %v11427, 2147483648
    %v11552 = vor.u32 1.1754944e-38, %v11551
    %v11553 = vsel %vm11550, %v11552, %v11548
    %v11554 = vmul.f32 1.0, %v11553
    %v11555 = vrcp.pop %v11428
    %v11556 = vmul.f32 %v11428, %v11555
    %v11557 = vsub.f32 1.0, %v11556
    %v11558 = vmul.f32 %v11555, %v11557
    %v11559 = vadd.f32 %v11555, %v11558
    %vm11560 = vweird.f32 %v11428
    %vm11561 = vweird.f32 %v11555
    %vm11562 = vmor %vm11560, %vm11561
    %v11563 = vsel %vm11562, %v11555, %v11559
    %v11564 = vand.u32 2147483647, %v11428
    %vm11565 = vcmp.eq.f32.partialorder %v11564, 8.507059e+37
    %v11566 = vand.u32 %v11428, 2147483648
    %v11567 = vor.u32 1.1754944e-38, %v11566
    %v11568 = vsel %vm11565, %v11567, %v11563
    %v11569 = vmul.f32 1.0, %v11568
    %v11570 = vrcp.pop %v11429
    %v11571 = vmul.f32 %v11429, %v11570
    %v11572 = vsub.f32 1.0, %v11571
    %v11573 = vmul.f32 %v11570, %v11572
    %v11574 = vadd.f32 %v11570, %v11573
    %vm11575 = vweird.f32 %v11429
    %vm11576 = vweird.f32 %v11570
    %vm11577 = vmor %vm11575, %vm11576
    %v11578 = vsel %vm11577, %v11570, %v11574
    %v11579 = vand.u32 2147483647, %v11429
    %vm11580 = vcmp.eq.f32.partialorder %v11579, 8.507059e+37
    %v11581 = vand.u32 %v11429, 2147483648
    %v11582 = vor.u32 1.1754944e-38, %v11581
    %v11583 = vsel %vm11580, %v11582, %v11578
    %v11584 = vmul.f32 1.0, %v11583
    %v11585 = vrcp.pop %v11430
    %v11586 = vmul.f32 %v11430, %v11585
    %v11587 = vsub.f32 1.0, %v11586
    %v11588 = vmul.f32 %v11585, %v11587
    %v11589 = vadd.f32 %v11585, %v11588
    %vm11590 = vweird.f32 %v11430
    %vm11591 = vweird.f32 %v11585
    %vm11592 = vmor %vm11590, %vm11591
    %v11593 = vsel %vm11592, %v11585, %v11589
    %v11594 = vand.u32 2147483647, %v11430
    %vm11595 = vcmp.eq.f32.partialorder %v11594, 8.507059e+37
    %v11596 = vand.u32 %v11430, 2147483648
    %v11597 = vor.u32 1.1754944e-38, %v11596
    %v11598 = vsel %vm11595, %v11597, %v11593
    %v11599 = vmul.f32 1.0, %v11598
    %v11600 = vrcp.pop %v11431
    %v11601 = vmul.f32 %v11431, %v11600
    %v11602 = vsub.f32 1.0, %v11601
    %v11603 = vmul.f32 %v11600, %v11602
    %v11604 = vadd.f32 %v11600, %v11603
    %vm11605 = vweird.f32 %v11431
    %vm11606 = vweird.f32 %v11600
    %vm11607 = vmor %vm11605, %vm11606
    %v11608 = vsel %vm11607, %v11600, %v11604
    %v11609 = vand.u32 2147483647, %v11431
    %vm11610 = vcmp.eq.f32.partialorder %v11609, 8.507059e+37
    %v11611 = vand.u32 %v11431, 2147483648
    %v11612 = vor.u32 1.1754944e-38, %v11611
    %v11613 = vsel %vm11610, %v11612, %v11608
    %v11614 = vmul.f32 1.0, %v11613
    %v11615 = vrcp.pop %v11432
    %v11616 = vmul.f32 %v11432, %v11615
    %v11617 = vsub.f32 1.0, %v11616
    %v11618 = vmul.f32 %v11615, %v11617
    %v11619 = vadd.f32 %v11615, %v11618
    %vm11620 = vweird.f32 %v11432
    %vm11621 = vweird.f32 %v11615
    %vm11622 = vmor %vm11620, %vm11621
    %v11623 = vsel %vm11622, %v11615, %v11619
    %v11624 = vand.u32 2147483647, %v11432
    %vm11625 = vcmp.eq.f32.partialorder %v11624, 8.507059e+37
    %v11626 = vand.u32 %v11432, 2147483648
    %v11627 = vor.u32 1.1754944e-38, %v11626
    %v11628 = vsel %vm11625, %v11627, %v11623
    %v11629 = vmul.f32 1.0, %v11628
    %v11630 = vrcp.pop %v11433
    %v11631 = vmul.f32 %v11433, %v11630
    %v11632 = vsub.f32 1.0, %v11631
    %v11633 = vmul.f32 %v11630, %v11632
    %v11634 = vadd.f32 %v11630, %v11633
    %vm11635 = vweird.f32 %v11433
    %vm11636 = vweird.f32 %v11630
    %vm11637 = vmor %vm11635, %vm11636
    %v11638 = vsel %vm11637, %v11630, %v11634
    %v11639 = vand.u32 2147483647, %v11433
    %vm11640 = vcmp.eq.f32.partialorder %v11639, 8.507059e+37
    %v11641 = vand.u32 %v11433, 2147483648
    %v11642 = vor.u32 1.1754944e-38, %v11641
    %v11643 = vsel %vm11640, %v11642, %v11638
    %v11644 = vmul.f32 1.0, %v11643
    %v11645 = vrcp.pop %v11434
    %v11646 = vmul.f32 %v11434, %v11645
    %v11647 = vsub.f32 1.0, %v11646
    %v11648 = vmul.f32 %v11645, %v11647
    %v11649 = vadd.f32 %v11645, %v11648
    %vm11650 = vweird.f32 %v11434
    %vm11651 = vweird.f32 %v11645
    %vm11652 = vmor %vm11650, %vm11651
    %v11653 = vsel %vm11652, %v11645, %v11649
    %v11654 = vand.u32 2147483647, %v11434
    %vm11655 = vcmp.eq.f32.partialorder %v11654, 8.507059e+37
    %v11656 = vand.u32 %v11434, 2147483648
    %v11657 = vor.u32 1.1754944e-38, %v11656
    %v11658 = vsel %vm11655, %v11657, %v11653
    %v11659 = vmul.f32 1.0, %v11658
    %v11660 = vsub.f32 %v11449, 0.55
    %v11661 = vsub.f32 %v11464, 0.55
    %v11662 = vsub.f32 %v11479, 0.55
    %v11663 = vsub.f32 %v11494, 0.55
    %v11664 = vsub.f32 %v11509, 0.55
    %v11665 = vsub.f32 %v11524, 0.55
    %v11666 = vsub.f32 %v11539, 0.55
    %v11667 = vsub.f32 %v11554, 0.55
    %v11668 = vsub.f32 %v11569, 0.55
    %v11669 = vsub.f32 %v11584, 0.55
    %v11670 = vsub.f32 %v11599, 0.55
    %v11671 = vsub.f32 %v11614, 0.55
    %v11672 = vsub.f32 %v11629, 0.55
    %v11673 = vsub.f32 %v11644, 0.55
    %v11674 = vsub.f32 %v11659, 0.55
    %v11675 = vmul.f32 %v11660, 2.2
    %v11676 = vmul.f32 %v11661, 2.2
    %v11677 = vmul.f32 %v11662, 2.2
    %v11678 = vmul.f32 %v11663, 2.2
    %v11679 = vmul.f32 %v11664, 2.2
    %v11680 = vmul.f32 %v11665, 2.2
    %v11681 = vmul.f32 %v11666, 2.2
    %v11682 = vmul.f32 %v11667, 2.2
    %v11683 = vmul.f32 %v11668, 2.2
    %v11684 = vmul.f32 %v11669, 2.2
    %v11685 = vmul.f32 %v11670, 2.2
    %v11686 = vmul.f32 %v11671, 2.2
    %v11687 = vmul.f32 %v11672, 2.2
    %v11688 = vmul.f32 %v11673, 2.2
    %v11689 = vmul.f32 %v11674, 2.2
    %v11690 = vld [vmem:[%s16] sm:$0xff]
    %v11691 = vld [vmem:[#allocation2] sm:$0x1]
    %v11693 = vperm.slane %v11691, 0
    %vm11695 = vcmask 982016
    %v11697 = vsel %vm11695, %v11690, 0
    %11699 = vmatpush.msra.mxu0 0.0
    %11700 = vmatpush.msra.mxu0 %v11689
    %11701 = vmatpush.msra.mxu0 %v11688
    %11702 = vmatpush.msra.mxu0 %v11687
    %11703 = vmatpush.msra.mxu0 %v11686
    %11704 = vmatpush.msra.mxu0 %v11685
    %11705 = vmatpush.msra.mxu0 %v11684
    %11706 = vmatpush.msra.mxu0 %v11683
    %11707 = vmatpush.msra.mxu0 %v11682
    %11708 = vmatpush.msra.mxu0 %v11681
    %11709 = vmatpush.msra.mxu0 %v11680
    %11710 = vmatpush.msra.mxu0 %v11679
    %11711 = vmatpush.msra.mxu0 %v11678
    %11712 = vmatpush.msra.mxu0 %v11677
    %11713 = vmatpush.msra.mxu0 %v11676
    %11714 = vmatpush.msra.mxu0 %v11675
    %11715 = vmatmul.f32.gmra.mxu0 %v11697
    %v11716 = vpop.f32.mrf.mxu0
    %v11717 = vadd.f32 %v11693, %v11716
    %11718 = vdwg.mxu0
    %vm11719 = vcmask 7168
    %11720 = vst.msk [vmem:[%s18] sm:$0xff] %vm11719, %v11717
    // Predicated region
    $region114: #{tpu_custom_call.1} parent=1 // pred_check
      _
    $region115: #{tpu_custom_call.1} parent=1 // pred_check_branch
      %11722 = sbr.rel (0) target = $region117
    $region116: #{tpu_custom_call.1} parent=1 // pred_region
      _
    $region117: #{tpu_custom_call.1} parent=1 // pred_fallthru
      _
    // Predicated region
    $region118: #{tpu_custom_call.1} parent=1 // pred_check
      _
    $region119: #{tpu_custom_call.1} parent=1 // pred_check_branch
      %11724 = sbr.rel (0) target = $region121
    $region120: #{tpu_custom_call.1} parent=1 // pred_region
      _
    $region121: #{tpu_custom_call.1} parent=1 // pred_fallthru
      _
    %11725 = vsyncpa [#allocation4], 1
    %11726 = vsyncpa [#allocation6], 1
    %11727 = vsyncpa [#allocation9], 1
    %11728 = vsyncpa [#allocation12], 1
    %11729 = vsyncpa [#allocation15], 1
    %11730 = vsyncpa [#allocation18], 1

</llo_original>
